<compile_context>
chip_gen: v7x
topology: tpu7x:2x2x1
jax: 0.10.0
libtpu: 0.0.40
codegen_flags: <defaults>
</compile_context>

<pallas_src>
import numpy as np

import jax
import jax.numpy as jnp
from jax.experimental import pallas as pl
from jax.experimental.pallas import tpu as pltpu


# ------------------------------ fused kernel --------------------------------

def _dqn_fused_kernel(x_ref,
                      w1_ref, b1_ref,      # conv1 (space-to-depth / parity form)
                      w2_ref, b2_ref,      # conv2 (per-tap stacks)
                      w3_ref, b3_ref,      # conv3 (per-tap stacks)
                      wl1_ref, bl1_ref,    # linear1 (per pooled position)
                      wl2_ref, bl2_ref,    # linear2
                      wl3_ref, bl3_ref,    # linear3 (output padded to 128)
                      o_ref,
                      pad1_ref, pad2_ref):
    f32 = jnp.float32
    bf16 = jnp.bfloat16
    TB = x_ref.shape[0]

    x = x_ref[...]                                     # (TB, 9, 9, 64) f32

    # ---- conv1: 8x8, stride 4, pad 1 ---------------------------------------
    # Input was space-to-depth-8'ed in the wrapper; conv1 weights were repacked
    # on the host so the output lands directly in a parity-grouped layout:
    #   channel = ph*32 + pw*16 + co   <->   conv1 output pixel (2i+ph, 2j+pw).
    acc1 = jnp.zeros((TB * 64, 64), f32)
    for di in range(2):
        for dj in range(2):
            slab = x[:, di:di + 8, dj:dj + 8, :].reshape(TB * 64, 64)
            acc1 = acc1 + jnp.dot(slab.astype(bf16), w1_ref[di * 2 + dj],
                                  preferred_element_type=f32)
    a1 = jnp.maximum(acc1 + b1_ref[...], 0.0)          # (TB*64, 64) f32

    # Zero-padded (conv2 padding=1) parity-grouped conv1 output, kept in VMEM.
    pad1_ref[...] = jnp.zeros(pad1_ref.shape, pad1_ref.dtype)
    pad1_ref[:, 1:9, 1:9, :] = a1.reshape(TB, 8, 8, 64)
    a1p = pad1_ref[...]                                # (TB, 10, 10, 64)

    # ---- conv2: 4x4, stride 2, pad 1 (sum over taps of Cin=16 matmuls) -----
    off = (-1, 0, 0, 1)                                # spatial block offset per tap
    acc2 = jnp.zeros((TB * 64, 32), f32)
    for kh in range(4):
        ph = (kh + 1) % 2
        for kw in range(4):
            pw = (kw + 1) % 2
            cs = ph * 32 + pw * 16                     # parity group lane offset
            sl = a1p[:, 1 + off[kh]:9 + off[kh],
                        1 + off[kw]:9 + off[kw], cs:cs + 16]
            acc2 = acc2 + jnp.dot(sl.reshape(TB * 64, 16).astype(bf16),
                                  w2_ref[kh * 4 + kw],
                                  preferred_element_type=f32)
    a2 = jnp.maximum(acc2 + b2_ref[...], 0.0)          # (TB*64, 32)

    pad2_ref[...] = jnp.zeros(pad2_ref.shape, pad2_ref.dtype)
    pad2_ref[:, 1:9, 1:9, :] = a2.reshape(TB, 8, 8, 32)
    a2p = pad2_ref[...]                                # (TB, 10, 10, 32)

    # ---- conv3: 3x3, stride 1, pad 1 (sum over taps of Cin=32 matmuls) -----
    acc3 = jnp.zeros((TB * 64, 64), f32)
    for kh in range(3):
        for kw in range(3):
            sl = a2p[:, kh:kh + 8, kw:kw + 8, :].reshape(TB * 64, 32)
            acc3 = acc3 + jnp.dot(sl.astype(bf16), w3_ref[kh * 3 + kw],
                                  preferred_element_type=f32)
    a3 = jnp.maximum(acc3 + b3_ref[...], 0.0).reshape(TB, 8, 8, 64)

    # ---- 2x2 maxpool fused with linear1 ------------------------------------
    # The NCHW flatten is absorbed into wl1's row grouping (done on the host),
    # so linear1 is accumulated per pooled spatial position.
    accl1 = jnp.zeros((TB, 256), f32)
    for i in range(4):
        for j in range(4):
            p = jnp.maximum(
                jnp.maximum(a3[:, 2 * i, 2 * j, :], a3[:, 2 * i, 2 * j + 1, :]),
                jnp.maximum(a3[:, 2 * i + 1, 2 * j, :],
                            a3[:, 2 * i + 1, 2 * j + 1, :]))
            accl1 = accl1 + jnp.dot(p.astype(bf16), wl1_ref[i * 4 + j],
                                    preferred_element_type=f32)
    h = jnp.maximum(accl1 + bl1_ref[...], 0.0)         # (TB, 256)

    # ---- linear2 -> ReLU -> linear3 (output padded to 128 lanes) -----------
    h = jnp.maximum(jnp.dot(h.astype(bf16), wl2_ref[...],
                            preferred_element_type=f32) + bl2_ref[...], 0.0)
    out = jnp.dot(h.astype(bf16), wl3_ref[...],
                  preferred_element_type=f32) + bl3_ref[...]
    o_ref[...] = out.astype(o_ref.dtype)
    # TODO(synk): Sigmoid / Softmax are defined in __init__ but unused in forward(); not applied.


# ------------------------------- JAX wrapper ---------------------------------

def dqn_forward(kparams, x_nchw, *, n_actions=6):
    B, C, H, W = x_nchw.shape
    assert (C, H, W) == (1, 66, 66), "DQN_Q_Net expects (B, 1, 66, 66) inputs"

    # conv1 padding=1 -> 68x68; pad to 72x72 and space-to-depth by 8 so the
    # kernel only needs unit-stride slices.  Pure relayout, no data blow-up.
    x = x_nchw.reshape(B, H, W).astype(jnp.float32)
    xp = jnp.zeros((B, 72, 72), jnp.float32).at[:, 1:67, 1:67].set(x)
    x8 = xp.reshape(B, 9, 8, 9, 8).transpose(0, 1, 3, 2, 4).reshape(B, 9, 9, 64)

    TB = B if B <= 8 else 8                 # batch rows per grid step
    nb = pl.cdiv(B, TB)
    Bp = nb * TB
    if Bp != B:
        x8 = jnp.pad(x8, ((0, Bp - B), (0, 0), (0, 0), (0, 0)))

    kp = kparams
    out = pl.pallas_call(
        _dqn_fused_kernel,
        out_shape=jax.ShapeDtypeStruct((Bp, 128), jnp.float32),
        grid=(nb,),
        in_specs=[
            pl.BlockSpec((TB, 9, 9, 64), lambda i: (i, 0, 0, 0)),   # x (streamed)
            pl.BlockSpec((4, 64, 64), lambda i: (0, 0, 0)),         # conv1 w
            pl.BlockSpec((1, 64), lambda i: (0, 0)),                # conv1 b
            pl.BlockSpec((16, 16, 32), lambda i: (0, 0, 0)),        # conv2 w
            pl.BlockSpec((1, 32), lambda i: (0, 0)),                # conv2 b
            pl.BlockSpec((9, 32, 64), lambda i: (0, 0, 0)),         # conv3 w
            pl.BlockSpec((1, 64), lambda i: (0, 0)),                # conv3 b
            pl.BlockSpec((16, 64, 256), lambda i: (0, 0, 0)),       # linear1 w
            pl.BlockSpec((1, 256), lambda i: (0, 0)),               # linear1 b
            pl.BlockSpec((256, 64), lambda i: (0, 0)),              # linear2 w
            pl.BlockSpec((1, 64), lambda i: (0, 0)),                # linear2 b
            pl.BlockSpec((64, 128), lambda i: (0, 0)),              # linear3 w (padded)
            pl.BlockSpec((1, 128), lambda i: (0, 0)),               # linear3 b (padded)
        ],
        out_specs=pl.BlockSpec((TB, 128), lambda i: (i, 0)),
        scratch_shapes=[
            pltpu.VMEM((TB, 10, 10, 64), jnp.float32),   # padded conv1 output
            pltpu.VMEM((TB, 10, 10, 32), jnp.float32),   # padded conv2 output
        ],
        compiler_params=pltpu.CompilerParams(
            dimension_semantics=("parallel",),
            vmem_limit_bytes=32 * 1024 * 1024,
        ),
    )(x8, kp["cw1"], kp["cb1"], kp["cw2"], kp["cb2"], kp["cw3"], kp["cb3"],
      kp["w1"], kp["b1"], kp["w2"], kp["b2"], kp["w3"], kp["b3"])
    return out[:B, :n_actions]


# ----------------------- parameters / host-side repack -----------------------

def init_params(key, n_actions=6):
    """Canonical params (match the pure-JAX reference / PyTorch layout)."""
    def uinit(k, fan_in, shape):
        bound = 1.0 / (fan_in ** 0.5)
        return jax.random.uniform(k, shape, jnp.float32, -bound, bound)

    ks = jax.random.split(key, 12)
    p = {}
    p["cw1"] = uinit(ks[0], 8 * 8 * 1, (8 * 8 * 1, 16));   p["cb1"] = uinit(ks[1], 8 * 8 * 1, (16,))
    p["cw2"] = uinit(ks[2], 4 * 4 * 16, (4 * 4 * 16, 32)); p["cb2"] = uinit(ks[3], 4 * 4 * 16, (32,))
    p["cw3"] = uinit(ks[4], 3 * 3 * 32, (3 * 3 * 32, 64)); p["cb3"] = uinit(ks[5], 3 * 3 * 32, (64,))
    p["w1"] = uinit(ks[6], 1024, (1024, 256));             p["b1"] = uinit(ks[7], 1024, (256,))
    p["w2"] = uinit(ks[8], 256, (256, 64));                p["b2"] = uinit(ks[9], 256, (64,))
    p["w3"] = uinit(ks[10], 64, (64, n_actions));          p["b3"] = uinit(ks[11], 64, (n_actions,))
    return p


def prepare_kernel_params(params, n_actions=6):
    """One-time host-side repack of the canonical params into kernel layout."""
    f32, bf16 = jnp.float32, jnp.bfloat16
    kp = {}

    # conv1: canonical (8*8*1, 16) rows ordered (kh, kw).  Repack so that
    #   acc[(b,i,j), ph*32+pw*16+co] += x8[b, i+di, j+dj, 8u+v] * W1big[2di+dj, 8u+v, ...]
    # reproduces conv1 output at pixel (2i+ph, 2j+pw); kh = 8*di+u-4*ph,
    # kw = 8*dj+v-4*pw, zero weight outside [0, 8).
    w1 = np.asarray(params["cw1"], np.float32).reshape(8, 8, 16)   # (kh, kw, co)
    w1big = np.zeros((4, 64, 64), np.float32)
    for di in range(2):
        for dj in range(2):
            for u in range(8):
                for v in range(8):
                    for ph in range(2):
                        for pw in range(2):
                            kh = 8 * di + u - 4 * ph
                            kw = 8 * dj + v - 4 * pw
                            if 0 <= kh < 8 and 0 <= kw < 8:
                                cs = ph * 32 + pw * 16
                                w1big[di * 2 + dj, 8 * u + v, cs:cs + 16] = w1[kh, kw]
    kp["cw1"] = jnp.asarray(w1big).astype(bf16)
    kp["cb1"] = jnp.tile(params["cb1"], 4).reshape(1, 64).astype(f32)

    # conv2 / conv3: canonical (k*k*Cin, Cout) rows (kh, kw, cin) -> per-tap stacks.
    kp["cw2"] = params["cw2"].reshape(16, 16, 32).astype(bf16)
    kp["cb2"] = params["cb2"].reshape(1, 32).astype(f32)
    kp["cw3"] = params["cw3"].reshape(9, 32, 64).astype(bf16)
    kp["cb3"] = params["cb3"].reshape(1, 64).astype(f32)

    # linear1: rows are torch NCHW-flatten order (c, h, w).  Regroup per pooled
    # spatial position g = h*4 + w (absorbs the NHWC->NCHW transpose + flatten).
    kp["w1"] = params["w1"].reshape(64, 16, 256).transpose(1, 0, 2).astype(bf16)
    kp["b1"] = params["b1"].reshape(1, 256).astype(f32)

    kp["w2"] = params["w2"].astype(bf16)
    kp["b2"] = params["b2"].reshape(1, 64).astype(f32)

    # linear3: pad the n_actions output dim to 128 lanes (lane-dense stores).
    w3 = jnp.zeros((64, 128), f32).at[:, :n_actions].set(params["w3"])
    b3 = jnp.zeros((1, 128), f32).at[0, :n_actions].set(params["b3"])
    kp["w3"] = w3.astype(bf16)
    kp["b3"] = b3
    return kp


# ------------------------------ pure-JAX reference ---------------------------

def reference_forward(params, x_nchw):
    """Faithful f32 reference of the PyTorch forward (no Pallas)."""
    def conv(x, w_mat, b, k, stride, pad, cin, cout):
        w = w_mat.reshape(k, k, cin, cout)  # HWIO
        y = jax.lax.conv_general_dilated(
            x, w, window_strides=(stride, stride),
            padding=((pad, pad), (pad, pad)),
            dimension_numbers=("NHWC", "HWIO", "NHWC"))
        return jax.nn.relu(y + b)

    x = jnp.transpose(x_nchw, (0, 2, 3, 1))
    x = conv(x, params["cw1"], params["cb1"], 8, 4, 1, 1, 16)
    x = conv(x, params["cw2"], params["cb2"], 4, 2, 1, 16, 32)
    x = conv(x, params["cw3"], params["cb3"], 3, 1, 1, 32, 64)
    B, H, W, C = x.shape
    x = x.reshape(B, H // 2, 2, W // 2, 2, C).max(axis=(2, 4))
    x = jnp.transpose(x, (0, 3, 1, 2)).reshape(B, -1)
    h = jax.nn.relu(x @ params["w1"] + params["b1"])
    h = jax.nn.relu(h @ params["w2"] + params["b2"])
    return h @ params["w3"] + params["b3"]


if __name__ == "__main__":
    key = jax.random.PRNGKey(0)
    pkey, xkey = jax.random.split(key)
    params = init_params(pkey, n_actions=6)
    kparams = prepare_kernel_params(params, n_actions=6)

    # 66x66 input -> conv1 16x16 -> conv2 8x8 -> conv3 8x8 -> pool 4x4 -> 1024
    x = jax.random.normal(xkey, (2, 1, 66, 66), jnp.float32)

    fwd = jax.jit(dqn_forward)
    out = jax.block_until_ready(fwd(kparams, x))

    ref = reference_forward(params, x)
    assert out.shape == (2, 6), out.shape
    # bf16 MXU operands (f32 accumulation) -> compare at bf16-appropriate tolerance.
    max_err = float(jnp.max(jnp.abs(out - ref)))
    assert jnp.allclose(out, ref, rtol=2e-2, atol=5e-3), f"max abs err {max_err}"

    print("KERNEL_OK")
</pallas_src>

<mosaic_0001>
module attributes {stable_mosaic.version = 11 : i64} {
  func.func @_dqn_fused_kernel(%arg0: i32, %arg1: memref<2x9x9x64xf32, #tpu.memory_space<vmem>>, %arg2: memref<4x64x64xbf16, #tpu.memory_space<vmem>>, %arg3: memref<1x64xf32, #tpu.memory_space<vmem>>, %arg4: memref<16x16x32xbf16, #tpu.memory_space<vmem>>, %arg5: memref<1x32xf32, #tpu.memory_space<vmem>>, %arg6: memref<9x32x64xbf16, #tpu.memory_space<vmem>>, %arg7: memref<1x64xf32, #tpu.memory_space<vmem>>, %arg8: memref<16x64x256xbf16, #tpu.memory_space<vmem>>, %arg9: memref<1x256xf32, #tpu.memory_space<vmem>>, %arg10: memref<256x64xbf16, #tpu.memory_space<vmem>>, %arg11: memref<1x64xf32, #tpu.memory_space<vmem>>, %arg12: memref<64x128xbf16, #tpu.memory_space<vmem>>, %arg13: memref<1x128xf32, #tpu.memory_space<vmem>>, %arg14: memref<2x128xf32, #tpu.memory_space<vmem>>, %arg15: memref<2x10x10x64xf32, #tpu.memory_space<vmem>>, %arg16: memref<2x10x10x32xf32, #tpu.memory_space<vmem>>) attributes {dimension_semantics = [#tpu.dimension_semantics<parallel>], iteration_bounds = array<i64: 1>, scalar_prefetch = 0 : i64, scratch_operands = 2 : i64, tpu.core_type = #tpu.core_type<tc>, window_params = [{transform_indices = @transform_0, window_bounds = array<i64: 2, 9, 9, 64>}, {pipeline_mode = #tpu.pipeline_mode<synchronous>, transform_indices = @transform_1, window_bounds = array<i64: 4, 64, 64>}, {pipeline_mode = #tpu.pipeline_mode<synchronous>, transform_indices = @transform_2, window_bounds = array<i64: 1, 64>}, {pipeline_mode = #tpu.pipeline_mode<synchronous>, transform_indices = @transform_3, window_bounds = array<i64: 16, 16, 32>}, {pipeline_mode = #tpu.pipeline_mode<synchronous>, transform_indices = @transform_4, window_bounds = array<i64: 1, 32>}, {pipeline_mode = #tpu.pipeline_mode<synchronous>, transform_indices = @transform_5, window_bounds = array<i64: 9, 32, 64>}, {pipeline_mode = #tpu.pipeline_mode<synchronous>, transform_indices = @transform_6, window_bounds = array<i64: 1, 64>}, {pipeline_mode = #tpu.pipeline_mode<synchronous>, transform_indices = @transform_7, window_bounds = array<i64: 16, 64, 256>}, {pipeline_mode = #tpu.pipeline_mode<synchronous>, transform_indices = @transform_8, window_bounds = array<i64: 1, 256>}, {pipeline_mode = #tpu.pipeline_mode<synchronous>, transform_indices = @transform_9, window_bounds = array<i64: 256, 64>}, {pipeline_mode = #tpu.pipeline_mode<synchronous>, transform_indices = @transform_10, window_bounds = array<i64: 1, 64>}, {pipeline_mode = #tpu.pipeline_mode<synchronous>, transform_indices = @transform_11, window_bounds = array<i64: 64, 128>}, {pipeline_mode = #tpu.pipeline_mode<synchronous>, transform_indices = @transform_12, window_bounds = array<i64: 1, 128>}, {transform_indices = @transform_13, window_bounds = array<i64: 2, 128>}]} {
    %c0 = arith.constant 0 : index
    %c0_0 = arith.constant 0 : index
    %c0_1 = arith.constant 0 : index
    %c0_2 = arith.constant 0 : index
    %0 = vector.load %arg1[%c0, %c0_0, %c0_1, %c0_2] : memref<2x9x9x64xf32, #tpu.memory_space<vmem>>, vector<2x9x9x64xf32>
    %cst = arith.constant 0.000000e+00 : f32
    %1 = vector.broadcast %cst : f32 to vector<128x64xf32>
    %2 = vector.extract_strided_slice %0 {offsets = [0, 0, 0, 0], sizes = [2, 8, 8, 64], strides = [1, 1, 1, 1]} : vector<2x9x9x64xf32> to vector<2x8x8x64xf32>
    %3 = vector.shape_cast %2 : vector<2x8x8x64xf32> to vector<128x64xf32>
    %4 = arith.truncf %3 : vector<128x64xf32> to vector<128x64xbf16>
    %c0_3 = arith.constant 0 : index
    %c0_4 = arith.constant 0 : index
    %c0_5 = arith.constant 0 : index
    %5 = vector.load %arg2[%c0_3, %c0_4, %c0_5] : memref<4x64x64xbf16, #tpu.memory_space<vmem>>, vector<1x64x64xbf16>
    %6 = vector.shape_cast %5 : vector<1x64x64xbf16> to vector<64x64xbf16>
    %cst_6 = arith.constant dense<0.000000e+00> : vector<128x64xf32>
    %7 = tpu.matmul %4, %6, %cst_6 {dimension_numbers = #tpu.dot_dimension_numbers<[1], [0], [0], [1], [0, 0, 1, 1], [], []>} : vector<128x64xbf16>, vector<64x64xbf16>, vector<128x64xf32> -> vector<128x64xf32>
    %8 = arith.addf %1, %7 : vector<128x64xf32>
    %9 = vector.extract_strided_slice %0 {offsets = [0, 0, 1, 0], sizes = [2, 8, 8, 64], strides = [1, 1, 1, 1]} : vector<2x9x9x64xf32> to vector<2x8x8x64xf32>
    %10 = vector.shape_cast %9 : vector<2x8x8x64xf32> to vector<128x64xf32>
    %11 = arith.truncf %10 : vector<128x64xf32> to vector<128x64xbf16>
    %c1 = arith.constant 1 : index
    %c0_7 = arith.constant 0 : index
    %c0_8 = arith.constant 0 : index
    %12 = vector.load %arg2[%c1, %c0_7, %c0_8] : memref<4x64x64xbf16, #tpu.memory_space<vmem>>, vector<1x64x64xbf16>
    %13 = vector.shape_cast %12 : vector<1x64x64xbf16> to vector<64x64xbf16>
    %cst_9 = arith.constant dense<0.000000e+00> : vector<128x64xf32>
    %14 = tpu.matmul %11, %13, %cst_9 {dimension_numbers = #tpu.dot_dimension_numbers<[1], [0], [0], [1], [0, 0, 1, 1], [], []>} : vector<128x64xbf16>, vector<64x64xbf16>, vector<128x64xf32> -> vector<128x64xf32>
    %15 = arith.addf %8, %14 : vector<128x64xf32>
    %16 = vector.extract_strided_slice %0 {offsets = [0, 1, 0, 0], sizes = [2, 8, 8, 64], strides = [1, 1, 1, 1]} : vector<2x9x9x64xf32> to vector<2x8x8x64xf32>
    %17 = vector.shape_cast %16 : vector<2x8x8x64xf32> to vector<128x64xf32>
    %18 = arith.truncf %17 : vector<128x64xf32> to vector<128x64xbf16>
    %c2 = arith.constant 2 : index
    %c0_10 = arith.constant 0 : index
    %c0_11 = arith.constant 0 : index
    %19 = vector.load %arg2[%c2, %c0_10, %c0_11] : memref<4x64x64xbf16, #tpu.memory_space<vmem>>, vector<1x64x64xbf16>
    %20 = vector.shape_cast %19 : vector<1x64x64xbf16> to vector<64x64xbf16>
    %cst_12 = arith.constant dense<0.000000e+00> : vector<128x64xf32>
    %21 = tpu.matmul %18, %20, %cst_12 {dimension_numbers = #tpu.dot_dimension_numbers<[1], [0], [0], [1], [0, 0, 1, 1], [], []>} : vector<128x64xbf16>, vector<64x64xbf16>, vector<128x64xf32> -> vector<128x64xf32>
    %22 = arith.addf %15, %21 : vector<128x64xf32>
    %23 = vector.extract_strided_slice %0 {offsets = [0, 1, 1, 0], sizes = [2, 8, 8, 64], strides = [1, 1, 1, 1]} : vector<2x9x9x64xf32> to vector<2x8x8x64xf32>
    %24 = vector.shape_cast %23 : vector<2x8x8x64xf32> to vector<128x64xf32>
    %25 = arith.truncf %24 : vector<128x64xf32> to vector<128x64xbf16>
    %c3 = arith.constant 3 : index
    %c0_13 = arith.constant 0 : index
    %c0_14 = arith.constant 0 : index
    %26 = vector.load %arg2[%c3, %c0_13, %c0_14] : memref<4x64x64xbf16, #tpu.memory_space<vmem>>, vector<1x64x64xbf16>
    %27 = vector.shape_cast %26 : vector<1x64x64xbf16> to vector<64x64xbf16>
    %cst_15 = arith.constant dense<0.000000e+00> : vector<128x64xf32>
    %28 = tpu.matmul %25, %27, %cst_15 {dimension_numbers = #tpu.dot_dimension_numbers<[1], [0], [0], [1], [0, 0, 1, 1], [], []>} : vector<128x64xbf16>, vector<64x64xbf16>, vector<128x64xf32> -> vector<128x64xf32>
    %29 = arith.addf %22, %28 : vector<128x64xf32>
    %c0_16 = arith.constant 0 : index
    %c0_17 = arith.constant 0 : index
    %30 = vector.load %arg3[%c0_16, %c0_17] : memref<1x64xf32, #tpu.memory_space<vmem>>, vector<1x64xf32>
    %31 = vector.broadcast %30 : vector<1x64xf32> to vector<128x64xf32>
    %32 = arith.addf %29, %31 : vector<128x64xf32>
    %cst_18 = arith.constant 0.000000e+00 : f32
    %33 = vector.broadcast %cst_18 : f32 to vector<128x64xf32>
    %34 = arith.maximumf %32, %33 : vector<128x64xf32>
    %cst_19 = arith.constant 0.000000e+00 : f32
    %35 = vector.broadcast %cst_19 : f32 to vector<2x10x10x64xf32>
    %c0_20 = arith.constant 0 : index
    %c0_21 = arith.constant 0 : index
    %c0_22 = arith.constant 0 : index
    %c0_23 = arith.constant 0 : index
    %36 = vector.load %arg15[%c0_20, %c0_21, %c0_22, %c0_23] : memref<2x10x10x64xf32, #tpu.memory_space<vmem>>, vector<2x10x10x64xf32>
    tpu.vector_store %arg15[%c0_20, %c0_21, %c0_22, %c0_23], %35 {strides = array<i32>} : memref<2x10x10x64xf32, #tpu.memory_space<vmem>>, vector<2x10x10x64xf32>,
    %37 = vector.shape_cast %34 : vector<128x64xf32> to vector<2x8x8x64xf32>
    %c0_24 = arith.constant 0 : index
    %c1_25 = arith.constant 1 : index
    %c1_26 = arith.constant 1 : index
    %c0_27 = arith.constant 0 : index
    %38 = vector.load %arg15[%c0_24, %c1_25, %c1_26, %c0_27] : memref<2x10x10x64xf32, #tpu.memory_space<vmem>>, vector<2x8x8x64xf32>
    tpu.vector_store %arg15[%c0_24, %c1_25, %c1_26, %c0_27], %37 {strides = array<i32>} : memref<2x10x10x64xf32, #tpu.memory_space<vmem>>, vector<2x8x8x64xf32>,
    %c0_28 = arith.constant 0 : index
    %c0_29 = arith.constant 0 : index
    %c0_30 = arith.constant 0 : index
    %c0_31 = arith.constant 0 : index
    %39 = vector.load %arg15[%c0_28, %c0_29, %c0_30, %c0_31] : memref<2x10x10x64xf32, #tpu.memory_space<vmem>>, vector<2x10x10x64xf32>
    %cst_32 = arith.constant 0.000000e+00 : f32
    %40 = vector.broadcast %cst_32 : f32 to vector<128x32xf32>
    %41 = vector.extract_strided_slice %39 {offsets = [0, 0, 0, 48], sizes = [2, 8, 8, 16], strides = [1, 1, 1, 1]} : vector<2x10x10x64xf32> to vector<2x8x8x16xf32>
    %42 = vector.shape_cast %41 : vector<2x8x8x16xf32> to vector<128x16xf32>
    %43 = arith.truncf %42 : vector<128x16xf32> to vector<128x16xbf16>
    %c0_33 = arith.constant 0 : index
    %c0_34 = arith.constant 0 : index
    %c0_35 = arith.constant 0 : index
    %44 = vector.load %arg4[%c0_33, %c0_34, %c0_35] : memref<16x16x32xbf16, #tpu.memory_space<vmem>>, vector<1x16x32xbf16>
    %45 = vector.shape_cast %44 : vector<1x16x32xbf16> to vector<16x32xbf16>
    %cst_36 = arith.constant dense<0.000000e+00> : vector<128x32xf32>
    %46 = tpu.matmul %43, %45, %cst_36 {dimension_numbers = #tpu.dot_dimension_numbers<[1], [0], [0], [1], [0, 0, 1, 1], [], []>} : vector<128x16xbf16>, vector<16x32xbf16>, vector<128x32xf32> -> vector<128x32xf32>
    %47 = arith.addf %40, %46 : vector<128x32xf32>
    %48 = vector.extract_strided_slice %39 {offsets = [0, 0, 1, 32], sizes = [2, 8, 8, 16], strides = [1, 1, 1, 1]} : vector<2x10x10x64xf32> to vector<2x8x8x16xf32>
    %49 = vector.shape_cast %48 : vector<2x8x8x16xf32> to vector<128x16xf32>
    %50 = arith.truncf %49 : vector<128x16xf32> to vector<128x16xbf16>
    %c1_37 = arith.constant 1 : index
    %c0_38 = arith.constant 0 : index
    %c0_39 = arith.constant 0 : index
    %51 = vector.load %arg4[%c1_37, %c0_38, %c0_39] : memref<16x16x32xbf16, #tpu.memory_space<vmem>>, vector<1x16x32xbf16>
    %52 = vector.shape_cast %51 : vector<1x16x32xbf16> to vector<16x32xbf16>
    %cst_40 = arith.constant dense<0.000000e+00> : vector<128x32xf32>
    %53 = tpu.matmul %50, %52, %cst_40 {dimension_numbers = #tpu.dot_dimension_numbers<[1], [0], [0], [1], [0, 0, 1, 1], [], []>} : vector<128x16xbf16>, vector<16x32xbf16>, vector<128x32xf32> -> vector<128x32xf32>
    %54 = arith.addf %47, %53 : vector<128x32xf32>
    %55 = vector.extract_strided_slice %39 {offsets = [0, 0, 1, 48], sizes = [2, 8, 8, 16], strides = [1, 1, 1, 1]} : vector<2x10x10x64xf32> to vector<2x8x8x16xf32>
    %56 = vector.shape_cast %55 : vector<2x8x8x16xf32> to vector<128x16xf32>
    %57 = arith.truncf %56 : vector<128x16xf32> to vector<128x16xbf16>
    %c2_41 = arith.constant 2 : index
    %c0_42 = arith.constant 0 : index
    %c0_43 = arith.constant 0 : index
    %58 = vector.load %arg4[%c2_41, %c0_42, %c0_43] : memref<16x16x32xbf16, #tpu.memory_space<vmem>>, vector<1x16x32xbf16>
    %59 = vector.shape_cast %58 : vector<1x16x32xbf16> to vector<16x32xbf16>
    %cst_44 = arith.constant dense<0.000000e+00> : vector<128x32xf32>
    %60 = tpu.matmul %57, %59, %cst_44 {dimension_numbers = #tpu.dot_dimension_numbers<[1], [0], [0], [1], [0, 0, 1, 1], [], []>} : vector<128x16xbf16>, vector<16x32xbf16>, vector<128x32xf32> -> vector<128x32xf32>
    %61 = arith.addf %54, %60 : vector<128x32xf32>
    %62 = vector.extract_strided_slice %39 {offsets = [0, 0, 2, 32], sizes = [2, 8, 8, 16], strides = [1, 1, 1, 1]} : vector<2x10x10x64xf32> to vector<2x8x8x16xf32>
    %63 = vector.shape_cast %62 : vector<2x8x8x16xf32> to vector<128x16xf32>
    %64 = arith.truncf %63 : vector<128x16xf32> to vector<128x16xbf16>
    %c3_45 = arith.constant 3 : index
    %c0_46 = arith.constant 0 : index
    %c0_47 = arith.constant 0 : index
    %65 = vector.load %arg4[%c3_45, %c0_46, %c0_47] : memref<16x16x32xbf16, #tpu.memory_space<vmem>>, vector<1x16x32xbf16>
    %66 = vector.shape_cast %65 : vector<1x16x32xbf16> to vector<16x32xbf16>
    %cst_48 = arith.constant dense<0.000000e+00> : vector<128x32xf32>
    %67 = tpu.matmul %64, %66, %cst_48 {dimension_numbers = #tpu.dot_dimension_numbers<[1], [0], [0], [1], [0, 0, 1, 1], [], []>} : vector<128x16xbf16>, vector<16x32xbf16>, vector<128x32xf32> -> vector<128x32xf32>
    %68 = arith.addf %61, %67 : vector<128x32xf32>
    %69 = vector.extract_strided_slice %39 {offsets = [0, 1, 0, 16], sizes = [2, 8, 8, 16], strides = [1, 1, 1, 1]} : vector<2x10x10x64xf32> to vector<2x8x8x16xf32>
    %70 = vector.shape_cast %69 : vector<2x8x8x16xf32> to vector<128x16xf32>
    %71 = arith.truncf %70 : vector<128x16xf32> to vector<128x16xbf16>
    %c4 = arith.constant 4 : index
    %c0_49 = arith.constant 0 : index
    %c0_50 = arith.constant 0 : index
    %72 = vector.load %arg4[%c4, %c0_49, %c0_50] : memref<16x16x32xbf16, #tpu.memory_space<vmem>>, vector<1x16x32xbf16>
    %73 = vector.shape_cast %72 : vector<1x16x32xbf16> to vector<16x32xbf16>
    %cst_51 = arith.constant dense<0.000000e+00> : vector<128x32xf32>
    %74 = tpu.matmul %71, %73, %cst_51 {dimension_numbers = #tpu.dot_dimension_numbers<[1], [0], [0], [1], [0, 0, 1, 1], [], []>} : vector<128x16xbf16>, vector<16x32xbf16>, vector<128x32xf32> -> vector<128x32xf32>
    %75 = arith.addf %68, %74 : vector<128x32xf32>
    %76 = vector.extract_strided_slice %39 {offsets = [0, 1, 1, 0], sizes = [2, 8, 8, 16], strides = [1, 1, 1, 1]} : vector<2x10x10x64xf32> to vector<2x8x8x16xf32>
    %77 = vector.shape_cast %76 : vector<2x8x8x16xf32> to vector<128x16xf32>
    %78 = arith.truncf %77 : vector<128x16xf32> to vector<128x16xbf16>
    %c5 = arith.constant 5 : index
    %c0_52 = arith.constant 0 : index
    %c0_53 = arith.constant 0 : index
    %79 = vector.load %arg4[%c5, %c0_52, %c0_53] : memref<16x16x32xbf16, #tpu.memory_space<vmem>>, vector<1x16x32xbf16>
    %80 = vector.shape_cast %79 : vector<1x16x32xbf16> to vector<16x32xbf16>
    %cst_54 = arith.constant dense<0.000000e+00> : vector<128x32xf32>
    %81 = tpu.matmul %78, %80, %cst_54 {dimension_numbers = #tpu.dot_dimension_numbers<[1], [0], [0], [1], [0, 0, 1, 1], [], []>} : vector<128x16xbf16>, vector<16x32xbf16>, vector<128x32xf32> -> vector<128x32xf32>
    %82 = arith.addf %75, %81 : vector<128x32xf32>
    %83 = vector.extract_strided_slice %39 {offsets = [0, 1, 1, 16], sizes = [2, 8, 8, 16], strides = [1, 1, 1, 1]} : vector<2x10x10x64xf32> to vector<2x8x8x16xf32>
    %84 = vector.shape_cast %83 : vector<2x8x8x16xf32> to vector<128x16xf32>
    %85 = arith.truncf %84 : vector<128x16xf32> to vector<128x16xbf16>
    %c6 = arith.constant 6 : index
    %c0_55 = arith.constant 0 : index
    %c0_56 = arith.constant 0 : index
    %86 = vector.load %arg4[%c6, %c0_55, %c0_56] : memref<16x16x32xbf16, #tpu.memory_space<vmem>>, vector<1x16x32xbf16>
    %87 = vector.shape_cast %86 : vector<1x16x32xbf16> to vector<16x32xbf16>
    %cst_57 = arith.constant dense<0.000000e+00> : vector<128x32xf32>
    %88 = tpu.matmul %85, %87, %cst_57 {dimension_numbers = #tpu.dot_dimension_numbers<[1], [0], [0], [1], [0, 0, 1, 1], [], []>} : vector<128x16xbf16>, vector<16x32xbf16>, vector<128x32xf32> -> vector<128x32xf32>
    %89 = arith.addf %82, %88 : vector<128x32xf32>
    %90 = vector.extract_strided_slice %39 {offsets = [0, 1, 2, 0], sizes = [2, 8, 8, 16], strides = [1, 1, 1, 1]} : vector<2x10x10x64xf32> to vector<2x8x8x16xf32>
    %91 = vector.shape_cast %90 : vector<2x8x8x16xf32> to vector<128x16xf32>
    %92 = arith.truncf %91 : vector<128x16xf32> to vector<128x16xbf16>
    %c7 = arith.constant 7 : index
    %c0_58 = arith.constant 0 : index
    %c0_59 = arith.constant 0 : index
    %93 = vector.load %arg4[%c7, %c0_58, %c0_59] : memref<16x16x32xbf16, #tpu.memory_space<vmem>>, vector<1x16x32xbf16>
    %94 = vector.shape_cast %93 : vector<1x16x32xbf16> to vector<16x32xbf16>
    %cst_60 = arith.constant dense<0.000000e+00> : vector<128x32xf32>
    %95 = tpu.matmul %92, %94, %cst_60 {dimension_numbers = #tpu.dot_dimension_numbers<[1], [0], [0], [1], [0, 0, 1, 1], [], []>} : vector<128x16xbf16>, vector<16x32xbf16>, vector<128x32xf32> -> vector<128x32xf32>
    %96 = arith.addf %89, %95 : vector<128x32xf32>
    %97 = vector.extract_strided_slice %39 {offsets = [0, 1, 0, 48], sizes = [2, 8, 8, 16], strides = [1, 1, 1, 1]} : vector<2x10x10x64xf32> to vector<2x8x8x16xf32>
    %98 = vector.shape_cast %97 : vector<2x8x8x16xf32> to vector<128x16xf32>
    %99 = arith.truncf %98 : vector<128x16xf32> to vector<128x16xbf16>
    %c8 = arith.constant 8 : index
    %c0_61 = arith.constant 0 : index
    %c0_62 = arith.constant 0 : index
    %100 = vector.load %arg4[%c8, %c0_61, %c0_62] : memref<16x16x32xbf16, #tpu.memory_space<vmem>>, vector<1x16x32xbf16>
    %101 = vector.shape_cast %100 : vector<1x16x32xbf16> to vector<16x32xbf16>
    %cst_63 = arith.constant dense<0.000000e+00> : vector<128x32xf32>
    %102 = tpu.matmul %99, %101, %cst_63 {dimension_numbers = #tpu.dot_dimension_numbers<[1], [0], [0], [1], [0, 0, 1, 1], [], []>} : vector<128x16xbf16>, vector<16x32xbf16>, vector<128x32xf32> -> vector<128x32xf32>
    %103 = arith.addf %96, %102 : vector<128x32xf32>
    %104 = vector.extract_strided_slice %39 {offsets = [0, 1, 1, 32], sizes = [2, 8, 8, 16], strides = [1, 1, 1, 1]} : vector<2x10x10x64xf32> to vector<2x8x8x16xf32>
    %105 = vector.shape_cast %104 : vector<2x8x8x16xf32> to vector<128x16xf32>
    %106 = arith.truncf %105 : vector<128x16xf32> to vector<128x16xbf16>
    %c9 = arith.constant 9 : index
    %c0_64 = arith.constant 0 : index
    %c0_65 = arith.constant 0 : index
    %107 = vector.load %arg4[%c9, %c0_64, %c0_65] : memref<16x16x32xbf16, #tpu.memory_space<vmem>>, vector<1x16x32xbf16>
    %108 = vector.shape_cast %107 : vector<1x16x32xbf16> to vector<16x32xbf16>
    %cst_66 = arith.constant dense<0.000000e+00> : vector<128x32xf32>
    %109 = tpu.matmul %106, %108, %cst_66 {dimension_numbers = #tpu.dot_dimension_numbers<[1], [0], [0], [1], [0, 0, 1, 1], [], []>} : vector<128x16xbf16>, vector<16x32xbf16>, vector<128x32xf32> -> vector<128x32xf32>
    %110 = arith.addf %103, %109 : vector<128x32xf32>
    %111 = vector.extract_strided_slice %39 {offsets = [0, 1, 1, 48], sizes = [2, 8, 8, 16], strides = [1, 1, 1, 1]} : vector<2x10x10x64xf32> to vector<2x8x8x16xf32>
    %112 = vector.shape_cast %111 : vector<2x8x8x16xf32> to vector<128x16xf32>
    %113 = arith.truncf %112 : vector<128x16xf32> to vector<128x16xbf16>
    %c10 = arith.constant 10 : index
    %c0_67 = arith.constant 0 : index
    %c0_68 = arith.constant 0 : index
    %114 = vector.load %arg4[%c10, %c0_67, %c0_68] : memref<16x16x32xbf16, #tpu.memory_space<vmem>>, vector<1x16x32xbf16>
    %115 = vector.shape_cast %114 : vector<1x16x32xbf16> to vector<16x32xbf16>
    %cst_69 = arith.constant dense<0.000000e+00> : vector<128x32xf32>
    %116 = tpu.matmul %113, %115, %cst_69 {dimension_numbers = #tpu.dot_dimension_numbers<[1], [0], [0], [1], [0, 0, 1, 1], [], []>} : vector<128x16xbf16>, vector<16x32xbf16>, vector<128x32xf32> -> vector<128x32xf32>
    %117 = arith.addf %110, %116 : vector<128x32xf32>
    %118 = vector.extract_strided_slice %39 {offsets = [0, 1, 2, 32], sizes = [2, 8, 8, 16], strides = [1, 1, 1, 1]} : vector<2x10x10x64xf32> to vector<2x8x8x16xf32>
    %119 = vector.shape_cast %118 : vector<2x8x8x16xf32> to vector<128x16xf32>
    %120 = arith.truncf %119 : vector<128x16xf32> to vector<128x16xbf16>
    %c11 = arith.constant 11 : index
    %c0_70 = arith.constant 0 : index
    %c0_71 = arith.constant 0 : index
    %121 = vector.load %arg4[%c11, %c0_70, %c0_71] : memref<16x16x32xbf16, #tpu.memory_space<vmem>>, vector<1x16x32xbf16>
    %122 = vector.shape_cast %121 : vector<1x16x32xbf16> to vector<16x32xbf16>
    %cst_72 = arith.constant dense<0.000000e+00> : vector<128x32xf32>
    %123 = tpu.matmul %120, %122, %cst_72 {dimension_numbers = #tpu.dot_dimension_numbers<[1], [0], [0], [1], [0, 0, 1, 1], [], []>} : vector<128x16xbf16>, vector<16x32xbf16>, vector<128x32xf32> -> vector<128x32xf32>
    %124 = arith.addf %117, %123 : vector<128x32xf32>
    %125 = vector.extract_strided_slice %39 {offsets = [0, 2, 0, 16], sizes = [2, 8, 8, 16], strides = [1, 1, 1, 1]} : vector<2x10x10x64xf32> to vector<2x8x8x16xf32>
    %126 = vector.shape_cast %125 : vector<2x8x8x16xf32> to vector<128x16xf32>
    %127 = arith.truncf %126 : vector<128x16xf32> to vector<128x16xbf16>
    %c12 = arith.constant 12 : index
    %c0_73 = arith.constant 0 : index
    %c0_74 = arith.constant 0 : index
    %128 = vector.load %arg4[%c12, %c0_73, %c0_74] : memref<16x16x32xbf16, #tpu.memory_space<vmem>>, vector<1x16x32xbf16>
    %129 = vector.shape_cast %128 : vector<1x16x32xbf16> to vector<16x32xbf16>
    %cst_75 = arith.constant dense<0.000000e+00> : vector<128x32xf32>
    %130 = tpu.matmul %127, %129, %cst_75 {dimension_numbers = #tpu.dot_dimension_numbers<[1], [0], [0], [1], [0, 0, 1, 1], [], []>} : vector<128x16xbf16>, vector<16x32xbf16>, vector<128x32xf32> -> vector<128x32xf32>
    %131 = arith.addf %124, %130 : vector<128x32xf32>
    %132 = vector.extract_strided_slice %39 {offsets = [0, 2, 1, 0], sizes = [2, 8, 8, 16], strides = [1, 1, 1, 1]} : vector<2x10x10x64xf32> to vector<2x8x8x16xf32>
    %133 = vector.shape_cast %132 : vector<2x8x8x16xf32> to vector<128x16xf32>
    %134 = arith.truncf %133 : vector<128x16xf32> to vector<128x16xbf16>
    %c13 = arith.constant 13 : index
    %c0_76 = arith.constant 0 : index
    %c0_77 = arith.constant 0 : index
    %135 = vector.load %arg4[%c13, %c0_76, %c0_77] : memref<16x16x32xbf16, #tpu.memory_space<vmem>>, vector<1x16x32xbf16>
    %136 = vector.shape_cast %135 : vector<1x16x32xbf16> to vector<16x32xbf16>
    %cst_78 = arith.constant dense<0.000000e+00> : vector<128x32xf32>
    %137 = tpu.matmul %134, %136, %cst_78 {dimension_numbers = #tpu.dot_dimension_numbers<[1], [0], [0], [1], [0, 0, 1, 1], [], []>} : vector<128x16xbf16>, vector<16x32xbf16>, vector<128x32xf32> -> vector<128x32xf32>
    %138 = arith.addf %131, %137 : vector<128x32xf32>
    %139 = vector.extract_strided_slice %39 {offsets = [0, 2, 1, 16], sizes = [2, 8, 8, 16], strides = [1, 1, 1, 1]} : vector<2x10x10x64xf32> to vector<2x8x8x16xf32>
    %140 = vector.shape_cast %139 : vector<2x8x8x16xf32> to vector<128x16xf32>
    %141 = arith.truncf %140 : vector<128x16xf32> to vector<128x16xbf16>
    %c14 = arith.constant 14 : index
    %c0_79 = arith.constant 0 : index
    %c0_80 = arith.constant 0 : index
    %142 = vector.load %arg4[%c14, %c0_79, %c0_80] : memref<16x16x32xbf16, #tpu.memory_space<vmem>>, vector<1x16x32xbf16>
    %143 = vector.shape_cast %142 : vector<1x16x32xbf16> to vector<16x32xbf16>
    %cst_81 = arith.constant dense<0.000000e+00> : vector<128x32xf32>
    %144 = tpu.matmul %141, %143, %cst_81 {dimension_numbers = #tpu.dot_dimension_numbers<[1], [0], [0], [1], [0, 0, 1, 1], [], []>} : vector<128x16xbf16>, vector<16x32xbf16>, vector<128x32xf32> -> vector<128x32xf32>
    %145 = arith.addf %138, %144 : vector<128x32xf32>
    %146 = vector.extract_strided_slice %39 {offsets = [0, 2, 2, 0], sizes = [2, 8, 8, 16], strides = [1, 1, 1, 1]} : vector<2x10x10x64xf32> to vector<2x8x8x16xf32>
    %147 = vector.shape_cast %146 : vector<2x8x8x16xf32> to vector<128x16xf32>
    %148 = arith.truncf %147 : vector<128x16xf32> to vector<128x16xbf16>
    %c15 = arith.constant 15 : index
    %c0_82 = arith.constant 0 : index
    %c0_83 = arith.constant 0 : index
    %149 = vector.load %arg4[%c15, %c0_82, %c0_83] : memref<16x16x32xbf16, #tpu.memory_space<vmem>>, vector<1x16x32xbf16>
    %150 = vector.shape_cast %149 : vector<1x16x32xbf16> to vector<16x32xbf16>
    %cst_84 = arith.constant dense<0.000000e+00> : vector<128x32xf32>
    %151 = tpu.matmul %148, %150, %cst_84 {dimension_numbers = #tpu.dot_dimension_numbers<[1], [0], [0], [1], [0, 0, 1, 1], [], []>} : vector<128x16xbf16>, vector<16x32xbf16>, vector<128x32xf32> -> vector<128x32xf32>
    %152 = arith.addf %145, %151 : vector<128x32xf32>
    %c0_85 = arith.constant 0 : index
    %c0_86 = arith.constant 0 : index
    %153 = vector.load %arg5[%c0_85, %c0_86] : memref<1x32xf32, #tpu.memory_space<vmem>>, vector<1x32xf32>
    %154 = vector.broadcast %153 : vector<1x32xf32> to vector<128x32xf32>
    %155 = arith.addf %152, %154 : vector<128x32xf32>
    %cst_87 = arith.constant 0.000000e+00 : f32
    %156 = vector.broadcast %cst_87 : f32 to vector<128x32xf32>
    %157 = arith.maximumf %155, %156 : vector<128x32xf32>
    %cst_88 = arith.constant 0.000000e+00 : f32
    %158 = vector.broadcast %cst_88 : f32 to vector<2x10x10x32xf32>
    %c0_89 = arith.constant 0 : index
    %c0_90 = arith.constant 0 : index
    %c0_91 = arith.constant 0 : index
    %c0_92 = arith.constant 0 : index
    %159 = vector.load %arg16[%c0_89, %c0_90, %c0_91, %c0_92] : memref<2x10x10x32xf32, #tpu.memory_space<vmem>>, vector<2x10x10x32xf32>
    tpu.vector_store %arg16[%c0_89, %c0_90, %c0_91, %c0_92], %158 {strides = array<i32>} : memref<2x10x10x32xf32, #tpu.memory_space<vmem>>, vector<2x10x10x32xf32>,
    %160 = vector.shape_cast %157 : vector<128x32xf32> to vector<2x8x8x32xf32>
    %c0_93 = arith.constant 0 : index
    %c1_94 = arith.constant 1 : index
    %c1_95 = arith.constant 1 : index
    %c0_96 = arith.constant 0 : index
    %161 = vector.load %arg16[%c0_93, %c1_94, %c1_95, %c0_96] : memref<2x10x10x32xf32, #tpu.memory_space<vmem>>, vector<2x8x8x32xf32>
    tpu.vector_store %arg16[%c0_93, %c1_94, %c1_95, %c0_96], %160 {strides = array<i32>} : memref<2x10x10x32xf32, #tpu.memory_space<vmem>>, vector<2x8x8x32xf32>,
    %c0_97 = arith.constant 0 : index
    %c0_98 = arith.constant 0 : index
    %c0_99 = arith.constant 0 : index
    %c0_100 = arith.constant 0 : index
    %162 = vector.load %arg16[%c0_97, %c0_98, %c0_99, %c0_100] : memref<2x10x10x32xf32, #tpu.memory_space<vmem>>, vector<2x10x10x32xf32>
    %cst_101 = arith.constant 0.000000e+00 : f32
    %163 = vector.broadcast %cst_101 : f32 to vector<128x64xf32>
    %164 = vector.extract_strided_slice %162 {offsets = [0, 0, 0, 0], sizes = [2, 8, 8, 32], strides = [1, 1, 1, 1]} : vector<2x10x10x32xf32> to vector<2x8x8x32xf32>
    %165 = vector.shape_cast %164 : vector<2x8x8x32xf32> to vector<128x32xf32>
    %166 = arith.truncf %165 : vector<128x32xf32> to vector<128x32xbf16>
    %c0_102 = arith.constant 0 : index
    %c0_103 = arith.constant 0 : index
    %c0_104 = arith.constant 0 : index
    %167 = vector.load %arg6[%c0_102, %c0_103, %c0_104] : memref<9x32x64xbf16, #tpu.memory_space<vmem>>, vector<1x32x64xbf16>
    %168 = vector.shape_cast %167 : vector<1x32x64xbf16> to vector<32x64xbf16>
    %cst_105 = arith.constant dense<0.000000e+00> : vector<128x64xf32>
    %169 = tpu.matmul %166, %168, %cst_105 {dimension_numbers = #tpu.dot_dimension_numbers<[1], [0], [0], [1], [0, 0, 1, 1], [], []>} : vector<128x32xbf16>, vector<32x64xbf16>, vector<128x64xf32> -> vector<128x64xf32>
    %170 = arith.addf %163, %169 : vector<128x64xf32>
    %171 = vector.extract_strided_slice %162 {offsets = [0, 0, 1, 0], sizes = [2, 8, 8, 32], strides = [1, 1, 1, 1]} : vector<2x10x10x32xf32> to vector<2x8x8x32xf32>
    %172 = vector.shape_cast %171 : vector<2x8x8x32xf32> to vector<128x32xf32>
    %173 = arith.truncf %172 : vector<128x32xf32> to vector<128x32xbf16>
    %c1_106 = arith.constant 1 : index
    %c0_107 = arith.constant 0 : index
    %c0_108 = arith.constant 0 : index
    %174 = vector.load %arg6[%c1_106, %c0_107, %c0_108] : memref<9x32x64xbf16, #tpu.memory_space<vmem>>, vector<1x32x64xbf16>
    %175 = vector.shape_cast %174 : vector<1x32x64xbf16> to vector<32x64xbf16>
    %cst_109 = arith.constant dense<0.000000e+00> : vector<128x64xf32>
    %176 = tpu.matmul %173, %175, %cst_109 {dimension_numbers = #tpu.dot_dimension_numbers<[1], [0], [0], [1], [0, 0, 1, 1], [], []>} : vector<128x32xbf16>, vector<32x64xbf16>, vector<128x64xf32> -> vector<128x64xf32>
    %177 = arith.addf %170, %176 : vector<128x64xf32>
    %178 = vector.extract_strided_slice %162 {offsets = [0, 0, 2, 0], sizes = [2, 8, 8, 32], strides = [1, 1, 1, 1]} : vector<2x10x10x32xf32> to vector<2x8x8x32xf32>
    %179 = vector.shape_cast %178 : vector<2x8x8x32xf32> to vector<128x32xf32>
    %180 = arith.truncf %179 : vector<128x32xf32> to vector<128x32xbf16>
    %c2_110 = arith.constant 2 : index
    %c0_111 = arith.constant 0 : index
    %c0_112 = arith.constant 0 : index
    %181 = vector.load %arg6[%c2_110, %c0_111, %c0_112] : memref<9x32x64xbf16, #tpu.memory_space<vmem>>, vector<1x32x64xbf16>
    %182 = vector.shape_cast %181 : vector<1x32x64xbf16> to vector<32x64xbf16>
    %cst_113 = arith.constant dense<0.000000e+00> : vector<128x64xf32>
    %183 = tpu.matmul %180, %182, %cst_113 {dimension_numbers = #tpu.dot_dimension_numbers<[1], [0], [0], [1], [0, 0, 1, 1], [], []>} : vector<128x32xbf16>, vector<32x64xbf16>, vector<128x64xf32> -> vector<128x64xf32>
    %184 = arith.addf %177, %183 : vector<128x64xf32>
    %185 = vector.extract_strided_slice %162 {offsets = [0, 1, 0, 0], sizes = [2, 8, 8, 32], strides = [1, 1, 1, 1]} : vector<2x10x10x32xf32> to vector<2x8x8x32xf32>
    %186 = vector.shape_cast %185 : vector<2x8x8x32xf32> to vector<128x32xf32>
    %187 = arith.truncf %186 : vector<128x32xf32> to vector<128x32xbf16>
    %c3_114 = arith.constant 3 : index
    %c0_115 = arith.constant 0 : index
    %c0_116 = arith.constant 0 : index
    %188 = vector.load %arg6[%c3_114, %c0_115, %c0_116] : memref<9x32x64xbf16, #tpu.memory_space<vmem>>, vector<1x32x64xbf16>
    %189 = vector.shape_cast %188 : vector<1x32x64xbf16> to vector<32x64xbf16>
    %cst_117 = arith.constant dense<0.000000e+00> : vector<128x64xf32>
    %190 = tpu.matmul %187, %189, %cst_117 {dimension_numbers = #tpu.dot_dimension_numbers<[1], [0], [0], [1], [0, 0, 1, 1], [], []>} : vector<128x32xbf16>, vector<32x64xbf16>, vector<128x64xf32> -> vector<128x64xf32>
    %191 = arith.addf %184, %190 : vector<128x64xf32>
    %192 = vector.extract_strided_slice %162 {offsets = [0, 1, 1, 0], sizes = [2, 8, 8, 32], strides = [1, 1, 1, 1]} : vector<2x10x10x32xf32> to vector<2x8x8x32xf32>
    %193 = vector.shape_cast %192 : vector<2x8x8x32xf32> to vector<128x32xf32>
    %194 = arith.truncf %193 : vector<128x32xf32> to vector<128x32xbf16>
    %c4_118 = arith.constant 4 : index
    %c0_119 = arith.constant 0 : index
    %c0_120 = arith.constant 0 : index
    %195 = vector.load %arg6[%c4_118, %c0_119, %c0_120] : memref<9x32x64xbf16, #tpu.memory_space<vmem>>, vector<1x32x64xbf16>
    %196 = vector.shape_cast %195 : vector<1x32x64xbf16> to vector<32x64xbf16>
    %cst_121 = arith.constant dense<0.000000e+00> : vector<128x64xf32>
    %197 = tpu.matmul %194, %196, %cst_121 {dimension_numbers = #tpu.dot_dimension_numbers<[1], [0], [0], [1], [0, 0, 1, 1], [], []>} : vector<128x32xbf16>, vector<32x64xbf16>, vector<128x64xf32> -> vector<128x64xf32>
    %198 = arith.addf %191, %197 : vector<128x64xf32>
    %199 = vector.extract_strided_slice %162 {offsets = [0, 1, 2, 0], sizes = [2, 8, 8, 32], strides = [1, 1, 1, 1]} : vector<2x10x10x32xf32> to vector<2x8x8x32xf32>
    %200 = vector.shape_cast %199 : vector<2x8x8x32xf32> to vector<128x32xf32>
    %201 = arith.truncf %200 : vector<128x32xf32> to vector<128x32xbf16>
    %c5_122 = arith.constant 5 : index
    %c0_123 = arith.constant 0 : index
    %c0_124 = arith.constant 0 : index
    %202 = vector.load %arg6[%c5_122, %c0_123, %c0_124] : memref<9x32x64xbf16, #tpu.memory_space<vmem>>, vector<1x32x64xbf16>
    %203 = vector.shape_cast %202 : vector<1x32x64xbf16> to vector<32x64xbf16>
    %cst_125 = arith.constant dense<0.000000e+00> : vector<128x64xf32>
    %204 = tpu.matmul %201, %203, %cst_125 {dimension_numbers = #tpu.dot_dimension_numbers<[1], [0], [0], [1], [0, 0, 1, 1], [], []>} : vector<128x32xbf16>, vector<32x64xbf16>, vector<128x64xf32> -> vector<128x64xf32>
    %205 = arith.addf %198, %204 : vector<128x64xf32>
    %206 = vector.extract_strided_slice %162 {offsets = [0, 2, 0, 0], sizes = [2, 8, 8, 32], strides = [1, 1, 1, 1]} : vector<2x10x10x32xf32> to vector<2x8x8x32xf32>
    %207 = vector.shape_cast %206 : vector<2x8x8x32xf32> to vector<128x32xf32>
    %208 = arith.truncf %207 : vector<128x32xf32> to vector<128x32xbf16>
    %c6_126 = arith.constant 6 : index
    %c0_127 = arith.constant 0 : index
    %c0_128 = arith.constant 0 : index
    %209 = vector.load %arg6[%c6_126, %c0_127, %c0_128] : memref<9x32x64xbf16, #tpu.memory_space<vmem>>, vector<1x32x64xbf16>
    %210 = vector.shape_cast %209 : vector<1x32x64xbf16> to vector<32x64xbf16>
    %cst_129 = arith.constant dense<0.000000e+00> : vector<128x64xf32>
    %211 = tpu.matmul %208, %210, %cst_129 {dimension_numbers = #tpu.dot_dimension_numbers<[1], [0], [0], [1], [0, 0, 1, 1], [], []>} : vector<128x32xbf16>, vector<32x64xbf16>, vector<128x64xf32> -> vector<128x64xf32>
    %212 = arith.addf %205, %211 : vector<128x64xf32>
    %213 = vector.extract_strided_slice %162 {offsets = [0, 2, 1, 0], sizes = [2, 8, 8, 32], strides = [1, 1, 1, 1]} : vector<2x10x10x32xf32> to vector<2x8x8x32xf32>
    %214 = vector.shape_cast %213 : vector<2x8x8x32xf32> to vector<128x32xf32>
    %215 = arith.truncf %214 : vector<128x32xf32> to vector<128x32xbf16>
    %c7_130 = arith.constant 7 : index
    %c0_131 = arith.constant 0 : index
    %c0_132 = arith.constant 0 : index
    %216 = vector.load %arg6[%c7_130, %c0_131, %c0_132] : memref<9x32x64xbf16, #tpu.memory_space<vmem>>, vector<1x32x64xbf16>
    %217 = vector.shape_cast %216 : vector<1x32x64xbf16> to vector<32x64xbf16>
    %cst_133 = arith.constant dense<0.000000e+00> : vector<128x64xf32>
    %218 = tpu.matmul %215, %217, %cst_133 {dimension_numbers = #tpu.dot_dimension_numbers<[1], [0], [0], [1], [0, 0, 1, 1], [], []>} : vector<128x32xbf16>, vector<32x64xbf16>, vector<128x64xf32> -> vector<128x64xf32>
    %219 = arith.addf %212, %218 : vector<128x64xf32>
    %220 = vector.extract_strided_slice %162 {offsets = [0, 2, 2, 0], sizes = [2, 8, 8, 32], strides = [1, 1, 1, 1]} : vector<2x10x10x32xf32> to vector<2x8x8x32xf32>
    %221 = vector.shape_cast %220 : vector<2x8x8x32xf32> to vector<128x32xf32>
    %222 = arith.truncf %221 : vector<128x32xf32> to vector<128x32xbf16>
    %c8_134 = arith.constant 8 : index
    %c0_135 = arith.constant 0 : index
    %c0_136 = arith.constant 0 : index
    %223 = vector.load %arg6[%c8_134, %c0_135, %c0_136] : memref<9x32x64xbf16, #tpu.memory_space<vmem>>, vector<1x32x64xbf16>
    %224 = vector.shape_cast %223 : vector<1x32x64xbf16> to vector<32x64xbf16>
    %cst_137 = arith.constant dense<0.000000e+00> : vector<128x64xf32>
    %225 = tpu.matmul %222, %224, %cst_137 {dimension_numbers = #tpu.dot_dimension_numbers<[1], [0], [0], [1], [0, 0, 1, 1], [], []>} : vector<128x32xbf16>, vector<32x64xbf16>, vector<128x64xf32> -> vector<128x64xf32>
    %226 = arith.addf %219, %225 : vector<128x64xf32>
    %c0_138 = arith.constant 0 : index
    %c0_139 = arith.constant 0 : index
    %227 = vector.load %arg7[%c0_138, %c0_139] : memref<1x64xf32, #tpu.memory_space<vmem>>, vector<1x64xf32>
    %228 = vector.broadcast %227 : vector<1x64xf32> to vector<128x64xf32>
    %229 = arith.addf %226, %228 : vector<128x64xf32>
    %cst_140 = arith.constant 0.000000e+00 : f32
    %230 = vector.broadcast %cst_140 : f32 to vector<128x64xf32>
    %231 = arith.maximumf %229, %230 : vector<128x64xf32>
    %232 = vector.shape_cast %231 : vector<128x64xf32> to vector<2x8x8x64xf32>
    %cst_141 = arith.constant 0.000000e+00 : f32
    %233 = vector.broadcast %cst_141 : f32 to vector<2x256xf32>
    %234 = vector.extract_strided_slice %232 {offsets = [0, 0, 0, 0], sizes = [2, 1, 1, 64], strides = [1, 1, 1, 1]} : vector<2x8x8x64xf32> to vector<2x1x1x64xf32>
    %235 = vector.shape_cast %234 : vector<2x1x1x64xf32> to vector<2x64xf32>
    %236 = vector.extract_strided_slice %232 {offsets = [0, 0, 1, 0], sizes = [2, 1, 1, 64], strides = [1, 1, 1, 1]} : vector<2x8x8x64xf32> to vector<2x1x1x64xf32>
    %237 = vector.shape_cast %236 : vector<2x1x1x64xf32> to vector<2x64xf32>
    %238 = arith.maximumf %235, %237 : vector<2x64xf32>
    %239 = vector.extract_strided_slice %232 {offsets = [0, 1, 0, 0], sizes = [2, 1, 1, 64], strides = [1, 1, 1, 1]} : vector<2x8x8x64xf32> to vector<2x1x1x64xf32>
    %240 = vector.shape_cast %239 : vector<2x1x1x64xf32> to vector<2x64xf32>
    %241 = vector.extract_strided_slice %232 {offsets = [0, 1, 1, 0], sizes = [2, 1, 1, 64], strides = [1, 1, 1, 1]} : vector<2x8x8x64xf32> to vector<2x1x1x64xf32>
    %242 = vector.shape_cast %241 : vector<2x1x1x64xf32> to vector<2x64xf32>
    %243 = arith.maximumf %240, %242 : vector<2x64xf32>
    %244 = arith.maximumf %238, %243 : vector<2x64xf32>
    %245 = arith.truncf %244 : vector<2x64xf32> to vector<2x64xbf16>
    %c0_142 = arith.constant 0 : index
    %c0_143 = arith.constant 0 : index
    %c0_144 = arith.constant 0 : index
    %246 = vector.load %arg8[%c0_142, %c0_143, %c0_144] : memref<16x64x256xbf16, #tpu.memory_space<vmem>>, vector<1x64x256xbf16>
    %247 = vector.shape_cast %246 : vector<1x64x256xbf16> to vector<64x256xbf16>
    %cst_145 = arith.constant dense<0.000000e+00> : vector<2x256xf32>
    %248 = tpu.matmul %245, %247, %cst_145 {dimension_numbers = #tpu.dot_dimension_numbers<[1], [0], [0], [1], [0, 0, 1, 1], [], []>} : vector<2x64xbf16>, vector<64x256xbf16>, vector<2x256xf32> -> vector<2x256xf32>
    %249 = arith.addf %233, %248 : vector<2x256xf32>
    %250 = vector.extract_strided_slice %232 {offsets = [0, 0, 2, 0], sizes = [2, 1, 1, 64], strides = [1, 1, 1, 1]} : vector<2x8x8x64xf32> to vector<2x1x1x64xf32>
    %251 = vector.shape_cast %250 : vector<2x1x1x64xf32> to vector<2x64xf32>
    %252 = vector.extract_strided_slice %232 {offsets = [0, 0, 3, 0], sizes = [2, 1, 1, 64], strides = [1, 1, 1, 1]} : vector<2x8x8x64xf32> to vector<2x1x1x64xf32>
    %253 = vector.shape_cast %252 : vector<2x1x1x64xf32> to vector<2x64xf32>
    %254 = arith.maximumf %251, %253 : vector<2x64xf32>
    %255 = vector.extract_strided_slice %232 {offsets = [0, 1, 2, 0], sizes = [2, 1, 1, 64], strides = [1, 1, 1, 1]} : vector<2x8x8x64xf32> to vector<2x1x1x64xf32>
    %256 = vector.shape_cast %255 : vector<2x1x1x64xf32> to vector<2x64xf32>
    %257 = vector.extract_strided_slice %232 {offsets = [0, 1, 3, 0], sizes = [2, 1, 1, 64], strides = [1, 1, 1, 1]} : vector<2x8x8x64xf32> to vector<2x1x1x64xf32>
    %258 = vector.shape_cast %257 : vector<2x1x1x64xf32> to vector<2x64xf32>
    %259 = arith.maximumf %256, %258 : vector<2x64xf32>
    %260 = arith.maximumf %254, %259 : vector<2x64xf32>
    %261 = arith.truncf %260 : vector<2x64xf32> to vector<2x64xbf16>
    %c1_146 = arith.constant 1 : index
    %c0_147 = arith.constant 0 : index
    %c0_148 = arith.constant 0 : index
    %262 = vector.load %arg8[%c1_146, %c0_147, %c0_148] : memref<16x64x256xbf16, #tpu.memory_space<vmem>>, vector<1x64x256xbf16>
    %263 = vector.shape_cast %262 : vector<1x64x256xbf16> to vector<64x256xbf16>
    %cst_149 = arith.constant dense<0.000000e+00> : vector<2x256xf32>
    %264 = tpu.matmul %261, %263, %cst_149 {dimension_numbers = #tpu.dot_dimension_numbers<[1], [0], [0], [1], [0, 0, 1, 1], [], []>} : vector<2x64xbf16>, vector<64x256xbf16>, vector<2x256xf32> -> vector<2x256xf32>
    %265 = arith.addf %249, %264 : vector<2x256xf32>
    %266 = vector.extract_strided_slice %232 {offsets = [0, 0, 4, 0], sizes = [2, 1, 1, 64], strides = [1, 1, 1, 1]} : vector<2x8x8x64xf32> to vector<2x1x1x64xf32>
    %267 = vector.shape_cast %266 : vector<2x1x1x64xf32> to vector<2x64xf32>
    %268 = vector.extract_strided_slice %232 {offsets = [0, 0, 5, 0], sizes = [2, 1, 1, 64], strides = [1, 1, 1, 1]} : vector<2x8x8x64xf32> to vector<2x1x1x64xf32>
    %269 = vector.shape_cast %268 : vector<2x1x1x64xf32> to vector<2x64xf32>
    %270 = arith.maximumf %267, %269 : vector<2x64xf32>
    %271 = vector.extract_strided_slice %232 {offsets = [0, 1, 4, 0], sizes = [2, 1, 1, 64], strides = [1, 1, 1, 1]} : vector<2x8x8x64xf32> to vector<2x1x1x64xf32>
    %272 = vector.shape_cast %271 : vector<2x1x1x64xf32> to vector<2x64xf32>
    %273 = vector.extract_strided_slice %232 {offsets = [0, 1, 5, 0], sizes = [2, 1, 1, 64], strides = [1, 1, 1, 1]} : vector<2x8x8x64xf32> to vector<2x1x1x64xf32>
    %274 = vector.shape_cast %273 : vector<2x1x1x64xf32> to vector<2x64xf32>
    %275 = arith.maximumf %272, %274 : vector<2x64xf32>
    %276 = arith.maximumf %270, %275 : vector<2x64xf32>
    %277 = arith.truncf %276 : vector<2x64xf32> to vector<2x64xbf16>
    %c2_150 = arith.constant 2 : index
    %c0_151 = arith.constant 0 : index
    %c0_152 = arith.constant 0 : index
    %278 = vector.load %arg8[%c2_150, %c0_151, %c0_152] : memref<16x64x256xbf16, #tpu.memory_space<vmem>>, vector<1x64x256xbf16>
    %279 = vector.shape_cast %278 : vector<1x64x256xbf16> to vector<64x256xbf16>
    %cst_153 = arith.constant dense<0.000000e+00> : vector<2x256xf32>
    %280 = tpu.matmul %277, %279, %cst_153 {dimension_numbers = #tpu.dot_dimension_numbers<[1], [0], [0], [1], [0, 0, 1, 1], [], []>} : vector<2x64xbf16>, vector<64x256xbf16>, vector<2x256xf32> -> vector<2x256xf32>
    %281 = arith.addf %265, %280 : vector<2x256xf32>
    %282 = vector.extract_strided_slice %232 {offsets = [0, 0, 6, 0], sizes = [2, 1, 1, 64], strides = [1, 1, 1, 1]} : vector<2x8x8x64xf32> to vector<2x1x1x64xf32>
    %283 = vector.shape_cast %282 : vector<2x1x1x64xf32> to vector<2x64xf32>
    %284 = vector.extract_strided_slice %232 {offsets = [0, 0, 7, 0], sizes = [2, 1, 1, 64], strides = [1, 1, 1, 1]} : vector<2x8x8x64xf32> to vector<2x1x1x64xf32>
    %285 = vector.shape_cast %284 : vector<2x1x1x64xf32> to vector<2x64xf32>
    %286 = arith.maximumf %283, %285 : vector<2x64xf32>
    %287 = vector.extract_strided_slice %232 {offsets = [0, 1, 6, 0], sizes = [2, 1, 1, 64], strides = [1, 1, 1, 1]} : vector<2x8x8x64xf32> to vector<2x1x1x64xf32>
    %288 = vector.shape_cast %287 : vector<2x1x1x64xf32> to vector<2x64xf32>
    %289 = vector.extract_strided_slice %232 {offsets = [0, 1, 7, 0], sizes = [2, 1, 1, 64], strides = [1, 1, 1, 1]} : vector<2x8x8x64xf32> to vector<2x1x1x64xf32>
    %290 = vector.shape_cast %289 : vector<2x1x1x64xf32> to vector<2x64xf32>
    %291 = arith.maximumf %288, %290 : vector<2x64xf32>
    %292 = arith.maximumf %286, %291 : vector<2x64xf32>
    %293 = arith.truncf %292 : vector<2x64xf32> to vector<2x64xbf16>
    %c3_154 = arith.constant 3 : index
    %c0_155 = arith.constant 0 : index
    %c0_156 = arith.constant 0 : index
    %294 = vector.load %arg8[%c3_154, %c0_155, %c0_156] : memref<16x64x256xbf16, #tpu.memory_space<vmem>>, vector<1x64x256xbf16>
    %295 = vector.shape_cast %294 : vector<1x64x256xbf16> to vector<64x256xbf16>
    %cst_157 = arith.constant dense<0.000000e+00> : vector<2x256xf32>
    %296 = tpu.matmul %293, %295, %cst_157 {dimension_numbers = #tpu.dot_dimension_numbers<[1], [0], [0], [1], [0, 0, 1, 1], [], []>} : vector<2x64xbf16>, vector<64x256xbf16>, vector<2x256xf32> -> vector<2x256xf32>
    %297 = arith.addf %281, %296 : vector<2x256xf32>
    %298 = vector.extract_strided_slice %232 {offsets = [0, 2, 0, 0], sizes = [2, 1, 1, 64], strides = [1, 1, 1, 1]} : vector<2x8x8x64xf32> to vector<2x1x1x64xf32>
    %299 = vector.shape_cast %298 : vector<2x1x1x64xf32> to vector<2x64xf32>
    %300 = vector.extract_strided_slice %232 {offsets = [0, 2, 1, 0], sizes = [2, 1, 1, 64], strides = [1, 1, 1, 1]} : vector<2x8x8x64xf32> to vector<2x1x1x64xf32>
    %301 = vector.shape_cast %300 : vector<2x1x1x64xf32> to vector<2x64xf32>
    %302 = arith.maximumf %299, %301 : vector<2x64xf32>
    %303 = vector.extract_strided_slice %232 {offsets = [0, 3, 0, 0], sizes = [2, 1, 1, 64], strides = [1, 1, 1, 1]} : vector<2x8x8x64xf32> to vector<2x1x1x64xf32>
    %304 = vector.shape_cast %303 : vector<2x1x1x64xf32> to vector<2x64xf32>
    %305 = vector.extract_strided_slice %232 {offsets = [0, 3, 1, 0], sizes = [2, 1, 1, 64], strides = [1, 1, 1, 1]} : vector<2x8x8x64xf32> to vector<2x1x1x64xf32>
    %306 = vector.shape_cast %305 : vector<2x1x1x64xf32> to vector<2x64xf32>
    %307 = arith.maximumf %304, %306 : vector<2x64xf32>
    %308 = arith.maximumf %302, %307 : vector<2x64xf32>
    %309 = arith.truncf %308 : vector<2x64xf32> to vector<2x64xbf16>
    %c4_158 = arith.constant 4 : index
    %c0_159 = arith.constant 0 : index
    %c0_160 = arith.constant 0 : index
    %310 = vector.load %arg8[%c4_158, %c0_159, %c0_160] : memref<16x64x256xbf16, #tpu.memory_space<vmem>>, vector<1x64x256xbf16>
    %311 = vector.shape_cast %310 : vector<1x64x256xbf16> to vector<64x256xbf16>
    %cst_161 = arith.constant dense<0.000000e+00> : vector<2x256xf32>
    %312 = tpu.matmul %309, %311, %cst_161 {dimension_numbers = #tpu.dot_dimension_numbers<[1], [0], [0], [1], [0, 0, 1, 1], [], []>} : vector<2x64xbf16>, vector<64x256xbf16>, vector<2x256xf32> -> vector<2x256xf32>
    %313 = arith.addf %297, %312 : vector<2x256xf32>
    %314 = vector.extract_strided_slice %232 {offsets = [0, 2, 2, 0], sizes = [2, 1, 1, 64], strides = [1, 1, 1, 1]} : vector<2x8x8x64xf32> to vector<2x1x1x64xf32>
    %315 = vector.shape_cast %314 : vector<2x1x1x64xf32> to vector<2x64xf32>
    %316 = vector.extract_strided_slice %232 {offsets = [0, 2, 3, 0], sizes = [2, 1, 1, 64], strides = [1, 1, 1, 1]} : vector<2x8x8x64xf32> to vector<2x1x1x64xf32>
    %317 = vector.shape_cast %316 : vector<2x1x1x64xf32> to vector<2x64xf32>
    %318 = arith.maximumf %315, %317 : vector<2x64xf32>
    %319 = vector.extract_strided_slice %232 {offsets = [0, 3, 2, 0], sizes = [2, 1, 1, 64], strides = [1, 1, 1, 1]} : vector<2x8x8x64xf32> to vector<2x1x1x64xf32>
    %320 = vector.shape_cast %319 : vector<2x1x1x64xf32> to vector<2x64xf32>
    %321 = vector.extract_strided_slice %232 {offsets = [0, 3, 3, 0], sizes = [2, 1, 1, 64], strides = [1, 1, 1, 1]} : vector<2x8x8x64xf32> to vector<2x1x1x64xf32>
    %322 = vector.shape_cast %321 : vector<2x1x1x64xf32> to vector<2x64xf32>
    %323 = arith.maximumf %320, %322 : vector<2x64xf32>
    %324 = arith.maximumf %318, %323 : vector<2x64xf32>
    %325 = arith.truncf %324 : vector<2x64xf32> to vector<2x64xbf16>
    %c5_162 = arith.constant 5 : index
    %c0_163 = arith.constant 0 : index
    %c0_164 = arith.constant 0 : index
    %326 = vector.load %arg8[%c5_162, %c0_163, %c0_164] : memref<16x64x256xbf16, #tpu.memory_space<vmem>>, vector<1x64x256xbf16>
    %327 = vector.shape_cast %326 : vector<1x64x256xbf16> to vector<64x256xbf16>
    %cst_165 = arith.constant dense<0.000000e+00> : vector<2x256xf32>
    %328 = tpu.matmul %325, %327, %cst_165 {dimension_numbers = #tpu.dot_dimension_numbers<[1], [0], [0], [1], [0, 0, 1, 1], [], []>} : vector<2x64xbf16>, vector<64x256xbf16>, vector<2x256xf32> -> vector<2x256xf32>
    %329 = arith.addf %313, %328 : vector<2x256xf32>
    %330 = vector.extract_strided_slice %232 {offsets = [0, 2, 4, 0], sizes = [2, 1, 1, 64], strides = [1, 1, 1, 1]} : vector<2x8x8x64xf32> to vector<2x1x1x64xf32>
    %331 = vector.shape_cast %330 : vector<2x1x1x64xf32> to vector<2x64xf32>
    %332 = vector.extract_strided_slice %232 {offsets = [0, 2, 5, 0], sizes = [2, 1, 1, 64], strides = [1, 1, 1, 1]} : vector<2x8x8x64xf32> to vector<2x1x1x64xf32>
    %333 = vector.shape_cast %332 : vector<2x1x1x64xf32> to vector<2x64xf32>
    %334 = arith.maximumf %331, %333 : vector<2x64xf32>
    %335 = vector.extract_strided_slice %232 {offsets = [0, 3, 4, 0], sizes = [2, 1, 1, 64], strides = [1, 1, 1, 1]} : vector<2x8x8x64xf32> to vector<2x1x1x64xf32>
    %336 = vector.shape_cast %335 : vector<2x1x1x64xf32> to vector<2x64xf32>
    %337 = vector.extract_strided_slice %232 {offsets = [0, 3, 5, 0], sizes = [2, 1, 1, 64], strides = [1, 1, 1, 1]} : vector<2x8x8x64xf32> to vector<2x1x1x64xf32>
    %338 = vector.shape_cast %337 : vector<2x1x1x64xf32> to vector<2x64xf32>
    %339 = arith.maximumf %336, %338 : vector<2x64xf32>
    %340 = arith.maximumf %334, %339 : vector<2x64xf32>
    %341 = arith.truncf %340 : vector<2x64xf32> to vector<2x64xbf16>
    %c6_166 = arith.constant 6 : index
    %c0_167 = arith.constant 0 : index
    %c0_168 = arith.constant 0 : index
    %342 = vector.load %arg8[%c6_166, %c0_167, %c0_168] : memref<16x64x256xbf16, #tpu.memory_space<vmem>>, vector<1x64x256xbf16>
    %343 = vector.shape_cast %342 : vector<1x64x256xbf16> to vector<64x256xbf16>
    %cst_169 = arith.constant dense<0.000000e+00> : vector<2x256xf32>
    %344 = tpu.matmul %341, %343, %cst_169 {dimension_numbers = #tpu.dot_dimension_numbers<[1], [0], [0], [1], [0, 0, 1, 1], [], []>} : vector<2x64xbf16>, vector<64x256xbf16>, vector<2x256xf32> -> vector<2x256xf32>
    %345 = arith.addf %329, %344 : vector<2x256xf32>
    %346 = vector.extract_strided_slice %232 {offsets = [0, 2, 6, 0], sizes = [2, 1, 1, 64], strides = [1, 1, 1, 1]} : vector<2x8x8x64xf32> to vector<2x1x1x64xf32>
    %347 = vector.shape_cast %346 : vector<2x1x1x64xf32> to vector<2x64xf32>
    %348 = vector.extract_strided_slice %232 {offsets = [0, 2, 7, 0], sizes = [2, 1, 1, 64], strides = [1, 1, 1, 1]} : vector<2x8x8x64xf32> to vector<2x1x1x64xf32>
    %349 = vector.shape_cast %348 : vector<2x1x1x64xf32> to vector<2x64xf32>
    %350 = arith.maximumf %347, %349 : vector<2x64xf32>
    %351 = vector.extract_strided_slice %232 {offsets = [0, 3, 6, 0], sizes = [2, 1, 1, 64], strides = [1, 1, 1, 1]} : vector<2x8x8x64xf32> to vector<2x1x1x64xf32>
    %352 = vector.shape_cast %351 : vector<2x1x1x64xf32> to vector<2x64xf32>
    %353 = vector.extract_strided_slice %232 {offsets = [0, 3, 7, 0], sizes = [2, 1, 1, 64], strides = [1, 1, 1, 1]} : vector<2x8x8x64xf32> to vector<2x1x1x64xf32>
    %354 = vector.shape_cast %353 : vector<2x1x1x64xf32> to vector<2x64xf32>
    %355 = arith.maximumf %352, %354 : vector<2x64xf32>
    %356 = arith.maximumf %350, %355 : vector<2x64xf32>
    %357 = arith.truncf %356 : vector<2x64xf32> to vector<2x64xbf16>
    %c7_170 = arith.constant 7 : index
    %c0_171 = arith.constant 0 : index
    %c0_172 = arith.constant 0 : index
    %358 = vector.load %arg8[%c7_170, %c0_171, %c0_172] : memref<16x64x256xbf16, #tpu.memory_space<vmem>>, vector<1x64x256xbf16>
    %359 = vector.shape_cast %358 : vector<1x64x256xbf16> to vector<64x256xbf16>
    %cst_173 = arith.constant dense<0.000000e+00> : vector<2x256xf32>
    %360 = tpu.matmul %357, %359, %cst_173 {dimension_numbers = #tpu.dot_dimension_numbers<[1], [0], [0], [1], [0, 0, 1, 1], [], []>} : vector<2x64xbf16>, vector<64x256xbf16>, vector<2x256xf32> -> vector<2x256xf32>
    %361 = arith.addf %345, %360 : vector<2x256xf32>
    %362 = vector.extract_strided_slice %232 {offsets = [0, 4, 0, 0], sizes = [2, 1, 1, 64], strides = [1, 1, 1, 1]} : vector<2x8x8x64xf32> to vector<2x1x1x64xf32>
    %363 = vector.shape_cast %362 : vector<2x1x1x64xf32> to vector<2x64xf32>
    %364 = vector.extract_strided_slice %232 {offsets = [0, 4, 1, 0], sizes = [2, 1, 1, 64], strides = [1, 1, 1, 1]} : vector<2x8x8x64xf32> to vector<2x1x1x64xf32>
    %365 = vector.shape_cast %364 : vector<2x1x1x64xf32> to vector<2x64xf32>
    %366 = arith.maximumf %363, %365 : vector<2x64xf32>
    %367 = vector.extract_strided_slice %232 {offsets = [0, 5, 0, 0], sizes = [2, 1, 1, 64], strides = [1, 1, 1, 1]} : vector<2x8x8x64xf32> to vector<2x1x1x64xf32>
    %368 = vector.shape_cast %367 : vector<2x1x1x64xf32> to vector<2x64xf32>
    %369 = vector.extract_strided_slice %232 {offsets = [0, 5, 1, 0], sizes = [2, 1, 1, 64], strides = [1, 1, 1, 1]} : vector<2x8x8x64xf32> to vector<2x1x1x64xf32>
    %370 = vector.shape_cast %369 : vector<2x1x1x64xf32> to vector<2x64xf32>
    %371 = arith.maximumf %368, %370 : vector<2x64xf32>
    %372 = arith.maximumf %366, %371 : vector<2x64xf32>
    %373 = arith.truncf %372 : vector<2x64xf32> to vector<2x64xbf16>
    %c8_174 = arith.constant 8 : index
    %c0_175 = arith.constant 0 : index
    %c0_176 = arith.constant 0 : index
    %374 = vector.load %arg8[%c8_174, %c0_175, %c0_176] : memref<16x64x256xbf16, #tpu.memory_space<vmem>>, vector<1x64x256xbf16>
    %375 = vector.shape_cast %374 : vector<1x64x256xbf16> to vector<64x256xbf16>
    %cst_177 = arith.constant dense<0.000000e+00> : vector<2x256xf32>
    %376 = tpu.matmul %373, %375, %cst_177 {dimension_numbers = #tpu.dot_dimension_numbers<[1], [0], [0], [1], [0, 0, 1, 1], [], []>} : vector<2x64xbf16>, vector<64x256xbf16>, vector<2x256xf32> -> vector<2x256xf32>
    %377 = arith.addf %361, %376 : vector<2x256xf32>
    %378 = vector.extract_strided_slice %232 {offsets = [0, 4, 2, 0], sizes = [2, 1, 1, 64], strides = [1, 1, 1, 1]} : vector<2x8x8x64xf32> to vector<2x1x1x64xf32>
    %379 = vector.shape_cast %378 : vector<2x1x1x64xf32> to vector<2x64xf32>
    %380 = vector.extract_strided_slice %232 {offsets = [0, 4, 3, 0], sizes = [2, 1, 1, 64], strides = [1, 1, 1, 1]} : vector<2x8x8x64xf32> to vector<2x1x1x64xf32>
    %381 = vector.shape_cast %380 : vector<2x1x1x64xf32> to vector<2x64xf32>
    %382 = arith.maximumf %379, %381 : vector<2x64xf32>
    %383 = vector.extract_strided_slice %232 {offsets = [0, 5, 2, 0], sizes = [2, 1, 1, 64], strides = [1, 1, 1, 1]} : vector<2x8x8x64xf32> to vector<2x1x1x64xf32>
    %384 = vector.shape_cast %383 : vector<2x1x1x64xf32> to vector<2x64xf32>
    %385 = vector.extract_strided_slice %232 {offsets = [0, 5, 3, 0], sizes = [2, 1, 1, 64], strides = [1, 1, 1, 1]} : vector<2x8x8x64xf32> to vector<2x1x1x64xf32>
    %386 = vector.shape_cast %385 : vector<2x1x1x64xf32> to vector<2x64xf32>
    %387 = arith.maximumf %384, %386 : vector<2x64xf32>
    %388 = arith.maximumf %382, %387 : vector<2x64xf32>
    %389 = arith.truncf %388 : vector<2x64xf32> to vector<2x64xbf16>
    %c9_178 = arith.constant 9 : index
    %c0_179 = arith.constant 0 : index
    %c0_180 = arith.constant 0 : index
    %390 = vector.load %arg8[%c9_178, %c0_179, %c0_180] : memref<16x64x256xbf16, #tpu.memory_space<vmem>>, vector<1x64x256xbf16>
    %391 = vector.shape_cast %390 : vector<1x64x256xbf16> to vector<64x256xbf16>
    %cst_181 = arith.constant dense<0.000000e+00> : vector<2x256xf32>
    %392 = tpu.matmul %389, %391, %cst_181 {dimension_numbers = #tpu.dot_dimension_numbers<[1], [0], [0], [1], [0, 0, 1, 1], [], []>} : vector<2x64xbf16>, vector<64x256xbf16>, vector<2x256xf32> -> vector<2x256xf32>
    %393 = arith.addf %377, %392 : vector<2x256xf32>
    %394 = vector.extract_strided_slice %232 {offsets = [0, 4, 4, 0], sizes = [2, 1, 1, 64], strides = [1, 1, 1, 1]} : vector<2x8x8x64xf32> to vector<2x1x1x64xf32>
    %395 = vector.shape_cast %394 : vector<2x1x1x64xf32> to vector<2x64xf32>
    %396 = vector.extract_strided_slice %232 {offsets = [0, 4, 5, 0], sizes = [2, 1, 1, 64], strides = [1, 1, 1, 1]} : vector<2x8x8x64xf32> to vector<2x1x1x64xf32>
    %397 = vector.shape_cast %396 : vector<2x1x1x64xf32> to vector<2x64xf32>
    %398 = arith.maximumf %395, %397 : vector<2x64xf32>
    %399 = vector.extract_strided_slice %232 {offsets = [0, 5, 4, 0], sizes = [2, 1, 1, 64], strides = [1, 1, 1, 1]} : vector<2x8x8x64xf32> to vector<2x1x1x64xf32>
    %400 = vector.shape_cast %399 : vector<2x1x1x64xf32> to vector<2x64xf32>
    %401 = vector.extract_strided_slice %232 {offsets = [0, 5, 5, 0], sizes = [2, 1, 1, 64], strides = [1, 1, 1, 1]} : vector<2x8x8x64xf32> to vector<2x1x1x64xf32>
    %402 = vector.shape_cast %401 : vector<2x1x1x64xf32> to vector<2x64xf32>
    %403 = arith.maximumf %400, %402 : vector<2x64xf32>
    %404 = arith.maximumf %398, %403 : vector<2x64xf32>
    %405 = arith.truncf %404 : vector<2x64xf32> to vector<2x64xbf16>
    %c10_182 = arith.constant 10 : index
    %c0_183 = arith.constant 0 : index
    %c0_184 = arith.constant 0 : index
    %406 = vector.load %arg8[%c10_182, %c0_183, %c0_184] : memref<16x64x256xbf16, #tpu.memory_space<vmem>>, vector<1x64x256xbf16>
    %407 = vector.shape_cast %406 : vector<1x64x256xbf16> to vector<64x256xbf16>
    %cst_185 = arith.constant dense<0.000000e+00> : vector<2x256xf32>
    %408 = tpu.matmul %405, %407, %cst_185 {dimension_numbers = #tpu.dot_dimension_numbers<[1], [0], [0], [1], [0, 0, 1, 1], [], []>} : vector<2x64xbf16>, vector<64x256xbf16>, vector<2x256xf32> -> vector<2x256xf32>
    %409 = arith.addf %393, %408 : vector<2x256xf32>
    %410 = vector.extract_strided_slice %232 {offsets = [0, 4, 6, 0], sizes = [2, 1, 1, 64], strides = [1, 1, 1, 1]} : vector<2x8x8x64xf32> to vector<2x1x1x64xf32>
    %411 = vector.shape_cast %410 : vector<2x1x1x64xf32> to vector<2x64xf32>
    %412 = vector.extract_strided_slice %232 {offsets = [0, 4, 7, 0], sizes = [2, 1, 1, 64], strides = [1, 1, 1, 1]} : vector<2x8x8x64xf32> to vector<2x1x1x64xf32>
    %413 = vector.shape_cast %412 : vector<2x1x1x64xf32> to vector<2x64xf32>
    %414 = arith.maximumf %411, %413 : vector<2x64xf32>
    %415 = vector.extract_strided_slice %232 {offsets = [0, 5, 6, 0], sizes = [2, 1, 1, 64], strides = [1, 1, 1, 1]} : vector<2x8x8x64xf32> to vector<2x1x1x64xf32>
    %416 = vector.shape_cast %415 : vector<2x1x1x64xf32> to vector<2x64xf32>
    %417 = vector.extract_strided_slice %232 {offsets = [0, 5, 7, 0], sizes = [2, 1, 1, 64], strides = [1, 1, 1, 1]} : vector<2x8x8x64xf32> to vector<2x1x1x64xf32>
    %418 = vector.shape_cast %417 : vector<2x1x1x64xf32> to vector<2x64xf32>
    %419 = arith.maximumf %416, %418 : vector<2x64xf32>
    %420 = arith.maximumf %414, %419 : vector<2x64xf32>
    %421 = arith.truncf %420 : vector<2x64xf32> to vector<2x64xbf16>
    %c11_186 = arith.constant 11 : index
    %c0_187 = arith.constant 0 : index
    %c0_188 = arith.constant 0 : index
    %422 = vector.load %arg8[%c11_186, %c0_187, %c0_188] : memref<16x64x256xbf16, #tpu.memory_space<vmem>>, vector<1x64x256xbf16>
    %423 = vector.shape_cast %422 : vector<1x64x256xbf16> to vector<64x256xbf16>
    %cst_189 = arith.constant dense<0.000000e+00> : vector<2x256xf32>
    %424 = tpu.matmul %421, %423, %cst_189 {dimension_numbers = #tpu.dot_dimension_numbers<[1], [0], [0], [1], [0, 0, 1, 1], [], []>} : vector<2x64xbf16>, vector<64x256xbf16>, vector<2x256xf32> -> vector<2x256xf32>
    %425 = arith.addf %409, %424 : vector<2x256xf32>
    %426 = vector.extract_strided_slice %232 {offsets = [0, 6, 0, 0], sizes = [2, 1, 1, 64], strides = [1, 1, 1, 1]} : vector<2x8x8x64xf32> to vector<2x1x1x64xf32>
    %427 = vector.shape_cast %426 : vector<2x1x1x64xf32> to vector<2x64xf32>
    %428 = vector.extract_strided_slice %232 {offsets = [0, 6, 1, 0], sizes = [2, 1, 1, 64], strides = [1, 1, 1, 1]} : vector<2x8x8x64xf32> to vector<2x1x1x64xf32>
    %429 = vector.shape_cast %428 : vector<2x1x1x64xf32> to vector<2x64xf32>
    %430 = arith.maximumf %427, %429 : vector<2x64xf32>
    %431 = vector.extract_strided_slice %232 {offsets = [0, 7, 0, 0], sizes = [2, 1, 1, 64], strides = [1, 1, 1, 1]} : vector<2x8x8x64xf32> to vector<2x1x1x64xf32>
    %432 = vector.shape_cast %431 : vector<2x1x1x64xf32> to vector<2x64xf32>
    %433 = vector.extract_strided_slice %232 {offsets = [0, 7, 1, 0], sizes = [2, 1, 1, 64], strides = [1, 1, 1, 1]} : vector<2x8x8x64xf32> to vector<2x1x1x64xf32>
    %434 = vector.shape_cast %433 : vector<2x1x1x64xf32> to vector<2x64xf32>
    %435 = arith.maximumf %432, %434 : vector<2x64xf32>
    %436 = arith.maximumf %430, %435 : vector<2x64xf32>
    %437 = arith.truncf %436 : vector<2x64xf32> to vector<2x64xbf16>
    %c12_190 = arith.constant 12 : index
    %c0_191 = arith.constant 0 : index
    %c0_192 = arith.constant 0 : index
    %438 = vector.load %arg8[%c12_190, %c0_191, %c0_192] : memref<16x64x256xbf16, #tpu.memory_space<vmem>>, vector<1x64x256xbf16>
    %439 = vector.shape_cast %438 : vector<1x64x256xbf16> to vector<64x256xbf16>
    %cst_193 = arith.constant dense<0.000000e+00> : vector<2x256xf32>
    %440 = tpu.matmul %437, %439, %cst_193 {dimension_numbers = #tpu.dot_dimension_numbers<[1], [0], [0], [1], [0, 0, 1, 1], [], []>} : vector<2x64xbf16>, vector<64x256xbf16>, vector<2x256xf32> -> vector<2x256xf32>
    %441 = arith.addf %425, %440 : vector<2x256xf32>
    %442 = vector.extract_strided_slice %232 {offsets = [0, 6, 2, 0], sizes = [2, 1, 1, 64], strides = [1, 1, 1, 1]} : vector<2x8x8x64xf32> to vector<2x1x1x64xf32>
    %443 = vector.shape_cast %442 : vector<2x1x1x64xf32> to vector<2x64xf32>
    %444 = vector.extract_strided_slice %232 {offsets = [0, 6, 3, 0], sizes = [2, 1, 1, 64], strides = [1, 1, 1, 1]} : vector<2x8x8x64xf32> to vector<2x1x1x64xf32>
    %445 = vector.shape_cast %444 : vector<2x1x1x64xf32> to vector<2x64xf32>
    %446 = arith.maximumf %443, %445 : vector<2x64xf32>
    %447 = vector.extract_strided_slice %232 {offsets = [0, 7, 2, 0], sizes = [2, 1, 1, 64], strides = [1, 1, 1, 1]} : vector<2x8x8x64xf32> to vector<2x1x1x64xf32>
    %448 = vector.shape_cast %447 : vector<2x1x1x64xf32> to vector<2x64xf32>
    %449 = vector.extract_strided_slice %232 {offsets = [0, 7, 3, 0], sizes = [2, 1, 1, 64], strides = [1, 1, 1, 1]} : vector<2x8x8x64xf32> to vector<2x1x1x64xf32>
    %450 = vector.shape_cast %449 : vector<2x1x1x64xf32> to vector<2x64xf32>
    %451 = arith.maximumf %448, %450 : vector<2x64xf32>
    %452 = arith.maximumf %446, %451 : vector<2x64xf32>
    %453 = arith.truncf %452 : vector<2x64xf32> to vector<2x64xbf16>
    %c13_194 = arith.constant 13 : index
    %c0_195 = arith.constant 0 : index
    %c0_196 = arith.constant 0 : index
    %454 = vector.load %arg8[%c13_194, %c0_195, %c0_196] : memref<16x64x256xbf16, #tpu.memory_space<vmem>>, vector<1x64x256xbf16>
    %455 = vector.shape_cast %454 : vector<1x64x256xbf16> to vector<64x256xbf16>
    %cst_197 = arith.constant dense<0.000000e+00> : vector<2x256xf32>
    %456 = tpu.matmul %453, %455, %cst_197 {dimension_numbers = #tpu.dot_dimension_numbers<[1], [0], [0], [1], [0, 0, 1, 1], [], []>} : vector<2x64xbf16>, vector<64x256xbf16>, vector<2x256xf32> -> vector<2x256xf32>
    %457 = arith.addf %441, %456 : vector<2x256xf32>
    %458 = vector.extract_strided_slice %232 {offsets = [0, 6, 4, 0], sizes = [2, 1, 1, 64], strides = [1, 1, 1, 1]} : vector<2x8x8x64xf32> to vector<2x1x1x64xf32>
    %459 = vector.shape_cast %458 : vector<2x1x1x64xf32> to vector<2x64xf32>
    %460 = vector.extract_strided_slice %232 {offsets = [0, 6, 5, 0], sizes = [2, 1, 1, 64], strides = [1, 1, 1, 1]} : vector<2x8x8x64xf32> to vector<2x1x1x64xf32>
    %461 = vector.shape_cast %460 : vector<2x1x1x64xf32> to vector<2x64xf32>
    %462 = arith.maximumf %459, %461 : vector<2x64xf32>
    %463 = vector.extract_strided_slice %232 {offsets = [0, 7, 4, 0], sizes = [2, 1, 1, 64], strides = [1, 1, 1, 1]} : vector<2x8x8x64xf32> to vector<2x1x1x64xf32>
    %464 = vector.shape_cast %463 : vector<2x1x1x64xf32> to vector<2x64xf32>
    %465 = vector.extract_strided_slice %232 {offsets = [0, 7, 5, 0], sizes = [2, 1, 1, 64], strides = [1, 1, 1, 1]} : vector<2x8x8x64xf32> to vector<2x1x1x64xf32>
    %466 = vector.shape_cast %465 : vector<2x1x1x64xf32> to vector<2x64xf32>
    %467 = arith.maximumf %464, %466 : vector<2x64xf32>
    %468 = arith.maximumf %462, %467 : vector<2x64xf32>
    %469 = arith.truncf %468 : vector<2x64xf32> to vector<2x64xbf16>
    %c14_198 = arith.constant 14 : index
    %c0_199 = arith.constant 0 : index
    %c0_200 = arith.constant 0 : index
    %470 = vector.load %arg8[%c14_198, %c0_199, %c0_200] : memref<16x64x256xbf16, #tpu.memory_space<vmem>>, vector<1x64x256xbf16>
    %471 = vector.shape_cast %470 : vector<1x64x256xbf16> to vector<64x256xbf16>
    %cst_201 = arith.constant dense<0.000000e+00> : vector<2x256xf32>
    %472 = tpu.matmul %469, %471, %cst_201 {dimension_numbers = #tpu.dot_dimension_numbers<[1], [0], [0], [1], [0, 0, 1, 1], [], []>} : vector<2x64xbf16>, vector<64x256xbf16>, vector<2x256xf32> -> vector<2x256xf32>
    %473 = arith.addf %457, %472 : vector<2x256xf32>
    %474 = vector.extract_strided_slice %232 {offsets = [0, 6, 6, 0], sizes = [2, 1, 1, 64], strides = [1, 1, 1, 1]} : vector<2x8x8x64xf32> to vector<2x1x1x64xf32>
    %475 = vector.shape_cast %474 : vector<2x1x1x64xf32> to vector<2x64xf32>
    %476 = vector.extract_strided_slice %232 {offsets = [0, 6, 7, 0], sizes = [2, 1, 1, 64], strides = [1, 1, 1, 1]} : vector<2x8x8x64xf32> to vector<2x1x1x64xf32>
    %477 = vector.shape_cast %476 : vector<2x1x1x64xf32> to vector<2x64xf32>
    %478 = arith.maximumf %475, %477 : vector<2x64xf32>
    %479 = vector.extract_strided_slice %232 {offsets = [0, 7, 6, 0], sizes = [2, 1, 1, 64], strides = [1, 1, 1, 1]} : vector<2x8x8x64xf32> to vector<2x1x1x64xf32>
    %480 = vector.shape_cast %479 : vector<2x1x1x64xf32> to vector<2x64xf32>
    %481 = vector.extract_strided_slice %232 {offsets = [0, 7, 7, 0], sizes = [2, 1, 1, 64], strides = [1, 1, 1, 1]} : vector<2x8x8x64xf32> to vector<2x1x1x64xf32>
    %482 = vector.shape_cast %481 : vector<2x1x1x64xf32> to vector<2x64xf32>
    %483 = arith.maximumf %480, %482 : vector<2x64xf32>
    %484 = arith.maximumf %478, %483 : vector<2x64xf32>
    %485 = arith.truncf %484 : vector<2x64xf32> to vector<2x64xbf16>
    %c15_202 = arith.constant 15 : index
    %c0_203 = arith.constant 0 : index
    %c0_204 = arith.constant 0 : index
    %486 = vector.load %arg8[%c15_202, %c0_203, %c0_204] : memref<16x64x256xbf16, #tpu.memory_space<vmem>>, vector<1x64x256xbf16>
    %487 = vector.shape_cast %486 : vector<1x64x256xbf16> to vector<64x256xbf16>
    %cst_205 = arith.constant dense<0.000000e+00> : vector<2x256xf32>
    %488 = tpu.matmul %485, %487, %cst_205 {dimension_numbers = #tpu.dot_dimension_numbers<[1], [0], [0], [1], [0, 0, 1, 1], [], []>} : vector<2x64xbf16>, vector<64x256xbf16>, vector<2x256xf32> -> vector<2x256xf32>
    %489 = arith.addf %473, %488 : vector<2x256xf32>
    %c0_206 = arith.constant 0 : index
    %c0_207 = arith.constant 0 : index
    %490 = vector.load %arg9[%c0_206, %c0_207] : memref<1x256xf32, #tpu.memory_space<vmem>>, vector<1x256xf32>
    %491 = vector.broadcast %490 : vector<1x256xf32> to vector<2x256xf32>
    %492 = arith.addf %489, %491 : vector<2x256xf32>
    %cst_208 = arith.constant 0.000000e+00 : f32
    %493 = vector.broadcast %cst_208 : f32 to vector<2x256xf32>
    %494 = arith.maximumf %492, %493 : vector<2x256xf32>
    %495 = arith.truncf %494 : vector<2x256xf32> to vector<2x256xbf16>
    %c0_209 = arith.constant 0 : index
    %c0_210 = arith.constant 0 : index
    %496 = vector.load %arg10[%c0_209, %c0_210] : memref<256x64xbf16, #tpu.memory_space<vmem>>, vector<256x64xbf16>
    %cst_211 = arith.constant dense<0.000000e+00> : vector<2x64xf32>
    %497 = tpu.matmul %495, %496, %cst_211 {dimension_numbers = #tpu.dot_dimension_numbers<[1], [0], [0], [1], [0, 0, 1, 1], [], []>} : vector<2x256xbf16>, vector<256x64xbf16>, vector<2x64xf32> -> vector<2x64xf32>
    %c0_212 = arith.constant 0 : index
    %c0_213 = arith.constant 0 : index
    %498 = vector.load %arg11[%c0_212, %c0_213] : memref<1x64xf32, #tpu.memory_space<vmem>>, vector<1x64xf32>
    %499 = vector.broadcast %498 : vector<1x64xf32> to vector<2x64xf32>
    %500 = arith.addf %497, %499 : vector<2x64xf32>
    %cst_214 = arith.constant 0.000000e+00 : f32
    %501 = vector.broadcast %cst_214 : f32 to vector<2x64xf32>
    %502 = arith.maximumf %500, %501 : vector<2x64xf32>
    %503 = arith.truncf %502 : vector<2x64xf32> to vector<2x64xbf16>
    %c0_215 = arith.constant 0 : index
    %c0_216 = arith.constant 0 : index
    %504 = vector.load %arg12[%c0_215, %c0_216] : memref<64x128xbf16, #tpu.memory_space<vmem>>, vector<64x128xbf16>
    %cst_217 = arith.constant dense<0.000000e+00> : vector<2x128xf32>
    %505 = tpu.matmul %503, %504, %cst_217 {dimension_numbers = #tpu.dot_dimension_numbers<[1], [0], [0], [1], [0, 0, 1, 1], [], []>} : vector<2x64xbf16>, vector<64x128xbf16>, vector<2x128xf32> -> vector<2x128xf32>
    %c0_218 = arith.constant 0 : index
    %c0_219 = arith.constant 0 : index
    %506 = vector.load %arg13[%c0_218, %c0_219] : memref<1x128xf32, #tpu.memory_space<vmem>>, vector<1x128xf32>
    %507 = vector.broadcast %506 : vector<1x128xf32> to vector<2x128xf32>
    %508 = arith.addf %505, %507 : vector<2x128xf32>
    %c0_220 = arith.constant 0 : index
    %c0_221 = arith.constant 0 : index
    %509 = vector.load %arg14[%c0_220, %c0_221] : memref<2x128xf32, #tpu.memory_space<vmem>>, vector<2x128xf32>
    tpu.vector_store %arg14[%c0_220, %c0_221], %508 {strides = array<i32>} : memref<2x128xf32, #tpu.memory_space<vmem>>, vector<2x128xf32>,
    return
  }
  func.func @transform_0(%arg0: i32) -> (i32, i32, i32, i32) {
    %c0_i32 = arith.constant 0 : i32
    %c0_i32_0 = arith.constant 0 : i32
    %c0_i32_1 = arith.constant 0 : i32
    %c0_i32_2 = arith.constant 0 : i32
    return %arg0, %c0_i32, %c0_i32_0, %c0_i32_1 : i32, i32, i32, i32
  }
  func.func @transform_1(%arg0: i32) -> (i32, i32, i32) {
    %c0_i32 = arith.constant 0 : i32
    %c0_i32_0 = arith.constant 0 : i32
    %c0_i32_1 = arith.constant 0 : i32
    %c0_i32_2 = arith.constant 0 : i32
    return %c0_i32, %c0_i32_0, %c0_i32_1 : i32, i32, i32
  }
  func.func @transform_2(%arg0: i32) -> (i32, i32) {
    %c0_i32 = arith.constant 0 : i32
    %c0_i32_0 = arith.constant 0 : i32
    %c0_i32_1 = arith.constant 0 : i32
    return %c0_i32, %c0_i32_0 : i32, i32
  }
  func.func @transform_3(%arg0: i32) -> (i32, i32, i32) {
    %c0_i32 = arith.constant 0 : i32
    %c0_i32_0 = arith.constant 0 : i32
    %c0_i32_1 = arith.constant 0 : i32
    %c0_i32_2 = arith.constant 0 : i32
    return %c0_i32, %c0_i32_0, %c0_i32_1 : i32, i32, i32
  }
  func.func @transform_4(%arg0: i32) -> (i32, i32) {
    %c0_i32 = arith.constant 0 : i32
    %c0_i32_0 = arith.constant 0 : i32
    %c0_i32_1 = arith.constant 0 : i32
    return %c0_i32, %c0_i32_0 : i32, i32
  }
  func.func @transform_5(%arg0: i32) -> (i32, i32, i32) {
    %c0_i32 = arith.constant 0 : i32
    %c0_i32_0 = arith.constant 0 : i32
    %c0_i32_1 = arith.constant 0 : i32
    %c0_i32_2 = arith.constant 0 : i32
    return %c0_i32, %c0_i32_0, %c0_i32_1 : i32, i32, i32
  }
  func.func @transform_6(%arg0: i32) -> (i32, i32) {
    %c0_i32 = arith.constant 0 : i32
    %c0_i32_0 = arith.constant 0 : i32
    %c0_i32_1 = arith.constant 0 : i32
    return %c0_i32, %c0_i32_0 : i32, i32
  }
  func.func @transform_7(%arg0: i32) -> (i32, i32, i32) {
    %c0_i32 = arith.constant 0 : i32
    %c0_i32_0 = arith.constant 0 : i32
    %c0_i32_1 = arith.constant 0 : i32
    %c0_i32_2 = arith.constant 0 : i32
    return %c0_i32, %c0_i32_0, %c0_i32_1 : i32, i32, i32
  }
  func.func @transform_8(%arg0: i32) -> (i32, i32) {
    %c0_i32 = arith.constant 0 : i32
    %c0_i32_0 = arith.constant 0 : i32
    %c0_i32_1 = arith.constant 0 : i32
    return %c0_i32, %c0_i32_0 : i32, i32
  }
  func.func @transform_9(%arg0: i32) -> (i32, i32) {
    %c0_i32 = arith.constant 0 : i32
    %c0_i32_0 = arith.constant 0 : i32
    %c0_i32_1 = arith.constant 0 : i32
    return %c0_i32, %c0_i32_0 : i32, i32
  }
  func.func @transform_10(%arg0: i32) -> (i32, i32) {
    %c0_i32 = arith.constant 0 : i32
    %c0_i32_0 = arith.constant 0 : i32
    %c0_i32_1 = arith.constant 0 : i32
    return %c0_i32, %c0_i32_0 : i32, i32
  }
  func.func @transform_11(%arg0: i32) -> (i32, i32) {
    %c0_i32 = arith.constant 0 : i32
    %c0_i32_0 = arith.constant 0 : i32
    %c0_i32_1 = arith.constant 0 : i32
    return %c0_i32, %c0_i32_0 : i32, i32
  }
  func.func @transform_12(%arg0: i32) -> (i32, i32) {
    %c0_i32 = arith.constant 0 : i32
    %c0_i32_0 = arith.constant 0 : i32
    %c0_i32_1 = arith.constant 0 : i32
    return %c0_i32, %c0_i32_0 : i32, i32
  }
  func.func @transform_13(%arg0: i32) -> (i32, i32) {
    %c0_i32 = arith.constant 0 : i32
    %c0_i32_0 = arith.constant 0 : i32
    return %arg0, %c0_i32 : i32, i32
  }
}

</mosaic_0001>

<llo_original>
// kernel: dqn_forward.1
$region0: #{dqn_forward.1}
  #allocation0 [shape = 'u32[]', space=smem, size = 0x4, offset = 0x4, fixed_abs, tag = 'smem constant byte address 0x4 - core index']
  #allocation1 [shape = 'u32[144,128]{1,0:T(1,128)}', space=vmem, size = 0x12000, scoped, tag = 'internal scratch']
  #allocation2 [shape = 'f32[2,10,10,64]{3,2,1,0:T(8,128)}', space=vmem, size = 0x28000, scoped, tag = 'scratch operand']
  #allocation3 [shape = 'f32[2,10,10,32]{3,2,1,0:T(8,128)}', space=vmem, size = 0x28000, scoped, tag = 'scratch operand']
  %s0 = inlined_call_operand.vmem [shape: f32[2,9,9,64], index: 0, kind: input, shape index: {}]
  %s1 = inlined_call_operand.vmem [shape: bf16[4,64,64], index: 1, kind: input, shape index: {}]
  %s2 = inlined_call_operand.vmem [shape: f32[1,64], index: 2, kind: input, shape index: {}]
  %s3 = inlined_call_operand.vmem [shape: bf16[16,16,32], index: 3, kind: input, shape index: {}]
  %s4 = inlined_call_operand.vmem [shape: f32[1,32], index: 4, kind: input, shape index: {}]
  %s5 = inlined_call_operand.vmem [shape: bf16[9,32,64], index: 5, kind: input, shape index: {}]
  %s6 = inlined_call_operand.vmem [shape: f32[1,64], index: 6, kind: input, shape index: {}]
  %s7 = inlined_call_operand.vmem [shape: bf16[16,64,256], index: 7, kind: input, shape index: {}]
  %s8 = inlined_call_operand.vmem [shape: f32[1,256], index: 8, kind: input, shape index: {}]
  %s9 = inlined_call_operand.vmem [shape: bf16[256,64], index: 9, kind: input, shape index: {}]
  %s10 = inlined_call_operand.vmem [shape: f32[1,64], index: 10, kind: input, shape index: {}]
  %s11 = inlined_call_operand.vmem [shape: bf16[64,128], index: 11, kind: input, shape index: {}]
  %s12 = inlined_call_operand.vmem [shape: f32[1,128], index: 12, kind: input, shape index: {}]
  %s13 = inlined_call_operand.hbm [shape: f32[2,128], index: 13, kind: output, shape index: {}]
  %s14 = sld [smem:[#allocation0]]
  $region62: #{dqn_forward.1} parent=0
    _
  %s16 = ssub.s32 1, %s14
  %s17 = scalar_select 0, %s16, %s14
  $region1: #{dqn_forward.1} parent=0
    #allocation4 [shape = 'u8[1024]{0}', space=vmem, size = 0x400, scoped, tag = 'output window, operand 0, single buffered']
    #allocation5 [shape = 's32[1]{0}', space=sflag, size = 0x4, scoped, tag = 'scoped memory for dqn_forward.1']
    %18 = vsyncpa [#allocation5], 0
    // Predicated region
    $region2: #{dqn_forward.1} parent=1 // pred_check
      _
    $region3: #{dqn_forward.1} parent=1 // pred_check_branch
      %20 = sbr.rel (0) target = $region5
    $region4: #{dqn_forward.1} parent=1 // pred_region
      _
    $region5: #{dqn_forward.1} parent=1 // pred_fallthru
      _
    // Predicated region
    $region6: #{dqn_forward.1} parent=1 // pred_check
      _
    $region7: #{dqn_forward.1} parent=1 // pred_check_branch
      %22 = sbr.rel (0) target = $region9
    $region8: #{dqn_forward.1} parent=1 // pred_region
      _
    $region9: #{dqn_forward.1} parent=1 // pred_fallthru
      _
    // Predicated region
    $region10: #{dqn_forward.1} parent=1 // pred_check
      _
    $region11: #{dqn_forward.1} parent=1 // pred_check_branch
      %24 = sbr.rel (0) target = $region13
    $region12: #{dqn_forward.1} parent=1 // pred_region
      _
    $region13: #{dqn_forward.1} parent=1 // pred_fallthru
      _
    // Predicated region
    $region14: #{dqn_forward.1} parent=1 // pred_check
      _
    $region15: #{dqn_forward.1} parent=1 // pred_check_branch
      %26 = sbr.rel (0) target = $region17
    $region16: #{dqn_forward.1} parent=1 // pred_region
      _
    $region17: #{dqn_forward.1} parent=1 // pred_fallthru
      _
    // Predicated region
    $region18: #{dqn_forward.1} parent=1 // pred_check
      _
    $region19: #{dqn_forward.1} parent=1 // pred_check_branch
      %28 = sbr.rel (0) target = $region21
    $region20: #{dqn_forward.1} parent=1 // pred_region
      _
    $region21: #{dqn_forward.1} parent=1 // pred_fallthru
      _
    // Predicated region
    $region22: #{dqn_forward.1} parent=1 // pred_check
      _
    $region23: #{dqn_forward.1} parent=1 // pred_check_branch
      %30 = sbr.rel (0) target = $region25
    $region24: #{dqn_forward.1} parent=1 // pred_region
      _
    $region25: #{dqn_forward.1} parent=1 // pred_fallthru
      _
    // Predicated region
    $region26: #{dqn_forward.1} parent=1 // pred_check
      _
    $region27: #{dqn_forward.1} parent=1 // pred_check_branch
      %32 = sbr.rel (0) target = $region29
    $region28: #{dqn_forward.1} parent=1 // pred_region
      _
    $region29: #{dqn_forward.1} parent=1 // pred_fallthru
      _
    // Predicated region
    $region30: #{dqn_forward.1} parent=1 // pred_check
      _
    $region31: #{dqn_forward.1} parent=1 // pred_check_branch
      %34 = sbr.rel (0) target = $region33
    $region32: #{dqn_forward.1} parent=1 // pred_region
      _
    $region33: #{dqn_forward.1} parent=1 // pred_fallthru
      _
    // Predicated region
    $region34: #{dqn_forward.1} parent=1 // pred_check
      _
    $region35: #{dqn_forward.1} parent=1 // pred_check_branch
      %36 = sbr.rel (0) target = $region37
    $region36: #{dqn_forward.1} parent=1 // pred_region
      _
    $region37: #{dqn_forward.1} parent=1 // pred_fallthru
      _
    // Predicated region
    $region38: #{dqn_forward.1} parent=1 // pred_check
      _
    $region39: #{dqn_forward.1} parent=1 // pred_check_branch
      %38 = sbr.rel (0) target = $region41
    $region40: #{dqn_forward.1} parent=1 // pred_region
      _
    $region41: #{dqn_forward.1} parent=1 // pred_fallthru
      _
    // Predicated region
    $region42: #{dqn_forward.1} parent=1 // pred_check
      _
    $region43: #{dqn_forward.1} parent=1 // pred_check_branch
      %40 = sbr.rel (0) target = $region45
    $region44: #{dqn_forward.1} parent=1 // pred_region
      _
    $region45: #{dqn_forward.1} parent=1 // pred_fallthru
      _
    // Predicated region
    $region46: #{dqn_forward.1} parent=1 // pred_check
      _
    $region47: #{dqn_forward.1} parent=1 // pred_check_branch
      %42 = sbr.rel (0) target = $region49
    $region48: #{dqn_forward.1} parent=1 // pred_region
      _
    $region49: #{dqn_forward.1} parent=1 // pred_fallthru
      _
    // Predicated region
    $region50: #{dqn_forward.1} parent=1 // pred_check
      _
    $region51: #{dqn_forward.1} parent=1 // pred_check_branch
      %44 = sbr.rel (0) target = $region53
    $region52: #{dqn_forward.1} parent=1 // pred_region
      _
    $region53: #{dqn_forward.1} parent=1 // pred_fallthru
      _
    %v46 = vld [vmem:[%s0] sm:$0xff]
    %v47 = vld [vmem:[%s0 + $0x8] sm:$0x1]
    %v48 = vld [vmem:[%s0 + $0x10] sm:$0xff]
    %v49 = vld [vmem:[%s0 + $0x18] sm:$0x1]
    %v50 = vld [vmem:[%s0 + $0x20] sm:$0xff]
    %v51 = vld [vmem:[%s0 + $0x28] sm:$0x1]
    %v52 = vld [vmem:[%s0 + $0x30] sm:$0xff]
    %v53 = vld [vmem:[%s0 + $0x38] sm:$0x1]
    %v54 = vld [vmem:[%s0 + $0x40] sm:$0xff]
    %v55 = vld [vmem:[%s0 + $0x48] sm:$0x1]
    %v56 = vld [vmem:[%s0 + $0x50] sm:$0xff]
    %v57 = vld [vmem:[%s0 + $0x58] sm:$0x1]
    %v58 = vld [vmem:[%s0 + $0x60] sm:$0xff]
    %v59 = vld [vmem:[%s0 + $0x68] sm:$0x1]
    %v60 = vld [vmem:[%s0 + $0x70] sm:$0xff]
    %v61 = vld [vmem:[%s0 + $0x78] sm:$0x1]
    %v62 = vld [vmem:[%s0 + $0x80] sm:$0xff]
    %v63 = vld [vmem:[%s0 + $0x88] sm:$0x1]
    %v64 = vld [vmem:[%s0 + $0x90] sm:$0xff]
    %v65 = vld [vmem:[%s0 + $0x98] sm:$0x1]
    %v66 = vld [vmem:[%s0 + $0xa0] sm:$0xff]
    %v67 = vld [vmem:[%s0 + $0xa8] sm:$0x1]
    %v68 = vld [vmem:[%s0 + $0xb0] sm:$0xff]
    %v69 = vld [vmem:[%s0 + $0xb8] sm:$0x1]
    %v70 = vld [vmem:[%s0 + $0xc0] sm:$0xff]
    %v71 = vld [vmem:[%s0 + $0xc8] sm:$0x1]
    %v72 = vld [vmem:[%s0 + $0xd0] sm:$0xff]
    %v73 = vld [vmem:[%s0 + $0xd8] sm:$0x1]
    %v74 = vld [vmem:[%s0 + $0xe0] sm:$0xff]
    %v75 = vld [vmem:[%s0 + $0xe8] sm:$0x1]
    %v76 = vld [vmem:[%s0 + $0xf0] sm:$0xff]
    %v77 = vld [vmem:[%s0 + $0xf8] sm:$0x1]
    %v78 = vld [vmem:[%s0 + $0x100] sm:$0xff]
    %v79 = vld [vmem:[%s0 + $0x108] sm:$0x1]
    %v80 = vld [vmem:[%s0 + $0x110] sm:$0xff]
    %v81 = vld [vmem:[%s0 + $0x118] sm:$0x1]
    %v82 = vpack.c.bf16 %v48, %v46
    %v83 = vpack.c.bf16 %v52, %v50
    %v84 = vpack.c.bf16 %v56, %v54
    %v85 = vpack.c.bf16 %v60, %v58
    %v86 = vpack.c.bf16 %v66, %v64
    %v87 = vpack.c.bf16 %v70, %v68
    %v88 = vpack.c.bf16 %v74, %v72
    %v89 = vpack.c.bf16 %v78, %v76
    %v90 = vld [vmem:[%s1] sm:$0xf]
    %v91 = vld [vmem:[%s1 + $0x4] sm:$0xf]
    %v92 = vld [vmem:[%s1 + $0x8] sm:$0xf]
    %v93 = vld [vmem:[%s1 + $0xc] sm:$0xf]
    %v94 = vld [vmem:[%s1 + $0x10] sm:$0xf]
    %v95 = vld [vmem:[%s1 + $0x14] sm:$0xf]
    %v96 = vld [vmem:[%s1 + $0x18] sm:$0xf]
    %v97 = vld [vmem:[%s1 + $0x1c] sm:$0xf]
    %vm130 = vcmask 1046528
    %v131 = vrot.slane %v46, 1
    %v132 = vrot.slane %v47, 1
    %v133 = vsel %vm130, %v131, %v132
    %v134 = vrot.slane %v48, 1
    %v135 = vrot.slane %v49, 1
    %v136 = vsel %vm130, %v134, %v135
    %v137 = vrot.slane %v50, 1
    %v138 = vrot.slane %v51, 1
    %v139 = vsel %vm130, %v137, %v138
    %v140 = vrot.slane %v52, 1
    %v141 = vrot.slane %v53, 1
    %v142 = vsel %vm130, %v140, %v141
    %v143 = vrot.slane %v54, 1
    %v144 = vrot.slane %v55, 1
    %v145 = vsel %vm130, %v143, %v144
    %v146 = vrot.slane %v56, 1
    %v147 = vrot.slane %v57, 1
    %v148 = vsel %vm130, %v146, %v147
    %v149 = vrot.slane %v58, 1
    %v150 = vrot.slane %v59, 1
    %v151 = vsel %vm130, %v149, %v150
    %v152 = vrot.slane %v60, 1
    %v153 = vrot.slane %v61, 1
    %v154 = vsel %vm130, %v152, %v153
    %v155 = vrot.slane %v64, 1
    %v156 = vrot.slane %v65, 1
    %v157 = vsel %vm130, %v155, %v156
    %v158 = vrot.slane %v66, 1
    %v159 = vrot.slane %v67, 1
    %v160 = vsel %vm130, %v158, %v159
    %v161 = vrot.slane %v68, 1
    %v162 = vrot.slane %v69, 1
    %v163 = vsel %vm130, %v161, %v162
    %v164 = vrot.slane %v70, 1
    %v165 = vrot.slane %v71, 1
    %v166 = vsel %vm130, %v164, %v165
    %v167 = vrot.slane %v72, 1
    %v168 = vrot.slane %v73, 1
    %v169 = vsel %vm130, %v167, %v168
    %v170 = vrot.slane %v74, 1
    %v171 = vrot.slane %v75, 1
    %v172 = vsel %vm130, %v170, %v171
    %v173 = vrot.slane %v76, 1
    %v174 = vrot.slane %v77, 1
    %v175 = vsel %vm130, %v173, %v174
    %v176 = vrot.slane %v78, 1
    %v177 = vrot.slane %v79, 1
    %v178 = vsel %vm130, %v176, %v177
    %v195 = vpack.c.bf16 %v136, %v133
    %v196 = vpack.c.bf16 %v142, %v139
    %v197 = vpack.c.bf16 %v148, %v145
    %v198 = vpack.c.bf16 %v154, %v151
    %v199 = vpack.c.bf16 %v160, %v157
    %v200 = vpack.c.bf16 %v166, %v163
    %v201 = vpack.c.bf16 %v172, %v169
    %v202 = vpack.c.bf16 %v178, %v175
    %s203 = scalar_lea.vmem %s1, 32
    %v204 = vld [vmem:[%s203] sm:$0xf]
    %v205 = vld [vmem:[%s203 + $0x4] sm:$0xf]
    %v206 = vld [vmem:[%s203 + $0x8] sm:$0xf]
    %v207 = vld [vmem:[%s203 + $0xc] sm:$0xf]
    %v208 = vld [vmem:[%s203 + $0x10] sm:$0xf]
    %v209 = vld [vmem:[%s203 + $0x14] sm:$0xf]
    %v210 = vld [vmem:[%s203 + $0x18] sm:$0xf]
    %v211 = vld [vmem:[%s203 + $0x1c] sm:$0xf]
    %v220 = vunpack.c.l.b16 %v204
    %v221 = vunpack.c.l.b16 %v205
    %v222 = vunpack.c.l.b16 %v206
    %v223 = vunpack.c.l.b16 %v207
    %v224 = vunpack.c.l.b16 %v208
    %v225 = vunpack.c.l.b16 %v209
    %v226 = vunpack.c.l.b16 %v210
    %v227 = vunpack.c.l.b16 %v211
    %v228 = vpack.c.b16 %v221, %v220
    %v229 = vpack.c.b16 %v223, %v222
    %v230 = vpack.c.b16 %v225, %v224
    %v231 = vpack.c.b16 %v227, %v226
    %vm236 = vcmask 523264
    %v238 = vsel %vm236, %v195, 0
    %v241 = vsel %vm236, %v196, 0
    %v244 = vsel %vm236, %v197, 0
    %v247 = vsel %vm236, %v198, 0
    %v250 = vsel %vm236, %v199, 0
    %v253 = vsel %vm236, %v200, 0
    %v256 = vsel %vm236, %v201, 0
    %v259 = vsel %vm236, %v202, 0
    %261 = vmatprep.subr.bf16.mxu0 0
    %262 = vmatpush1.bf16.msra.mxu0 %v228
    %263 = vmatprep.subr.bf16.mxu0 0
    %264 = vmatpush1.bf16.msra.mxu0 %v229
    %265 = vmatprep.subr.bf16.mxu0 0
    %266 = vmatpush1.bf16.msra.mxu0 %v230
    %267 = vmatprep.subr.bf16.mxu0 0
    %268 = vmatpush1.bf16.msra.mxu0 %v231
    %269 = vmatprep.subr.bf16.mxu0 0
    %270 = vmatpush1.bf16.msra.mxu0 0
    %271 = vmatprep.subr.bf16.mxu0 0
    %272 = vmatpush1.bf16.msra.mxu0 0
    %273 = vmatprep.subr.bf16.mxu0 0
    %274 = vmatpush1.bf16.msra.mxu0 0
    %275 = vmatprep.subr.bf16.mxu0 0
    %276 = vmatpush1.bf16.msra.mxu0 0
    %277 = vmatprep.subr.bf16.mxu0 0
    %278 = vmatpush1.bf16.msra.mxu0 0
    %279 = vmatprep.subr.bf16.mxu0 0
    %280 = vmatpush1.bf16.msra.mxu0 0
    %281 = vmatprep.subr.bf16.mxu0 0
    %282 = vmatpush1.bf16.msra.mxu0 0
    %283 = vmatprep.subr.bf16.mxu0 0
    %284 = vmatpush1.bf16.msra.mxu0 0
    %285 = vmatprep.subr.bf16.mxu0 0
    %286 = vmatpush1.bf16.msra.mxu0 0
    %287 = vmatprep.subr.bf16.mxu0 0
    %288 = vmatpush1.bf16.msra.mxu0 0
    %289 = vmatprep.subr.bf16.mxu0 0
    %290 = vmatpush1.bf16.msra.mxu0 0
    %291 = vmatprep.subr.bf16.mxu0 0
    %292 = vmatpush1.bf16.msra.mxu0 0
    %293 = vmatprep.mubr.bf16.mxu0 0
    %294 = vmatmul.mubr.bf16.gmra.mrb[0].mxu0 %v238
    %v295 = vpop.f32.mrb[0].mxu0
    %v296 = vadd.f32 0.0, %v295
    %v297 = vpop.f32.mrb[0].mxu0
    %v298 = vpop.f32.mrb[0].mxu0
    %v299 = vadd.f32 0.0, %v298
    %v300 = vpop.f32.mrb[0].mxu0
    %301 = vmatprep.mubr.bf16.mxu0 0
    %302 = vmatmul.mubr.bf16.gmra.mrb[0].mxu0 %v241
    %v303 = vpop.f32.mrb[0].mxu0
    %v304 = vadd.f32 0.0, %v303
    %v305 = vpop.f32.mrb[0].mxu0
    %v306 = vpop.f32.mrb[0].mxu0
    %v307 = vadd.f32 0.0, %v306
    %v308 = vpop.f32.mrb[0].mxu0
    %309 = vmatprep.mubr.bf16.mxu0 0
    %310 = vmatmul.mubr.bf16.gmra.mrb[0].mxu0 %v244
    %v311 = vpop.f32.mrb[0].mxu0
    %v312 = vadd.f32 0.0, %v311
    %v313 = vpop.f32.mrb[0].mxu0
    %v314 = vpop.f32.mrb[0].mxu0
    %v315 = vadd.f32 0.0, %v314
    %v316 = vpop.f32.mrb[0].mxu0
    %317 = vmatprep.mubr.bf16.mxu0 0
    %318 = vmatmul.mubr.bf16.gmra.mrb[0].mxu0 %v247
    %v319 = vpop.f32.mrb[0].mxu0
    %v320 = vadd.f32 0.0, %v319
    %v321 = vpop.f32.mrb[0].mxu0
    %v322 = vpop.f32.mrb[0].mxu0
    %v323 = vadd.f32 0.0, %v322
    %v324 = vpop.f32.mrb[0].mxu0
    %325 = vmatprep.mubr.bf16.mxu0 0
    %326 = vmatmul.mubr.bf16.gmra.mrb[0].mxu0 %v250
    %v327 = vpop.f32.mrb[0].mxu0
    %v328 = vadd.f32 0.0, %v327
    %v329 = vpop.f32.mrb[0].mxu0
    %v330 = vpop.f32.mrb[0].mxu0
    %v331 = vadd.f32 0.0, %v330
    %v332 = vpop.f32.mrb[0].mxu0
    %333 = vmatprep.mubr.bf16.mxu0 0
    %334 = vmatmul.mubr.bf16.gmra.mrb[0].mxu0 %v253
    %v335 = vpop.f32.mrb[0].mxu0
    %v336 = vadd.f32 0.0, %v335
    %v337 = vpop.f32.mrb[0].mxu0
    %v338 = vpop.f32.mrb[0].mxu0
    %v339 = vadd.f32 0.0, %v338
    %v340 = vpop.f32.mrb[0].mxu0
    %341 = vmatprep.mubr.bf16.mxu0 0
    %342 = vmatmul.mubr.bf16.gmra.mrb[0].mxu0 %v256
    %v343 = vpop.f32.mrb[0].mxu0
    %v344 = vadd.f32 0.0, %v343
    %v345 = vpop.f32.mrb[0].mxu0
    %v346 = vpop.f32.mrb[0].mxu0
    %v347 = vadd.f32 0.0, %v346
    %v348 = vpop.f32.mrb[0].mxu0
    %349 = vmatprep.mubr.bf16.mxu0 0
    %350 = vmatmul.mubr.bf16.gmra.mrb[0].mxu0 %v259
    %v351 = vpop.f32.mrb[0].mxu0
    %v352 = vadd.f32 0.0, %v351
    %v353 = vpop.f32.mrb[0].mxu0
    %v354 = vpop.f32.mrb[0].mxu0
    %v355 = vadd.f32 0.0, %v354
    %v356 = vpop.f32.mrb[0].mxu0
    %357 = vdwg.mxu0
    %v366 = vunpack.c.l.b16 %v90
    %v367 = vunpack.c.l.b16 %v91
    %v368 = vunpack.c.l.b16 %v92
    %v369 = vunpack.c.l.b16 %v93
    %v370 = vunpack.c.l.b16 %v94
    %v371 = vunpack.c.l.b16 %v95
    %v372 = vunpack.c.l.b16 %v96
    %v373 = vunpack.c.l.b16 %v97
    %v374 = vpack.c.b16 %v367, %v366
    %v375 = vpack.c.b16 %v369, %v368
    %v376 = vpack.c.b16 %v371, %v370
    %v377 = vpack.c.b16 %v373, %v372
    %v383 = vsel %vm236, %v82, 0
    %v386 = vsel %vm236, %v83, 0
    %v389 = vsel %vm236, %v84, 0
    %v392 = vsel %vm236, %v85, 0
    %v395 = vsel %vm236, %v86, 0
    %v398 = vsel %vm236, %v87, 0
    %v401 = vsel %vm236, %v88, 0
    %v404 = vsel %vm236, %v89, 0
    %406 = vmatprep.subr.bf16.mxu0 0
    %407 = vmatpush1.bf16.msra.mxu0 %v374
    %408 = vmatprep.subr.bf16.mxu0 0
    %409 = vmatpush1.bf16.msra.mxu0 %v375
    %410 = vmatprep.subr.bf16.mxu0 0
    %411 = vmatpush1.bf16.msra.mxu0 %v376
    %412 = vmatprep.subr.bf16.mxu0 0
    %413 = vmatpush1.bf16.msra.mxu0 %v377
    %414 = vmatprep.subr.bf16.mxu0 0
    %415 = vmatpush1.bf16.msra.mxu0 0
    %416 = vmatprep.subr.bf16.mxu0 0
    %417 = vmatpush1.bf16.msra.mxu0 0
    %418 = vmatprep.subr.bf16.mxu0 0
    %419 = vmatpush1.bf16.msra.mxu0 0
    %420 = vmatprep.subr.bf16.mxu0 0
    %421 = vmatpush1.bf16.msra.mxu0 0
    %422 = vmatprep.subr.bf16.mxu0 0
    %423 = vmatpush1.bf16.msra.mxu0 0
    %424 = vmatprep.subr.bf16.mxu0 0
    %425 = vmatpush1.bf16.msra.mxu0 0
    %426 = vmatprep.subr.bf16.mxu0 0
    %427 = vmatpush1.bf16.msra.mxu0 0
    %428 = vmatprep.subr.bf16.mxu0 0
    %429 = vmatpush1.bf16.msra.mxu0 0
    %430 = vmatprep.subr.bf16.mxu0 0
    %431 = vmatpush1.bf16.msra.mxu0 0
    %432 = vmatprep.subr.bf16.mxu0 0
    %433 = vmatpush1.bf16.msra.mxu0 0
    %434 = vmatprep.subr.bf16.mxu0 0
    %435 = vmatpush1.bf16.msra.mxu0 0
    %436 = vmatprep.subr.bf16.mxu0 0
    %437 = vmatpush1.bf16.msra.mxu0 0
    %438 = vmatprep.mubr.bf16.mxu0 0
    %439 = vmatmul.mubr.bf16.gmra.mrb[0].mxu0 %v383
    %v440 = vpop.f32.mrb[0].mxu0
    %v441 = vadd.f32 %v296, %v440
    %v442 = vpop.f32.mrb[0].mxu0
    %v443 = vpop.f32.mrb[0].mxu0
    %v444 = vadd.f32 %v299, %v443
    %v445 = vpop.f32.mrb[0].mxu0
    %446 = vmatprep.mubr.bf16.mxu0 0
    %447 = vmatmul.mubr.bf16.gmra.mrb[0].mxu0 %v386
    %v448 = vpop.f32.mrb[0].mxu0
    %v449 = vadd.f32 %v304, %v448
    %v450 = vpop.f32.mrb[0].mxu0
    %v451 = vpop.f32.mrb[0].mxu0
    %v452 = vadd.f32 %v307, %v451
    %v453 = vpop.f32.mrb[0].mxu0
    %454 = vmatprep.mubr.bf16.mxu0 0
    %455 = vmatmul.mubr.bf16.gmra.mrb[0].mxu0 %v389
    %v456 = vpop.f32.mrb[0].mxu0
    %v457 = vadd.f32 %v312, %v456
    %v458 = vpop.f32.mrb[0].mxu0
    %v459 = vpop.f32.mrb[0].mxu0
    %v460 = vadd.f32 %v315, %v459
    %v461 = vpop.f32.mrb[0].mxu0
    %462 = vmatprep.mubr.bf16.mxu0 0
    %463 = vmatmul.mubr.bf16.gmra.mrb[0].mxu0 %v392
    %v464 = vpop.f32.mrb[0].mxu0
    %v465 = vadd.f32 %v320, %v464
    %v466 = vpop.f32.mrb[0].mxu0
    %v467 = vpop.f32.mrb[0].mxu0
    %v468 = vadd.f32 %v323, %v467
    %v469 = vpop.f32.mrb[0].mxu0
    %470 = vmatprep.mubr.bf16.mxu0 0
    %471 = vmatmul.mubr.bf16.gmra.mrb[0].mxu0 %v395
    %v472 = vpop.f32.mrb[0].mxu0
    %v473 = vadd.f32 %v328, %v472
    %v474 = vpop.f32.mrb[0].mxu0
    %v475 = vpop.f32.mrb[0].mxu0
    %v476 = vadd.f32 %v331, %v475
    %v477 = vpop.f32.mrb[0].mxu0
    %478 = vmatprep.mubr.bf16.mxu0 0
    %479 = vmatmul.mubr.bf16.gmra.mrb[0].mxu0 %v398
    %v480 = vpop.f32.mrb[0].mxu0
    %v481 = vadd.f32 %v336, %v480
    %v482 = vpop.f32.mrb[0].mxu0
    %v483 = vpop.f32.mrb[0].mxu0
    %v484 = vadd.f32 %v339, %v483
    %v485 = vpop.f32.mrb[0].mxu0
    %486 = vmatprep.mubr.bf16.mxu0 0
    %487 = vmatmul.mubr.bf16.gmra.mrb[0].mxu0 %v401
    %v488 = vpop.f32.mrb[0].mxu0
    %v489 = vadd.f32 %v344, %v488
    %v490 = vpop.f32.mrb[0].mxu0
    %v491 = vpop.f32.mrb[0].mxu0
    %v492 = vadd.f32 %v347, %v491
    %v493 = vpop.f32.mrb[0].mxu0
    %494 = vmatprep.mubr.bf16.mxu0 0
    %495 = vmatmul.mubr.bf16.gmra.mrb[0].mxu0 %v404
    %v496 = vpop.f32.mrb[0].mxu0
    %v497 = vadd.f32 %v352, %v496
    %v498 = vpop.f32.mrb[0].mxu0
    %v499 = vpop.f32.mrb[0].mxu0
    %v500 = vadd.f32 %v355, %v499
    %v501 = vpop.f32.mrb[0].mxu0
    %502 = vdwg.mxu0
    %v503 = vpack.c.bf16 %v50, %v48
    %v504 = vpack.c.bf16 %v54, %v52
    %v505 = vpack.c.bf16 %v58, %v56
    %v506 = vpack.c.bf16 %v62, %v60
    %v507 = vpack.c.bf16 %v68, %v66
    %v508 = vpack.c.bf16 %v72, %v70
    %v509 = vpack.c.bf16 %v76, %v74
    %v510 = vpack.c.bf16 %v80, %v78
    %s511 = scalar_lea.vmem %s1, 64
    %v512 = vld [vmem:[%s511] sm:$0xf]
    %v513 = vld [vmem:[%s511 + $0x4] sm:$0xf]
    %v514 = vld [vmem:[%s511 + $0x8] sm:$0xf]
    %v515 = vld [vmem:[%s511 + $0xc] sm:$0xf]
    %v516 = vld [vmem:[%s511 + $0x10] sm:$0xf]
    %v517 = vld [vmem:[%s511 + $0x14] sm:$0xf]
    %v518 = vld [vmem:[%s511 + $0x18] sm:$0xf]
    %v519 = vld [vmem:[%s511 + $0x1c] sm:$0xf]
    %v528 = vunpack.c.l.b16 %v512
    %v529 = vunpack.c.l.b16 %v513
    %v530 = vunpack.c.l.b16 %v514
    %v531 = vunpack.c.l.b16 %v515
    %v532 = vunpack.c.l.b16 %v516
    %v533 = vunpack.c.l.b16 %v517
    %v534 = vunpack.c.l.b16 %v518
    %v535 = vunpack.c.l.b16 %v519
    %v536 = vpack.c.b16 %v529, %v528
    %v537 = vpack.c.b16 %v531, %v530
    %v538 = vpack.c.b16 %v533, %v532
    %v539 = vpack.c.b16 %v535, %v534
    %v545 = vsel %vm236, %v503, 0
    %v548 = vsel %vm236, %v504, 0
    %v551 = vsel %vm236, %v505, 0
    %v554 = vsel %vm236, %v506, 0
    %v557 = vsel %vm236, %v507, 0
    %v560 = vsel %vm236, %v508, 0
    %v563 = vsel %vm236, %v509, 0
    %v566 = vsel %vm236, %v510, 0
    %568 = vmatprep.subr.bf16.mxu0 0
    %569 = vmatpush1.bf16.msra.mxu0 %v536
    %570 = vmatprep.subr.bf16.mxu0 0
    %571 = vmatpush1.bf16.msra.mxu0 %v537
    %572 = vmatprep.subr.bf16.mxu0 0
    %573 = vmatpush1.bf16.msra.mxu0 %v538
    %574 = vmatprep.subr.bf16.mxu0 0
    %575 = vmatpush1.bf16.msra.mxu0 %v539
    %576 = vmatprep.subr.bf16.mxu0 0
    %577 = vmatpush1.bf16.msra.mxu0 0
    %578 = vmatprep.subr.bf16.mxu0 0
    %579 = vmatpush1.bf16.msra.mxu0 0
    %580 = vmatprep.subr.bf16.mxu0 0
    %581 = vmatpush1.bf16.msra.mxu0 0
    %582 = vmatprep.subr.bf16.mxu0 0
    %583 = vmatpush1.bf16.msra.mxu0 0
    %584 = vmatprep.subr.bf16.mxu0 0
    %585 = vmatpush1.bf16.msra.mxu0 0
    %586 = vmatprep.subr.bf16.mxu0 0
    %587 = vmatpush1.bf16.msra.mxu0 0
    %588 = vmatprep.subr.bf16.mxu0 0
    %589 = vmatpush1.bf16.msra.mxu0 0
    %590 = vmatprep.subr.bf16.mxu0 0
    %591 = vmatpush1.bf16.msra.mxu0 0
    %592 = vmatprep.subr.bf16.mxu0 0
    %593 = vmatpush1.bf16.msra.mxu0 0
    %594 = vmatprep.subr.bf16.mxu0 0
    %595 = vmatpush1.bf16.msra.mxu0 0
    %596 = vmatprep.subr.bf16.mxu0 0
    %597 = vmatpush1.bf16.msra.mxu0 0
    %598 = vmatprep.subr.bf16.mxu0 0
    %599 = vmatpush1.bf16.msra.mxu0 0
    %600 = vmatprep.mubr.bf16.mxu0 0
    %601 = vmatmul.mubr.bf16.gmra.mrb[0].mxu0 %v545
    %v602 = vpop.f32.mrb[0].mxu0
    %v603 = vadd.f32 0.0, %v602
    %v604 = vpop.f32.mrb[0].mxu0
    %v605 = vpop.f32.mrb[0].mxu0
    %v606 = vadd.f32 0.0, %v605
    %v607 = vpop.f32.mrb[0].mxu0
    %608 = vmatprep.mubr.bf16.mxu0 0
    %609 = vmatmul.mubr.bf16.gmra.mrb[0].mxu0 %v548
    %v610 = vpop.f32.mrb[0].mxu0
    %v611 = vadd.f32 0.0, %v610
    %v612 = vpop.f32.mrb[0].mxu0
    %v613 = vpop.f32.mrb[0].mxu0
    %v614 = vadd.f32 0.0, %v613
    %v615 = vpop.f32.mrb[0].mxu0
    %616 = vmatprep.mubr.bf16.mxu0 0
    %617 = vmatmul.mubr.bf16.gmra.mrb[0].mxu0 %v551
    %v618 = vpop.f32.mrb[0].mxu0
    %v619 = vadd.f32 0.0, %v618
    %v620 = vpop.f32.mrb[0].mxu0
    %v621 = vpop.f32.mrb[0].mxu0
    %v622 = vadd.f32 0.0, %v621
    %v623 = vpop.f32.mrb[0].mxu0
    %624 = vmatprep.mubr.bf16.mxu0 0
    %625 = vmatmul.mubr.bf16.gmra.mrb[0].mxu0 %v554
    %v626 = vpop.f32.mrb[0].mxu0
    %v627 = vadd.f32 0.0, %v626
    %v628 = vpop.f32.mrb[0].mxu0
    %v629 = vpop.f32.mrb[0].mxu0
    %v630 = vadd.f32 0.0, %v629
    %v631 = vpop.f32.mrb[0].mxu0
    %632 = vmatprep.mubr.bf16.mxu0 0
    %633 = vmatmul.mubr.bf16.gmra.mrb[0].mxu0 %v557
    %v634 = vpop.f32.mrb[0].mxu0
    %v635 = vadd.f32 0.0, %v634
    %v636 = vpop.f32.mrb[0].mxu0
    %v637 = vpop.f32.mrb[0].mxu0
    %v638 = vadd.f32 0.0, %v637
    %v639 = vpop.f32.mrb[0].mxu0
    %640 = vmatprep.mubr.bf16.mxu0 0
    %641 = vmatmul.mubr.bf16.gmra.mrb[0].mxu0 %v560
    %v642 = vpop.f32.mrb[0].mxu0
    %v643 = vadd.f32 0.0, %v642
    %v644 = vpop.f32.mrb[0].mxu0
    %v645 = vpop.f32.mrb[0].mxu0
    %v646 = vadd.f32 0.0, %v645
    %v647 = vpop.f32.mrb[0].mxu0
    %648 = vmatprep.mubr.bf16.mxu0 0
    %649 = vmatmul.mubr.bf16.gmra.mrb[0].mxu0 %v563
    %v650 = vpop.f32.mrb[0].mxu0
    %v651 = vadd.f32 0.0, %v650
    %v652 = vpop.f32.mrb[0].mxu0
    %v653 = vpop.f32.mrb[0].mxu0
    %v654 = vadd.f32 0.0, %v653
    %v655 = vpop.f32.mrb[0].mxu0
    %656 = vmatprep.mubr.bf16.mxu0 0
    %657 = vmatmul.mubr.bf16.gmra.mrb[0].mxu0 %v566
    %v658 = vpop.f32.mrb[0].mxu0
    %v659 = vadd.f32 0.0, %v658
    %v660 = vpop.f32.mrb[0].mxu0
    %v661 = vpop.f32.mrb[0].mxu0
    %v662 = vadd.f32 0.0, %v661
    %v663 = vpop.f32.mrb[0].mxu0
    %664 = vdwg.mxu0
    %v665 = vadd.f32 %v441, %v603
    %v666 = vadd.f32 %v444, %v606
    %v667 = vadd.f32 %v449, %v611
    %v668 = vadd.f32 %v452, %v614
    %v669 = vadd.f32 %v457, %v619
    %v670 = vadd.f32 %v460, %v622
    %v671 = vadd.f32 %v465, %v627
    %v672 = vadd.f32 %v468, %v630
    %v673 = vadd.f32 %v473, %v635
    %v674 = vadd.f32 %v476, %v638
    %v675 = vadd.f32 %v481, %v643
    %v676 = vadd.f32 %v484, %v646
    %v677 = vadd.f32 %v489, %v651
    %v678 = vadd.f32 %v492, %v654
    %v679 = vadd.f32 %v497, %v659
    %v680 = vadd.f32 %v500, %v662
    %v685 = vrot.slane %v62, 1
    %v686 = vrot.slane %v63, 1
    %v687 = vsel %vm130, %v685, %v686
    %v688 = vrot.slane %v80, 1
    %v689 = vrot.slane %v81, 1
    %v690 = vsel %vm130, %v688, %v689
    %v693 = vpack.c.bf16 %v139, %v136
    %v694 = vpack.c.bf16 %v145, %v142
    %v695 = vpack.c.bf16 %v151, %v148
    %v696 = vpack.c.bf16 %v687, %v154
    %v697 = vpack.c.bf16 %v163, %v160
    %v698 = vpack.c.bf16 %v169, %v166
    %v699 = vpack.c.bf16 %v175, %v172
    %v700 = vpack.c.bf16 %v690, %v178
    %s701 = scalar_lea.vmem %s1, 96
    %v702 = vld [vmem:[%s701] sm:$0xf]
    %v703 = vld [vmem:[%s701 + $0x4] sm:$0xf]
    %v704 = vld [vmem:[%s701 + $0x8] sm:$0xf]
    %v705 = vld [vmem:[%s701 + $0xc] sm:$0xf]
    %v706 = vld [vmem:[%s701 + $0x10] sm:$0xf]
    %v707 = vld [vmem:[%s701 + $0x14] sm:$0xf]
    %v708 = vld [vmem:[%s701 + $0x18] sm:$0xf]
    %v709 = vld [vmem:[%s701 + $0x1c] sm:$0xf]
    %v718 = vunpack.c.l.b16 %v702
    %v719 = vunpack.c.l.b16 %v703
    %v720 = vunpack.c.l.b16 %v704
    %v721 = vunpack.c.l.b16 %v705
    %v722 = vunpack.c.l.b16 %v706
    %v723 = vunpack.c.l.b16 %v707
    %v724 = vunpack.c.l.b16 %v708
    %v725 = vunpack.c.l.b16 %v709
    %v726 = vpack.c.b16 %v719, %v718
    %v727 = vpack.c.b16 %v721, %v720
    %v728 = vpack.c.b16 %v723, %v722
    %v729 = vpack.c.b16 %v725, %v724
    %v735 = vsel %vm236, %v693, 0
    %v738 = vsel %vm236, %v694, 0
    %v741 = vsel %vm236, %v695, 0
    %v744 = vsel %vm236, %v696, 0
    %v747 = vsel %vm236, %v697, 0
    %v750 = vsel %vm236, %v698, 0
    %v753 = vsel %vm236, %v699, 0
    %v756 = vsel %vm236, %v700, 0
    %758 = vmatprep.subr.bf16.mxu0 0
    %759 = vmatpush1.bf16.msra.mxu0 %v726
    %760 = vmatprep.subr.bf16.mxu0 0
    %761 = vmatpush1.bf16.msra.mxu0 %v727
    %762 = vmatprep.subr.bf16.mxu0 0
    %763 = vmatpush1.bf16.msra.mxu0 %v728
    %764 = vmatprep.subr.bf16.mxu0 0
    %765 = vmatpush1.bf16.msra.mxu0 %v729
    %766 = vmatprep.subr.bf16.mxu0 0
    %767 = vmatpush1.bf16.msra.mxu0 0
    %768 = vmatprep.subr.bf16.mxu0 0
    %769 = vmatpush1.bf16.msra.mxu0 0
    %770 = vmatprep.subr.bf16.mxu0 0
    %771 = vmatpush1.bf16.msra.mxu0 0
    %772 = vmatprep.subr.bf16.mxu0 0
    %773 = vmatpush1.bf16.msra.mxu0 0
    %774 = vmatprep.subr.bf16.mxu0 0
    %775 = vmatpush1.bf16.msra.mxu0 0
    %776 = vmatprep.subr.bf16.mxu0 0
    %777 = vmatpush1.bf16.msra.mxu0 0
    %778 = vmatprep.subr.bf16.mxu0 0
    %779 = vmatpush1.bf16.msra.mxu0 0
    %780 = vmatprep.subr.bf16.mxu0 0
    %781 = vmatpush1.bf16.msra.mxu0 0
    %782 = vmatprep.subr.bf16.mxu0 0
    %783 = vmatpush1.bf16.msra.mxu0 0
    %784 = vmatprep.subr.bf16.mxu0 0
    %785 = vmatpush1.bf16.msra.mxu0 0
    %786 = vmatprep.subr.bf16.mxu0 0
    %787 = vmatpush1.bf16.msra.mxu0 0
    %788 = vmatprep.subr.bf16.mxu0 0
    %789 = vmatpush1.bf16.msra.mxu0 0
    %790 = vmatprep.mubr.bf16.mxu0 0
    %791 = vmatmul.mubr.bf16.gmra.mrb[0].mxu0 %v735
    %v792 = vpop.f32.mrb[0].mxu0
    %v793 = vadd.f32 0.0, %v792
    %v794 = vpop.f32.mrb[0].mxu0
    %v795 = vpop.f32.mrb[0].mxu0
    %v796 = vadd.f32 0.0, %v795
    %v797 = vpop.f32.mrb[0].mxu0
    %798 = vmatprep.mubr.bf16.mxu0 0
    %799 = vmatmul.mubr.bf16.gmra.mrb[0].mxu0 %v738
    %v800 = vpop.f32.mrb[0].mxu0
    %v801 = vadd.f32 0.0, %v800
    %v802 = vpop.f32.mrb[0].mxu0
    %v803 = vpop.f32.mrb[0].mxu0
    %v804 = vadd.f32 0.0, %v803
    %v805 = vpop.f32.mrb[0].mxu0
    %806 = vmatprep.mubr.bf16.mxu0 0
    %807 = vmatmul.mubr.bf16.gmra.mrb[0].mxu0 %v741
    %v808 = vpop.f32.mrb[0].mxu0
    %v809 = vadd.f32 0.0, %v808
    %v810 = vpop.f32.mrb[0].mxu0
    %v811 = vpop.f32.mrb[0].mxu0
    %v812 = vadd.f32 0.0, %v811
    %v813 = vpop.f32.mrb[0].mxu0
    %814 = vmatprep.mubr.bf16.mxu0 0
    %815 = vmatmul.mubr.bf16.gmra.mrb[0].mxu0 %v744
    %v816 = vpop.f32.mrb[0].mxu0
    %v817 = vadd.f32 0.0, %v816
    %v818 = vpop.f32.mrb[0].mxu0
    %v819 = vpop.f32.mrb[0].mxu0
    %v820 = vadd.f32 0.0, %v819
    %v821 = vpop.f32.mrb[0].mxu0
    %822 = vmatprep.mubr.bf16.mxu0 0
    %823 = vmatmul.mubr.bf16.gmra.mrb[0].mxu0 %v747
    %v824 = vpop.f32.mrb[0].mxu0
    %v825 = vadd.f32 0.0, %v824
    %v826 = vpop.f32.mrb[0].mxu0
    %v827 = vpop.f32.mrb[0].mxu0
    %v828 = vadd.f32 0.0, %v827
    %v829 = vpop.f32.mrb[0].mxu0
    %830 = vmatprep.mubr.bf16.mxu0 0
    %831 = vmatmul.mubr.bf16.gmra.mrb[0].mxu0 %v750
    %v832 = vpop.f32.mrb[0].mxu0
    %v833 = vadd.f32 0.0, %v832
    %v834 = vpop.f32.mrb[0].mxu0
    %v835 = vpop.f32.mrb[0].mxu0
    %v836 = vadd.f32 0.0, %v835
    %v837 = vpop.f32.mrb[0].mxu0
    %838 = vmatprep.mubr.bf16.mxu0 0
    %839 = vmatmul.mubr.bf16.gmra.mrb[0].mxu0 %v753
    %v840 = vpop.f32.mrb[0].mxu0
    %v841 = vadd.f32 0.0, %v840
    %v842 = vpop.f32.mrb[0].mxu0
    %v843 = vpop.f32.mrb[0].mxu0
    %v844 = vadd.f32 0.0, %v843
    %v845 = vpop.f32.mrb[0].mxu0
    %846 = vmatprep.mubr.bf16.mxu0 0
    %847 = vmatmul.mubr.bf16.gmra.mrb[0].mxu0 %v756
    %v848 = vpop.f32.mrb[0].mxu0
    %v849 = vadd.f32 0.0, %v848
    %v850 = vpop.f32.mrb[0].mxu0
    %v851 = vpop.f32.mrb[0].mxu0
    %v852 = vadd.f32 0.0, %v851
    %v853 = vpop.f32.mrb[0].mxu0
    %854 = vdwg.mxu0
    %v855 = vadd.f32 %v665, %v793
    %v856 = vadd.f32 %v666, %v796
    %v857 = vadd.f32 %v667, %v801
    %v858 = vadd.f32 %v668, %v804
    %v859 = vadd.f32 %v669, %v809
    %v860 = vadd.f32 %v670, %v812
    %v861 = vadd.f32 %v671, %v817
    %v862 = vadd.f32 %v672, %v820
    %v863 = vadd.f32 %v673, %v825
    %v864 = vadd.f32 %v674, %v828
    %v865 = vadd.f32 %v675, %v833
    %v866 = vadd.f32 %v676, %v836
    %v867 = vadd.f32 %v677, %v841
    %v868 = vadd.f32 %v678, %v844
    %v869 = vadd.f32 %v679, %v849
    %v870 = vadd.f32 %v680, %v852
    %v871 = vld [vmem:[%s2] sm:$0x1]
    %v873 = vlaneseq
    %v874 = vshrl.u32 %v873, 7
    %v875 = vsub.s32 0, %v874
    %v876 = vrot.slane %v871, %v875
    %v878 = vadd.f32 %v855, %v876
    %v879 = vadd.f32 %v856, %v876
    %v880 = vadd.f32 %v857, %v876
    %v881 = vadd.f32 %v858, %v876
    %v882 = vadd.f32 %v859, %v876
    %v883 = vadd.f32 %v860, %v876
    %v884 = vadd.f32 %v861, %v876
    %v885 = vadd.f32 %v862, %v876
    %v886 = vadd.f32 %v863, %v876
    %v887 = vadd.f32 %v864, %v876
    %v888 = vadd.f32 %v865, %v876
    %v889 = vadd.f32 %v866, %v876
    %v890 = vadd.f32 %v867, %v876
    %v891 = vadd.f32 %v868, %v876
    %v892 = vadd.f32 %v869, %v876
    %v893 = vadd.f32 %v870, %v876
    %v894 = vmax.f32 %v878, 0.0
    %v895 = vmax.f32 %v879, 0.0
    %v896 = vmax.f32 %v880, 0.0
    %v897 = vmax.f32 %v881, 0.0
    %v898 = vmax.f32 %v882, 0.0
    %v899 = vmax.f32 %v883, 0.0
    %v900 = vmax.f32 %v884, 0.0
    %v901 = vmax.f32 %v885, 0.0
    %v902 = vmax.f32 %v886, 0.0
    %v903 = vmax.f32 %v887, 0.0
    %v904 = vmax.f32 %v888, 0.0
    %v905 = vmax.f32 %v889, 0.0
    %v906 = vmax.f32 %v890, 0.0
    %v907 = vmax.f32 %v891, 0.0
    %v908 = vmax.f32 %v892, 0.0
    %v909 = vmax.f32 %v893, 0.0
    %910 = vst.msk [vmem:[#allocation2] sm:$0xff] %vm236, 0.0
    %vm911 = vcmask 517120
    %912 = vst.msk [vmem:[#allocation2 + $0x8] sm:$0x3] %vm911, 0.0
    %913 = vst.msk [vmem:[#allocation2 + $0x10] sm:$0xff] %vm236, 0.0
    %914 = vst.msk [vmem:[#allocation2 + $0x18] sm:$0x3] %vm911, 0.0
    %915 = vst.msk [vmem:[#allocation2 + $0x20] sm:$0xff] %vm236, 0.0
    %916 = vst.msk [vmem:[#allocation2 + $0x28] sm:$0x3] %vm911, 0.0
    %917 = vst.msk [vmem:[#allocation2 + $0x30] sm:$0xff] %vm236, 0.0
    %918 = vst.msk [vmem:[#allocation2 + $0x38] sm:$0x3] %vm911, 0.0
    %919 = vst.msk [vmem:[#allocation2 + $0x40] sm:$0xff] %vm236, 0.0
    %920 = vst.msk [vmem:[#allocation2 + $0x48] sm:$0x3] %vm911, 0.0
    %921 = vst.msk [vmem:[#allocation2 + $0x50] sm:$0xff] %vm236, 0.0
    %922 = vst.msk [vmem:[#allocation2 + $0x58] sm:$0x3] %vm911, 0.0
    %923 = vst.msk [vmem:[#allocation2 + $0x60] sm:$0xff] %vm236, 0.0
    %924 = vst.msk [vmem:[#allocation2 + $0x68] sm:$0x3] %vm911, 0.0
    %925 = vst.msk [vmem:[#allocation2 + $0x70] sm:$0xff] %vm236, 0.0
    %926 = vst.msk [vmem:[#allocation2 + $0x78] sm:$0x3] %vm911, 0.0
    %927 = vst.msk [vmem:[#allocation2 + $0x80] sm:$0xff] %vm236, 0.0
    %928 = vst.msk [vmem:[#allocation2 + $0x88] sm:$0x3] %vm911, 0.0
    %929 = vst.msk [vmem:[#allocation2 + $0x90] sm:$0xff] %vm236, 0.0
    %930 = vst.msk [vmem:[#allocation2 + $0x98] sm:$0x3] %vm911, 0.0
    %931 = vst.msk [vmem:[#allocation2 + $0xa0] sm:$0xff] %vm236, 0.0
    %932 = vst.msk [vmem:[#allocation2 + $0xa8] sm:$0x3] %vm911, 0.0
    %933 = vst.msk [vmem:[#allocation2 + $0xb0] sm:$0xff] %vm236, 0.0
    %934 = vst.msk [vmem:[#allocation2 + $0xb8] sm:$0x3] %vm911, 0.0
    %935 = vst.msk [vmem:[#allocation2 + $0xc0] sm:$0xff] %vm236, 0.0
    %936 = vst.msk [vmem:[#allocation2 + $0xc8] sm:$0x3] %vm911, 0.0
    %937 = vst.msk [vmem:[#allocation2 + $0xd0] sm:$0xff] %vm236, 0.0
    %938 = vst.msk [vmem:[#allocation2 + $0xd8] sm:$0x3] %vm911, 0.0
    %939 = vst.msk [vmem:[#allocation2 + $0xe0] sm:$0xff] %vm236, 0.0
    %940 = vst.msk [vmem:[#allocation2 + $0xe8] sm:$0x3] %vm911, 0.0
    %941 = vst.msk [vmem:[#allocation2 + $0xf0] sm:$0xff] %vm236, 0.0
    %942 = vst.msk [vmem:[#allocation2 + $0xf8] sm:$0x3] %vm911, 0.0
    %943 = vst.msk [vmem:[#allocation2 + $0x100] sm:$0xff] %vm236, 0.0
    %944 = vst.msk [vmem:[#allocation2 + $0x108] sm:$0x3] %vm911, 0.0
    %945 = vst.msk [vmem:[#allocation2 + $0x110] sm:$0xff] %vm236, 0.0
    %946 = vst.msk [vmem:[#allocation2 + $0x118] sm:$0x3] %vm911, 0.0
    %947 = vst.msk [vmem:[#allocation2 + $0x120] sm:$0xff] %vm236, 0.0
    %948 = vst.msk [vmem:[#allocation2 + $0x128] sm:$0x3] %vm911, 0.0
    %949 = vst.msk [vmem:[#allocation2 + $0x130] sm:$0xff] %vm236, 0.0
    %950 = vst.msk [vmem:[#allocation2 + $0x138] sm:$0x3] %vm911, 0.0
    %s951 = scalar_lea.vmem [#allocation2], 16
    %952 = vst.msk [vmem:[%s951 + $0x1] sm:$0xff] %vm236, %v894
    %953 = vst.msk [vmem:[%s951 + $0x11] sm:$0xff] %vm236, %v895
    %954 = vst.msk [vmem:[%s951 + $0x21] sm:$0xff] %vm236, %v896
    %955 = vst.msk [vmem:[%s951 + $0x31] sm:$0xff] %vm236, %v897
    %956 = vst.msk [vmem:[%s951 + $0x41] sm:$0xff] %vm236, %v898
    %957 = vst.msk [vmem:[%s951 + $0x51] sm:$0xff] %vm236, %v899
    %958 = vst.msk [vmem:[%s951 + $0x61] sm:$0xff] %vm236, %v900
    %959 = vst.msk [vmem:[%s951 + $0x71] sm:$0xff] %vm236, %v901
    %960 = vst.msk [vmem:[%s951 + $0xa1] sm:$0xff] %vm236, %v902
    %961 = vst.msk [vmem:[%s951 + $0xb1] sm:$0xff] %vm236, %v903
    %962 = vst.msk [vmem:[%s951 + $0xc1] sm:$0xff] %vm236, %v904
    %963 = vst.msk [vmem:[%s951 + $0xd1] sm:$0xff] %vm236, %v905
    %964 = vst.msk [vmem:[%s951 + $0xe1] sm:$0xff] %vm236, %v906
    %965 = vst.msk [vmem:[%s951 + $0xf1] sm:$0xff] %vm236, %v907
    %966 = vst.msk [vmem:[%s951 + $0x101] sm:$0xff] %vm236, %v908
    %967 = vst.msk [vmem:[%s951 + $0x111] sm:$0xff] %vm236, %v909
    %v968 = vld [vmem:[#allocation2] sm:$0xff]
    %v969 = vld [vmem:[#allocation2 + $0x8] sm:$0x3]
    %v970 = vld [vmem:[#allocation2 + $0x10] sm:$0xff]
    %v971 = vld [vmem:[#allocation2 + $0x18] sm:$0x3]
    %v972 = vld [vmem:[#allocation2 + $0x20] sm:$0xff]
    %v973 = vld [vmem:[#allocation2 + $0x28] sm:$0x3]
    %v974 = vld [vmem:[#allocation2 + $0x30] sm:$0xff]
    %v975 = vld [vmem:[#allocation2 + $0x38] sm:$0x3]
    %v976 = vld [vmem:[#allocation2 + $0x40] sm:$0xff]
    %v977 = vld [vmem:[#allocation2 + $0x48] sm:$0x3]
    %v978 = vld [vmem:[#allocation2 + $0x50] sm:$0xff]
    %v979 = vld [vmem:[#allocation2 + $0x58] sm:$0x3]
    %v980 = vld [vmem:[#allocation2 + $0x60] sm:$0xff]
    %v981 = vld [vmem:[#allocation2 + $0x68] sm:$0x3]
    %v982 = vld [vmem:[#allocation2 + $0x70] sm:$0xff]
    %v983 = vld [vmem:[#allocation2 + $0x78] sm:$0x3]
    %v984 = vld [vmem:[#allocation2 + $0x80] sm:$0xff]
    %v985 = vld [vmem:[#allocation2 + $0x88] sm:$0x3]
    %v986 = vld [vmem:[#allocation2 + $0x90] sm:$0xff]
    %v987 = vld [vmem:[#allocation2 + $0x98] sm:$0x3]
    %v988 = vld [vmem:[#allocation2 + $0xa0] sm:$0xff]
    %v989 = vld [vmem:[#allocation2 + $0xa8] sm:$0x3]
    %v990 = vld [vmem:[#allocation2 + $0xb0] sm:$0xff]
    %v991 = vld [vmem:[#allocation2 + $0xb8] sm:$0x3]
    %v992 = vld [vmem:[#allocation2 + $0xc0] sm:$0xff]
    %v993 = vld [vmem:[#allocation2 + $0xc8] sm:$0x3]
    %v994 = vld [vmem:[#allocation2 + $0xd0] sm:$0xff]
    %v995 = vld [vmem:[#allocation2 + $0xd8] sm:$0x3]
    %v996 = vld [vmem:[#allocation2 + $0xe0] sm:$0xff]
    %v997 = vld [vmem:[#allocation2 + $0xe8] sm:$0x3]
    %v998 = vld [vmem:[#allocation2 + $0xf0] sm:$0xff]
    %v999 = vld [vmem:[#allocation2 + $0xf8] sm:$0x3]
    %v1000 = vld [vmem:[#allocation2 + $0x100] sm:$0xff]
    %v1001 = vld [vmem:[#allocation2 + $0x108] sm:$0x3]
    %v1002 = vld [vmem:[#allocation2 + $0x110] sm:$0xff]
    %v1003 = vld [vmem:[#allocation2 + $0x118] sm:$0x3]
    %v1004 = vld [vmem:[#allocation2 + $0x120] sm:$0xff]
    %v1005 = vld [vmem:[#allocation2 + $0x128] sm:$0x3]
    %v1006 = vld [vmem:[#allocation2 + $0x130] sm:$0xff]
    %v1007 = vld [vmem:[#allocation2 + $0x138] sm:$0x3]
    %v1008 = vpack.c.bf16 %v970, %v968
    %v1009 = vpack.c.bf16 %v974, %v972
    %v1010 = vpack.c.bf16 %v978, %v976
    %v1011 = vpack.c.bf16 %v982, %v980
    %v1012 = vpack.c.bf16 %v990, %v988
    %v1013 = vpack.c.bf16 %v994, %v992
    %v1014 = vpack.c.bf16 %v998, %v996
    %v1015 = vpack.c.bf16 %v1002, %v1000
    %v1016 = vld [vmem:[%s3] sm:$0xf]
    %v1017 = vld [vmem:[%s3 + $0x4] sm:$0xf]
    %v1050 = vrot.slane %v968, 1
    %v1051 = vrot.slane %v969, 1
    %v1052 = vsel %vm130, %v1050, %v1051
    %v1053 = vrot.slane %v970, 1
    %v1054 = vrot.slane %v971, 1
    %v1055 = vsel %vm130, %v1053, %v1054
    %v1056 = vrot.slane %v972, 1
    %v1057 = vrot.slane %v973, 1
    %v1058 = vsel %vm130, %v1056, %v1057
    %v1059 = vrot.slane %v974, 1
    %v1060 = vrot.slane %v975, 1
    %v1061 = vsel %vm130, %v1059, %v1060
    %v1062 = vrot.slane %v976, 1
    %v1063 = vrot.slane %v977, 1
    %v1064 = vsel %vm130, %v1062, %v1063
    %v1065 = vrot.slane %v978, 1
    %v1066 = vrot.slane %v979, 1
    %v1067 = vsel %vm130, %v1065, %v1066
    %v1068 = vrot.slane %v980, 1
    %v1069 = vrot.slane %v981, 1
    %v1070 = vsel %vm130, %v1068, %v1069
    %v1071 = vrot.slane %v982, 1
    %v1072 = vrot.slane %v983, 1
    %v1073 = vsel %vm130, %v1071, %v1072
    %v1074 = vrot.slane %v988, 1
    %v1075 = vrot.slane %v989, 1
    %v1076 = vsel %vm130, %v1074, %v1075
    %v1077 = vrot.slane %v990, 1
    %v1078 = vrot.slane %v991, 1
    %v1079 = vsel %vm130, %v1077, %v1078
    %v1080 = vrot.slane %v992, 1
    %v1081 = vrot.slane %v993, 1
    %v1082 = vsel %vm130, %v1080, %v1081
    %v1083 = vrot.slane %v994, 1
    %v1084 = vrot.slane %v995, 1
    %v1085 = vsel %vm130, %v1083, %v1084
    %v1086 = vrot.slane %v996, 1
    %v1087 = vrot.slane %v997, 1
    %v1088 = vsel %vm130, %v1086, %v1087
    %v1089 = vrot.slane %v998, 1
    %v1090 = vrot.slane %v999, 1
    %v1091 = vsel %vm130, %v1089, %v1090
    %v1092 = vrot.slane %v1000, 1
    %v1093 = vrot.slane %v1001, 1
    %v1094 = vsel %vm130, %v1092, %v1093
    %v1095 = vrot.slane %v1002, 1
    %v1096 = vrot.slane %v1003, 1
    %v1097 = vsel %vm130, %v1095, %v1096
    %v1114 = vpack.c.bf16 %v1055, %v1052
    %v1115 = vpack.c.bf16 %v1061, %v1058
    %v1116 = vpack.c.bf16 %v1067, %v1064
    %v1117 = vpack.c.bf16 %v1073, %v1070
    %v1118 = vpack.c.bf16 %v1079, %v1076
    %v1119 = vpack.c.bf16 %v1085, %v1082
    %v1120 = vpack.c.bf16 %v1091, %v1088
    %v1121 = vpack.c.bf16 %v1097, %v1094
    %s1122 = scalar_lea.vmem %s3, 8
    %v1123 = vld [vmem:[%s1122] sm:$0xf]
    %v1124 = vld [vmem:[%s1122 + $0x4] sm:$0xf]
    %1133 = vrot.lane.b32.xlu0 %v1114, 96
    %v1134 = vpop.permute.xlu0 %1133
    %1135 = vrot.lane.b32.xlu0 %v1115, 96
    %v1136 = vpop.permute.xlu0 %1135
    %1137 = vrot.lane.b32.xlu0 %v1116, 96
    %v1138 = vpop.permute.xlu0 %1137
    %1139 = vrot.lane.b32.xlu0 %v1117, 96
    %v1140 = vpop.permute.xlu0 %1139
    %1141 = vrot.lane.b32.xlu0 %v1118, 96
    %v1142 = vpop.permute.xlu0 %1141
    %1143 = vrot.lane.b32.xlu0 %v1119, 96
    %v1144 = vpop.permute.xlu0 %1143
    %1145 = vrot.lane.b32.xlu0 %v1120, 96
    %v1146 = vpop.permute.xlu0 %1145
    %1147 = vrot.lane.b32.xlu0 %v1121, 96
    %v1148 = vpop.permute.xlu0 %1147
    %v1151 = vunpack.c.l.b16 %v1123
    %v1152 = vunpack.c.l.b16 %v1124
    %v1153 = vpack.c.b16 %v1152, %v1151
    %vm1155 = vcmask 130048
    %v1157 = vsel %vm1155, %v1134, 0
    %v1160 = vsel %vm1155, %v1136, 0
    %v1163 = vsel %vm1155, %v1138, 0
    %v1166 = vsel %vm1155, %v1140, 0
    %v1169 = vsel %vm1155, %v1142, 0
    %v1172 = vsel %vm1155, %v1144, 0
    %v1175 = vsel %vm1155, %v1146, 0
    %v1178 = vsel %vm1155, %v1148, 0
    %1180 = vmatprep.subr.bf16.mxu0 0
    %1181 = vmatpush1.bf16.msra.mxu0 %v1153
    %1182 = vmatprep.subr.bf16.mxu0 0
    %1183 = vmatpush1.bf16.msra.mxu0 0
    %1184 = vmatprep.subr.bf16.mxu0 0
    %1185 = vmatpush1.bf16.msra.mxu0 0
    %1186 = vmatprep.subr.bf16.mxu0 0
    %1187 = vmatpush1.bf16.msra.mxu0 0
    %1188 = vmatprep.subr.bf16.mxu0 0
    %1189 = vmatpush1.bf16.msra.mxu0 0
    %1190 = vmatprep.subr.bf16.mxu0 0
    %1191 = vmatpush1.bf16.msra.mxu0 0
    %1192 = vmatprep.subr.bf16.mxu0 0
    %1193 = vmatpush1.bf16.msra.mxu0 0
    %1194 = vmatprep.subr.bf16.mxu0 0
    %1195 = vmatpush1.bf16.msra.mxu0 0
    %1196 = vmatprep.subr.bf16.mxu0 0
    %1197 = vmatpush1.bf16.msra.mxu0 0
    %1198 = vmatprep.subr.bf16.mxu0 0
    %1199 = vmatpush1.bf16.msra.mxu0 0
    %1200 = vmatprep.subr.bf16.mxu0 0
    %1201 = vmatpush1.bf16.msra.mxu0 0
    %1202 = vmatprep.subr.bf16.mxu0 0
    %1203 = vmatpush1.bf16.msra.mxu0 0
    %1204 = vmatprep.subr.bf16.mxu0 0
    %1205 = vmatpush1.bf16.msra.mxu0 0
    %1206 = vmatprep.subr.bf16.mxu0 0
    %1207 = vmatpush1.bf16.msra.mxu0 0
    %1208 = vmatprep.subr.bf16.mxu0 0
    %1209 = vmatpush1.bf16.msra.mxu0 0
    %1210 = vmatprep.subr.bf16.mxu0 0
    %1211 = vmatpush1.bf16.msra.mxu0 0
    %1212 = vmatprep.mubr.bf16.mxu0 0
    %1213 = vmatmul.mubr.bf16.gmra.mrb[0].mxu0 %v1157
    %v1214 = vpop.f32.mrb[0].mxu0
    %v1215 = vadd.f32 0.0, %v1214
    %v1216 = vpop.f32.mrb[0].mxu0
    %v1217 = vpop.f32.mrb[0].mxu0
    %v1218 = vadd.f32 0.0, %v1217
    %v1219 = vpop.f32.mrb[0].mxu0
    %1220 = vmatprep.mubr.bf16.mxu0 0
    %1221 = vmatmul.mubr.bf16.gmra.mrb[0].mxu0 %v1160
    %v1222 = vpop.f32.mrb[0].mxu0
    %v1223 = vadd.f32 0.0, %v1222
    %v1224 = vpop.f32.mrb[0].mxu0
    %v1225 = vpop.f32.mrb[0].mxu0
    %v1226 = vadd.f32 0.0, %v1225
    %v1227 = vpop.f32.mrb[0].mxu0
    %1228 = vmatprep.mubr.bf16.mxu0 0
    %1229 = vmatmul.mubr.bf16.gmra.mrb[0].mxu0 %v1163
    %v1230 = vpop.f32.mrb[0].mxu0
    %v1231 = vadd.f32 0.0, %v1230
    %v1232 = vpop.f32.mrb[0].mxu0
    %v1233 = vpop.f32.mrb[0].mxu0
    %v1234 = vadd.f32 0.0, %v1233
    %v1235 = vpop.f32.mrb[0].mxu0
    %1236 = vmatprep.mubr.bf16.mxu0 0
    %1237 = vmatmul.mubr.bf16.gmra.mrb[0].mxu0 %v1166
    %v1238 = vpop.f32.mrb[0].mxu0
    %v1239 = vadd.f32 0.0, %v1238
    %v1240 = vpop.f32.mrb[0].mxu0
    %v1241 = vpop.f32.mrb[0].mxu0
    %v1242 = vadd.f32 0.0, %v1241
    %v1243 = vpop.f32.mrb[0].mxu0
    %1244 = vmatprep.mubr.bf16.mxu0 0
    %1245 = vmatmul.mubr.bf16.gmra.mrb[0].mxu0 %v1169
    %v1246 = vpop.f32.mrb[0].mxu0
    %v1247 = vadd.f32 0.0, %v1246
    %v1248 = vpop.f32.mrb[0].mxu0
    %v1249 = vpop.f32.mrb[0].mxu0
    %v1250 = vadd.f32 0.0, %v1249
    %v1251 = vpop.f32.mrb[0].mxu0
    %1252 = vmatprep.mubr.bf16.mxu0 0
    %1253 = vmatmul.mubr.bf16.gmra.mrb[0].mxu0 %v1172
    %v1254 = vpop.f32.mrb[0].mxu0
    %v1255 = vadd.f32 0.0, %v1254
    %v1256 = vpop.f32.mrb[0].mxu0
    %v1257 = vpop.f32.mrb[0].mxu0
    %v1258 = vadd.f32 0.0, %v1257
    %v1259 = vpop.f32.mrb[0].mxu0
    %1260 = vmatprep.mubr.bf16.mxu0 0
    %1261 = vmatmul.mubr.bf16.gmra.mrb[0].mxu0 %v1175
    %v1262 = vpop.f32.mrb[0].mxu0
    %v1263 = vadd.f32 0.0, %v1262
    %v1264 = vpop.f32.mrb[0].mxu0
    %v1265 = vpop.f32.mrb[0].mxu0
    %v1266 = vadd.f32 0.0, %v1265
    %v1267 = vpop.f32.mrb[0].mxu0
    %1268 = vmatprep.mubr.bf16.mxu0 0
    %1269 = vmatmul.mubr.bf16.gmra.mrb[0].mxu0 %v1178
    %v1270 = vpop.f32.mrb[0].mxu0
    %v1271 = vadd.f32 0.0, %v1270
    %v1272 = vpop.f32.mrb[0].mxu0
    %v1273 = vpop.f32.mrb[0].mxu0
    %v1274 = vadd.f32 0.0, %v1273
    %v1275 = vpop.f32.mrb[0].mxu0
    %1276 = vdwg.mxu0
    %1285 = vrot.lane.b32.xlu0 %v1008, 80
    %v1286 = vpop.permute.xlu0 %1285
    %1287 = vrot.lane.b32.xlu0 %v1009, 80
    %v1288 = vpop.permute.xlu0 %1287
    %1289 = vrot.lane.b32.xlu0 %v1010, 80
    %v1290 = vpop.permute.xlu0 %1289
    %1291 = vrot.lane.b32.xlu0 %v1011, 80
    %v1292 = vpop.permute.xlu0 %1291
    %1293 = vrot.lane.b32.xlu0 %v1012, 80
    %v1294 = vpop.permute.xlu0 %1293
    %1295 = vrot.lane.b32.xlu0 %v1013, 80
    %v1296 = vpop.permute.xlu0 %1295
    %1297 = vrot.lane.b32.xlu0 %v1014, 80
    %v1298 = vpop.permute.xlu0 %1297
    %1299 = vrot.lane.b32.xlu0 %v1015, 80
    %v1300 = vpop.permute.xlu0 %1299
    %v1303 = vunpack.c.l.b16 %v1016
    %v1304 = vunpack.c.l.b16 %v1017
    %v1305 = vpack.c.b16 %v1304, %v1303
    %v1308 = vsel %vm1155, %v1286, 0
    %v1311 = vsel %vm1155, %v1288, 0
    %v1314 = vsel %vm1155, %v1290, 0
    %v1317 = vsel %vm1155, %v1292, 0
    %v1320 = vsel %vm1155, %v1294, 0
    %v1323 = vsel %vm1155, %v1296, 0
    %v1326 = vsel %vm1155, %v1298, 0
    %v1329 = vsel %vm1155, %v1300, 0
    %1331 = vmatprep.subr.bf16.mxu0 0
    %1332 = vmatpush1.bf16.msra.mxu0 %v1305
    %1333 = vmatprep.subr.bf16.mxu0 0
    %1334 = vmatpush1.bf16.msra.mxu0 0
    %1335 = vmatprep.subr.bf16.mxu0 0
    %1336 = vmatpush1.bf16.msra.mxu0 0
    %1337 = vmatprep.subr.bf16.mxu0 0
    %1338 = vmatpush1.bf16.msra.mxu0 0
    %1339 = vmatprep.subr.bf16.mxu0 0
    %1340 = vmatpush1.bf16.msra.mxu0 0
    %1341 = vmatprep.subr.bf16.mxu0 0
    %1342 = vmatpush1.bf16.msra.mxu0 0
    %1343 = vmatprep.subr.bf16.mxu0 0
    %1344 = vmatpush1.bf16.msra.mxu0 0
    %1345 = vmatprep.subr.bf16.mxu0 0
    %1346 = vmatpush1.bf16.msra.mxu0 0
    %1347 = vmatprep.subr.bf16.mxu0 0
    %1348 = vmatpush1.bf16.msra.mxu0 0
    %1349 = vmatprep.subr.bf16.mxu0 0
    %1350 = vmatpush1.bf16.msra.mxu0 0
    %1351 = vmatprep.subr.bf16.mxu0 0
    %1352 = vmatpush1.bf16.msra.mxu0 0
    %1353 = vmatprep.subr.bf16.mxu0 0
    %1354 = vmatpush1.bf16.msra.mxu0 0
    %1355 = vmatprep.subr.bf16.mxu0 0
    %1356 = vmatpush1.bf16.msra.mxu0 0
    %1357 = vmatprep.subr.bf16.mxu0 0
    %1358 = vmatpush1.bf16.msra.mxu0 0
    %1359 = vmatprep.subr.bf16.mxu0 0
    %1360 = vmatpush1.bf16.msra.mxu0 0
    %1361 = vmatprep.subr.bf16.mxu0 0
    %1362 = vmatpush1.bf16.msra.mxu0 0
    %1363 = vmatprep.mubr.bf16.mxu0 0
    %1364 = vmatmul.mubr.bf16.gmra.mrb[0].mxu0 %v1308
    %v1365 = vpop.f32.mrb[0].mxu0
    %v1366 = vadd.f32 %v1215, %v1365
    %v1367 = vpop.f32.mrb[0].mxu0
    %v1368 = vpop.f32.mrb[0].mxu0
    %v1369 = vadd.f32 %v1218, %v1368
    %v1370 = vpop.f32.mrb[0].mxu0
    %1371 = vmatprep.mubr.bf16.mxu0 0
    %1372 = vmatmul.mubr.bf16.gmra.mrb[0].mxu0 %v1311
    %v1373 = vpop.f32.mrb[0].mxu0
    %v1374 = vadd.f32 %v1223, %v1373
    %v1375 = vpop.f32.mrb[0].mxu0
    %v1376 = vpop.f32.mrb[0].mxu0
    %v1377 = vadd.f32 %v1226, %v1376
    %v1378 = vpop.f32.mrb[0].mxu0
    %1379 = vmatprep.mubr.bf16.mxu0 0
    %1380 = vmatmul.mubr.bf16.gmra.mrb[0].mxu0 %v1314
    %v1381 = vpop.f32.mrb[0].mxu0
    %v1382 = vadd.f32 %v1231, %v1381
    %v1383 = vpop.f32.mrb[0].mxu0
    %v1384 = vpop.f32.mrb[0].mxu0
    %v1385 = vadd.f32 %v1234, %v1384
    %v1386 = vpop.f32.mrb[0].mxu0
    %1387 = vmatprep.mubr.bf16.mxu0 0
    %1388 = vmatmul.mubr.bf16.gmra.mrb[0].mxu0 %v1317
    %v1389 = vpop.f32.mrb[0].mxu0
    %v1390 = vadd.f32 %v1239, %v1389
    %v1391 = vpop.f32.mrb[0].mxu0
    %v1392 = vpop.f32.mrb[0].mxu0
    %v1393 = vadd.f32 %v1242, %v1392
    %v1394 = vpop.f32.mrb[0].mxu0
    %1395 = vmatprep.mubr.bf16.mxu0 0
    %1396 = vmatmul.mubr.bf16.gmra.mrb[0].mxu0 %v1320
    %v1397 = vpop.f32.mrb[0].mxu0
    %v1398 = vadd.f32 %v1247, %v1397
    %v1399 = vpop.f32.mrb[0].mxu0
    %v1400 = vpop.f32.mrb[0].mxu0
    %v1401 = vadd.f32 %v1250, %v1400
    %v1402 = vpop.f32.mrb[0].mxu0
    %1403 = vmatprep.mubr.bf16.mxu0 0
    %1404 = vmatmul.mubr.bf16.gmra.mrb[0].mxu0 %v1323
    %v1405 = vpop.f32.mrb[0].mxu0
    %v1406 = vadd.f32 %v1255, %v1405
    %v1407 = vpop.f32.mrb[0].mxu0
    %v1408 = vpop.f32.mrb[0].mxu0
    %v1409 = vadd.f32 %v1258, %v1408
    %v1410 = vpop.f32.mrb[0].mxu0
    %1411 = vmatprep.mubr.bf16.mxu0 0
    %1412 = vmatmul.mubr.bf16.gmra.mrb[0].mxu0 %v1326
    %v1413 = vpop.f32.mrb[0].mxu0
    %v1414 = vadd.f32 %v1263, %v1413
    %v1415 = vpop.f32.mrb[0].mxu0
    %v1416 = vpop.f32.mrb[0].mxu0
    %v1417 = vadd.f32 %v1266, %v1416
    %v1418 = vpop.f32.mrb[0].mxu0
    %1419 = vmatprep.mubr.bf16.mxu0 0
    %1420 = vmatmul.mubr.bf16.gmra.mrb[0].mxu0 %v1329
    %v1421 = vpop.f32.mrb[0].mxu0
    %v1422 = vadd.f32 %v1271, %v1421
    %v1423 = vpop.f32.mrb[0].mxu0
    %v1424 = vpop.f32.mrb[0].mxu0
    %v1425 = vadd.f32 %v1274, %v1424
    %v1426 = vpop.f32.mrb[0].mxu0
    %1427 = vdwg.mxu0
    %s1428 = scalar_lea.vmem %s3, 16
    %v1429 = vld [vmem:[%s1428] sm:$0xf]
    %v1430 = vld [vmem:[%s1428 + $0x4] sm:$0xf]
    %1431 = vrot.lane.b32.xlu0 %v1114, 80
    %v1432 = vpop.permute.xlu0 %1431
    %1433 = vrot.lane.b32.xlu0 %v1115, 80
    %v1434 = vpop.permute.xlu0 %1433
    %1435 = vrot.lane.b32.xlu0 %v1116, 80
    %v1436 = vpop.permute.xlu0 %1435
    %1437 = vrot.lane.b32.xlu0 %v1117, 80
    %v1438 = vpop.permute.xlu0 %1437
    %1439 = vrot.lane.b32.xlu0 %v1118, 80
    %v1440 = vpop.permute.xlu0 %1439
    %1441 = vrot.lane.b32.xlu0 %v1119, 80
    %v1442 = vpop.permute.xlu0 %1441
    %1443 = vrot.lane.b32.xlu0 %v1120, 80
    %v1444 = vpop.permute.xlu0 %1443
    %1445 = vrot.lane.b32.xlu0 %v1121, 80
    %v1446 = vpop.permute.xlu0 %1445
    %v1449 = vunpack.c.l.b16 %v1429
    %v1450 = vunpack.c.l.b16 %v1430
    %v1451 = vpack.c.b16 %v1450, %v1449
    %v1454 = vsel %vm1155, %v1432, 0
    %v1457 = vsel %vm1155, %v1434, 0
    %v1460 = vsel %vm1155, %v1436, 0
    %v1463 = vsel %vm1155, %v1438, 0
    %v1466 = vsel %vm1155, %v1440, 0
    %v1469 = vsel %vm1155, %v1442, 0
    %v1472 = vsel %vm1155, %v1444, 0
    %v1475 = vsel %vm1155, %v1446, 0
    %1477 = vmatprep.subr.bf16.mxu0 0
    %1478 = vmatpush1.bf16.msra.mxu0 %v1451
    %1479 = vmatprep.subr.bf16.mxu0 0
    %1480 = vmatpush1.bf16.msra.mxu0 0
    %1481 = vmatprep.subr.bf16.mxu0 0
    %1482 = vmatpush1.bf16.msra.mxu0 0
    %1483 = vmatprep.subr.bf16.mxu0 0
    %1484 = vmatpush1.bf16.msra.mxu0 0
    %1485 = vmatprep.subr.bf16.mxu0 0
    %1486 = vmatpush1.bf16.msra.mxu0 0
    %1487 = vmatprep.subr.bf16.mxu0 0
    %1488 = vmatpush1.bf16.msra.mxu0 0
    %1489 = vmatprep.subr.bf16.mxu0 0
    %1490 = vmatpush1.bf16.msra.mxu0 0
    %1491 = vmatprep.subr.bf16.mxu0 0
    %1492 = vmatpush1.bf16.msra.mxu0 0
    %1493 = vmatprep.subr.bf16.mxu0 0
    %1494 = vmatpush1.bf16.msra.mxu0 0
    %1495 = vmatprep.subr.bf16.mxu0 0
    %1496 = vmatpush1.bf16.msra.mxu0 0
    %1497 = vmatprep.subr.bf16.mxu0 0
    %1498 = vmatpush1.bf16.msra.mxu0 0
    %1499 = vmatprep.subr.bf16.mxu0 0
    %1500 = vmatpush1.bf16.msra.mxu0 0
    %1501 = vmatprep.subr.bf16.mxu0 0
    %1502 = vmatpush1.bf16.msra.mxu0 0
    %1503 = vmatprep.subr.bf16.mxu0 0
    %1504 = vmatpush1.bf16.msra.mxu0 0
    %1505 = vmatprep.subr.bf16.mxu0 0
    %1506 = vmatpush1.bf16.msra.mxu0 0
    %1507 = vmatprep.subr.bf16.mxu0 0
    %1508 = vmatpush1.bf16.msra.mxu0 0
    %1509 = vmatprep.mubr.bf16.mxu0 0
    %1510 = vmatmul.mubr.bf16.gmra.mrb[0].mxu0 %v1454
    %v1511 = vpop.f32.mrb[0].mxu0
    %v1512 = vadd.f32 0.0, %v1511
    %v1513 = vpop.f32.mrb[0].mxu0
    %v1514 = vpop.f32.mrb[0].mxu0
    %v1515 = vadd.f32 0.0, %v1514
    %v1516 = vpop.f32.mrb[0].mxu0
    %1517 = vmatprep.mubr.bf16.mxu0 0
    %1518 = vmatmul.mubr.bf16.gmra.mrb[0].mxu0 %v1457
    %v1519 = vpop.f32.mrb[0].mxu0
    %v1520 = vadd.f32 0.0, %v1519
    %v1521 = vpop.f32.mrb[0].mxu0
    %v1522 = vpop.f32.mrb[0].mxu0
    %v1523 = vadd.f32 0.0, %v1522
    %v1524 = vpop.f32.mrb[0].mxu0
    %1525 = vmatprep.mubr.bf16.mxu0 0
    %1526 = vmatmul.mubr.bf16.gmra.mrb[0].mxu0 %v1460
    %v1527 = vpop.f32.mrb[0].mxu0
    %v1528 = vadd.f32 0.0, %v1527
    %v1529 = vpop.f32.mrb[0].mxu0
    %v1530 = vpop.f32.mrb[0].mxu0
    %v1531 = vadd.f32 0.0, %v1530
    %v1532 = vpop.f32.mrb[0].mxu0
    %1533 = vmatprep.mubr.bf16.mxu0 0
    %1534 = vmatmul.mubr.bf16.gmra.mrb[0].mxu0 %v1463
    %v1535 = vpop.f32.mrb[0].mxu0
    %v1536 = vadd.f32 0.0, %v1535
    %v1537 = vpop.f32.mrb[0].mxu0
    %v1538 = vpop.f32.mrb[0].mxu0
    %v1539 = vadd.f32 0.0, %v1538
    %v1540 = vpop.f32.mrb[0].mxu0
    %1541 = vmatprep.mubr.bf16.mxu0 0
    %1542 = vmatmul.mubr.bf16.gmra.mrb[0].mxu0 %v1466
    %v1543 = vpop.f32.mrb[0].mxu0
    %v1544 = vadd.f32 0.0, %v1543
    %v1545 = vpop.f32.mrb[0].mxu0
    %v1546 = vpop.f32.mrb[0].mxu0
    %v1547 = vadd.f32 0.0, %v1546
    %v1548 = vpop.f32.mrb[0].mxu0
    %1549 = vmatprep.mubr.bf16.mxu0 0
    %1550 = vmatmul.mubr.bf16.gmra.mrb[0].mxu0 %v1469
    %v1551 = vpop.f32.mrb[0].mxu0
    %v1552 = vadd.f32 0.0, %v1551
    %v1553 = vpop.f32.mrb[0].mxu0
    %v1554 = vpop.f32.mrb[0].mxu0
    %v1555 = vadd.f32 0.0, %v1554
    %v1556 = vpop.f32.mrb[0].mxu0
    %1557 = vmatprep.mubr.bf16.mxu0 0
    %1558 = vmatmul.mubr.bf16.gmra.mrb[0].mxu0 %v1472
    %v1559 = vpop.f32.mrb[0].mxu0
    %v1560 = vadd.f32 0.0, %v1559
    %v1561 = vpop.f32.mrb[0].mxu0
    %v1562 = vpop.f32.mrb[0].mxu0
    %v1563 = vadd.f32 0.0, %v1562
    %v1564 = vpop.f32.mrb[0].mxu0
    %1565 = vmatprep.mubr.bf16.mxu0 0
    %1566 = vmatmul.mubr.bf16.gmra.mrb[0].mxu0 %v1475
    %v1567 = vpop.f32.mrb[0].mxu0
    %v1568 = vadd.f32 0.0, %v1567
    %v1569 = vpop.f32.mrb[0].mxu0
    %v1570 = vpop.f32.mrb[0].mxu0
    %v1571 = vadd.f32 0.0, %v1570
    %v1572 = vpop.f32.mrb[0].mxu0
    %1573 = vdwg.mxu0
    %v1574 = vadd.f32 %v1366, %v1512
    %v1575 = vadd.f32 %v1369, %v1515
    %v1576 = vadd.f32 %v1374, %v1520
    %v1577 = vadd.f32 %v1377, %v1523
    %v1578 = vadd.f32 %v1382, %v1528
    %v1579 = vadd.f32 %v1385, %v1531
    %v1580 = vadd.f32 %v1390, %v1536
    %v1581 = vadd.f32 %v1393, %v1539
    %v1582 = vadd.f32 %v1398, %v1544
    %v1583 = vadd.f32 %v1401, %v1547
    %v1584 = vadd.f32 %v1406, %v1552
    %v1585 = vadd.f32 %v1409, %v1555
    %v1586 = vadd.f32 %v1414, %v1560
    %v1587 = vadd.f32 %v1417, %v1563
    %v1588 = vadd.f32 %v1422, %v1568
    %v1589 = vadd.f32 %v1425, %v1571
    %vm1590 = vcmask 1045504
    %v1591 = vrot.slane %v968, 2
    %v1592 = vrot.slane %v969, 2
    %v1593 = vsel %vm1590, %v1591, %v1592
    %v1594 = vrot.slane %v970, 2
    %v1595 = vrot.slane %v971, 2
    %v1596 = vsel %vm1590, %v1594, %v1595
    %v1597 = vrot.slane %v972, 2
    %v1598 = vrot.slane %v973, 2
    %v1599 = vsel %vm1590, %v1597, %v1598
    %v1600 = vrot.slane %v974, 2
    %v1601 = vrot.slane %v975, 2
    %v1602 = vsel %vm1590, %v1600, %v1601
    %v1603 = vrot.slane %v976, 2
    %v1604 = vrot.slane %v977, 2
    %v1605 = vsel %vm1590, %v1603, %v1604
    %v1606 = vrot.slane %v978, 2
    %v1607 = vrot.slane %v979, 2
    %v1608 = vsel %vm1590, %v1606, %v1607
    %v1609 = vrot.slane %v980, 2
    %v1610 = vrot.slane %v981, 2
    %v1611 = vsel %vm1590, %v1609, %v1610
    %v1612 = vrot.slane %v982, 2
    %v1613 = vrot.slane %v983, 2
    %v1614 = vsel %vm1590, %v1612, %v1613
    %v1615 = vrot.slane %v988, 2
    %v1616 = vrot.slane %v989, 2
    %v1617 = vsel %vm1590, %v1615, %v1616
    %v1618 = vrot.slane %v990, 2
    %v1619 = vrot.slane %v991, 2
    %v1620 = vsel %vm1590, %v1618, %v1619
    %v1621 = vrot.slane %v992, 2
    %v1622 = vrot.slane %v993, 2
    %v1623 = vsel %vm1590, %v1621, %v1622
    %v1624 = vrot.slane %v994, 2
    %v1625 = vrot.slane %v995, 2
    %v1626 = vsel %vm1590, %v1624, %v1625
    %v1627 = vrot.slane %v996, 2
    %v1628 = vrot.slane %v997, 2
    %v1629 = vsel %vm1590, %v1627, %v1628
    %v1630 = vrot.slane %v998, 2
    %v1631 = vrot.slane %v999, 2
    %v1632 = vsel %vm1590, %v1630, %v1631
    %v1633 = vrot.slane %v1000, 2
    %v1634 = vrot.slane %v1001, 2
    %v1635 = vsel %vm1590, %v1633, %v1634
    %v1636 = vrot.slane %v1002, 2
    %v1637 = vrot.slane %v1003, 2
    %v1638 = vsel %vm1590, %v1636, %v1637
    %v1655 = vpack.c.bf16 %v1596, %v1593
    %v1656 = vpack.c.bf16 %v1602, %v1599
    %v1657 = vpack.c.bf16 %v1608, %v1605
    %v1658 = vpack.c.bf16 %v1614, %v1611
    %v1659 = vpack.c.bf16 %v1620, %v1617
    %v1660 = vpack.c.bf16 %v1626, %v1623
    %v1661 = vpack.c.bf16 %v1632, %v1629
    %v1662 = vpack.c.bf16 %v1638, %v1635
    %s1663 = scalar_lea.vmem %s3, 24
    %v1664 = vld [vmem:[%s1663] sm:$0xf]
    %v1665 = vld [vmem:[%s1663 + $0x4] sm:$0xf]
    %1674 = vrot.lane.b32.xlu0 %v1655, 96
    %v1675 = vpop.permute.xlu0 %1674
    %1676 = vrot.lane.b32.xlu0 %v1656, 96
    %v1677 = vpop.permute.xlu0 %1676
    %1678 = vrot.lane.b32.xlu0 %v1657, 96
    %v1679 = vpop.permute.xlu0 %1678
    %1680 = vrot.lane.b32.xlu0 %v1658, 96
    %v1681 = vpop.permute.xlu0 %1680
    %1682 = vrot.lane.b32.xlu0 %v1659, 96
    %v1683 = vpop.permute.xlu0 %1682
    %1684 = vrot.lane.b32.xlu0 %v1660, 96
    %v1685 = vpop.permute.xlu0 %1684
    %1686 = vrot.lane.b32.xlu0 %v1661, 96
    %v1687 = vpop.permute.xlu0 %1686
    %1688 = vrot.lane.b32.xlu0 %v1662, 96
    %v1689 = vpop.permute.xlu0 %1688
    %v1692 = vunpack.c.l.b16 %v1664
    %v1693 = vunpack.c.l.b16 %v1665
    %v1694 = vpack.c.b16 %v1693, %v1692
    %v1697 = vsel %vm1155, %v1675, 0
    %v1700 = vsel %vm1155, %v1677, 0
    %v1703 = vsel %vm1155, %v1679, 0
    %v1706 = vsel %vm1155, %v1681, 0
    %v1709 = vsel %vm1155, %v1683, 0
    %v1712 = vsel %vm1155, %v1685, 0
    %v1715 = vsel %vm1155, %v1687, 0
    %v1718 = vsel %vm1155, %v1689, 0
    %1720 = vmatprep.subr.bf16.mxu0 0
    %1721 = vmatpush1.bf16.msra.mxu0 %v1694
    %1722 = vmatprep.subr.bf16.mxu0 0
    %1723 = vmatpush1.bf16.msra.mxu0 0
    %1724 = vmatprep.subr.bf16.mxu0 0
    %1725 = vmatpush1.bf16.msra.mxu0 0
    %1726 = vmatprep.subr.bf16.mxu0 0
    %1727 = vmatpush1.bf16.msra.mxu0 0
    %1728 = vmatprep.subr.bf16.mxu0 0
    %1729 = vmatpush1.bf16.msra.mxu0 0
    %1730 = vmatprep.subr.bf16.mxu0 0
    %1731 = vmatpush1.bf16.msra.mxu0 0
    %1732 = vmatprep.subr.bf16.mxu0 0
    %1733 = vmatpush1.bf16.msra.mxu0 0
    %1734 = vmatprep.subr.bf16.mxu0 0
    %1735 = vmatpush1.bf16.msra.mxu0 0
    %1736 = vmatprep.subr.bf16.mxu0 0
    %1737 = vmatpush1.bf16.msra.mxu0 0
    %1738 = vmatprep.subr.bf16.mxu0 0
    %1739 = vmatpush1.bf16.msra.mxu0 0
    %1740 = vmatprep.subr.bf16.mxu0 0
    %1741 = vmatpush1.bf16.msra.mxu0 0
    %1742 = vmatprep.subr.bf16.mxu0 0
    %1743 = vmatpush1.bf16.msra.mxu0 0
    %1744 = vmatprep.subr.bf16.mxu0 0
    %1745 = vmatpush1.bf16.msra.mxu0 0
    %1746 = vmatprep.subr.bf16.mxu0 0
    %1747 = vmatpush1.bf16.msra.mxu0 0
    %1748 = vmatprep.subr.bf16.mxu0 0
    %1749 = vmatpush1.bf16.msra.mxu0 0
    %1750 = vmatprep.subr.bf16.mxu0 0
    %1751 = vmatpush1.bf16.msra.mxu0 0
    %1752 = vmatprep.mubr.bf16.mxu0 0
    %1753 = vmatmul.mubr.bf16.gmra.mrb[0].mxu0 %v1697
    %v1754 = vpop.f32.mrb[0].mxu0
    %v1755 = vadd.f32 0.0, %v1754
    %v1756 = vpop.f32.mrb[0].mxu0
    %v1757 = vpop.f32.mrb[0].mxu0
    %v1758 = vadd.f32 0.0, %v1757
    %v1759 = vpop.f32.mrb[0].mxu0
    %1760 = vmatprep.mubr.bf16.mxu0 0
    %1761 = vmatmul.mubr.bf16.gmra.mrb[0].mxu0 %v1700
    %v1762 = vpop.f32.mrb[0].mxu0
    %v1763 = vadd.f32 0.0, %v1762
    %v1764 = vpop.f32.mrb[0].mxu0
    %v1765 = vpop.f32.mrb[0].mxu0
    %v1766 = vadd.f32 0.0, %v1765
    %v1767 = vpop.f32.mrb[0].mxu0
    %1768 = vmatprep.mubr.bf16.mxu0 0
    %1769 = vmatmul.mubr.bf16.gmra.mrb[0].mxu0 %v1703
    %v1770 = vpop.f32.mrb[0].mxu0
    %v1771 = vadd.f32 0.0, %v1770
    %v1772 = vpop.f32.mrb[0].mxu0
    %v1773 = vpop.f32.mrb[0].mxu0
    %v1774 = vadd.f32 0.0, %v1773
    %v1775 = vpop.f32.mrb[0].mxu0
    %1776 = vmatprep.mubr.bf16.mxu0 0
    %1777 = vmatmul.mubr.bf16.gmra.mrb[0].mxu0 %v1706
    %v1778 = vpop.f32.mrb[0].mxu0
    %v1779 = vadd.f32 0.0, %v1778
    %v1780 = vpop.f32.mrb[0].mxu0
    %v1781 = vpop.f32.mrb[0].mxu0
    %v1782 = vadd.f32 0.0, %v1781
    %v1783 = vpop.f32.mrb[0].mxu0
    %1784 = vmatprep.mubr.bf16.mxu0 0
    %1785 = vmatmul.mubr.bf16.gmra.mrb[0].mxu0 %v1709
    %v1786 = vpop.f32.mrb[0].mxu0
    %v1787 = vadd.f32 0.0, %v1786
    %v1788 = vpop.f32.mrb[0].mxu0
    %v1789 = vpop.f32.mrb[0].mxu0
    %v1790 = vadd.f32 0.0, %v1789
    %v1791 = vpop.f32.mrb[0].mxu0
    %1792 = vmatprep.mubr.bf16.mxu0 0
    %1793 = vmatmul.mubr.bf16.gmra.mrb[0].mxu0 %v1712
    %v1794 = vpop.f32.mrb[0].mxu0
    %v1795 = vadd.f32 0.0, %v1794
    %v1796 = vpop.f32.mrb[0].mxu0
    %v1797 = vpop.f32.mrb[0].mxu0
    %v1798 = vadd.f32 0.0, %v1797
    %v1799 = vpop.f32.mrb[0].mxu0
    %1800 = vmatprep.mubr.bf16.mxu0 0
    %1801 = vmatmul.mubr.bf16.gmra.mrb[0].mxu0 %v1715
    %v1802 = vpop.f32.mrb[0].mxu0
    %v1803 = vadd.f32 0.0, %v1802
    %v1804 = vpop.f32.mrb[0].mxu0
    %v1805 = vpop.f32.mrb[0].mxu0
    %v1806 = vadd.f32 0.0, %v1805
    %v1807 = vpop.f32.mrb[0].mxu0
    %1808 = vmatprep.mubr.bf16.mxu0 0
    %1809 = vmatmul.mubr.bf16.gmra.mrb[0].mxu0 %v1718
    %v1810 = vpop.f32.mrb[0].mxu0
    %v1811 = vadd.f32 0.0, %v1810
    %v1812 = vpop.f32.mrb[0].mxu0
    %v1813 = vpop.f32.mrb[0].mxu0
    %v1814 = vadd.f32 0.0, %v1813
    %v1815 = vpop.f32.mrb[0].mxu0
    %1816 = vdwg.mxu0
    %v1817 = vadd.f32 %v1574, %v1755
    %v1818 = vadd.f32 %v1575, %v1758
    %v1819 = vadd.f32 %v1576, %v1763
    %v1820 = vadd.f32 %v1577, %v1766
    %v1821 = vadd.f32 %v1578, %v1771
    %v1822 = vadd.f32 %v1579, %v1774
    %v1823 = vadd.f32 %v1580, %v1779
    %v1824 = vadd.f32 %v1581, %v1782
    %v1825 = vadd.f32 %v1582, %v1787
    %v1826 = vadd.f32 %v1583, %v1790
    %v1827 = vadd.f32 %v1584, %v1795
    %v1828 = vadd.f32 %v1585, %v1798
    %v1829 = vadd.f32 %v1586, %v1803
    %v1830 = vadd.f32 %v1587, %v1806
    %v1831 = vadd.f32 %v1588, %v1811
    %v1832 = vadd.f32 %v1589, %v1814
    %v1833 = vpack.c.bf16 %v972, %v970
    %v1834 = vpack.c.bf16 %v976, %v974
    %v1835 = vpack.c.bf16 %v980, %v978
    %v1836 = vpack.c.bf16 %v984, %v982
    %v1837 = vpack.c.bf16 %v992, %v990
    %v1838 = vpack.c.bf16 %v996, %v994
    %v1839 = vpack.c.bf16 %v1000, %v998
    %v1840 = vpack.c.bf16 %v1004, %v1002
    %s1841 = scalar_lea.vmem %s3, 32
    %v1842 = vld [vmem:[%s1841] sm:$0xf]
    %v1843 = vld [vmem:[%s1841 + $0x4] sm:$0xf]
    %1852 = vrot.lane.b32.xlu0 %v1833, 112
    %v1853 = vpop.permute.xlu0 %1852
    %1854 = vrot.lane.b32.xlu0 %v1834, 112
    %v1855 = vpop.permute.xlu0 %1854
    %1856 = vrot.lane.b32.xlu0 %v1835, 112
    %v1857 = vpop.permute.xlu0 %1856
    %1858 = vrot.lane.b32.xlu0 %v1836, 112
    %v1859 = vpop.permute.xlu0 %1858
    %1860 = vrot.lane.b32.xlu0 %v1837, 112
    %v1861 = vpop.permute.xlu0 %1860
    %1862 = vrot.lane.b32.xlu0 %v1838, 112
    %v1863 = vpop.permute.xlu0 %1862
    %1864 = vrot.lane.b32.xlu0 %v1839, 112
    %v1865 = vpop.permute.xlu0 %1864
    %1866 = vrot.lane.b32.xlu0 %v1840, 112
    %v1867 = vpop.permute.xlu0 %1866
    %v1870 = vunpack.c.l.b16 %v1842
    %v1871 = vunpack.c.l.b16 %v1843
    %v1872 = vpack.c.b16 %v1871, %v1870
    %v1875 = vsel %vm1155, %v1853, 0
    %v1878 = vsel %vm1155, %v1855, 0
    %v1881 = vsel %vm1155, %v1857, 0
    %v1884 = vsel %vm1155, %v1859, 0
    %v1887 = vsel %vm1155, %v1861, 0
    %v1890 = vsel %vm1155, %v1863, 0
    %v1893 = vsel %vm1155, %v1865, 0
    %v1896 = vsel %vm1155, %v1867, 0
    %1898 = vmatprep.subr.bf16.mxu0 0
    %1899 = vmatpush1.bf16.msra.mxu0 %v1872
    %1900 = vmatprep.subr.bf16.mxu0 0
    %1901 = vmatpush1.bf16.msra.mxu0 0
    %1902 = vmatprep.subr.bf16.mxu0 0
    %1903 = vmatpush1.bf16.msra.mxu0 0
    %1904 = vmatprep.subr.bf16.mxu0 0
    %1905 = vmatpush1.bf16.msra.mxu0 0
    %1906 = vmatprep.subr.bf16.mxu0 0
    %1907 = vmatpush1.bf16.msra.mxu0 0
    %1908 = vmatprep.subr.bf16.mxu0 0
    %1909 = vmatpush1.bf16.msra.mxu0 0
    %1910 = vmatprep.subr.bf16.mxu0 0
    %1911 = vmatpush1.bf16.msra.mxu0 0
    %1912 = vmatprep.subr.bf16.mxu0 0
    %1913 = vmatpush1.bf16.msra.mxu0 0
    %1914 = vmatprep.subr.bf16.mxu0 0
    %1915 = vmatpush1.bf16.msra.mxu0 0
    %1916 = vmatprep.subr.bf16.mxu0 0
    %1917 = vmatpush1.bf16.msra.mxu0 0
    %1918 = vmatprep.subr.bf16.mxu0 0
    %1919 = vmatpush1.bf16.msra.mxu0 0
    %1920 = vmatprep.subr.bf16.mxu0 0
    %1921 = vmatpush1.bf16.msra.mxu0 0
    %1922 = vmatprep.subr.bf16.mxu0 0
    %1923 = vmatpush1.bf16.msra.mxu0 0
    %1924 = vmatprep.subr.bf16.mxu0 0
    %1925 = vmatpush1.bf16.msra.mxu0 0
    %1926 = vmatprep.subr.bf16.mxu0 0
    %1927 = vmatpush1.bf16.msra.mxu0 0
    %1928 = vmatprep.subr.bf16.mxu0 0
    %1929 = vmatpush1.bf16.msra.mxu0 0
    %1930 = vmatprep.mubr.bf16.mxu0 0
    %1931 = vmatmul.mubr.bf16.gmra.mrb[0].mxu0 %v1875
    %v1932 = vpop.f32.mrb[0].mxu0
    %v1933 = vadd.f32 0.0, %v1932
    %v1934 = vpop.f32.mrb[0].mxu0
    %v1935 = vpop.f32.mrb[0].mxu0
    %v1936 = vadd.f32 0.0, %v1935
    %v1937 = vpop.f32.mrb[0].mxu0
    %1938 = vmatprep.mubr.bf16.mxu0 0
    %1939 = vmatmul.mubr.bf16.gmra.mrb[0].mxu0 %v1878
    %v1940 = vpop.f32.mrb[0].mxu0
    %v1941 = vadd.f32 0.0, %v1940
    %v1942 = vpop.f32.mrb[0].mxu0
    %v1943 = vpop.f32.mrb[0].mxu0
    %v1944 = vadd.f32 0.0, %v1943
    %v1945 = vpop.f32.mrb[0].mxu0
    %1946 = vmatprep.mubr.bf16.mxu0 0
    %1947 = vmatmul.mubr.bf16.gmra.mrb[0].mxu0 %v1881
    %v1948 = vpop.f32.mrb[0].mxu0
    %v1949 = vadd.f32 0.0, %v1948
    %v1950 = vpop.f32.mrb[0].mxu0
    %v1951 = vpop.f32.mrb[0].mxu0
    %v1952 = vadd.f32 0.0, %v1951
    %v1953 = vpop.f32.mrb[0].mxu0
    %1954 = vmatprep.mubr.bf16.mxu0 0
    %1955 = vmatmul.mubr.bf16.gmra.mrb[0].mxu0 %v1884
    %v1956 = vpop.f32.mrb[0].mxu0
    %v1957 = vadd.f32 0.0, %v1956
    %v1958 = vpop.f32.mrb[0].mxu0
    %v1959 = vpop.f32.mrb[0].mxu0
    %v1960 = vadd.f32 0.0, %v1959
    %v1961 = vpop.f32.mrb[0].mxu0
    %1962 = vmatprep.mubr.bf16.mxu0 0
    %1963 = vmatmul.mubr.bf16.gmra.mrb[0].mxu0 %v1887
    %v1964 = vpop.f32.mrb[0].mxu0
    %v1965 = vadd.f32 0.0, %v1964
    %v1966 = vpop.f32.mrb[0].mxu0
    %v1967 = vpop.f32.mrb[0].mxu0
    %v1968 = vadd.f32 0.0, %v1967
    %v1969 = vpop.f32.mrb[0].mxu0
    %1970 = vmatprep.mubr.bf16.mxu0 0
    %1971 = vmatmul.mubr.bf16.gmra.mrb[0].mxu0 %v1890
    %v1972 = vpop.f32.mrb[0].mxu0
    %v1973 = vadd.f32 0.0, %v1972
    %v1974 = vpop.f32.mrb[0].mxu0
    %v1975 = vpop.f32.mrb[0].mxu0
    %v1976 = vadd.f32 0.0, %v1975
    %v1977 = vpop.f32.mrb[0].mxu0
    %1978 = vmatprep.mubr.bf16.mxu0 0
    %1979 = vmatmul.mubr.bf16.gmra.mrb[0].mxu0 %v1893
    %v1980 = vpop.f32.mrb[0].mxu0
    %v1981 = vadd.f32 0.0, %v1980
    %v1982 = vpop.f32.mrb[0].mxu0
    %v1983 = vpop.f32.mrb[0].mxu0
    %v1984 = vadd.f32 0.0, %v1983
    %v1985 = vpop.f32.mrb[0].mxu0
    %1986 = vmatprep.mubr.bf16.mxu0 0
    %1987 = vmatmul.mubr.bf16.gmra.mrb[0].mxu0 %v1896
    %v1988 = vpop.f32.mrb[0].mxu0
    %v1989 = vadd.f32 0.0, %v1988
    %v1990 = vpop.f32.mrb[0].mxu0
    %v1991 = vpop.f32.mrb[0].mxu0
    %v1992 = vadd.f32 0.0, %v1991
    %v1993 = vpop.f32.mrb[0].mxu0
    %1994 = vdwg.mxu0
    %v1995 = vadd.f32 %v1817, %v1933
    %v1996 = vadd.f32 %v1818, %v1936
    %v1997 = vadd.f32 %v1819, %v1941
    %v1998 = vadd.f32 %v1820, %v1944
    %v1999 = vadd.f32 %v1821, %v1949
    %v2000 = vadd.f32 %v1822, %v1952
    %v2001 = vadd.f32 %v1823, %v1957
    %v2002 = vadd.f32 %v1824, %v1960
    %v2003 = vadd.f32 %v1825, %v1965
    %v2004 = vadd.f32 %v1826, %v1968
    %v2005 = vadd.f32 %v1827, %v1973
    %v2006 = vadd.f32 %v1828, %v1976
    %v2007 = vadd.f32 %v1829, %v1981
    %v2008 = vadd.f32 %v1830, %v1984
    %v2009 = vadd.f32 %v1831, %v1989
    %v2010 = vadd.f32 %v1832, %v1992
    %v2015 = vrot.slane %v984, 1
    %v2016 = vrot.slane %v985, 1
    %v2017 = vsel %vm130, %v2015, %v2016
    %v2018 = vrot.slane %v1004, 1
    %v2019 = vrot.slane %v1005, 1
    %v2020 = vsel %vm130, %v2018, %v2019
    %v2023 = vpack.c.bf16 %v1058, %v1055
    %v2024 = vpack.c.bf16 %v1064, %v1061
    %v2025 = vpack.c.bf16 %v1070, %v1067
    %v2026 = vpack.c.bf16 %v2017, %v1073
    %v2027 = vpack.c.bf16 %v1082, %v1079
    %v2028 = vpack.c.bf16 %v1088, %v1085
    %v2029 = vpack.c.bf16 %v1094, %v1091
    %v2030 = vpack.c.bf16 %v2020, %v1097
    %s2031 = scalar_lea.vmem %s3, 40
    %v2032 = vld [vmem:[%s2031] sm:$0xf]
    %v2033 = vld [vmem:[%s2031 + $0x4] sm:$0xf]
    %v2036 = vunpack.c.l.b16 %v2032
    %v2037 = vunpack.c.l.b16 %v2033
    %v2038 = vpack.c.b16 %v2037, %v2036
    %v2041 = vsel %vm1155, %v2023, 0
    %v2044 = vsel %vm1155, %v2024, 0
    %v2047 = vsel %vm1155, %v2025, 0
    %v2050 = vsel %vm1155, %v2026, 0
    %v2053 = vsel %vm1155, %v2027, 0
    %v2056 = vsel %vm1155, %v2028, 0
    %v2059 = vsel %vm1155, %v2029, 0
    %v2062 = vsel %vm1155, %v2030, 0
    %2064 = vmatprep.subr.bf16.mxu0 0
    %2065 = vmatpush1.bf16.msra.mxu0 %v2038
    %2066 = vmatprep.subr.bf16.mxu0 0
    %2067 = vmatpush1.bf16.msra.mxu0 0
    %2068 = vmatprep.subr.bf16.mxu0 0
    %2069 = vmatpush1.bf16.msra.mxu0 0
    %2070 = vmatprep.subr.bf16.mxu0 0
    %2071 = vmatpush1.bf16.msra.mxu0 0
    %2072 = vmatprep.subr.bf16.mxu0 0
    %2073 = vmatpush1.bf16.msra.mxu0 0
    %2074 = vmatprep.subr.bf16.mxu0 0
    %2075 = vmatpush1.bf16.msra.mxu0 0
    %2076 = vmatprep.subr.bf16.mxu0 0
    %2077 = vmatpush1.bf16.msra.mxu0 0
    %2078 = vmatprep.subr.bf16.mxu0 0
    %2079 = vmatpush1.bf16.msra.mxu0 0
    %2080 = vmatprep.subr.bf16.mxu0 0
    %2081 = vmatpush1.bf16.msra.mxu0 0
    %2082 = vmatprep.subr.bf16.mxu0 0
    %2083 = vmatpush1.bf16.msra.mxu0 0
    %2084 = vmatprep.subr.bf16.mxu0 0
    %2085 = vmatpush1.bf16.msra.mxu0 0
    %2086 = vmatprep.subr.bf16.mxu0 0
    %2087 = vmatpush1.bf16.msra.mxu0 0
    %2088 = vmatprep.subr.bf16.mxu0 0
    %2089 = vmatpush1.bf16.msra.mxu0 0
    %2090 = vmatprep.subr.bf16.mxu0 0
    %2091 = vmatpush1.bf16.msra.mxu0 0
    %2092 = vmatprep.subr.bf16.mxu0 0
    %2093 = vmatpush1.bf16.msra.mxu0 0
    %2094 = vmatprep.subr.bf16.mxu0 0
    %2095 = vmatpush1.bf16.msra.mxu0 0
    %2096 = vmatprep.mubr.bf16.mxu0 0
    %2097 = vmatmul.mubr.bf16.gmra.mrb[0].mxu0 %v2041
    %v2098 = vpop.f32.mrb[0].mxu0
    %v2099 = vadd.f32 0.0, %v2098
    %v2100 = vpop.f32.mrb[0].mxu0
    %v2101 = vpop.f32.mrb[0].mxu0
    %v2102 = vadd.f32 0.0, %v2101
    %v2103 = vpop.f32.mrb[0].mxu0
    %2104 = vmatprep.mubr.bf16.mxu0 0
    %2105 = vmatmul.mubr.bf16.gmra.mrb[0].mxu0 %v2044
    %v2106 = vpop.f32.mrb[0].mxu0
    %v2107 = vadd.f32 0.0, %v2106
    %v2108 = vpop.f32.mrb[0].mxu0
    %v2109 = vpop.f32.mrb[0].mxu0
    %v2110 = vadd.f32 0.0, %v2109
    %v2111 = vpop.f32.mrb[0].mxu0
    %2112 = vmatprep.mubr.bf16.mxu0 0
    %2113 = vmatmul.mubr.bf16.gmra.mrb[0].mxu0 %v2047
    %v2114 = vpop.f32.mrb[0].mxu0
    %v2115 = vadd.f32 0.0, %v2114
    %v2116 = vpop.f32.mrb[0].mxu0
    %v2117 = vpop.f32.mrb[0].mxu0
    %v2118 = vadd.f32 0.0, %v2117
    %v2119 = vpop.f32.mrb[0].mxu0
    %2120 = vmatprep.mubr.bf16.mxu0 0
    %2121 = vmatmul.mubr.bf16.gmra.mrb[0].mxu0 %v2050
    %v2122 = vpop.f32.mrb[0].mxu0
    %v2123 = vadd.f32 0.0, %v2122
    %v2124 = vpop.f32.mrb[0].mxu0
    %v2125 = vpop.f32.mrb[0].mxu0
    %v2126 = vadd.f32 0.0, %v2125
    %v2127 = vpop.f32.mrb[0].mxu0
    %2128 = vmatprep.mubr.bf16.mxu0 0
    %2129 = vmatmul.mubr.bf16.gmra.mrb[0].mxu0 %v2053
    %v2130 = vpop.f32.mrb[0].mxu0
    %v2131 = vadd.f32 0.0, %v2130
    %v2132 = vpop.f32.mrb[0].mxu0
    %v2133 = vpop.f32.mrb[0].mxu0
    %v2134 = vadd.f32 0.0, %v2133
    %v2135 = vpop.f32.mrb[0].mxu0
    %2136 = vmatprep.mubr.bf16.mxu0 0
    %2137 = vmatmul.mubr.bf16.gmra.mrb[0].mxu0 %v2056
    %v2138 = vpop.f32.mrb[0].mxu0
    %v2139 = vadd.f32 0.0, %v2138
    %v2140 = vpop.f32.mrb[0].mxu0
    %v2141 = vpop.f32.mrb[0].mxu0
    %v2142 = vadd.f32 0.0, %v2141
    %v2143 = vpop.f32.mrb[0].mxu0
    %2144 = vmatprep.mubr.bf16.mxu0 0
    %2145 = vmatmul.mubr.bf16.gmra.mrb[0].mxu0 %v2059
    %v2146 = vpop.f32.mrb[0].mxu0
    %v2147 = vadd.f32 0.0, %v2146
    %v2148 = vpop.f32.mrb[0].mxu0
    %v2149 = vpop.f32.mrb[0].mxu0
    %v2150 = vadd.f32 0.0, %v2149
    %v2151 = vpop.f32.mrb[0].mxu0
    %2152 = vmatprep.mubr.bf16.mxu0 0
    %2153 = vmatmul.mubr.bf16.gmra.mrb[0].mxu0 %v2062
    %v2154 = vpop.f32.mrb[0].mxu0
    %v2155 = vadd.f32 0.0, %v2154
    %v2156 = vpop.f32.mrb[0].mxu0
    %v2157 = vpop.f32.mrb[0].mxu0
    %v2158 = vadd.f32 0.0, %v2157
    %v2159 = vpop.f32.mrb[0].mxu0
    %2160 = vdwg.mxu0
    %v2161 = vadd.f32 %v1995, %v2099
    %v2162 = vadd.f32 %v1996, %v2102
    %v2163 = vadd.f32 %v1997, %v2107
    %v2164 = vadd.f32 %v1998, %v2110
    %v2165 = vadd.f32 %v1999, %v2115
    %v2166 = vadd.f32 %v2000, %v2118
    %v2167 = vadd.f32 %v2001, %v2123
    %v2168 = vadd.f32 %v2002, %v2126
    %v2169 = vadd.f32 %v2003, %v2131
    %v2170 = vadd.f32 %v2004, %v2134
    %v2171 = vadd.f32 %v2005, %v2139
    %v2172 = vadd.f32 %v2006, %v2142
    %v2173 = vadd.f32 %v2007, %v2147
    %v2174 = vadd.f32 %v2008, %v2150
    %v2175 = vadd.f32 %v2009, %v2155
    %v2176 = vadd.f32 %v2010, %v2158
    %s2177 = scalar_lea.vmem %s3, 48
    %v2178 = vld [vmem:[%s2177] sm:$0xf]
    %v2179 = vld [vmem:[%s2177 + $0x4] sm:$0xf]
    %2188 = vrot.lane.b32.xlu0 %v2023, 112
    %v2189 = vpop.permute.xlu0 %2188
    %2190 = vrot.lane.b32.xlu0 %v2024, 112
    %v2191 = vpop.permute.xlu0 %2190
    %2192 = vrot.lane.b32.xlu0 %v2025, 112
    %v2193 = vpop.permute.xlu0 %2192
    %2194 = vrot.lane.b32.xlu0 %v2026, 112
    %v2195 = vpop.permute.xlu0 %2194
    %2196 = vrot.lane.b32.xlu0 %v2027, 112
    %v2197 = vpop.permute.xlu0 %2196
    %2198 = vrot.lane.b32.xlu0 %v2028, 112
    %v2199 = vpop.permute.xlu0 %2198
    %2200 = vrot.lane.b32.xlu0 %v2029, 112
    %v2201 = vpop.permute.xlu0 %2200
    %2202 = vrot.lane.b32.xlu0 %v2030, 112
    %v2203 = vpop.permute.xlu0 %2202
    %v2206 = vunpack.c.l.b16 %v2178
    %v2207 = vunpack.c.l.b16 %v2179
    %v2208 = vpack.c.b16 %v2207, %v2206
    %v2211 = vsel %vm1155, %v2189, 0
    %v2214 = vsel %vm1155, %v2191, 0
    %v2217 = vsel %vm1155, %v2193, 0
    %v2220 = vsel %vm1155, %v2195, 0
    %v2223 = vsel %vm1155, %v2197, 0
    %v2226 = vsel %vm1155, %v2199, 0
    %v2229 = vsel %vm1155, %v2201, 0
    %v2232 = vsel %vm1155, %v2203, 0
    %2234 = vmatprep.subr.bf16.mxu0 0
    %2235 = vmatpush1.bf16.msra.mxu0 %v2208
    %2236 = vmatprep.subr.bf16.mxu0 0
    %2237 = vmatpush1.bf16.msra.mxu0 0
    %2238 = vmatprep.subr.bf16.mxu0 0
    %2239 = vmatpush1.bf16.msra.mxu0 0
    %2240 = vmatprep.subr.bf16.mxu0 0
    %2241 = vmatpush1.bf16.msra.mxu0 0
    %2242 = vmatprep.subr.bf16.mxu0 0
    %2243 = vmatpush1.bf16.msra.mxu0 0
    %2244 = vmatprep.subr.bf16.mxu0 0
    %2245 = vmatpush1.bf16.msra.mxu0 0
    %2246 = vmatprep.subr.bf16.mxu0 0
    %2247 = vmatpush1.bf16.msra.mxu0 0
    %2248 = vmatprep.subr.bf16.mxu0 0
    %2249 = vmatpush1.bf16.msra.mxu0 0
    %2250 = vmatprep.subr.bf16.mxu0 0
    %2251 = vmatpush1.bf16.msra.mxu0 0
    %2252 = vmatprep.subr.bf16.mxu0 0
    %2253 = vmatpush1.bf16.msra.mxu0 0
    %2254 = vmatprep.subr.bf16.mxu0 0
    %2255 = vmatpush1.bf16.msra.mxu0 0
    %2256 = vmatprep.subr.bf16.mxu0 0
    %2257 = vmatpush1.bf16.msra.mxu0 0
    %2258 = vmatprep.subr.bf16.mxu0 0
    %2259 = vmatpush1.bf16.msra.mxu0 0
    %2260 = vmatprep.subr.bf16.mxu0 0
    %2261 = vmatpush1.bf16.msra.mxu0 0
    %2262 = vmatprep.subr.bf16.mxu0 0
    %2263 = vmatpush1.bf16.msra.mxu0 0
    %2264 = vmatprep.subr.bf16.mxu0 0
    %2265 = vmatpush1.bf16.msra.mxu0 0
    %2266 = vmatprep.mubr.bf16.mxu0 0
    %2267 = vmatmul.mubr.bf16.gmra.mrb[0].mxu0 %v2211
    %v2268 = vpop.f32.mrb[0].mxu0
    %v2269 = vadd.f32 0.0, %v2268
    %v2270 = vpop.f32.mrb[0].mxu0
    %v2271 = vpop.f32.mrb[0].mxu0
    %v2272 = vadd.f32 0.0, %v2271
    %v2273 = vpop.f32.mrb[0].mxu0
    %2274 = vmatprep.mubr.bf16.mxu0 0
    %2275 = vmatmul.mubr.bf16.gmra.mrb[0].mxu0 %v2214
    %v2276 = vpop.f32.mrb[0].mxu0
    %v2277 = vadd.f32 0.0, %v2276
    %v2278 = vpop.f32.mrb[0].mxu0
    %v2279 = vpop.f32.mrb[0].mxu0
    %v2280 = vadd.f32 0.0, %v2279
    %v2281 = vpop.f32.mrb[0].mxu0
    %2282 = vmatprep.mubr.bf16.mxu0 0
    %2283 = vmatmul.mubr.bf16.gmra.mrb[0].mxu0 %v2217
    %v2284 = vpop.f32.mrb[0].mxu0
    %v2285 = vadd.f32 0.0, %v2284
    %v2286 = vpop.f32.mrb[0].mxu0
    %v2287 = vpop.f32.mrb[0].mxu0
    %v2288 = vadd.f32 0.0, %v2287
    %v2289 = vpop.f32.mrb[0].mxu0
    %2290 = vmatprep.mubr.bf16.mxu0 0
    %2291 = vmatmul.mubr.bf16.gmra.mrb[0].mxu0 %v2220
    %v2292 = vpop.f32.mrb[0].mxu0
    %v2293 = vadd.f32 0.0, %v2292
    %v2294 = vpop.f32.mrb[0].mxu0
    %v2295 = vpop.f32.mrb[0].mxu0
    %v2296 = vadd.f32 0.0, %v2295
    %v2297 = vpop.f32.mrb[0].mxu0
    %2298 = vmatprep.mubr.bf16.mxu0 0
    %2299 = vmatmul.mubr.bf16.gmra.mrb[0].mxu0 %v2223
    %v2300 = vpop.f32.mrb[0].mxu0
    %v2301 = vadd.f32 0.0, %v2300
    %v2302 = vpop.f32.mrb[0].mxu0
    %v2303 = vpop.f32.mrb[0].mxu0
    %v2304 = vadd.f32 0.0, %v2303
    %v2305 = vpop.f32.mrb[0].mxu0
    %2306 = vmatprep.mubr.bf16.mxu0 0
    %2307 = vmatmul.mubr.bf16.gmra.mrb[0].mxu0 %v2226
    %v2308 = vpop.f32.mrb[0].mxu0
    %v2309 = vadd.f32 0.0, %v2308
    %v2310 = vpop.f32.mrb[0].mxu0
    %v2311 = vpop.f32.mrb[0].mxu0
    %v2312 = vadd.f32 0.0, %v2311
    %v2313 = vpop.f32.mrb[0].mxu0
    %2314 = vmatprep.mubr.bf16.mxu0 0
    %2315 = vmatmul.mubr.bf16.gmra.mrb[0].mxu0 %v2229
    %v2316 = vpop.f32.mrb[0].mxu0
    %v2317 = vadd.f32 0.0, %v2316
    %v2318 = vpop.f32.mrb[0].mxu0
    %v2319 = vpop.f32.mrb[0].mxu0
    %v2320 = vadd.f32 0.0, %v2319
    %v2321 = vpop.f32.mrb[0].mxu0
    %2322 = vmatprep.mubr.bf16.mxu0 0
    %2323 = vmatmul.mubr.bf16.gmra.mrb[0].mxu0 %v2232
    %v2324 = vpop.f32.mrb[0].mxu0
    %v2325 = vadd.f32 0.0, %v2324
    %v2326 = vpop.f32.mrb[0].mxu0
    %v2327 = vpop.f32.mrb[0].mxu0
    %v2328 = vadd.f32 0.0, %v2327
    %v2329 = vpop.f32.mrb[0].mxu0
    %2330 = vdwg.mxu0
    %v2331 = vadd.f32 %v2161, %v2269
    %v2332 = vadd.f32 %v2162, %v2272
    %v2333 = vadd.f32 %v2163, %v2277
    %v2334 = vadd.f32 %v2164, %v2280
    %v2335 = vadd.f32 %v2165, %v2285
    %v2336 = vadd.f32 %v2166, %v2288
    %v2337 = vadd.f32 %v2167, %v2293
    %v2338 = vadd.f32 %v2168, %v2296
    %v2339 = vadd.f32 %v2169, %v2301
    %v2340 = vadd.f32 %v2170, %v2304
    %v2341 = vadd.f32 %v2171, %v2309
    %v2342 = vadd.f32 %v2172, %v2312
    %v2343 = vadd.f32 %v2173, %v2317
    %v2344 = vadd.f32 %v2174, %v2320
    %v2345 = vadd.f32 %v2175, %v2325
    %v2346 = vadd.f32 %v2176, %v2328
    %v2347 = vrot.slane %v984, 2
    %v2348 = vrot.slane %v985, 2
    %v2349 = vsel %vm1590, %v2347, %v2348
    %v2350 = vrot.slane %v1004, 2
    %v2351 = vrot.slane %v1005, 2
    %v2352 = vsel %vm1590, %v2350, %v2351
    %v2355 = vpack.c.bf16 %v1599, %v1596
    %v2356 = vpack.c.bf16 %v1605, %v1602
    %v2357 = vpack.c.bf16 %v1611, %v1608
    %v2358 = vpack.c.bf16 %v2349, %v1614
    %v2359 = vpack.c.bf16 %v1623, %v1620
    %v2360 = vpack.c.bf16 %v1629, %v1626
    %v2361 = vpack.c.bf16 %v1635, %v1632
    %v2362 = vpack.c.bf16 %v2352, %v1638
    %s2363 = scalar_lea.vmem %s3, 56
    %v2364 = vld [vmem:[%s2363] sm:$0xf]
    %v2365 = vld [vmem:[%s2363 + $0x4] sm:$0xf]
    %v2368 = vunpack.c.l.b16 %v2364
    %v2369 = vunpack.c.l.b16 %v2365
    %v2370 = vpack.c.b16 %v2369, %v2368
    %v2373 = vsel %vm1155, %v2355, 0
    %v2376 = vsel %vm1155, %v2356, 0
    %v2379 = vsel %vm1155, %v2357, 0
    %v2382 = vsel %vm1155, %v2358, 0
    %v2385 = vsel %vm1155, %v2359, 0
    %v2388 = vsel %vm1155, %v2360, 0
    %v2391 = vsel %vm1155, %v2361, 0
    %v2394 = vsel %vm1155, %v2362, 0
    %2396 = vmatprep.subr.bf16.mxu0 0
    %2397 = vmatpush1.bf16.msra.mxu0 %v2370
    %2398 = vmatprep.subr.bf16.mxu0 0
    %2399 = vmatpush1.bf16.msra.mxu0 0
    %2400 = vmatprep.subr.bf16.mxu0 0
    %2401 = vmatpush1.bf16.msra.mxu0 0
    %2402 = vmatprep.subr.bf16.mxu0 0
    %2403 = vmatpush1.bf16.msra.mxu0 0
    %2404 = vmatprep.subr.bf16.mxu0 0
    %2405 = vmatpush1.bf16.msra.mxu0 0
    %2406 = vmatprep.subr.bf16.mxu0 0
    %2407 = vmatpush1.bf16.msra.mxu0 0
    %2408 = vmatprep.subr.bf16.mxu0 0
    %2409 = vmatpush1.bf16.msra.mxu0 0
    %2410 = vmatprep.subr.bf16.mxu0 0
    %2411 = vmatpush1.bf16.msra.mxu0 0
    %2412 = vmatprep.subr.bf16.mxu0 0
    %2413 = vmatpush1.bf16.msra.mxu0 0
    %2414 = vmatprep.subr.bf16.mxu0 0
    %2415 = vmatpush1.bf16.msra.mxu0 0
    %2416 = vmatprep.subr.bf16.mxu0 0
    %2417 = vmatpush1.bf16.msra.mxu0 0
    %2418 = vmatprep.subr.bf16.mxu0 0
    %2419 = vmatpush1.bf16.msra.mxu0 0
    %2420 = vmatprep.subr.bf16.mxu0 0
    %2421 = vmatpush1.bf16.msra.mxu0 0
    %2422 = vmatprep.subr.bf16.mxu0 0
    %2423 = vmatpush1.bf16.msra.mxu0 0
    %2424 = vmatprep.subr.bf16.mxu0 0
    %2425 = vmatpush1.bf16.msra.mxu0 0
    %2426 = vmatprep.subr.bf16.mxu0 0
    %2427 = vmatpush1.bf16.msra.mxu0 0
    %2428 = vmatprep.mubr.bf16.mxu0 0
    %2429 = vmatmul.mubr.bf16.gmra.mrb[0].mxu0 %v2373
    %v2430 = vpop.f32.mrb[0].mxu0
    %v2431 = vadd.f32 0.0, %v2430
    %v2432 = vpop.f32.mrb[0].mxu0
    %v2433 = vpop.f32.mrb[0].mxu0
    %v2434 = vadd.f32 0.0, %v2433
    %v2435 = vpop.f32.mrb[0].mxu0
    %2436 = vmatprep.mubr.bf16.mxu0 0
    %2437 = vmatmul.mubr.bf16.gmra.mrb[0].mxu0 %v2376
    %v2438 = vpop.f32.mrb[0].mxu0
    %v2439 = vadd.f32 0.0, %v2438
    %v2440 = vpop.f32.mrb[0].mxu0
    %v2441 = vpop.f32.mrb[0].mxu0
    %v2442 = vadd.f32 0.0, %v2441
    %v2443 = vpop.f32.mrb[0].mxu0
    %2444 = vmatprep.mubr.bf16.mxu0 0
    %2445 = vmatmul.mubr.bf16.gmra.mrb[0].mxu0 %v2379
    %v2446 = vpop.f32.mrb[0].mxu0
    %v2447 = vadd.f32 0.0, %v2446
    %v2448 = vpop.f32.mrb[0].mxu0
    %v2449 = vpop.f32.mrb[0].mxu0
    %v2450 = vadd.f32 0.0, %v2449
    %v2451 = vpop.f32.mrb[0].mxu0
    %2452 = vmatprep.mubr.bf16.mxu0 0
    %2453 = vmatmul.mubr.bf16.gmra.mrb[0].mxu0 %v2382
    %v2454 = vpop.f32.mrb[0].mxu0
    %v2455 = vadd.f32 0.0, %v2454
    %v2456 = vpop.f32.mrb[0].mxu0
    %v2457 = vpop.f32.mrb[0].mxu0
    %v2458 = vadd.f32 0.0, %v2457
    %v2459 = vpop.f32.mrb[0].mxu0
    %2460 = vmatprep.mubr.bf16.mxu0 0
    %2461 = vmatmul.mubr.bf16.gmra.mrb[0].mxu0 %v2385
    %v2462 = vpop.f32.mrb[0].mxu0
    %v2463 = vadd.f32 0.0, %v2462
    %v2464 = vpop.f32.mrb[0].mxu0
    %v2465 = vpop.f32.mrb[0].mxu0
    %v2466 = vadd.f32 0.0, %v2465
    %v2467 = vpop.f32.mrb[0].mxu0
    %2468 = vmatprep.mubr.bf16.mxu0 0
    %2469 = vmatmul.mubr.bf16.gmra.mrb[0].mxu0 %v2388
    %v2470 = vpop.f32.mrb[0].mxu0
    %v2471 = vadd.f32 0.0, %v2470
    %v2472 = vpop.f32.mrb[0].mxu0
    %v2473 = vpop.f32.mrb[0].mxu0
    %v2474 = vadd.f32 0.0, %v2473
    %v2475 = vpop.f32.mrb[0].mxu0
    %2476 = vmatprep.mubr.bf16.mxu0 0
    %2477 = vmatmul.mubr.bf16.gmra.mrb[0].mxu0 %v2391
    %v2478 = vpop.f32.mrb[0].mxu0
    %v2479 = vadd.f32 0.0, %v2478
    %v2480 = vpop.f32.mrb[0].mxu0
    %v2481 = vpop.f32.mrb[0].mxu0
    %v2482 = vadd.f32 0.0, %v2481
    %v2483 = vpop.f32.mrb[0].mxu0
    %2484 = vmatprep.mubr.bf16.mxu0 0
    %2485 = vmatmul.mubr.bf16.gmra.mrb[0].mxu0 %v2394
    %v2486 = vpop.f32.mrb[0].mxu0
    %v2487 = vadd.f32 0.0, %v2486
    %v2488 = vpop.f32.mrb[0].mxu0
    %v2489 = vpop.f32.mrb[0].mxu0
    %v2490 = vadd.f32 0.0, %v2489
    %v2491 = vpop.f32.mrb[0].mxu0
    %2492 = vdwg.mxu0
    %v2493 = vadd.f32 %v2331, %v2431
    %v2494 = vadd.f32 %v2332, %v2434
    %v2495 = vadd.f32 %v2333, %v2439
    %v2496 = vadd.f32 %v2334, %v2442
    %v2497 = vadd.f32 %v2335, %v2447
    %v2498 = vadd.f32 %v2336, %v2450
    %v2499 = vadd.f32 %v2337, %v2455
    %v2500 = vadd.f32 %v2338, %v2458
    %v2501 = vadd.f32 %v2339, %v2463
    %v2502 = vadd.f32 %v2340, %v2466
    %v2503 = vadd.f32 %v2341, %v2471
    %v2504 = vadd.f32 %v2342, %v2474
    %v2505 = vadd.f32 %v2343, %v2479
    %v2506 = vadd.f32 %v2344, %v2482
    %v2507 = vadd.f32 %v2345, %v2487
    %v2508 = vadd.f32 %v2346, %v2490
    %s2509 = scalar_lea.vmem %s3, 64
    %v2510 = vld [vmem:[%s2509] sm:$0xf]
    %v2511 = vld [vmem:[%s2509 + $0x4] sm:$0xf]
    %2512 = vrot.lane.b32.xlu0 %v1833, 80
    %v2513 = vpop.permute.xlu0 %2512
    %2514 = vrot.lane.b32.xlu0 %v1834, 80
    %v2515 = vpop.permute.xlu0 %2514
    %2516 = vrot.lane.b32.xlu0 %v1835, 80
    %v2517 = vpop.permute.xlu0 %2516
    %2518 = vrot.lane.b32.xlu0 %v1836, 80
    %v2519 = vpop.permute.xlu0 %2518
    %2520 = vrot.lane.b32.xlu0 %v1837, 80
    %v2521 = vpop.permute.xlu0 %2520
    %2522 = vrot.lane.b32.xlu0 %v1838, 80
    %v2523 = vpop.permute.xlu0 %2522
    %2524 = vrot.lane.b32.xlu0 %v1839, 80
    %v2525 = vpop.permute.xlu0 %2524
    %2526 = vrot.lane.b32.xlu0 %v1840, 80
    %v2527 = vpop.permute.xlu0 %2526
    %v2530 = vunpack.c.l.b16 %v2510
    %v2531 = vunpack.c.l.b16 %v2511
    %v2532 = vpack.c.b16 %v2531, %v2530
    %v2535 = vsel %vm1155, %v2513, 0
    %v2538 = vsel %vm1155, %v2515, 0
    %v2541 = vsel %vm1155, %v2517, 0
    %v2544 = vsel %vm1155, %v2519, 0
    %v2547 = vsel %vm1155, %v2521, 0
    %v2550 = vsel %vm1155, %v2523, 0
    %v2553 = vsel %vm1155, %v2525, 0
    %v2556 = vsel %vm1155, %v2527, 0
    %2558 = vmatprep.subr.bf16.mxu0 0
    %2559 = vmatpush1.bf16.msra.mxu0 %v2532
    %2560 = vmatprep.subr.bf16.mxu0 0
    %2561 = vmatpush1.bf16.msra.mxu0 0
    %2562 = vmatprep.subr.bf16.mxu0 0
    %2563 = vmatpush1.bf16.msra.mxu0 0
    %2564 = vmatprep.subr.bf16.mxu0 0
    %2565 = vmatpush1.bf16.msra.mxu0 0
    %2566 = vmatprep.subr.bf16.mxu0 0
    %2567 = vmatpush1.bf16.msra.mxu0 0
    %2568 = vmatprep.subr.bf16.mxu0 0
    %2569 = vmatpush1.bf16.msra.mxu0 0
    %2570 = vmatprep.subr.bf16.mxu0 0
    %2571 = vmatpush1.bf16.msra.mxu0 0
    %2572 = vmatprep.subr.bf16.mxu0 0
    %2573 = vmatpush1.bf16.msra.mxu0 0
    %2574 = vmatprep.subr.bf16.mxu0 0
    %2575 = vmatpush1.bf16.msra.mxu0 0
    %2576 = vmatprep.subr.bf16.mxu0 0
    %2577 = vmatpush1.bf16.msra.mxu0 0
    %2578 = vmatprep.subr.bf16.mxu0 0
    %2579 = vmatpush1.bf16.msra.mxu0 0
    %2580 = vmatprep.subr.bf16.mxu0 0
    %2581 = vmatpush1.bf16.msra.mxu0 0
    %2582 = vmatprep.subr.bf16.mxu0 0
    %2583 = vmatpush1.bf16.msra.mxu0 0
    %2584 = vmatprep.subr.bf16.mxu0 0
    %2585 = vmatpush1.bf16.msra.mxu0 0
    %2586 = vmatprep.subr.bf16.mxu0 0
    %2587 = vmatpush1.bf16.msra.mxu0 0
    %2588 = vmatprep.subr.bf16.mxu0 0
    %2589 = vmatpush1.bf16.msra.mxu0 0
    %2590 = vmatprep.mubr.bf16.mxu0 0
    %2591 = vmatmul.mubr.bf16.gmra.mrb[0].mxu0 %v2535
    %v2592 = vpop.f32.mrb[0].mxu0
    %v2593 = vadd.f32 0.0, %v2592
    %v2594 = vpop.f32.mrb[0].mxu0
    %v2595 = vpop.f32.mrb[0].mxu0
    %v2596 = vadd.f32 0.0, %v2595
    %v2597 = vpop.f32.mrb[0].mxu0
    %2598 = vmatprep.mubr.bf16.mxu0 0
    %2599 = vmatmul.mubr.bf16.gmra.mrb[0].mxu0 %v2538
    %v2600 = vpop.f32.mrb[0].mxu0
    %v2601 = vadd.f32 0.0, %v2600
    %v2602 = vpop.f32.mrb[0].mxu0
    %v2603 = vpop.f32.mrb[0].mxu0
    %v2604 = vadd.f32 0.0, %v2603
    %v2605 = vpop.f32.mrb[0].mxu0
    %2606 = vmatprep.mubr.bf16.mxu0 0
    %2607 = vmatmul.mubr.bf16.gmra.mrb[0].mxu0 %v2541
    %v2608 = vpop.f32.mrb[0].mxu0
    %v2609 = vadd.f32 0.0, %v2608
    %v2610 = vpop.f32.mrb[0].mxu0
    %v2611 = vpop.f32.mrb[0].mxu0
    %v2612 = vadd.f32 0.0, %v2611
    %v2613 = vpop.f32.mrb[0].mxu0
    %2614 = vmatprep.mubr.bf16.mxu0 0
    %2615 = vmatmul.mubr.bf16.gmra.mrb[0].mxu0 %v2544
    %v2616 = vpop.f32.mrb[0].mxu0
    %v2617 = vadd.f32 0.0, %v2616
    %v2618 = vpop.f32.mrb[0].mxu0
    %v2619 = vpop.f32.mrb[0].mxu0
    %v2620 = vadd.f32 0.0, %v2619
    %v2621 = vpop.f32.mrb[0].mxu0
    %2622 = vmatprep.mubr.bf16.mxu0 0
    %2623 = vmatmul.mubr.bf16.gmra.mrb[0].mxu0 %v2547
    %v2624 = vpop.f32.mrb[0].mxu0
    %v2625 = vadd.f32 0.0, %v2624
    %v2626 = vpop.f32.mrb[0].mxu0
    %v2627 = vpop.f32.mrb[0].mxu0
    %v2628 = vadd.f32 0.0, %v2627
    %v2629 = vpop.f32.mrb[0].mxu0
    %2630 = vmatprep.mubr.bf16.mxu0 0
    %2631 = vmatmul.mubr.bf16.gmra.mrb[0].mxu0 %v2550
    %v2632 = vpop.f32.mrb[0].mxu0
    %v2633 = vadd.f32 0.0, %v2632
    %v2634 = vpop.f32.mrb[0].mxu0
    %v2635 = vpop.f32.mrb[0].mxu0
    %v2636 = vadd.f32 0.0, %v2635
    %v2637 = vpop.f32.mrb[0].mxu0
    %2638 = vmatprep.mubr.bf16.mxu0 0
    %2639 = vmatmul.mubr.bf16.gmra.mrb[0].mxu0 %v2553
    %v2640 = vpop.f32.mrb[0].mxu0
    %v2641 = vadd.f32 0.0, %v2640
    %v2642 = vpop.f32.mrb[0].mxu0
    %v2643 = vpop.f32.mrb[0].mxu0
    %v2644 = vadd.f32 0.0, %v2643
    %v2645 = vpop.f32.mrb[0].mxu0
    %2646 = vmatprep.mubr.bf16.mxu0 0
    %2647 = vmatmul.mubr.bf16.gmra.mrb[0].mxu0 %v2556
    %v2648 = vpop.f32.mrb[0].mxu0
    %v2649 = vadd.f32 0.0, %v2648
    %v2650 = vpop.f32.mrb[0].mxu0
    %v2651 = vpop.f32.mrb[0].mxu0
    %v2652 = vadd.f32 0.0, %v2651
    %v2653 = vpop.f32.mrb[0].mxu0
    %2654 = vdwg.mxu0
    %v2655 = vadd.f32 %v2493, %v2593
    %v2656 = vadd.f32 %v2494, %v2596
    %v2657 = vadd.f32 %v2495, %v2601
    %v2658 = vadd.f32 %v2496, %v2604
    %v2659 = vadd.f32 %v2497, %v2609
    %v2660 = vadd.f32 %v2498, %v2612
    %v2661 = vadd.f32 %v2499, %v2617
    %v2662 = vadd.f32 %v2500, %v2620
    %v2663 = vadd.f32 %v2501, %v2625
    %v2664 = vadd.f32 %v2502, %v2628
    %v2665 = vadd.f32 %v2503, %v2633
    %v2666 = vadd.f32 %v2504, %v2636
    %v2667 = vadd.f32 %v2505, %v2641
    %v2668 = vadd.f32 %v2506, %v2644
    %v2669 = vadd.f32 %v2507, %v2649
    %v2670 = vadd.f32 %v2508, %v2652
    %s2671 = scalar_lea.vmem %s3, 72
    %v2672 = vld [vmem:[%s2671] sm:$0xf]
    %v2673 = vld [vmem:[%s2671 + $0x4] sm:$0xf]
    %2674 = vrot.lane.b32.xlu0 %v2023, 96
    %v2675 = vpop.permute.xlu0 %2674
    %2676 = vrot.lane.b32.xlu0 %v2024, 96
    %v2677 = vpop.permute.xlu0 %2676
    %2678 = vrot.lane.b32.xlu0 %v2025, 96
    %v2679 = vpop.permute.xlu0 %2678
    %2680 = vrot.lane.b32.xlu0 %v2026, 96
    %v2681 = vpop.permute.xlu0 %2680
    %2682 = vrot.lane.b32.xlu0 %v2027, 96
    %v2683 = vpop.permute.xlu0 %2682
    %2684 = vrot.lane.b32.xlu0 %v2028, 96
    %v2685 = vpop.permute.xlu0 %2684
    %2686 = vrot.lane.b32.xlu0 %v2029, 96
    %v2687 = vpop.permute.xlu0 %2686
    %2688 = vrot.lane.b32.xlu0 %v2030, 96
    %v2689 = vpop.permute.xlu0 %2688
    %v2692 = vunpack.c.l.b16 %v2672
    %v2693 = vunpack.c.l.b16 %v2673
    %v2694 = vpack.c.b16 %v2693, %v2692
    %v2697 = vsel %vm1155, %v2675, 0
    %v2700 = vsel %vm1155, %v2677, 0
    %v2703 = vsel %vm1155, %v2679, 0
    %v2706 = vsel %vm1155, %v2681, 0
    %v2709 = vsel %vm1155, %v2683, 0
    %v2712 = vsel %vm1155, %v2685, 0
    %v2715 = vsel %vm1155, %v2687, 0
    %v2718 = vsel %vm1155, %v2689, 0
    %2720 = vmatprep.subr.bf16.mxu0 0
    %2721 = vmatpush1.bf16.msra.mxu0 %v2694
    %2722 = vmatprep.subr.bf16.mxu0 0
    %2723 = vmatpush1.bf16.msra.mxu0 0
    %2724 = vmatprep.subr.bf16.mxu0 0
    %2725 = vmatpush1.bf16.msra.mxu0 0
    %2726 = vmatprep.subr.bf16.mxu0 0
    %2727 = vmatpush1.bf16.msra.mxu0 0
    %2728 = vmatprep.subr.bf16.mxu0 0
    %2729 = vmatpush1.bf16.msra.mxu0 0
    %2730 = vmatprep.subr.bf16.mxu0 0
    %2731 = vmatpush1.bf16.msra.mxu0 0
    %2732 = vmatprep.subr.bf16.mxu0 0
    %2733 = vmatpush1.bf16.msra.mxu0 0
    %2734 = vmatprep.subr.bf16.mxu0 0
    %2735 = vmatpush1.bf16.msra.mxu0 0
    %2736 = vmatprep.subr.bf16.mxu0 0
    %2737 = vmatpush1.bf16.msra.mxu0 0
    %2738 = vmatprep.subr.bf16.mxu0 0
    %2739 = vmatpush1.bf16.msra.mxu0 0
    %2740 = vmatprep.subr.bf16.mxu0 0
    %2741 = vmatpush1.bf16.msra.mxu0 0
    %2742 = vmatprep.subr.bf16.mxu0 0
    %2743 = vmatpush1.bf16.msra.mxu0 0
    %2744 = vmatprep.subr.bf16.mxu0 0
    %2745 = vmatpush1.bf16.msra.mxu0 0
    %2746 = vmatprep.subr.bf16.mxu0 0
    %2747 = vmatpush1.bf16.msra.mxu0 0
    %2748 = vmatprep.subr.bf16.mxu0 0
    %2749 = vmatpush1.bf16.msra.mxu0 0
    %2750 = vmatprep.subr.bf16.mxu0 0
    %2751 = vmatpush1.bf16.msra.mxu0 0
    %2752 = vmatprep.mubr.bf16.mxu0 0
    %2753 = vmatmul.mubr.bf16.gmra.mrb[0].mxu0 %v2697
    %v2754 = vpop.f32.mrb[0].mxu0
    %v2755 = vadd.f32 0.0, %v2754
    %v2756 = vpop.f32.mrb[0].mxu0
    %v2757 = vpop.f32.mrb[0].mxu0
    %v2758 = vadd.f32 0.0, %v2757
    %v2759 = vpop.f32.mrb[0].mxu0
    %2760 = vmatprep.mubr.bf16.mxu0 0
    %2761 = vmatmul.mubr.bf16.gmra.mrb[0].mxu0 %v2700
    %v2762 = vpop.f32.mrb[0].mxu0
    %v2763 = vadd.f32 0.0, %v2762
    %v2764 = vpop.f32.mrb[0].mxu0
    %v2765 = vpop.f32.mrb[0].mxu0
    %v2766 = vadd.f32 0.0, %v2765
    %v2767 = vpop.f32.mrb[0].mxu0
    %2768 = vmatprep.mubr.bf16.mxu0 0
    %2769 = vmatmul.mubr.bf16.gmra.mrb[0].mxu0 %v2703
    %v2770 = vpop.f32.mrb[0].mxu0
    %v2771 = vadd.f32 0.0, %v2770
    %v2772 = vpop.f32.mrb[0].mxu0
    %v2773 = vpop.f32.mrb[0].mxu0
    %v2774 = vadd.f32 0.0, %v2773
    %v2775 = vpop.f32.mrb[0].mxu0
    %2776 = vmatprep.mubr.bf16.mxu0 0
    %2777 = vmatmul.mubr.bf16.gmra.mrb[0].mxu0 %v2706
    %v2778 = vpop.f32.mrb[0].mxu0
    %v2779 = vadd.f32 0.0, %v2778
    %v2780 = vpop.f32.mrb[0].mxu0
    %v2781 = vpop.f32.mrb[0].mxu0
    %v2782 = vadd.f32 0.0, %v2781
    %v2783 = vpop.f32.mrb[0].mxu0
    %2784 = vmatprep.mubr.bf16.mxu0 0
    %2785 = vmatmul.mubr.bf16.gmra.mrb[0].mxu0 %v2709
    %v2786 = vpop.f32.mrb[0].mxu0
    %v2787 = vadd.f32 0.0, %v2786
    %v2788 = vpop.f32.mrb[0].mxu0
    %v2789 = vpop.f32.mrb[0].mxu0
    %v2790 = vadd.f32 0.0, %v2789
    %v2791 = vpop.f32.mrb[0].mxu0
    %2792 = vmatprep.mubr.bf16.mxu0 0
    %2793 = vmatmul.mubr.bf16.gmra.mrb[0].mxu0 %v2712
    %v2794 = vpop.f32.mrb[0].mxu0
    %v2795 = vadd.f32 0.0, %v2794
    %v2796 = vpop.f32.mrb[0].mxu0
    %v2797 = vpop.f32.mrb[0].mxu0
    %v2798 = vadd.f32 0.0, %v2797
    %v2799 = vpop.f32.mrb[0].mxu0
    %2800 = vmatprep.mubr.bf16.mxu0 0
    %2801 = vmatmul.mubr.bf16.gmra.mrb[0].mxu0 %v2715
    %v2802 = vpop.f32.mrb[0].mxu0
    %v2803 = vadd.f32 0.0, %v2802
    %v2804 = vpop.f32.mrb[0].mxu0
    %v2805 = vpop.f32.mrb[0].mxu0
    %v2806 = vadd.f32 0.0, %v2805
    %v2807 = vpop.f32.mrb[0].mxu0
    %2808 = vmatprep.mubr.bf16.mxu0 0
    %2809 = vmatmul.mubr.bf16.gmra.mrb[0].mxu0 %v2718
    %v2810 = vpop.f32.mrb[0].mxu0
    %v2811 = vadd.f32 0.0, %v2810
    %v2812 = vpop.f32.mrb[0].mxu0
    %v2813 = vpop.f32.mrb[0].mxu0
    %v2814 = vadd.f32 0.0, %v2813
    %v2815 = vpop.f32.mrb[0].mxu0
    %2816 = vdwg.mxu0
    %v2817 = vadd.f32 %v2655, %v2755
    %v2818 = vadd.f32 %v2656, %v2758
    %v2819 = vadd.f32 %v2657, %v2763
    %v2820 = vadd.f32 %v2658, %v2766
    %v2821 = vadd.f32 %v2659, %v2771
    %v2822 = vadd.f32 %v2660, %v2774
    %v2823 = vadd.f32 %v2661, %v2779
    %v2824 = vadd.f32 %v2662, %v2782
    %v2825 = vadd.f32 %v2663, %v2787
    %v2826 = vadd.f32 %v2664, %v2790
    %v2827 = vadd.f32 %v2665, %v2795
    %v2828 = vadd.f32 %v2666, %v2798
    %v2829 = vadd.f32 %v2667, %v2803
    %v2830 = vadd.f32 %v2668, %v2806
    %v2831 = vadd.f32 %v2669, %v2811
    %v2832 = vadd.f32 %v2670, %v2814
    %s2833 = scalar_lea.vmem %s3, 80
    %v2834 = vld [vmem:[%s2833] sm:$0xf]
    %v2835 = vld [vmem:[%s2833 + $0x4] sm:$0xf]
    %2836 = vrot.lane.b32.xlu0 %v2023, 80
    %v2837 = vpop.permute.xlu0 %2836
    %2838 = vrot.lane.b32.xlu0 %v2024, 80
    %v2839 = vpop.permute.xlu0 %2838
    %2840 = vrot.lane.b32.xlu0 %v2025, 80
    %v2841 = vpop.permute.xlu0 %2840
    %2842 = vrot.lane.b32.xlu0 %v2026, 80
    %v2843 = vpop.permute.xlu0 %2842
    %2844 = vrot.lane.b32.xlu0 %v2027, 80
    %v2845 = vpop.permute.xlu0 %2844
    %2846 = vrot.lane.b32.xlu0 %v2028, 80
    %v2847 = vpop.permute.xlu0 %2846
    %2848 = vrot.lane.b32.xlu0 %v2029, 80
    %v2849 = vpop.permute.xlu0 %2848
    %2850 = vrot.lane.b32.xlu0 %v2030, 80
    %v2851 = vpop.permute.xlu0 %2850
    %v2854 = vunpack.c.l.b16 %v2834
    %v2855 = vunpack.c.l.b16 %v2835
    %v2856 = vpack.c.b16 %v2855, %v2854
    %v2859 = vsel %vm1155, %v2837, 0
    %v2862 = vsel %vm1155, %v2839, 0
    %v2865 = vsel %vm1155, %v2841, 0
    %v2868 = vsel %vm1155, %v2843, 0
    %v2871 = vsel %vm1155, %v2845, 0
    %v2874 = vsel %vm1155, %v2847, 0
    %v2877 = vsel %vm1155, %v2849, 0
    %v2880 = vsel %vm1155, %v2851, 0
    %2882 = vmatprep.subr.bf16.mxu0 0
    %2883 = vmatpush1.bf16.msra.mxu0 %v2856
    %2884 = vmatprep.subr.bf16.mxu0 0
    %2885 = vmatpush1.bf16.msra.mxu0 0
    %2886 = vmatprep.subr.bf16.mxu0 0
    %2887 = vmatpush1.bf16.msra.mxu0 0
    %2888 = vmatprep.subr.bf16.mxu0 0
    %2889 = vmatpush1.bf16.msra.mxu0 0
    %2890 = vmatprep.subr.bf16.mxu0 0
    %2891 = vmatpush1.bf16.msra.mxu0 0
    %2892 = vmatprep.subr.bf16.mxu0 0
    %2893 = vmatpush1.bf16.msra.mxu0 0
    %2894 = vmatprep.subr.bf16.mxu0 0
    %2895 = vmatpush1.bf16.msra.mxu0 0
    %2896 = vmatprep.subr.bf16.mxu0 0
    %2897 = vmatpush1.bf16.msra.mxu0 0
    %2898 = vmatprep.subr.bf16.mxu0 0
    %2899 = vmatpush1.bf16.msra.mxu0 0
    %2900 = vmatprep.subr.bf16.mxu0 0
    %2901 = vmatpush1.bf16.msra.mxu0 0
    %2902 = vmatprep.subr.bf16.mxu0 0
    %2903 = vmatpush1.bf16.msra.mxu0 0
    %2904 = vmatprep.subr.bf16.mxu0 0
    %2905 = vmatpush1.bf16.msra.mxu0 0
    %2906 = vmatprep.subr.bf16.mxu0 0
    %2907 = vmatpush1.bf16.msra.mxu0 0
    %2908 = vmatprep.subr.bf16.mxu0 0
    %2909 = vmatpush1.bf16.msra.mxu0 0
    %2910 = vmatprep.subr.bf16.mxu0 0
    %2911 = vmatpush1.bf16.msra.mxu0 0
    %2912 = vmatprep.subr.bf16.mxu0 0
    %2913 = vmatpush1.bf16.msra.mxu0 0
    %2914 = vmatprep.mubr.bf16.mxu0 0
    %2915 = vmatmul.mubr.bf16.gmra.mrb[0].mxu0 %v2859
    %v2916 = vpop.f32.mrb[0].mxu0
    %v2917 = vadd.f32 0.0, %v2916
    %v2918 = vpop.f32.mrb[0].mxu0
    %v2919 = vpop.f32.mrb[0].mxu0
    %v2920 = vadd.f32 0.0, %v2919
    %v2921 = vpop.f32.mrb[0].mxu0
    %2922 = vmatprep.mubr.bf16.mxu0 0
    %2923 = vmatmul.mubr.bf16.gmra.mrb[0].mxu0 %v2862
    %v2924 = vpop.f32.mrb[0].mxu0
    %v2925 = vadd.f32 0.0, %v2924
    %v2926 = vpop.f32.mrb[0].mxu0
    %v2927 = vpop.f32.mrb[0].mxu0
    %v2928 = vadd.f32 0.0, %v2927
    %v2929 = vpop.f32.mrb[0].mxu0
    %2930 = vmatprep.mubr.bf16.mxu0 0
    %2931 = vmatmul.mubr.bf16.gmra.mrb[0].mxu0 %v2865
    %v2932 = vpop.f32.mrb[0].mxu0
    %v2933 = vadd.f32 0.0, %v2932
    %v2934 = vpop.f32.mrb[0].mxu0
    %v2935 = vpop.f32.mrb[0].mxu0
    %v2936 = vadd.f32 0.0, %v2935
    %v2937 = vpop.f32.mrb[0].mxu0
    %2938 = vmatprep.mubr.bf16.mxu0 0
    %2939 = vmatmul.mubr.bf16.gmra.mrb[0].mxu0 %v2868
    %v2940 = vpop.f32.mrb[0].mxu0
    %v2941 = vadd.f32 0.0, %v2940
    %v2942 = vpop.f32.mrb[0].mxu0
    %v2943 = vpop.f32.mrb[0].mxu0
    %v2944 = vadd.f32 0.0, %v2943
    %v2945 = vpop.f32.mrb[0].mxu0
    %2946 = vmatprep.mubr.bf16.mxu0 0
    %2947 = vmatmul.mubr.bf16.gmra.mrb[0].mxu0 %v2871
    %v2948 = vpop.f32.mrb[0].mxu0
    %v2949 = vadd.f32 0.0, %v2948
    %v2950 = vpop.f32.mrb[0].mxu0
    %v2951 = vpop.f32.mrb[0].mxu0
    %v2952 = vadd.f32 0.0, %v2951
    %v2953 = vpop.f32.mrb[0].mxu0
    %2954 = vmatprep.mubr.bf16.mxu0 0
    %2955 = vmatmul.mubr.bf16.gmra.mrb[0].mxu0 %v2874
    %v2956 = vpop.f32.mrb[0].mxu0
    %v2957 = vadd.f32 0.0, %v2956
    %v2958 = vpop.f32.mrb[0].mxu0
    %v2959 = vpop.f32.mrb[0].mxu0
    %v2960 = vadd.f32 0.0, %v2959
    %v2961 = vpop.f32.mrb[0].mxu0
    %2962 = vmatprep.mubr.bf16.mxu0 0
    %2963 = vmatmul.mubr.bf16.gmra.mrb[0].mxu0 %v2877
    %v2964 = vpop.f32.mrb[0].mxu0
    %v2965 = vadd.f32 0.0, %v2964
    %v2966 = vpop.f32.mrb[0].mxu0
    %v2967 = vpop.f32.mrb[0].mxu0
    %v2968 = vadd.f32 0.0, %v2967
    %v2969 = vpop.f32.mrb[0].mxu0
    %2970 = vmatprep.mubr.bf16.mxu0 0
    %2971 = vmatmul.mubr.bf16.gmra.mrb[0].mxu0 %v2880
    %v2972 = vpop.f32.mrb[0].mxu0
    %v2973 = vadd.f32 0.0, %v2972
    %v2974 = vpop.f32.mrb[0].mxu0
    %v2975 = vpop.f32.mrb[0].mxu0
    %v2976 = vadd.f32 0.0, %v2975
    %v2977 = vpop.f32.mrb[0].mxu0
    %2978 = vdwg.mxu0
    %v2979 = vadd.f32 %v2817, %v2917
    %v2980 = vadd.f32 %v2818, %v2920
    %v2981 = vadd.f32 %v2819, %v2925
    %v2982 = vadd.f32 %v2820, %v2928
    %v2983 = vadd.f32 %v2821, %v2933
    %v2984 = vadd.f32 %v2822, %v2936
    %v2985 = vadd.f32 %v2823, %v2941
    %v2986 = vadd.f32 %v2824, %v2944
    %v2987 = vadd.f32 %v2825, %v2949
    %v2988 = vadd.f32 %v2826, %v2952
    %v2989 = vadd.f32 %v2827, %v2957
    %v2990 = vadd.f32 %v2828, %v2960
    %v2991 = vadd.f32 %v2829, %v2965
    %v2992 = vadd.f32 %v2830, %v2968
    %v2993 = vadd.f32 %v2831, %v2973
    %v2994 = vadd.f32 %v2832, %v2976
    %s2995 = scalar_lea.vmem %s3, 88
    %v2996 = vld [vmem:[%s2995] sm:$0xf]
    %v2997 = vld [vmem:[%s2995 + $0x4] sm:$0xf]
    %3006 = vrot.lane.b32.xlu0 %v2355, 96
    %v3007 = vpop.permute.xlu0 %3006
    %3008 = vrot.lane.b32.xlu0 %v2356, 96
    %v3009 = vpop.permute.xlu0 %3008
    %3010 = vrot.lane.b32.xlu0 %v2357, 96
    %v3011 = vpop.permute.xlu0 %3010
    %3012 = vrot.lane.b32.xlu0 %v2358, 96
    %v3013 = vpop.permute.xlu0 %3012
    %3014 = vrot.lane.b32.xlu0 %v2359, 96
    %v3015 = vpop.permute.xlu0 %3014
    %3016 = vrot.lane.b32.xlu0 %v2360, 96
    %v3017 = vpop.permute.xlu0 %3016
    %3018 = vrot.lane.b32.xlu0 %v2361, 96
    %v3019 = vpop.permute.xlu0 %3018
    %3020 = vrot.lane.b32.xlu0 %v2362, 96
    %v3021 = vpop.permute.xlu0 %3020
    %v3024 = vunpack.c.l.b16 %v2996
    %v3025 = vunpack.c.l.b16 %v2997
    %v3026 = vpack.c.b16 %v3025, %v3024
    %v3029 = vsel %vm1155, %v3007, 0
    %v3032 = vsel %vm1155, %v3009, 0
    %v3035 = vsel %vm1155, %v3011, 0
    %v3038 = vsel %vm1155, %v3013, 0
    %v3041 = vsel %vm1155, %v3015, 0
    %v3044 = vsel %vm1155, %v3017, 0
    %v3047 = vsel %vm1155, %v3019, 0
    %v3050 = vsel %vm1155, %v3021, 0
    %3052 = vmatprep.subr.bf16.mxu0 0
    %3053 = vmatpush1.bf16.msra.mxu0 %v3026
    %3054 = vmatprep.subr.bf16.mxu0 0
    %3055 = vmatpush1.bf16.msra.mxu0 0
    %3056 = vmatprep.subr.bf16.mxu0 0
    %3057 = vmatpush1.bf16.msra.mxu0 0
    %3058 = vmatprep.subr.bf16.mxu0 0
    %3059 = vmatpush1.bf16.msra.mxu0 0
    %3060 = vmatprep.subr.bf16.mxu0 0
    %3061 = vmatpush1.bf16.msra.mxu0 0
    %3062 = vmatprep.subr.bf16.mxu0 0
    %3063 = vmatpush1.bf16.msra.mxu0 0
    %3064 = vmatprep.subr.bf16.mxu0 0
    %3065 = vmatpush1.bf16.msra.mxu0 0
    %3066 = vmatprep.subr.bf16.mxu0 0
    %3067 = vmatpush1.bf16.msra.mxu0 0
    %3068 = vmatprep.subr.bf16.mxu0 0
    %3069 = vmatpush1.bf16.msra.mxu0 0
    %3070 = vmatprep.subr.bf16.mxu0 0
    %3071 = vmatpush1.bf16.msra.mxu0 0
    %3072 = vmatprep.subr.bf16.mxu0 0
    %3073 = vmatpush1.bf16.msra.mxu0 0
    %3074 = vmatprep.subr.bf16.mxu0 0
    %3075 = vmatpush1.bf16.msra.mxu0 0
    %3076 = vmatprep.subr.bf16.mxu0 0
    %3077 = vmatpush1.bf16.msra.mxu0 0
    %3078 = vmatprep.subr.bf16.mxu0 0
    %3079 = vmatpush1.bf16.msra.mxu0 0
    %3080 = vmatprep.subr.bf16.mxu0 0
    %3081 = vmatpush1.bf16.msra.mxu0 0
    %3082 = vmatprep.subr.bf16.mxu0 0
    %3083 = vmatpush1.bf16.msra.mxu0 0
    %3084 = vmatprep.mubr.bf16.mxu0 0
    %3085 = vmatmul.mubr.bf16.gmra.mrb[0].mxu0 %v3029
    %v3086 = vpop.f32.mrb[0].mxu0
    %v3087 = vadd.f32 0.0, %v3086
    %v3088 = vpop.f32.mrb[0].mxu0
    %v3089 = vpop.f32.mrb[0].mxu0
    %v3090 = vadd.f32 0.0, %v3089
    %v3091 = vpop.f32.mrb[0].mxu0
    %3092 = vmatprep.mubr.bf16.mxu0 0
    %3093 = vmatmul.mubr.bf16.gmra.mrb[0].mxu0 %v3032
    %v3094 = vpop.f32.mrb[0].mxu0
    %v3095 = vadd.f32 0.0, %v3094
    %v3096 = vpop.f32.mrb[0].mxu0
    %v3097 = vpop.f32.mrb[0].mxu0
    %v3098 = vadd.f32 0.0, %v3097
    %v3099 = vpop.f32.mrb[0].mxu0
    %3100 = vmatprep.mubr.bf16.mxu0 0
    %3101 = vmatmul.mubr.bf16.gmra.mrb[0].mxu0 %v3035
    %v3102 = vpop.f32.mrb[0].mxu0
    %v3103 = vadd.f32 0.0, %v3102
    %v3104 = vpop.f32.mrb[0].mxu0
    %v3105 = vpop.f32.mrb[0].mxu0
    %v3106 = vadd.f32 0.0, %v3105
    %v3107 = vpop.f32.mrb[0].mxu0
    %3108 = vmatprep.mubr.bf16.mxu0 0
    %3109 = vmatmul.mubr.bf16.gmra.mrb[0].mxu0 %v3038
    %v3110 = vpop.f32.mrb[0].mxu0
    %v3111 = vadd.f32 0.0, %v3110
    %v3112 = vpop.f32.mrb[0].mxu0
    %v3113 = vpop.f32.mrb[0].mxu0
    %v3114 = vadd.f32 0.0, %v3113
    %v3115 = vpop.f32.mrb[0].mxu0
    %3116 = vmatprep.mubr.bf16.mxu0 0
    %3117 = vmatmul.mubr.bf16.gmra.mrb[0].mxu0 %v3041
    %v3118 = vpop.f32.mrb[0].mxu0
    %v3119 = vadd.f32 0.0, %v3118
    %v3120 = vpop.f32.mrb[0].mxu0
    %v3121 = vpop.f32.mrb[0].mxu0
    %v3122 = vadd.f32 0.0, %v3121
    %v3123 = vpop.f32.mrb[0].mxu0
    %3124 = vmatprep.mubr.bf16.mxu0 0
    %3125 = vmatmul.mubr.bf16.gmra.mrb[0].mxu0 %v3044
    %v3126 = vpop.f32.mrb[0].mxu0
    %v3127 = vadd.f32 0.0, %v3126
    %v3128 = vpop.f32.mrb[0].mxu0
    %v3129 = vpop.f32.mrb[0].mxu0
    %v3130 = vadd.f32 0.0, %v3129
    %v3131 = vpop.f32.mrb[0].mxu0
    %3132 = vmatprep.mubr.bf16.mxu0 0
    %3133 = vmatmul.mubr.bf16.gmra.mrb[0].mxu0 %v3047
    %v3134 = vpop.f32.mrb[0].mxu0
    %v3135 = vadd.f32 0.0, %v3134
    %v3136 = vpop.f32.mrb[0].mxu0
    %v3137 = vpop.f32.mrb[0].mxu0
    %v3138 = vadd.f32 0.0, %v3137
    %v3139 = vpop.f32.mrb[0].mxu0
    %3140 = vmatprep.mubr.bf16.mxu0 0
    %3141 = vmatmul.mubr.bf16.gmra.mrb[0].mxu0 %v3050
    %v3142 = vpop.f32.mrb[0].mxu0
    %v3143 = vadd.f32 0.0, %v3142
    %v3144 = vpop.f32.mrb[0].mxu0
    %v3145 = vpop.f32.mrb[0].mxu0
    %v3146 = vadd.f32 0.0, %v3145
    %v3147 = vpop.f32.mrb[0].mxu0
    %3148 = vdwg.mxu0
    %v3149 = vadd.f32 %v2979, %v3087
    %v3150 = vadd.f32 %v2980, %v3090
    %v3151 = vadd.f32 %v2981, %v3095
    %v3152 = vadd.f32 %v2982, %v3098
    %v3153 = vadd.f32 %v2983, %v3103
    %v3154 = vadd.f32 %v2984, %v3106
    %v3155 = vadd.f32 %v2985, %v3111
    %v3156 = vadd.f32 %v2986, %v3114
    %v3157 = vadd.f32 %v2987, %v3119
    %v3158 = vadd.f32 %v2988, %v3122
    %v3159 = vadd.f32 %v2989, %v3127
    %v3160 = vadd.f32 %v2990, %v3130
    %v3161 = vadd.f32 %v2991, %v3135
    %v3162 = vadd.f32 %v2992, %v3138
    %v3163 = vadd.f32 %v2993, %v3143
    %v3164 = vadd.f32 %v2994, %v3146
    %v3165 = vpack.c.bf16 %v986, %v984
    %v3166 = vpack.c.bf16 %v1006, %v1004
    %s3167 = scalar_lea.vmem %s3, 96
    %v3168 = vld [vmem:[%s3167] sm:$0xf]
    %v3169 = vld [vmem:[%s3167 + $0x4] sm:$0xf]
    %3172 = vrot.lane.b32.xlu0 %v1009, 112
    %v3173 = vpop.permute.xlu0 %3172
    %3174 = vrot.lane.b32.xlu0 %v1010, 112
    %v3175 = vpop.permute.xlu0 %3174
    %3176 = vrot.lane.b32.xlu0 %v1011, 112
    %v3177 = vpop.permute.xlu0 %3176
    %3178 = vrot.lane.b32.xlu0 %v3165, 112
    %v3179 = vpop.permute.xlu0 %3178
    %3180 = vrot.lane.b32.xlu0 %v1013, 112
    %v3181 = vpop.permute.xlu0 %3180
    %3182 = vrot.lane.b32.xlu0 %v1014, 112
    %v3183 = vpop.permute.xlu0 %3182
    %3184 = vrot.lane.b32.xlu0 %v1015, 112
    %v3185 = vpop.permute.xlu0 %3184
    %3186 = vrot.lane.b32.xlu0 %v3166, 112
    %v3187 = vpop.permute.xlu0 %3186
    %v3190 = vunpack.c.l.b16 %v3168
    %v3191 = vunpack.c.l.b16 %v3169
    %v3192 = vpack.c.b16 %v3191, %v3190
    %v3195 = vsel %vm1155, %v3173, 0
    %v3198 = vsel %vm1155, %v3175, 0
    %v3201 = vsel %vm1155, %v3177, 0
    %v3204 = vsel %vm1155, %v3179, 0
    %v3207 = vsel %vm1155, %v3181, 0
    %v3210 = vsel %vm1155, %v3183, 0
    %v3213 = vsel %vm1155, %v3185, 0
    %v3216 = vsel %vm1155, %v3187, 0
    %3218 = vmatprep.subr.bf16.mxu0 0
    %3219 = vmatpush1.bf16.msra.mxu0 %v3192
    %3220 = vmatprep.subr.bf16.mxu0 0
    %3221 = vmatpush1.bf16.msra.mxu0 0
    %3222 = vmatprep.subr.bf16.mxu0 0
    %3223 = vmatpush1.bf16.msra.mxu0 0
    %3224 = vmatprep.subr.bf16.mxu0 0
    %3225 = vmatpush1.bf16.msra.mxu0 0
    %3226 = vmatprep.subr.bf16.mxu0 0
    %3227 = vmatpush1.bf16.msra.mxu0 0
    %3228 = vmatprep.subr.bf16.mxu0 0
    %3229 = vmatpush1.bf16.msra.mxu0 0
    %3230 = vmatprep.subr.bf16.mxu0 0
    %3231 = vmatpush1.bf16.msra.mxu0 0
    %3232 = vmatprep.subr.bf16.mxu0 0
    %3233 = vmatpush1.bf16.msra.mxu0 0
    %3234 = vmatprep.subr.bf16.mxu0 0
    %3235 = vmatpush1.bf16.msra.mxu0 0
    %3236 = vmatprep.subr.bf16.mxu0 0
    %3237 = vmatpush1.bf16.msra.mxu0 0
    %3238 = vmatprep.subr.bf16.mxu0 0
    %3239 = vmatpush1.bf16.msra.mxu0 0
    %3240 = vmatprep.subr.bf16.mxu0 0
    %3241 = vmatpush1.bf16.msra.mxu0 0
    %3242 = vmatprep.subr.bf16.mxu0 0
    %3243 = vmatpush1.bf16.msra.mxu0 0
    %3244 = vmatprep.subr.bf16.mxu0 0
    %3245 = vmatpush1.bf16.msra.mxu0 0
    %3246 = vmatprep.subr.bf16.mxu0 0
    %3247 = vmatpush1.bf16.msra.mxu0 0
    %3248 = vmatprep.subr.bf16.mxu0 0
    %3249 = vmatpush1.bf16.msra.mxu0 0
    %3250 = vmatprep.mubr.bf16.mxu0 0
    %3251 = vmatmul.mubr.bf16.gmra.mrb[0].mxu0 %v3195
    %v3252 = vpop.f32.mrb[0].mxu0
    %v3253 = vadd.f32 0.0, %v3252
    %v3254 = vpop.f32.mrb[0].mxu0
    %v3255 = vpop.f32.mrb[0].mxu0
    %v3256 = vadd.f32 0.0, %v3255
    %v3257 = vpop.f32.mrb[0].mxu0
    %3258 = vmatprep.mubr.bf16.mxu0 0
    %3259 = vmatmul.mubr.bf16.gmra.mrb[0].mxu0 %v3198
    %v3260 = vpop.f32.mrb[0].mxu0
    %v3261 = vadd.f32 0.0, %v3260
    %v3262 = vpop.f32.mrb[0].mxu0
    %v3263 = vpop.f32.mrb[0].mxu0
    %v3264 = vadd.f32 0.0, %v3263
    %v3265 = vpop.f32.mrb[0].mxu0
    %3266 = vmatprep.mubr.bf16.mxu0 0
    %3267 = vmatmul.mubr.bf16.gmra.mrb[0].mxu0 %v3201
    %v3268 = vpop.f32.mrb[0].mxu0
    %v3269 = vadd.f32 0.0, %v3268
    %v3270 = vpop.f32.mrb[0].mxu0
    %v3271 = vpop.f32.mrb[0].mxu0
    %v3272 = vadd.f32 0.0, %v3271
    %v3273 = vpop.f32.mrb[0].mxu0
    %3274 = vmatprep.mubr.bf16.mxu0 0
    %3275 = vmatmul.mubr.bf16.gmra.mrb[0].mxu0 %v3204
    %v3276 = vpop.f32.mrb[0].mxu0
    %v3277 = vadd.f32 0.0, %v3276
    %v3278 = vpop.f32.mrb[0].mxu0
    %v3279 = vpop.f32.mrb[0].mxu0
    %v3280 = vadd.f32 0.0, %v3279
    %v3281 = vpop.f32.mrb[0].mxu0
    %3282 = vmatprep.mubr.bf16.mxu0 0
    %3283 = vmatmul.mubr.bf16.gmra.mrb[0].mxu0 %v3207
    %v3284 = vpop.f32.mrb[0].mxu0
    %v3285 = vadd.f32 0.0, %v3284
    %v3286 = vpop.f32.mrb[0].mxu0
    %v3287 = vpop.f32.mrb[0].mxu0
    %v3288 = vadd.f32 0.0, %v3287
    %v3289 = vpop.f32.mrb[0].mxu0
    %3290 = vmatprep.mubr.bf16.mxu0 0
    %3291 = vmatmul.mubr.bf16.gmra.mrb[0].mxu0 %v3210
    %v3292 = vpop.f32.mrb[0].mxu0
    %v3293 = vadd.f32 0.0, %v3292
    %v3294 = vpop.f32.mrb[0].mxu0
    %v3295 = vpop.f32.mrb[0].mxu0
    %v3296 = vadd.f32 0.0, %v3295
    %v3297 = vpop.f32.mrb[0].mxu0
    %3298 = vmatprep.mubr.bf16.mxu0 0
    %3299 = vmatmul.mubr.bf16.gmra.mrb[0].mxu0 %v3213
    %v3300 = vpop.f32.mrb[0].mxu0
    %v3301 = vadd.f32 0.0, %v3300
    %v3302 = vpop.f32.mrb[0].mxu0
    %v3303 = vpop.f32.mrb[0].mxu0
    %v3304 = vadd.f32 0.0, %v3303
    %v3305 = vpop.f32.mrb[0].mxu0
    %3306 = vmatprep.mubr.bf16.mxu0 0
    %3307 = vmatmul.mubr.bf16.gmra.mrb[0].mxu0 %v3216
    %v3308 = vpop.f32.mrb[0].mxu0
    %v3309 = vadd.f32 0.0, %v3308
    %v3310 = vpop.f32.mrb[0].mxu0
    %v3311 = vpop.f32.mrb[0].mxu0
    %v3312 = vadd.f32 0.0, %v3311
    %v3313 = vpop.f32.mrb[0].mxu0
    %3314 = vdwg.mxu0
    %v3315 = vadd.f32 %v3149, %v3253
    %v3316 = vadd.f32 %v3150, %v3256
    %v3317 = vadd.f32 %v3151, %v3261
    %v3318 = vadd.f32 %v3152, %v3264
    %v3319 = vadd.f32 %v3153, %v3269
    %v3320 = vadd.f32 %v3154, %v3272
    %v3321 = vadd.f32 %v3155, %v3277
    %v3322 = vadd.f32 %v3156, %v3280
    %v3323 = vadd.f32 %v3157, %v3285
    %v3324 = vadd.f32 %v3158, %v3288
    %v3325 = vadd.f32 %v3159, %v3293
    %v3326 = vadd.f32 %v3160, %v3296
    %v3327 = vadd.f32 %v3161, %v3301
    %v3328 = vadd.f32 %v3162, %v3304
    %v3329 = vadd.f32 %v3163, %v3309
    %v3330 = vadd.f32 %v3164, %v3312
    %v3335 = vrot.slane %v986, 1
    %v3336 = vrot.slane %v987, 1
    %v3337 = vsel %vm130, %v3335, %v3336
    %v3338 = vrot.slane %v1006, 1
    %v3339 = vrot.slane %v1007, 1
    %v3340 = vsel %vm130, %v3338, %v3339
    %v3343 = vpack.c.bf16 %v3337, %v2017
    %v3344 = vpack.c.bf16 %v3340, %v2020
    %s3345 = scalar_lea.vmem %s3, 104
    %v3346 = vld [vmem:[%s3345] sm:$0xf]
    %v3347 = vld [vmem:[%s3345 + $0x4] sm:$0xf]
    %v3350 = vunpack.c.l.b16 %v3346
    %v3351 = vunpack.c.l.b16 %v3347
    %v3352 = vpack.c.b16 %v3351, %v3350
    %v3355 = vsel %vm1155, %v1115, 0
    %v3358 = vsel %vm1155, %v1116, 0
    %v3361 = vsel %vm1155, %v1117, 0
    %v3364 = vsel %vm1155, %v3343, 0
    %v3367 = vsel %vm1155, %v1119, 0
    %v3370 = vsel %vm1155, %v1120, 0
    %v3373 = vsel %vm1155, %v1121, 0
    %v3376 = vsel %vm1155, %v3344, 0
    %3378 = vmatprep.subr.bf16.mxu0 0
    %3379 = vmatpush1.bf16.msra.mxu0 %v3352
    %3380 = vmatprep.subr.bf16.mxu0 0
    %3381 = vmatpush1.bf16.msra.mxu0 0
    %3382 = vmatprep.subr.bf16.mxu0 0
    %3383 = vmatpush1.bf16.msra.mxu0 0
    %3384 = vmatprep.subr.bf16.mxu0 0
    %3385 = vmatpush1.bf16.msra.mxu0 0
    %3386 = vmatprep.subr.bf16.mxu0 0
    %3387 = vmatpush1.bf16.msra.mxu0 0
    %3388 = vmatprep.subr.bf16.mxu0 0
    %3389 = vmatpush1.bf16.msra.mxu0 0
    %3390 = vmatprep.subr.bf16.mxu0 0
    %3391 = vmatpush1.bf16.msra.mxu0 0
    %3392 = vmatprep.subr.bf16.mxu0 0
    %3393 = vmatpush1.bf16.msra.mxu0 0
    %3394 = vmatprep.subr.bf16.mxu0 0
    %3395 = vmatpush1.bf16.msra.mxu0 0
    %3396 = vmatprep.subr.bf16.mxu0 0
    %3397 = vmatpush1.bf16.msra.mxu0 0
    %3398 = vmatprep.subr.bf16.mxu0 0
    %3399 = vmatpush1.bf16.msra.mxu0 0
    %3400 = vmatprep.subr.bf16.mxu0 0
    %3401 = vmatpush1.bf16.msra.mxu0 0
    %3402 = vmatprep.subr.bf16.mxu0 0
    %3403 = vmatpush1.bf16.msra.mxu0 0
    %3404 = vmatprep.subr.bf16.mxu0 0
    %3405 = vmatpush1.bf16.msra.mxu0 0
    %3406 = vmatprep.subr.bf16.mxu0 0
    %3407 = vmatpush1.bf16.msra.mxu0 0
    %3408 = vmatprep.subr.bf16.mxu0 0
    %3409 = vmatpush1.bf16.msra.mxu0 0
    %3410 = vmatprep.mubr.bf16.mxu0 0
    %3411 = vmatmul.mubr.bf16.gmra.mrb[0].mxu0 %v3355
    %v3412 = vpop.f32.mrb[0].mxu0
    %v3413 = vadd.f32 0.0, %v3412
    %v3414 = vpop.f32.mrb[0].mxu0
    %v3415 = vpop.f32.mrb[0].mxu0
    %v3416 = vadd.f32 0.0, %v3415
    %v3417 = vpop.f32.mrb[0].mxu0
    %3418 = vmatprep.mubr.bf16.mxu0 0
    %3419 = vmatmul.mubr.bf16.gmra.mrb[0].mxu0 %v3358
    %v3420 = vpop.f32.mrb[0].mxu0
    %v3421 = vadd.f32 0.0, %v3420
    %v3422 = vpop.f32.mrb[0].mxu0
    %v3423 = vpop.f32.mrb[0].mxu0
    %v3424 = vadd.f32 0.0, %v3423
    %v3425 = vpop.f32.mrb[0].mxu0
    %3426 = vmatprep.mubr.bf16.mxu0 0
    %3427 = vmatmul.mubr.bf16.gmra.mrb[0].mxu0 %v3361
    %v3428 = vpop.f32.mrb[0].mxu0
    %v3429 = vadd.f32 0.0, %v3428
    %v3430 = vpop.f32.mrb[0].mxu0
    %v3431 = vpop.f32.mrb[0].mxu0
    %v3432 = vadd.f32 0.0, %v3431
    %v3433 = vpop.f32.mrb[0].mxu0
    %3434 = vmatprep.mubr.bf16.mxu0 0
    %3435 = vmatmul.mubr.bf16.gmra.mrb[0].mxu0 %v3364
    %v3436 = vpop.f32.mrb[0].mxu0
    %v3437 = vadd.f32 0.0, %v3436
    %v3438 = vpop.f32.mrb[0].mxu0
    %v3439 = vpop.f32.mrb[0].mxu0
    %v3440 = vadd.f32 0.0, %v3439
    %v3441 = vpop.f32.mrb[0].mxu0
    %3442 = vmatprep.mubr.bf16.mxu0 0
    %3443 = vmatmul.mubr.bf16.gmra.mrb[0].mxu0 %v3367
    %v3444 = vpop.f32.mrb[0].mxu0
    %v3445 = vadd.f32 0.0, %v3444
    %v3446 = vpop.f32.mrb[0].mxu0
    %v3447 = vpop.f32.mrb[0].mxu0
    %v3448 = vadd.f32 0.0, %v3447
    %v3449 = vpop.f32.mrb[0].mxu0
    %3450 = vmatprep.mubr.bf16.mxu0 0
    %3451 = vmatmul.mubr.bf16.gmra.mrb[0].mxu0 %v3370
    %v3452 = vpop.f32.mrb[0].mxu0
    %v3453 = vadd.f32 0.0, %v3452
    %v3454 = vpop.f32.mrb[0].mxu0
    %v3455 = vpop.f32.mrb[0].mxu0
    %v3456 = vadd.f32 0.0, %v3455
    %v3457 = vpop.f32.mrb[0].mxu0
    %3458 = vmatprep.mubr.bf16.mxu0 0
    %3459 = vmatmul.mubr.bf16.gmra.mrb[0].mxu0 %v3373
    %v3460 = vpop.f32.mrb[0].mxu0
    %v3461 = vadd.f32 0.0, %v3460
    %v3462 = vpop.f32.mrb[0].mxu0
    %v3463 = vpop.f32.mrb[0].mxu0
    %v3464 = vadd.f32 0.0, %v3463
    %v3465 = vpop.f32.mrb[0].mxu0
    %3466 = vmatprep.mubr.bf16.mxu0 0
    %3467 = vmatmul.mubr.bf16.gmra.mrb[0].mxu0 %v3376
    %v3468 = vpop.f32.mrb[0].mxu0
    %v3469 = vadd.f32 0.0, %v3468
    %v3470 = vpop.f32.mrb[0].mxu0
    %v3471 = vpop.f32.mrb[0].mxu0
    %v3472 = vadd.f32 0.0, %v3471
    %v3473 = vpop.f32.mrb[0].mxu0
    %3474 = vdwg.mxu0
    %v3475 = vadd.f32 %v3315, %v3413
    %v3476 = vadd.f32 %v3316, %v3416
    %v3477 = vadd.f32 %v3317, %v3421
    %v3478 = vadd.f32 %v3318, %v3424
    %v3479 = vadd.f32 %v3319, %v3429
    %v3480 = vadd.f32 %v3320, %v3432
    %v3481 = vadd.f32 %v3321, %v3437
    %v3482 = vadd.f32 %v3322, %v3440
    %v3483 = vadd.f32 %v3323, %v3445
    %v3484 = vadd.f32 %v3324, %v3448
    %v3485 = vadd.f32 %v3325, %v3453
    %v3486 = vadd.f32 %v3326, %v3456
    %v3487 = vadd.f32 %v3327, %v3461
    %v3488 = vadd.f32 %v3328, %v3464
    %v3489 = vadd.f32 %v3329, %v3469
    %v3490 = vadd.f32 %v3330, %v3472
    %s3491 = scalar_lea.vmem %s3, 112
    %v3492 = vld [vmem:[%s3491] sm:$0xf]
    %v3493 = vld [vmem:[%s3491 + $0x4] sm:$0xf]
    %3496 = vrot.lane.b32.xlu0 %v1115, 112
    %v3497 = vpop.permute.xlu0 %3496
    %3498 = vrot.lane.b32.xlu0 %v1116, 112
    %v3499 = vpop.permute.xlu0 %3498
    %3500 = vrot.lane.b32.xlu0 %v1117, 112
    %v3501 = vpop.permute.xlu0 %3500
    %3502 = vrot.lane.b32.xlu0 %v3343, 112
    %v3503 = vpop.permute.xlu0 %3502
    %3504 = vrot.lane.b32.xlu0 %v1119, 112
    %v3505 = vpop.permute.xlu0 %3504
    %3506 = vrot.lane.b32.xlu0 %v1120, 112
    %v3507 = vpop.permute.xlu0 %3506
    %3508 = vrot.lane.b32.xlu0 %v1121, 112
    %v3509 = vpop.permute.xlu0 %3508
    %3510 = vrot.lane.b32.xlu0 %v3344, 112
    %v3511 = vpop.permute.xlu0 %3510
    %v3514 = vunpack.c.l.b16 %v3492
    %v3515 = vunpack.c.l.b16 %v3493
    %v3516 = vpack.c.b16 %v3515, %v3514
    %v3519 = vsel %vm1155, %v3497, 0
    %v3522 = vsel %vm1155, %v3499, 0
    %v3525 = vsel %vm1155, %v3501, 0
    %v3528 = vsel %vm1155, %v3503, 0
    %v3531 = vsel %vm1155, %v3505, 0
    %v3534 = vsel %vm1155, %v3507, 0
    %v3537 = vsel %vm1155, %v3509, 0
    %v3540 = vsel %vm1155, %v3511, 0
    %3542 = vmatprep.subr.bf16.mxu0 0
    %3543 = vmatpush1.bf16.msra.mxu0 %v3516
    %3544 = vmatprep.subr.bf16.mxu0 0
    %3545 = vmatpush1.bf16.msra.mxu0 0
    %3546 = vmatprep.subr.bf16.mxu0 0
    %3547 = vmatpush1.bf16.msra.mxu0 0
    %3548 = vmatprep.subr.bf16.mxu0 0
    %3549 = vmatpush1.bf16.msra.mxu0 0
    %3550 = vmatprep.subr.bf16.mxu0 0
    %3551 = vmatpush1.bf16.msra.mxu0 0
    %3552 = vmatprep.subr.bf16.mxu0 0
    %3553 = vmatpush1.bf16.msra.mxu0 0
    %3554 = vmatprep.subr.bf16.mxu0 0
    %3555 = vmatpush1.bf16.msra.mxu0 0
    %3556 = vmatprep.subr.bf16.mxu0 0
    %3557 = vmatpush1.bf16.msra.mxu0 0
    %3558 = vmatprep.subr.bf16.mxu0 0
    %3559 = vmatpush1.bf16.msra.mxu0 0
    %3560 = vmatprep.subr.bf16.mxu0 0
    %3561 = vmatpush1.bf16.msra.mxu0 0
    %3562 = vmatprep.subr.bf16.mxu0 0
    %3563 = vmatpush1.bf16.msra.mxu0 0
    %3564 = vmatprep.subr.bf16.mxu0 0
    %3565 = vmatpush1.bf16.msra.mxu0 0
    %3566 = vmatprep.subr.bf16.mxu0 0
    %3567 = vmatpush1.bf16.msra.mxu0 0
    %3568 = vmatprep.subr.bf16.mxu0 0
    %3569 = vmatpush1.bf16.msra.mxu0 0
    %3570 = vmatprep.subr.bf16.mxu0 0
    %3571 = vmatpush1.bf16.msra.mxu0 0
    %3572 = vmatprep.subr.bf16.mxu0 0
    %3573 = vmatpush1.bf16.msra.mxu0 0
    %3574 = vmatprep.mubr.bf16.mxu0 0
    %3575 = vmatmul.mubr.bf16.gmra.mrb[0].mxu0 %v3519
    %v3576 = vpop.f32.mrb[0].mxu0
    %v3577 = vadd.f32 0.0, %v3576
    %v3578 = vpop.f32.mrb[0].mxu0
    %v3579 = vpop.f32.mrb[0].mxu0
    %v3580 = vadd.f32 0.0, %v3579
    %v3581 = vpop.f32.mrb[0].mxu0
    %3582 = vmatprep.mubr.bf16.mxu0 0
    %3583 = vmatmul.mubr.bf16.gmra.mrb[0].mxu0 %v3522
    %v3584 = vpop.f32.mrb[0].mxu0
    %v3585 = vadd.f32 0.0, %v3584
    %v3586 = vpop.f32.mrb[0].mxu0
    %v3587 = vpop.f32.mrb[0].mxu0
    %v3588 = vadd.f32 0.0, %v3587
    %v3589 = vpop.f32.mrb[0].mxu0
    %3590 = vmatprep.mubr.bf16.mxu0 0
    %3591 = vmatmul.mubr.bf16.gmra.mrb[0].mxu0 %v3525
    %v3592 = vpop.f32.mrb[0].mxu0
    %v3593 = vadd.f32 0.0, %v3592
    %v3594 = vpop.f32.mrb[0].mxu0
    %v3595 = vpop.f32.mrb[0].mxu0
    %v3596 = vadd.f32 0.0, %v3595
    %v3597 = vpop.f32.mrb[0].mxu0
    %3598 = vmatprep.mubr.bf16.mxu0 0
    %3599 = vmatmul.mubr.bf16.gmra.mrb[0].mxu0 %v3528
    %v3600 = vpop.f32.mrb[0].mxu0
    %v3601 = vadd.f32 0.0, %v3600
    %v3602 = vpop.f32.mrb[0].mxu0
    %v3603 = vpop.f32.mrb[0].mxu0
    %v3604 = vadd.f32 0.0, %v3603
    %v3605 = vpop.f32.mrb[0].mxu0
    %3606 = vmatprep.mubr.bf16.mxu0 0
    %3607 = vmatmul.mubr.bf16.gmra.mrb[0].mxu0 %v3531
    %v3608 = vpop.f32.mrb[0].mxu0
    %v3609 = vadd.f32 0.0, %v3608
    %v3610 = vpop.f32.mrb[0].mxu0
    %v3611 = vpop.f32.mrb[0].mxu0
    %v3612 = vadd.f32 0.0, %v3611
    %v3613 = vpop.f32.mrb[0].mxu0
    %3614 = vmatprep.mubr.bf16.mxu0 0
    %3615 = vmatmul.mubr.bf16.gmra.mrb[0].mxu0 %v3534
    %v3616 = vpop.f32.mrb[0].mxu0
    %v3617 = vadd.f32 0.0, %v3616
    %v3618 = vpop.f32.mrb[0].mxu0
    %v3619 = vpop.f32.mrb[0].mxu0
    %v3620 = vadd.f32 0.0, %v3619
    %v3621 = vpop.f32.mrb[0].mxu0
    %3622 = vmatprep.mubr.bf16.mxu0 0
    %3623 = vmatmul.mubr.bf16.gmra.mrb[0].mxu0 %v3537
    %v3624 = vpop.f32.mrb[0].mxu0
    %v3625 = vadd.f32 0.0, %v3624
    %v3626 = vpop.f32.mrb[0].mxu0
    %v3627 = vpop.f32.mrb[0].mxu0
    %v3628 = vadd.f32 0.0, %v3627
    %v3629 = vpop.f32.mrb[0].mxu0
    %3630 = vmatprep.mubr.bf16.mxu0 0
    %3631 = vmatmul.mubr.bf16.gmra.mrb[0].mxu0 %v3540
    %v3632 = vpop.f32.mrb[0].mxu0
    %v3633 = vadd.f32 0.0, %v3632
    %v3634 = vpop.f32.mrb[0].mxu0
    %v3635 = vpop.f32.mrb[0].mxu0
    %v3636 = vadd.f32 0.0, %v3635
    %v3637 = vpop.f32.mrb[0].mxu0
    %3638 = vdwg.mxu0
    %v3639 = vadd.f32 %v3475, %v3577
    %v3640 = vadd.f32 %v3476, %v3580
    %v3641 = vadd.f32 %v3477, %v3585
    %v3642 = vadd.f32 %v3478, %v3588
    %v3643 = vadd.f32 %v3479, %v3593
    %v3644 = vadd.f32 %v3480, %v3596
    %v3645 = vadd.f32 %v3481, %v3601
    %v3646 = vadd.f32 %v3482, %v3604
    %v3647 = vadd.f32 %v3483, %v3609
    %v3648 = vadd.f32 %v3484, %v3612
    %v3649 = vadd.f32 %v3485, %v3617
    %v3650 = vadd.f32 %v3486, %v3620
    %v3651 = vadd.f32 %v3487, %v3625
    %v3652 = vadd.f32 %v3488, %v3628
    %v3653 = vadd.f32 %v3489, %v3633
    %v3654 = vadd.f32 %v3490, %v3636
    %v3655 = vrot.slane %v986, 2
    %v3656 = vrot.slane %v987, 2
    %v3657 = vsel %vm1590, %v3655, %v3656
    %v3658 = vrot.slane %v1006, 2
    %v3659 = vrot.slane %v1007, 2
    %v3660 = vsel %vm1590, %v3658, %v3659
    %v3663 = vpack.c.bf16 %v3657, %v2349
    %v3664 = vpack.c.bf16 %v3660, %v2352
    %s3665 = scalar_lea.vmem %s3, 120
    %v3666 = vld [vmem:[%s3665] sm:$0xf]
    %v3667 = vld [vmem:[%s3665 + $0x4] sm:$0xf]
    %v3670 = vunpack.c.l.b16 %v3666
    %v3671 = vunpack.c.l.b16 %v3667
    %v3672 = vpack.c.b16 %v3671, %v3670
    %v3675 = vsel %vm1155, %v1656, 0
    %v3678 = vsel %vm1155, %v1657, 0
    %v3681 = vsel %vm1155, %v1658, 0
    %v3684 = vsel %vm1155, %v3663, 0
    %v3687 = vsel %vm1155, %v1660, 0
    %v3690 = vsel %vm1155, %v1661, 0
    %v3693 = vsel %vm1155, %v1662, 0
    %v3696 = vsel %vm1155, %v3664, 0
    %3698 = vmatprep.subr.bf16.mxu0 0
    %3699 = vmatpush1.bf16.msra.mxu0 %v3672
    %3700 = vmatprep.subr.bf16.mxu0 0
    %3701 = vmatpush1.bf16.msra.mxu0 0
    %3702 = vmatprep.subr.bf16.mxu0 0
    %3703 = vmatpush1.bf16.msra.mxu0 0
    %3704 = vmatprep.subr.bf16.mxu0 0
    %3705 = vmatpush1.bf16.msra.mxu0 0
    %3706 = vmatprep.subr.bf16.mxu0 0
    %3707 = vmatpush1.bf16.msra.mxu0 0
    %3708 = vmatprep.subr.bf16.mxu0 0
    %3709 = vmatpush1.bf16.msra.mxu0 0
    %3710 = vmatprep.subr.bf16.mxu0 0
    %3711 = vmatpush1.bf16.msra.mxu0 0
    %3712 = vmatprep.subr.bf16.mxu0 0
    %3713 = vmatpush1.bf16.msra.mxu0 0
    %3714 = vmatprep.subr.bf16.mxu0 0
    %3715 = vmatpush1.bf16.msra.mxu0 0
    %3716 = vmatprep.subr.bf16.mxu0 0
    %3717 = vmatpush1.bf16.msra.mxu0 0
    %3718 = vmatprep.subr.bf16.mxu0 0
    %3719 = vmatpush1.bf16.msra.mxu0 0
    %3720 = vmatprep.subr.bf16.mxu0 0
    %3721 = vmatpush1.bf16.msra.mxu0 0
    %3722 = vmatprep.subr.bf16.mxu0 0
    %3723 = vmatpush1.bf16.msra.mxu0 0
    %3724 = vmatprep.subr.bf16.mxu0 0
    %3725 = vmatpush1.bf16.msra.mxu0 0
    %3726 = vmatprep.subr.bf16.mxu0 0
    %3727 = vmatpush1.bf16.msra.mxu0 0
    %3728 = vmatprep.subr.bf16.mxu0 0
    %3729 = vmatpush1.bf16.msra.mxu0 0
    %3730 = vmatprep.mubr.bf16.mxu0 0
    %3731 = vmatmul.mubr.bf16.gmra.mrb[0].mxu0 %v3675
    %v3732 = vpop.f32.mrb[0].mxu0
    %v3733 = vadd.f32 0.0, %v3732
    %v3734 = vpop.f32.mrb[0].mxu0
    %v3735 = vpop.f32.mrb[0].mxu0
    %v3736 = vadd.f32 0.0, %v3735
    %v3737 = vpop.f32.mrb[0].mxu0
    %3738 = vmatprep.mubr.bf16.mxu0 0
    %3739 = vmatmul.mubr.bf16.gmra.mrb[0].mxu0 %v3678
    %v3740 = vpop.f32.mrb[0].mxu0
    %v3741 = vadd.f32 0.0, %v3740
    %v3742 = vpop.f32.mrb[0].mxu0
    %v3743 = vpop.f32.mrb[0].mxu0
    %v3744 = vadd.f32 0.0, %v3743
    %v3745 = vpop.f32.mrb[0].mxu0
    %3746 = vmatprep.mubr.bf16.mxu0 0
    %3747 = vmatmul.mubr.bf16.gmra.mrb[0].mxu0 %v3681
    %v3748 = vpop.f32.mrb[0].mxu0
    %v3749 = vadd.f32 0.0, %v3748
    %v3750 = vpop.f32.mrb[0].mxu0
    %v3751 = vpop.f32.mrb[0].mxu0
    %v3752 = vadd.f32 0.0, %v3751
    %v3753 = vpop.f32.mrb[0].mxu0
    %3754 = vmatprep.mubr.bf16.mxu0 0
    %3755 = vmatmul.mubr.bf16.gmra.mrb[0].mxu0 %v3684
    %v3756 = vpop.f32.mrb[0].mxu0
    %v3757 = vadd.f32 0.0, %v3756
    %v3758 = vpop.f32.mrb[0].mxu0
    %v3759 = vpop.f32.mrb[0].mxu0
    %v3760 = vadd.f32 0.0, %v3759
    %v3761 = vpop.f32.mrb[0].mxu0
    %3762 = vmatprep.mubr.bf16.mxu0 0
    %3763 = vmatmul.mubr.bf16.gmra.mrb[0].mxu0 %v3687
    %v3764 = vpop.f32.mrb[0].mxu0
    %v3765 = vadd.f32 0.0, %v3764
    %v3766 = vpop.f32.mrb[0].mxu0
    %v3767 = vpop.f32.mrb[0].mxu0
    %v3768 = vadd.f32 0.0, %v3767
    %v3769 = vpop.f32.mrb[0].mxu0
    %3770 = vmatprep.mubr.bf16.mxu0 0
    %3771 = vmatmul.mubr.bf16.gmra.mrb[0].mxu0 %v3690
    %v3772 = vpop.f32.mrb[0].mxu0
    %v3773 = vadd.f32 0.0, %v3772
    %v3774 = vpop.f32.mrb[0].mxu0
    %v3775 = vpop.f32.mrb[0].mxu0
    %v3776 = vadd.f32 0.0, %v3775
    %v3777 = vpop.f32.mrb[0].mxu0
    %3778 = vmatprep.mubr.bf16.mxu0 0
    %3779 = vmatmul.mubr.bf16.gmra.mrb[0].mxu0 %v3693
    %v3780 = vpop.f32.mrb[0].mxu0
    %v3781 = vadd.f32 0.0, %v3780
    %v3782 = vpop.f32.mrb[0].mxu0
    %v3783 = vpop.f32.mrb[0].mxu0
    %v3784 = vadd.f32 0.0, %v3783
    %v3785 = vpop.f32.mrb[0].mxu0
    %3786 = vmatprep.mubr.bf16.mxu0 0
    %3787 = vmatmul.mubr.bf16.gmra.mrb[0].mxu0 %v3696
    %v3788 = vpop.f32.mrb[0].mxu0
    %v3789 = vadd.f32 0.0, %v3788
    %v3790 = vpop.f32.mrb[0].mxu0
    %v3791 = vpop.f32.mrb[0].mxu0
    %v3792 = vadd.f32 0.0, %v3791
    %v3793 = vpop.f32.mrb[0].mxu0
    %3794 = vdwg.mxu0
    %v3795 = vadd.f32 %v3639, %v3733
    %v3796 = vadd.f32 %v3640, %v3736
    %v3797 = vadd.f32 %v3641, %v3741
    %v3798 = vadd.f32 %v3642, %v3744
    %v3799 = vadd.f32 %v3643, %v3749
    %v3800 = vadd.f32 %v3644, %v3752
    %v3801 = vadd.f32 %v3645, %v3757
    %v3802 = vadd.f32 %v3646, %v3760
    %v3803 = vadd.f32 %v3647, %v3765
    %v3804 = vadd.f32 %v3648, %v3768
    %v3805 = vadd.f32 %v3649, %v3773
    %v3806 = vadd.f32 %v3650, %v3776
    %v3807 = vadd.f32 %v3651, %v3781
    %v3808 = vadd.f32 %v3652, %v3784
    %v3809 = vadd.f32 %v3653, %v3789
    %v3810 = vadd.f32 %v3654, %v3792
    %v3811 = vld [vmem:[%s4] sm:$0x1]
    %v3813 = vlaneseq
    %v3814 = vshrl.u32 %v3813, 7
    %v3815 = vsub.s32 0, %v3814
    %v3816 = vrot.slane %v3811, %v3815
    %v3818 = vadd.f32 %v3795, %v3816
    %v3819 = vadd.f32 %v3796, %v3816
    %v3820 = vadd.f32 %v3797, %v3816
    %v3821 = vadd.f32 %v3798, %v3816
    %v3822 = vadd.f32 %v3799, %v3816
    %v3823 = vadd.f32 %v3800, %v3816
    %v3824 = vadd.f32 %v3801, %v3816
    %v3825 = vadd.f32 %v3802, %v3816
    %v3826 = vadd.f32 %v3803, %v3816
    %v3827 = vadd.f32 %v3804, %v3816
    %v3828 = vadd.f32 %v3805, %v3816
    %v3829 = vadd.f32 %v3806, %v3816
    %v3830 = vadd.f32 %v3807, %v3816
    %v3831 = vadd.f32 %v3808, %v3816
    %v3832 = vadd.f32 %v3809, %v3816
    %v3833 = vadd.f32 %v3810, %v3816
    %v3834 = vmax.f32 %v3818, 0.0
    %v3835 = vmax.f32 %v3819, 0.0
    %v3836 = vmax.f32 %v3820, 0.0
    %v3837 = vmax.f32 %v3821, 0.0
    %v3838 = vmax.f32 %v3822, 0.0
    %v3839 = vmax.f32 %v3823, 0.0
    %v3840 = vmax.f32 %v3824, 0.0
    %v3841 = vmax.f32 %v3825, 0.0
    %v3842 = vmax.f32 %v3826, 0.0
    %v3843 = vmax.f32 %v3827, 0.0
    %v3844 = vmax.f32 %v3828, 0.0
    %v3845 = vmax.f32 %v3829, 0.0
    %v3846 = vmax.f32 %v3830, 0.0
    %v3847 = vmax.f32 %v3831, 0.0
    %v3848 = vmax.f32 %v3832, 0.0
    %v3849 = vmax.f32 %v3833, 0.0
    %vm3850 = vcmask 261120
    %3851 = vst.msk [vmem:[#allocation3] sm:$0xff] %vm3850, 0.0
    %vm3852 = vcmask 254976
    %3853 = vst.msk [vmem:[#allocation3 + $0x8] sm:$0x3] %vm3852, 0.0
    %3854 = vst.msk [vmem:[#allocation3 + $0x10] sm:$0xff] %vm3850, 0.0
    %3855 = vst.msk [vmem:[#allocation3 + $0x18] sm:$0x3] %vm3852, 0.0
    %3856 = vst.msk [vmem:[#allocation3 + $0x20] sm:$0xff] %vm3850, 0.0
    %3857 = vst.msk [vmem:[#allocation3 + $0x28] sm:$0x3] %vm3852, 0.0
    %3858 = vst.msk [vmem:[#allocation3 + $0x30] sm:$0xff] %vm3850, 0.0
    %3859 = vst.msk [vmem:[#allocation3 + $0x38] sm:$0x3] %vm3852, 0.0
    %3860 = vst.msk [vmem:[#allocation3 + $0x40] sm:$0xff] %vm3850, 0.0
    %3861 = vst.msk [vmem:[#allocation3 + $0x48] sm:$0x3] %vm3852, 0.0
    %3862 = vst.msk [vmem:[#allocation3 + $0x50] sm:$0xff] %vm3850, 0.0
    %3863 = vst.msk [vmem:[#allocation3 + $0x58] sm:$0x3] %vm3852, 0.0
    %3864 = vst.msk [vmem:[#allocation3 + $0x60] sm:$0xff] %vm3850, 0.0
    %3865 = vst.msk [vmem:[#allocation3 + $0x68] sm:$0x3] %vm3852, 0.0
    %3866 = vst.msk [vmem:[#allocation3 + $0x70] sm:$0xff] %vm3850, 0.0
    %3867 = vst.msk [vmem:[#allocation3 + $0x78] sm:$0x3] %vm3852, 0.0
    %3868 = vst.msk [vmem:[#allocation3 + $0x80] sm:$0xff] %vm3850, 0.0
    %3869 = vst.msk [vmem:[#allocation3 + $0x88] sm:$0x3] %vm3852, 0.0
    %3870 = vst.msk [vmem:[#allocation3 + $0x90] sm:$0xff] %vm3850, 0.0
    %3871 = vst.msk [vmem:[#allocation3 + $0x98] sm:$0x3] %vm3852, 0.0
    %3872 = vst.msk [vmem:[#allocation3 + $0xa0] sm:$0xff] %vm3850, 0.0
    %3873 = vst.msk [vmem:[#allocation3 + $0xa8] sm:$0x3] %vm3852, 0.0
    %3874 = vst.msk [vmem:[#allocation3 + $0xb0] sm:$0xff] %vm3850, 0.0
    %3875 = vst.msk [vmem:[#allocation3 + $0xb8] sm:$0x3] %vm3852, 0.0
    %3876 = vst.msk [vmem:[#allocation3 + $0xc0] sm:$0xff] %vm3850, 0.0
    %3877 = vst.msk [vmem:[#allocation3 + $0xc8] sm:$0x3] %vm3852, 0.0
    %3878 = vst.msk [vmem:[#allocation3 + $0xd0] sm:$0xff] %vm3850, 0.0
    %3879 = vst.msk [vmem:[#allocation3 + $0xd8] sm:$0x3] %vm3852, 0.0
    %3880 = vst.msk [vmem:[#allocation3 + $0xe0] sm:$0xff] %vm3850, 0.0
    %3881 = vst.msk [vmem:[#allocation3 + $0xe8] sm:$0x3] %vm3852, 0.0
    %3882 = vst.msk [vmem:[#allocation3 + $0xf0] sm:$0xff] %vm3850, 0.0
    %3883 = vst.msk [vmem:[#allocation3 + $0xf8] sm:$0x3] %vm3852, 0.0
    %3884 = vst.msk [vmem:[#allocation3 + $0x100] sm:$0xff] %vm3850, 0.0
    %3885 = vst.msk [vmem:[#allocation3 + $0x108] sm:$0x3] %vm3852, 0.0
    %3886 = vst.msk [vmem:[#allocation3 + $0x110] sm:$0xff] %vm3850, 0.0
    %3887 = vst.msk [vmem:[#allocation3 + $0x118] sm:$0x3] %vm3852, 0.0
    %3888 = vst.msk [vmem:[#allocation3 + $0x120] sm:$0xff] %vm3850, 0.0
    %3889 = vst.msk [vmem:[#allocation3 + $0x128] sm:$0x3] %vm3852, 0.0
    %3890 = vst.msk [vmem:[#allocation3 + $0x130] sm:$0xff] %vm3850, 0.0
    %3891 = vst.msk [vmem:[#allocation3 + $0x138] sm:$0x3] %vm3852, 0.0
    %s3892 = scalar_lea.vmem [#allocation3], 16
    %3893 = vst.msk [vmem:[%s3892 + $0x1] sm:$0xff] %vm3850, %v3834
    %3894 = vst.msk [vmem:[%s3892 + $0x11] sm:$0xff] %vm3850, %v3835
    %3895 = vst.msk [vmem:[%s3892 + $0x21] sm:$0xff] %vm3850, %v3836
    %3896 = vst.msk [vmem:[%s3892 + $0x31] sm:$0xff] %vm3850, %v3837
    %3897 = vst.msk [vmem:[%s3892 + $0x41] sm:$0xff] %vm3850, %v3838
    %3898 = vst.msk [vmem:[%s3892 + $0x51] sm:$0xff] %vm3850, %v3839
    %3899 = vst.msk [vmem:[%s3892 + $0x61] sm:$0xff] %vm3850, %v3840
    %3900 = vst.msk [vmem:[%s3892 + $0x71] sm:$0xff] %vm3850, %v3841
    %3901 = vst.msk [vmem:[%s3892 + $0xa1] sm:$0xff] %vm3850, %v3842
    %3902 = vst.msk [vmem:[%s3892 + $0xb1] sm:$0xff] %vm3850, %v3843
    %3903 = vst.msk [vmem:[%s3892 + $0xc1] sm:$0xff] %vm3850, %v3844
    %3904 = vst.msk [vmem:[%s3892 + $0xd1] sm:$0xff] %vm3850, %v3845
    %3905 = vst.msk [vmem:[%s3892 + $0xe1] sm:$0xff] %vm3850, %v3846
    %3906 = vst.msk [vmem:[%s3892 + $0xf1] sm:$0xff] %vm3850, %v3847
    %3907 = vst.msk [vmem:[%s3892 + $0x101] sm:$0xff] %vm3850, %v3848
    %3908 = vst.msk [vmem:[%s3892 + $0x111] sm:$0xff] %vm3850, %v3849
    %v3909 = vld [vmem:[#allocation3] sm:$0xff]
    %v3910 = vld [vmem:[#allocation3 + $0x8] sm:$0x3]
    %v3911 = vld [vmem:[#allocation3 + $0x10] sm:$0xff]
    %v3912 = vld [vmem:[#allocation3 + $0x18] sm:$0x3]
    %v3913 = vld [vmem:[#allocation3 + $0x20] sm:$0xff]
    %v3914 = vld [vmem:[#allocation3 + $0x28] sm:$0x3]
    %v3915 = vld [vmem:[#allocation3 + $0x30] sm:$0xff]
    %v3916 = vld [vmem:[#allocation3 + $0x38] sm:$0x3]
    %v3917 = vld [vmem:[#allocation3 + $0x40] sm:$0xff]
    %v3918 = vld [vmem:[#allocation3 + $0x48] sm:$0x3]
    %v3919 = vld [vmem:[#allocation3 + $0x50] sm:$0xff]
    %v3920 = vld [vmem:[#allocation3 + $0x58] sm:$0x3]
    %v3921 = vld [vmem:[#allocation3 + $0x60] sm:$0xff]
    %v3922 = vld [vmem:[#allocation3 + $0x68] sm:$0x3]
    %v3923 = vld [vmem:[#allocation3 + $0x70] sm:$0xff]
    %v3924 = vld [vmem:[#allocation3 + $0x78] sm:$0x3]
    %v3925 = vld [vmem:[#allocation3 + $0x80] sm:$0xff]
    %v3926 = vld [vmem:[#allocation3 + $0x88] sm:$0x3]
    %v3927 = vld [vmem:[#allocation3 + $0x90] sm:$0xff]
    %v3928 = vld [vmem:[#allocation3 + $0x98] sm:$0x3]
    %v3929 = vld [vmem:[#allocation3 + $0xa0] sm:$0xff]
    %v3930 = vld [vmem:[#allocation3 + $0xa8] sm:$0x3]
    %v3931 = vld [vmem:[#allocation3 + $0xb0] sm:$0xff]
    %v3932 = vld [vmem:[#allocation3 + $0xb8] sm:$0x3]
    %v3933 = vld [vmem:[#allocation3 + $0xc0] sm:$0xff]
    %v3934 = vld [vmem:[#allocation3 + $0xc8] sm:$0x3]
    %v3935 = vld [vmem:[#allocation3 + $0xd0] sm:$0xff]
    %v3936 = vld [vmem:[#allocation3 + $0xd8] sm:$0x3]
    %v3937 = vld [vmem:[#allocation3 + $0xe0] sm:$0xff]
    %v3938 = vld [vmem:[#allocation3 + $0xe8] sm:$0x3]
    %v3939 = vld [vmem:[#allocation3 + $0xf0] sm:$0xff]
    %v3940 = vld [vmem:[#allocation3 + $0xf8] sm:$0x3]
    %v3941 = vld [vmem:[#allocation3 + $0x100] sm:$0xff]
    %v3942 = vld [vmem:[#allocation3 + $0x108] sm:$0x3]
    %v3943 = vld [vmem:[#allocation3 + $0x110] sm:$0xff]
    %v3944 = vld [vmem:[#allocation3 + $0x118] sm:$0x3]
    %v3945 = vld [vmem:[#allocation3 + $0x120] sm:$0xff]
    %v3946 = vld [vmem:[#allocation3 + $0x128] sm:$0x3]
    %v3947 = vld [vmem:[#allocation3 + $0x130] sm:$0xff]
    %v3948 = vld [vmem:[#allocation3 + $0x138] sm:$0x3]
    %v3949 = vpack.c.bf16 %v3911, %v3909
    %v3950 = vpack.c.bf16 %v3915, %v3913
    %v3951 = vpack.c.bf16 %v3919, %v3917
    %v3952 = vpack.c.bf16 %v3923, %v3921
    %v3953 = vpack.c.bf16 %v3931, %v3929
    %v3954 = vpack.c.bf16 %v3935, %v3933
    %v3955 = vpack.c.bf16 %v3939, %v3937
    %v3956 = vpack.c.bf16 %v3943, %v3941
    %v3957 = vld [vmem:[%s5] sm:$0xf]
    %v3958 = vld [vmem:[%s5 + $0x4] sm:$0xf]
    %v3959 = vld [vmem:[%s5 + $0x8] sm:$0xf]
    %v3960 = vld [vmem:[%s5 + $0xc] sm:$0xf]
    %v3993 = vrot.slane %v3909, 1
    %v3994 = vrot.slane %v3910, 1
    %v3995 = vsel %vm130, %v3993, %v3994
    %v3996 = vrot.slane %v3911, 1
    %v3997 = vrot.slane %v3912, 1
    %v3998 = vsel %vm130, %v3996, %v3997
    %v3999 = vrot.slane %v3913, 1
    %v4000 = vrot.slane %v3914, 1
    %v4001 = vsel %vm130, %v3999, %v4000
    %v4002 = vrot.slane %v3915, 1
    %v4003 = vrot.slane %v3916, 1
    %v4004 = vsel %vm130, %v4002, %v4003
    %v4005 = vrot.slane %v3917, 1
    %v4006 = vrot.slane %v3918, 1
    %v4007 = vsel %vm130, %v4005, %v4006
    %v4008 = vrot.slane %v3919, 1
    %v4009 = vrot.slane %v3920, 1
    %v4010 = vsel %vm130, %v4008, %v4009
    %v4011 = vrot.slane %v3921, 1
    %v4012 = vrot.slane %v3922, 1
    %v4013 = vsel %vm130, %v4011, %v4012
    %v4014 = vrot.slane %v3923, 1
    %v4015 = vrot.slane %v3924, 1
    %v4016 = vsel %vm130, %v4014, %v4015
    %v4017 = vrot.slane %v3929, 1
    %v4018 = vrot.slane %v3930, 1
    %v4019 = vsel %vm130, %v4017, %v4018
    %v4020 = vrot.slane %v3931, 1
    %v4021 = vrot.slane %v3932, 1
    %v4022 = vsel %vm130, %v4020, %v4021
    %v4023 = vrot.slane %v3933, 1
    %v4024 = vrot.slane %v3934, 1
    %v4025 = vsel %vm130, %v4023, %v4024
    %v4026 = vrot.slane %v3935, 1
    %v4027 = vrot.slane %v3936, 1
    %v4028 = vsel %vm130, %v4026, %v4027
    %v4029 = vrot.slane %v3937, 1
    %v4030 = vrot.slane %v3938, 1
    %v4031 = vsel %vm130, %v4029, %v4030
    %v4032 = vrot.slane %v3939, 1
    %v4033 = vrot.slane %v3940, 1
    %v4034 = vsel %vm130, %v4032, %v4033
    %v4035 = vrot.slane %v3941, 1
    %v4036 = vrot.slane %v3942, 1
    %v4037 = vsel %vm130, %v4035, %v4036
    %v4038 = vrot.slane %v3943, 1
    %v4039 = vrot.slane %v3944, 1
    %v4040 = vsel %vm130, %v4038, %v4039
    %v4057 = vpack.c.bf16 %v3998, %v3995
    %v4058 = vpack.c.bf16 %v4004, %v4001
    %v4059 = vpack.c.bf16 %v4010, %v4007
    %v4060 = vpack.c.bf16 %v4016, %v4013
    %v4061 = vpack.c.bf16 %v4022, %v4019
    %v4062 = vpack.c.bf16 %v4028, %v4025
    %v4063 = vpack.c.bf16 %v4034, %v4031
    %v4064 = vpack.c.bf16 %v4040, %v4037
    %s4065 = scalar_lea.vmem %s5, 16
    %v4066 = vld [vmem:[%s4065] sm:$0xf]
    %v4067 = vld [vmem:[%s4065 + $0x4] sm:$0xf]
    %v4068 = vld [vmem:[%s4065 + $0x8] sm:$0xf]
    %v4069 = vld [vmem:[%s4065 + $0xc] sm:$0xf]
    %v4074 = vunpack.c.l.b16 %v4066
    %v4075 = vunpack.c.l.b16 %v4067
    %v4076 = vunpack.c.l.b16 %v4068
    %v4077 = vunpack.c.l.b16 %v4069
    %v4078 = vpack.c.b16 %v4075, %v4074
    %v4079 = vpack.c.b16 %v4077, %v4076
    %v4083 = vsel %vm3850, %v4057, 0
    %v4086 = vsel %vm3850, %v4058, 0
    %v4089 = vsel %vm3850, %v4059, 0
    %v4092 = vsel %vm3850, %v4060, 0
    %v4095 = vsel %vm3850, %v4061, 0
    %v4098 = vsel %vm3850, %v4062, 0
    %v4101 = vsel %vm3850, %v4063, 0
    %v4104 = vsel %vm3850, %v4064, 0
    %4106 = vmatprep.subr.bf16.mxu0 0
    %4107 = vmatpush1.bf16.msra.mxu0 %v4078
    %4108 = vmatprep.subr.bf16.mxu0 0
    %4109 = vmatpush1.bf16.msra.mxu0 %v4079
    %4110 = vmatprep.subr.bf16.mxu0 0
    %4111 = vmatpush1.bf16.msra.mxu0 0
    %4112 = vmatprep.subr.bf16.mxu0 0
    %4113 = vmatpush1.bf16.msra.mxu0 0
    %4114 = vmatprep.subr.bf16.mxu0 0
    %4115 = vmatpush1.bf16.msra.mxu0 0
    %4116 = vmatprep.subr.bf16.mxu0 0
    %4117 = vmatpush1.bf16.msra.mxu0 0
    %4118 = vmatprep.subr.bf16.mxu0 0
    %4119 = vmatpush1.bf16.msra.mxu0 0
    %4120 = vmatprep.subr.bf16.mxu0 0
    %4121 = vmatpush1.bf16.msra.mxu0 0
    %4122 = vmatprep.subr.bf16.mxu0 0
    %4123 = vmatpush1.bf16.msra.mxu0 0
    %4124 = vmatprep.subr.bf16.mxu0 0
    %4125 = vmatpush1.bf16.msra.mxu0 0
    %4126 = vmatprep.subr.bf16.mxu0 0
    %4127 = vmatpush1.bf16.msra.mxu0 0
    %4128 = vmatprep.subr.bf16.mxu0 0
    %4129 = vmatpush1.bf16.msra.mxu0 0
    %4130 = vmatprep.subr.bf16.mxu0 0
    %4131 = vmatpush1.bf16.msra.mxu0 0
    %4132 = vmatprep.subr.bf16.mxu0 0
    %4133 = vmatpush1.bf16.msra.mxu0 0
    %4134 = vmatprep.subr.bf16.mxu0 0
    %4135 = vmatpush1.bf16.msra.mxu0 0
    %4136 = vmatprep.subr.bf16.mxu0 0
    %4137 = vmatpush1.bf16.msra.mxu0 0
    %4138 = vmatprep.mubr.bf16.mxu0 0
    %4139 = vmatmul.mubr.bf16.gmra.mrb[0].mxu0 %v4083
    %v4140 = vpop.f32.mrb[0].mxu0
    %v4141 = vadd.f32 0.0, %v4140
    %v4142 = vpop.f32.mrb[0].mxu0
    %v4143 = vpop.f32.mrb[0].mxu0
    %v4144 = vadd.f32 0.0, %v4143
    %v4145 = vpop.f32.mrb[0].mxu0
    %4146 = vmatprep.mubr.bf16.mxu0 0
    %4147 = vmatmul.mubr.bf16.gmra.mrb[0].mxu0 %v4086
    %v4148 = vpop.f32.mrb[0].mxu0
    %v4149 = vadd.f32 0.0, %v4148
    %v4150 = vpop.f32.mrb[0].mxu0
    %v4151 = vpop.f32.mrb[0].mxu0
    %v4152 = vadd.f32 0.0, %v4151
    %v4153 = vpop.f32.mrb[0].mxu0
    %4154 = vmatprep.mubr.bf16.mxu0 0
    %4155 = vmatmul.mubr.bf16.gmra.mrb[0].mxu0 %v4089
    %v4156 = vpop.f32.mrb[0].mxu0
    %v4157 = vadd.f32 0.0, %v4156
    %v4158 = vpop.f32.mrb[0].mxu0
    %v4159 = vpop.f32.mrb[0].mxu0
    %v4160 = vadd.f32 0.0, %v4159
    %v4161 = vpop.f32.mrb[0].mxu0
    %4162 = vmatprep.mubr.bf16.mxu0 0
    %4163 = vmatmul.mubr.bf16.gmra.mrb[0].mxu0 %v4092
    %v4164 = vpop.f32.mrb[0].mxu0
    %v4165 = vadd.f32 0.0, %v4164
    %v4166 = vpop.f32.mrb[0].mxu0
    %v4167 = vpop.f32.mrb[0].mxu0
    %v4168 = vadd.f32 0.0, %v4167
    %v4169 = vpop.f32.mrb[0].mxu0
    %4170 = vmatprep.mubr.bf16.mxu0 0
    %4171 = vmatmul.mubr.bf16.gmra.mrb[0].mxu0 %v4095
    %v4172 = vpop.f32.mrb[0].mxu0
    %v4173 = vadd.f32 0.0, %v4172
    %v4174 = vpop.f32.mrb[0].mxu0
    %v4175 = vpop.f32.mrb[0].mxu0
    %v4176 = vadd.f32 0.0, %v4175
    %v4177 = vpop.f32.mrb[0].mxu0
    %4178 = vmatprep.mubr.bf16.mxu0 0
    %4179 = vmatmul.mubr.bf16.gmra.mrb[0].mxu0 %v4098
    %v4180 = vpop.f32.mrb[0].mxu0
    %v4181 = vadd.f32 0.0, %v4180
    %v4182 = vpop.f32.mrb[0].mxu0
    %v4183 = vpop.f32.mrb[0].mxu0
    %v4184 = vadd.f32 0.0, %v4183
    %v4185 = vpop.f32.mrb[0].mxu0
    %4186 = vmatprep.mubr.bf16.mxu0 0
    %4187 = vmatmul.mubr.bf16.gmra.mrb[0].mxu0 %v4101
    %v4188 = vpop.f32.mrb[0].mxu0
    %v4189 = vadd.f32 0.0, %v4188
    %v4190 = vpop.f32.mrb[0].mxu0
    %v4191 = vpop.f32.mrb[0].mxu0
    %v4192 = vadd.f32 0.0, %v4191
    %v4193 = vpop.f32.mrb[0].mxu0
    %4194 = vmatprep.mubr.bf16.mxu0 0
    %4195 = vmatmul.mubr.bf16.gmra.mrb[0].mxu0 %v4104
    %v4196 = vpop.f32.mrb[0].mxu0
    %v4197 = vadd.f32 0.0, %v4196
    %v4198 = vpop.f32.mrb[0].mxu0
    %v4199 = vpop.f32.mrb[0].mxu0
    %v4200 = vadd.f32 0.0, %v4199
    %v4201 = vpop.f32.mrb[0].mxu0
    %4202 = vdwg.mxu0
    %v4207 = vunpack.c.l.b16 %v3957
    %v4208 = vunpack.c.l.b16 %v3958
    %v4209 = vunpack.c.l.b16 %v3959
    %v4210 = vunpack.c.l.b16 %v3960
    %v4211 = vpack.c.b16 %v4208, %v4207
    %v4212 = vpack.c.b16 %v4210, %v4209
    %v4216 = vsel %vm3850, %v3949, 0
    %v4219 = vsel %vm3850, %v3950, 0
    %v4222 = vsel %vm3850, %v3951, 0
    %v4225 = vsel %vm3850, %v3952, 0
    %v4228 = vsel %vm3850, %v3953, 0
    %v4231 = vsel %vm3850, %v3954, 0
    %v4234 = vsel %vm3850, %v3955, 0
    %v4237 = vsel %vm3850, %v3956, 0
    %4239 = vmatprep.subr.bf16.mxu0 0
    %4240 = vmatpush1.bf16.msra.mxu0 %v4211
    %4241 = vmatprep.subr.bf16.mxu0 0
    %4242 = vmatpush1.bf16.msra.mxu0 %v4212
    %4243 = vmatprep.subr.bf16.mxu0 0
    %4244 = vmatpush1.bf16.msra.mxu0 0
    %4245 = vmatprep.subr.bf16.mxu0 0
    %4246 = vmatpush1.bf16.msra.mxu0 0
    %4247 = vmatprep.subr.bf16.mxu0 0
    %4248 = vmatpush1.bf16.msra.mxu0 0
    %4249 = vmatprep.subr.bf16.mxu0 0
    %4250 = vmatpush1.bf16.msra.mxu0 0
    %4251 = vmatprep.subr.bf16.mxu0 0
    %4252 = vmatpush1.bf16.msra.mxu0 0
    %4253 = vmatprep.subr.bf16.mxu0 0
    %4254 = vmatpush1.bf16.msra.mxu0 0
    %4255 = vmatprep.subr.bf16.mxu0 0
    %4256 = vmatpush1.bf16.msra.mxu0 0
    %4257 = vmatprep.subr.bf16.mxu0 0
    %4258 = vmatpush1.bf16.msra.mxu0 0
    %4259 = vmatprep.subr.bf16.mxu0 0
    %4260 = vmatpush1.bf16.msra.mxu0 0
    %4261 = vmatprep.subr.bf16.mxu0 0
    %4262 = vmatpush1.bf16.msra.mxu0 0
    %4263 = vmatprep.subr.bf16.mxu0 0
    %4264 = vmatpush1.bf16.msra.mxu0 0
    %4265 = vmatprep.subr.bf16.mxu0 0
    %4266 = vmatpush1.bf16.msra.mxu0 0
    %4267 = vmatprep.subr.bf16.mxu0 0
    %4268 = vmatpush1.bf16.msra.mxu0 0
    %4269 = vmatprep.subr.bf16.mxu0 0
    %4270 = vmatpush1.bf16.msra.mxu0 0
    %4271 = vmatprep.mubr.bf16.mxu0 0
    %4272 = vmatmul.mubr.bf16.gmra.mrb[0].mxu0 %v4216
    %v4273 = vpop.f32.mrb[0].mxu0
    %v4274 = vadd.f32 %v4141, %v4273
    %v4275 = vpop.f32.mrb[0].mxu0
    %v4276 = vpop.f32.mrb[0].mxu0
    %v4277 = vadd.f32 %v4144, %v4276
    %v4278 = vpop.f32.mrb[0].mxu0
    %4279 = vmatprep.mubr.bf16.mxu0 0
    %4280 = vmatmul.mubr.bf16.gmra.mrb[0].mxu0 %v4219
    %v4281 = vpop.f32.mrb[0].mxu0
    %v4282 = vadd.f32 %v4149, %v4281
    %v4283 = vpop.f32.mrb[0].mxu0
    %v4284 = vpop.f32.mrb[0].mxu0
    %v4285 = vadd.f32 %v4152, %v4284
    %v4286 = vpop.f32.mrb[0].mxu0
    %4287 = vmatprep.mubr.bf16.mxu0 0
    %4288 = vmatmul.mubr.bf16.gmra.mrb[0].mxu0 %v4222
    %v4289 = vpop.f32.mrb[0].mxu0
    %v4290 = vadd.f32 %v4157, %v4289
    %v4291 = vpop.f32.mrb[0].mxu0
    %v4292 = vpop.f32.mrb[0].mxu0
    %v4293 = vadd.f32 %v4160, %v4292
    %v4294 = vpop.f32.mrb[0].mxu0
    %4295 = vmatprep.mubr.bf16.mxu0 0
    %4296 = vmatmul.mubr.bf16.gmra.mrb[0].mxu0 %v4225
    %v4297 = vpop.f32.mrb[0].mxu0
    %v4298 = vadd.f32 %v4165, %v4297
    %v4299 = vpop.f32.mrb[0].mxu0
    %v4300 = vpop.f32.mrb[0].mxu0
    %v4301 = vadd.f32 %v4168, %v4300
    %v4302 = vpop.f32.mrb[0].mxu0
    %4303 = vmatprep.mubr.bf16.mxu0 0
    %4304 = vmatmul.mubr.bf16.gmra.mrb[0].mxu0 %v4228
    %v4305 = vpop.f32.mrb[0].mxu0
    %v4306 = vadd.f32 %v4173, %v4305
    %v4307 = vpop.f32.mrb[0].mxu0
    %v4308 = vpop.f32.mrb[0].mxu0
    %v4309 = vadd.f32 %v4176, %v4308
    %v4310 = vpop.f32.mrb[0].mxu0
    %4311 = vmatprep.mubr.bf16.mxu0 0
    %4312 = vmatmul.mubr.bf16.gmra.mrb[0].mxu0 %v4231
    %v4313 = vpop.f32.mrb[0].mxu0
    %v4314 = vadd.f32 %v4181, %v4313
    %v4315 = vpop.f32.mrb[0].mxu0
    %v4316 = vpop.f32.mrb[0].mxu0
    %v4317 = vadd.f32 %v4184, %v4316
    %v4318 = vpop.f32.mrb[0].mxu0
    %4319 = vmatprep.mubr.bf16.mxu0 0
    %4320 = vmatmul.mubr.bf16.gmra.mrb[0].mxu0 %v4234
    %v4321 = vpop.f32.mrb[0].mxu0
    %v4322 = vadd.f32 %v4189, %v4321
    %v4323 = vpop.f32.mrb[0].mxu0
    %v4324 = vpop.f32.mrb[0].mxu0
    %v4325 = vadd.f32 %v4192, %v4324
    %v4326 = vpop.f32.mrb[0].mxu0
    %4327 = vmatprep.mubr.bf16.mxu0 0
    %4328 = vmatmul.mubr.bf16.gmra.mrb[0].mxu0 %v4237
    %v4329 = vpop.f32.mrb[0].mxu0
    %v4330 = vadd.f32 %v4197, %v4329
    %v4331 = vpop.f32.mrb[0].mxu0
    %v4332 = vpop.f32.mrb[0].mxu0
    %v4333 = vadd.f32 %v4200, %v4332
    %v4334 = vpop.f32.mrb[0].mxu0
    %4335 = vdwg.mxu0
    %v4336 = vrot.slane %v3909, 2
    %v4337 = vrot.slane %v3910, 2
    %v4338 = vsel %vm1590, %v4336, %v4337
    %v4339 = vrot.slane %v3911, 2
    %v4340 = vrot.slane %v3912, 2
    %v4341 = vsel %vm1590, %v4339, %v4340
    %v4342 = vrot.slane %v3913, 2
    %v4343 = vrot.slane %v3914, 2
    %v4344 = vsel %vm1590, %v4342, %v4343
    %v4345 = vrot.slane %v3915, 2
    %v4346 = vrot.slane %v3916, 2
    %v4347 = vsel %vm1590, %v4345, %v4346
    %v4348 = vrot.slane %v3917, 2
    %v4349 = vrot.slane %v3918, 2
    %v4350 = vsel %vm1590, %v4348, %v4349
    %v4351 = vrot.slane %v3919, 2
    %v4352 = vrot.slane %v3920, 2
    %v4353 = vsel %vm1590, %v4351, %v4352
    %v4354 = vrot.slane %v3921, 2
    %v4355 = vrot.slane %v3922, 2
    %v4356 = vsel %vm1590, %v4354, %v4355
    %v4357 = vrot.slane %v3923, 2
    %v4358 = vrot.slane %v3924, 2
    %v4359 = vsel %vm1590, %v4357, %v4358
    %v4360 = vrot.slane %v3929, 2
    %v4361 = vrot.slane %v3930, 2
    %v4362 = vsel %vm1590, %v4360, %v4361
    %v4363 = vrot.slane %v3931, 2
    %v4364 = vrot.slane %v3932, 2
    %v4365 = vsel %vm1590, %v4363, %v4364
    %v4366 = vrot.slane %v3933, 2
    %v4367 = vrot.slane %v3934, 2
    %v4368 = vsel %vm1590, %v4366, %v4367
    %v4369 = vrot.slane %v3935, 2
    %v4370 = vrot.slane %v3936, 2
    %v4371 = vsel %vm1590, %v4369, %v4370
    %v4372 = vrot.slane %v3937, 2
    %v4373 = vrot.slane %v3938, 2
    %v4374 = vsel %vm1590, %v4372, %v4373
    %v4375 = vrot.slane %v3939, 2
    %v4376 = vrot.slane %v3940, 2
    %v4377 = vsel %vm1590, %v4375, %v4376
    %v4378 = vrot.slane %v3941, 2
    %v4379 = vrot.slane %v3942, 2
    %v4380 = vsel %vm1590, %v4378, %v4379
    %v4381 = vrot.slane %v3943, 2
    %v4382 = vrot.slane %v3944, 2
    %v4383 = vsel %vm1590, %v4381, %v4382
    %v4400 = vpack.c.bf16 %v4341, %v4338
    %v4401 = vpack.c.bf16 %v4347, %v4344
    %v4402 = vpack.c.bf16 %v4353, %v4350
    %v4403 = vpack.c.bf16 %v4359, %v4356
    %v4404 = vpack.c.bf16 %v4365, %v4362
    %v4405 = vpack.c.bf16 %v4371, %v4368
    %v4406 = vpack.c.bf16 %v4377, %v4374
    %v4407 = vpack.c.bf16 %v4383, %v4380
    %s4408 = scalar_lea.vmem %s5, 32
    %v4409 = vld [vmem:[%s4408] sm:$0xf]
    %v4410 = vld [vmem:[%s4408 + $0x4] sm:$0xf]
    %v4411 = vld [vmem:[%s4408 + $0x8] sm:$0xf]
    %v4412 = vld [vmem:[%s4408 + $0xc] sm:$0xf]
    %v4417 = vunpack.c.l.b16 %v4409
    %v4418 = vunpack.c.l.b16 %v4410
    %v4419 = vunpack.c.l.b16 %v4411
    %v4420 = vunpack.c.l.b16 %v4412
    %v4421 = vpack.c.b16 %v4418, %v4417
    %v4422 = vpack.c.b16 %v4420, %v4419
    %v4426 = vsel %vm3850, %v4400, 0
    %v4429 = vsel %vm3850, %v4401, 0
    %v4432 = vsel %vm3850, %v4402, 0
    %v4435 = vsel %vm3850, %v4403, 0
    %v4438 = vsel %vm3850, %v4404, 0
    %v4441 = vsel %vm3850, %v4405, 0
    %v4444 = vsel %vm3850, %v4406, 0
    %v4447 = vsel %vm3850, %v4407, 0
    %4449 = vmatprep.subr.bf16.mxu0 0
    %4450 = vmatpush1.bf16.msra.mxu0 %v4421
    %4451 = vmatprep.subr.bf16.mxu0 0
    %4452 = vmatpush1.bf16.msra.mxu0 %v4422
    %4453 = vmatprep.subr.bf16.mxu0 0
    %4454 = vmatpush1.bf16.msra.mxu0 0
    %4455 = vmatprep.subr.bf16.mxu0 0
    %4456 = vmatpush1.bf16.msra.mxu0 0
    %4457 = vmatprep.subr.bf16.mxu0 0
    %4458 = vmatpush1.bf16.msra.mxu0 0
    %4459 = vmatprep.subr.bf16.mxu0 0
    %4460 = vmatpush1.bf16.msra.mxu0 0
    %4461 = vmatprep.subr.bf16.mxu0 0
    %4462 = vmatpush1.bf16.msra.mxu0 0
    %4463 = vmatprep.subr.bf16.mxu0 0
    %4464 = vmatpush1.bf16.msra.mxu0 0
    %4465 = vmatprep.subr.bf16.mxu0 0
    %4466 = vmatpush1.bf16.msra.mxu0 0
    %4467 = vmatprep.subr.bf16.mxu0 0
    %4468 = vmatpush1.bf16.msra.mxu0 0
    %4469 = vmatprep.subr.bf16.mxu0 0
    %4470 = vmatpush1.bf16.msra.mxu0 0
    %4471 = vmatprep.subr.bf16.mxu0 0
    %4472 = vmatpush1.bf16.msra.mxu0 0
    %4473 = vmatprep.subr.bf16.mxu0 0
    %4474 = vmatpush1.bf16.msra.mxu0 0
    %4475 = vmatprep.subr.bf16.mxu0 0
    %4476 = vmatpush1.bf16.msra.mxu0 0
    %4477 = vmatprep.subr.bf16.mxu0 0
    %4478 = vmatpush1.bf16.msra.mxu0 0
    %4479 = vmatprep.subr.bf16.mxu0 0
    %4480 = vmatpush1.bf16.msra.mxu0 0
    %4481 = vmatprep.mubr.bf16.mxu0 0
    %4482 = vmatmul.mubr.bf16.gmra.mrb[0].mxu0 %v4426
    %v4483 = vpop.f32.mrb[0].mxu0
    %v4484 = vadd.f32 0.0, %v4483
    %v4485 = vpop.f32.mrb[0].mxu0
    %v4486 = vpop.f32.mrb[0].mxu0
    %v4487 = vadd.f32 0.0, %v4486
    %v4488 = vpop.f32.mrb[0].mxu0
    %4489 = vmatprep.mubr.bf16.mxu0 0
    %4490 = vmatmul.mubr.bf16.gmra.mrb[0].mxu0 %v4429
    %v4491 = vpop.f32.mrb[0].mxu0
    %v4492 = vadd.f32 0.0, %v4491
    %v4493 = vpop.f32.mrb[0].mxu0
    %v4494 = vpop.f32.mrb[0].mxu0
    %v4495 = vadd.f32 0.0, %v4494
    %v4496 = vpop.f32.mrb[0].mxu0
    %4497 = vmatprep.mubr.bf16.mxu0 0
    %4498 = vmatmul.mubr.bf16.gmra.mrb[0].mxu0 %v4432
    %v4499 = vpop.f32.mrb[0].mxu0
    %v4500 = vadd.f32 0.0, %v4499
    %v4501 = vpop.f32.mrb[0].mxu0
    %v4502 = vpop.f32.mrb[0].mxu0
    %v4503 = vadd.f32 0.0, %v4502
    %v4504 = vpop.f32.mrb[0].mxu0
    %4505 = vmatprep.mubr.bf16.mxu0 0
    %4506 = vmatmul.mubr.bf16.gmra.mrb[0].mxu0 %v4435
    %v4507 = vpop.f32.mrb[0].mxu0
    %v4508 = vadd.f32 0.0, %v4507
    %v4509 = vpop.f32.mrb[0].mxu0
    %v4510 = vpop.f32.mrb[0].mxu0
    %v4511 = vadd.f32 0.0, %v4510
    %v4512 = vpop.f32.mrb[0].mxu0
    %4513 = vmatprep.mubr.bf16.mxu0 0
    %4514 = vmatmul.mubr.bf16.gmra.mrb[0].mxu0 %v4438
    %v4515 = vpop.f32.mrb[0].mxu0
    %v4516 = vadd.f32 0.0, %v4515
    %v4517 = vpop.f32.mrb[0].mxu0
    %v4518 = vpop.f32.mrb[0].mxu0
    %v4519 = vadd.f32 0.0, %v4518
    %v4520 = vpop.f32.mrb[0].mxu0
    %4521 = vmatprep.mubr.bf16.mxu0 0
    %4522 = vmatmul.mubr.bf16.gmra.mrb[0].mxu0 %v4441
    %v4523 = vpop.f32.mrb[0].mxu0
    %v4524 = vadd.f32 0.0, %v4523
    %v4525 = vpop.f32.mrb[0].mxu0
    %v4526 = vpop.f32.mrb[0].mxu0
    %v4527 = vadd.f32 0.0, %v4526
    %v4528 = vpop.f32.mrb[0].mxu0
    %4529 = vmatprep.mubr.bf16.mxu0 0
    %4530 = vmatmul.mubr.bf16.gmra.mrb[0].mxu0 %v4444
    %v4531 = vpop.f32.mrb[0].mxu0
    %v4532 = vadd.f32 0.0, %v4531
    %v4533 = vpop.f32.mrb[0].mxu0
    %v4534 = vpop.f32.mrb[0].mxu0
    %v4535 = vadd.f32 0.0, %v4534
    %v4536 = vpop.f32.mrb[0].mxu0
    %4537 = vmatprep.mubr.bf16.mxu0 0
    %4538 = vmatmul.mubr.bf16.gmra.mrb[0].mxu0 %v4447
    %v4539 = vpop.f32.mrb[0].mxu0
    %v4540 = vadd.f32 0.0, %v4539
    %v4541 = vpop.f32.mrb[0].mxu0
    %v4542 = vpop.f32.mrb[0].mxu0
    %v4543 = vadd.f32 0.0, %v4542
    %v4544 = vpop.f32.mrb[0].mxu0
    %4545 = vdwg.mxu0
    %v4546 = vadd.f32 %v4274, %v4484
    %v4547 = vadd.f32 %v4277, %v4487
    %v4548 = vadd.f32 %v4282, %v4492
    %v4549 = vadd.f32 %v4285, %v4495
    %v4550 = vadd.f32 %v4290, %v4500
    %v4551 = vadd.f32 %v4293, %v4503
    %v4552 = vadd.f32 %v4298, %v4508
    %v4553 = vadd.f32 %v4301, %v4511
    %v4554 = vadd.f32 %v4306, %v4516
    %v4555 = vadd.f32 %v4309, %v4519
    %v4556 = vadd.f32 %v4314, %v4524
    %v4557 = vadd.f32 %v4317, %v4527
    %v4558 = vadd.f32 %v4322, %v4532
    %v4559 = vadd.f32 %v4325, %v4535
    %v4560 = vadd.f32 %v4330, %v4540
    %v4561 = vadd.f32 %v4333, %v4543
    %v4562 = vpack.c.bf16 %v3913, %v3911
    %v4563 = vpack.c.bf16 %v3917, %v3915
    %v4564 = vpack.c.bf16 %v3921, %v3919
    %v4565 = vpack.c.bf16 %v3925, %v3923
    %v4566 = vpack.c.bf16 %v3933, %v3931
    %v4567 = vpack.c.bf16 %v3937, %v3935
    %v4568 = vpack.c.bf16 %v3941, %v3939
    %v4569 = vpack.c.bf16 %v3945, %v3943
    %s4570 = scalar_lea.vmem %s5, 48
    %v4571 = vld [vmem:[%s4570] sm:$0xf]
    %v4572 = vld [vmem:[%s4570 + $0x4] sm:$0xf]
    %v4573 = vld [vmem:[%s4570 + $0x8] sm:$0xf]
    %v4574 = vld [vmem:[%s4570 + $0xc] sm:$0xf]
    %v4579 = vunpack.c.l.b16 %v4571
    %v4580 = vunpack.c.l.b16 %v4572
    %v4581 = vunpack.c.l.b16 %v4573
    %v4582 = vunpack.c.l.b16 %v4574
    %v4583 = vpack.c.b16 %v4580, %v4579
    %v4584 = vpack.c.b16 %v4582, %v4581
    %v4588 = vsel %vm3850, %v4562, 0
    %v4591 = vsel %vm3850, %v4563, 0
    %v4594 = vsel %vm3850, %v4564, 0
    %v4597 = vsel %vm3850, %v4565, 0
    %v4600 = vsel %vm3850, %v4566, 0
    %v4603 = vsel %vm3850, %v4567, 0
    %v4606 = vsel %vm3850, %v4568, 0
    %v4609 = vsel %vm3850, %v4569, 0
    %4611 = vmatprep.subr.bf16.mxu0 0
    %4612 = vmatpush1.bf16.msra.mxu0 %v4583
    %4613 = vmatprep.subr.bf16.mxu0 0
    %4614 = vmatpush1.bf16.msra.mxu0 %v4584
    %4615 = vmatprep.subr.bf16.mxu0 0
    %4616 = vmatpush1.bf16.msra.mxu0 0
    %4617 = vmatprep.subr.bf16.mxu0 0
    %4618 = vmatpush1.bf16.msra.mxu0 0
    %4619 = vmatprep.subr.bf16.mxu0 0
    %4620 = vmatpush1.bf16.msra.mxu0 0
    %4621 = vmatprep.subr.bf16.mxu0 0
    %4622 = vmatpush1.bf16.msra.mxu0 0
    %4623 = vmatprep.subr.bf16.mxu0 0
    %4624 = vmatpush1.bf16.msra.mxu0 0
    %4625 = vmatprep.subr.bf16.mxu0 0
    %4626 = vmatpush1.bf16.msra.mxu0 0
    %4627 = vmatprep.subr.bf16.mxu0 0
    %4628 = vmatpush1.bf16.msra.mxu0 0
    %4629 = vmatprep.subr.bf16.mxu0 0
    %4630 = vmatpush1.bf16.msra.mxu0 0
    %4631 = vmatprep.subr.bf16.mxu0 0
    %4632 = vmatpush1.bf16.msra.mxu0 0
    %4633 = vmatprep.subr.bf16.mxu0 0
    %4634 = vmatpush1.bf16.msra.mxu0 0
    %4635 = vmatprep.subr.bf16.mxu0 0
    %4636 = vmatpush1.bf16.msra.mxu0 0
    %4637 = vmatprep.subr.bf16.mxu0 0
    %4638 = vmatpush1.bf16.msra.mxu0 0
    %4639 = vmatprep.subr.bf16.mxu0 0
    %4640 = vmatpush1.bf16.msra.mxu0 0
    %4641 = vmatprep.subr.bf16.mxu0 0
    %4642 = vmatpush1.bf16.msra.mxu0 0
    %4643 = vmatprep.mubr.bf16.mxu0 0
    %4644 = vmatmul.mubr.bf16.gmra.mrb[0].mxu0 %v4588
    %v4645 = vpop.f32.mrb[0].mxu0
    %v4646 = vadd.f32 0.0, %v4645
    %v4647 = vpop.f32.mrb[0].mxu0
    %v4648 = vpop.f32.mrb[0].mxu0
    %v4649 = vadd.f32 0.0, %v4648
    %v4650 = vpop.f32.mrb[0].mxu0
    %4651 = vmatprep.mubr.bf16.mxu0 0
    %4652 = vmatmul.mubr.bf16.gmra.mrb[0].mxu0 %v4591
    %v4653 = vpop.f32.mrb[0].mxu0
    %v4654 = vadd.f32 0.0, %v4653
    %v4655 = vpop.f32.mrb[0].mxu0
    %v4656 = vpop.f32.mrb[0].mxu0
    %v4657 = vadd.f32 0.0, %v4656
    %v4658 = vpop.f32.mrb[0].mxu0
    %4659 = vmatprep.mubr.bf16.mxu0 0
    %4660 = vmatmul.mubr.bf16.gmra.mrb[0].mxu0 %v4594
    %v4661 = vpop.f32.mrb[0].mxu0
    %v4662 = vadd.f32 0.0, %v4661
    %v4663 = vpop.f32.mrb[0].mxu0
    %v4664 = vpop.f32.mrb[0].mxu0
    %v4665 = vadd.f32 0.0, %v4664
    %v4666 = vpop.f32.mrb[0].mxu0
    %4667 = vmatprep.mubr.bf16.mxu0 0
    %4668 = vmatmul.mubr.bf16.gmra.mrb[0].mxu0 %v4597
    %v4669 = vpop.f32.mrb[0].mxu0
    %v4670 = vadd.f32 0.0, %v4669
    %v4671 = vpop.f32.mrb[0].mxu0
    %v4672 = vpop.f32.mrb[0].mxu0
    %v4673 = vadd.f32 0.0, %v4672
    %v4674 = vpop.f32.mrb[0].mxu0
    %4675 = vmatprep.mubr.bf16.mxu0 0
    %4676 = vmatmul.mubr.bf16.gmra.mrb[0].mxu0 %v4600
    %v4677 = vpop.f32.mrb[0].mxu0
    %v4678 = vadd.f32 0.0, %v4677
    %v4679 = vpop.f32.mrb[0].mxu0
    %v4680 = vpop.f32.mrb[0].mxu0
    %v4681 = vadd.f32 0.0, %v4680
    %v4682 = vpop.f32.mrb[0].mxu0
    %4683 = vmatprep.mubr.bf16.mxu0 0
    %4684 = vmatmul.mubr.bf16.gmra.mrb[0].mxu0 %v4603
    %v4685 = vpop.f32.mrb[0].mxu0
    %v4686 = vadd.f32 0.0, %v4685
    %v4687 = vpop.f32.mrb[0].mxu0
    %v4688 = vpop.f32.mrb[0].mxu0
    %v4689 = vadd.f32 0.0, %v4688
    %v4690 = vpop.f32.mrb[0].mxu0
    %4691 = vmatprep.mubr.bf16.mxu0 0
    %4692 = vmatmul.mubr.bf16.gmra.mrb[0].mxu0 %v4606
    %v4693 = vpop.f32.mrb[0].mxu0
    %v4694 = vadd.f32 0.0, %v4693
    %v4695 = vpop.f32.mrb[0].mxu0
    %v4696 = vpop.f32.mrb[0].mxu0
    %v4697 = vadd.f32 0.0, %v4696
    %v4698 = vpop.f32.mrb[0].mxu0
    %4699 = vmatprep.mubr.bf16.mxu0 0
    %4700 = vmatmul.mubr.bf16.gmra.mrb[0].mxu0 %v4609
    %v4701 = vpop.f32.mrb[0].mxu0
    %v4702 = vadd.f32 0.0, %v4701
    %v4703 = vpop.f32.mrb[0].mxu0
    %v4704 = vpop.f32.mrb[0].mxu0
    %v4705 = vadd.f32 0.0, %v4704
    %v4706 = vpop.f32.mrb[0].mxu0
    %4707 = vdwg.mxu0
    %v4708 = vadd.f32 %v4546, %v4646
    %v4709 = vadd.f32 %v4547, %v4649
    %v4710 = vadd.f32 %v4548, %v4654
    %v4711 = vadd.f32 %v4549, %v4657
    %v4712 = vadd.f32 %v4550, %v4662
    %v4713 = vadd.f32 %v4551, %v4665
    %v4714 = vadd.f32 %v4552, %v4670
    %v4715 = vadd.f32 %v4553, %v4673
    %v4716 = vadd.f32 %v4554, %v4678
    %v4717 = vadd.f32 %v4555, %v4681
    %v4718 = vadd.f32 %v4556, %v4686
    %v4719 = vadd.f32 %v4557, %v4689
    %v4720 = vadd.f32 %v4558, %v4694
    %v4721 = vadd.f32 %v4559, %v4697
    %v4722 = vadd.f32 %v4560, %v4702
    %v4723 = vadd.f32 %v4561, %v4705
    %v4728 = vrot.slane %v3925, 1
    %v4729 = vrot.slane %v3926, 1
    %v4730 = vsel %vm130, %v4728, %v4729
    %v4731 = vrot.slane %v3945, 1
    %v4732 = vrot.slane %v3946, 1
    %v4733 = vsel %vm130, %v4731, %v4732
    %v4736 = vpack.c.bf16 %v4001, %v3998
    %v4737 = vpack.c.bf16 %v4007, %v4004
    %v4738 = vpack.c.bf16 %v4013, %v4010
    %v4739 = vpack.c.bf16 %v4730, %v4016
    %v4740 = vpack.c.bf16 %v4025, %v4022
    %v4741 = vpack.c.bf16 %v4031, %v4028
    %v4742 = vpack.c.bf16 %v4037, %v4034
    %v4743 = vpack.c.bf16 %v4733, %v4040
    %s4744 = scalar_lea.vmem %s5, 64
    %v4745 = vld [vmem:[%s4744] sm:$0xf]
    %v4746 = vld [vmem:[%s4744 + $0x4] sm:$0xf]
    %v4747 = vld [vmem:[%s4744 + $0x8] sm:$0xf]
    %v4748 = vld [vmem:[%s4744 + $0xc] sm:$0xf]
    %v4753 = vunpack.c.l.b16 %v4745
    %v4754 = vunpack.c.l.b16 %v4746
    %v4755 = vunpack.c.l.b16 %v4747
    %v4756 = vunpack.c.l.b16 %v4748
    %v4757 = vpack.c.b16 %v4754, %v4753
    %v4758 = vpack.c.b16 %v4756, %v4755
    %v4762 = vsel %vm3850, %v4736, 0
    %v4765 = vsel %vm3850, %v4737, 0
    %v4768 = vsel %vm3850, %v4738, 0
    %v4771 = vsel %vm3850, %v4739, 0
    %v4774 = vsel %vm3850, %v4740, 0
    %v4777 = vsel %vm3850, %v4741, 0
    %v4780 = vsel %vm3850, %v4742, 0
    %v4783 = vsel %vm3850, %v4743, 0
    %4785 = vmatprep.subr.bf16.mxu0 0
    %4786 = vmatpush1.bf16.msra.mxu0 %v4757
    %4787 = vmatprep.subr.bf16.mxu0 0
    %4788 = vmatpush1.bf16.msra.mxu0 %v4758
    %4789 = vmatprep.subr.bf16.mxu0 0
    %4790 = vmatpush1.bf16.msra.mxu0 0
    %4791 = vmatprep.subr.bf16.mxu0 0
    %4792 = vmatpush1.bf16.msra.mxu0 0
    %4793 = vmatprep.subr.bf16.mxu0 0
    %4794 = vmatpush1.bf16.msra.mxu0 0
    %4795 = vmatprep.subr.bf16.mxu0 0
    %4796 = vmatpush1.bf16.msra.mxu0 0
    %4797 = vmatprep.subr.bf16.mxu0 0
    %4798 = vmatpush1.bf16.msra.mxu0 0
    %4799 = vmatprep.subr.bf16.mxu0 0
    %4800 = vmatpush1.bf16.msra.mxu0 0
    %4801 = vmatprep.subr.bf16.mxu0 0
    %4802 = vmatpush1.bf16.msra.mxu0 0
    %4803 = vmatprep.subr.bf16.mxu0 0
    %4804 = vmatpush1.bf16.msra.mxu0 0
    %4805 = vmatprep.subr.bf16.mxu0 0
    %4806 = vmatpush1.bf16.msra.mxu0 0
    %4807 = vmatprep.subr.bf16.mxu0 0
    %4808 = vmatpush1.bf16.msra.mxu0 0
    %4809 = vmatprep.subr.bf16.mxu0 0
    %4810 = vmatpush1.bf16.msra.mxu0 0
    %4811 = vmatprep.subr.bf16.mxu0 0
    %4812 = vmatpush1.bf16.msra.mxu0 0
    %4813 = vmatprep.subr.bf16.mxu0 0
    %4814 = vmatpush1.bf16.msra.mxu0 0
    %4815 = vmatprep.subr.bf16.mxu0 0
    %4816 = vmatpush1.bf16.msra.mxu0 0
    %4817 = vmatprep.mubr.bf16.mxu0 0
    %4818 = vmatmul.mubr.bf16.gmra.mrb[0].mxu0 %v4762
    %v4819 = vpop.f32.mrb[0].mxu0
    %v4820 = vadd.f32 0.0, %v4819
    %v4821 = vpop.f32.mrb[0].mxu0
    %v4822 = vpop.f32.mrb[0].mxu0
    %v4823 = vadd.f32 0.0, %v4822
    %v4824 = vpop.f32.mrb[0].mxu0
    %4825 = vmatprep.mubr.bf16.mxu0 0
    %4826 = vmatmul.mubr.bf16.gmra.mrb[0].mxu0 %v4765
    %v4827 = vpop.f32.mrb[0].mxu0
    %v4828 = vadd.f32 0.0, %v4827
    %v4829 = vpop.f32.mrb[0].mxu0
    %v4830 = vpop.f32.mrb[0].mxu0
    %v4831 = vadd.f32 0.0, %v4830
    %v4832 = vpop.f32.mrb[0].mxu0
    %4833 = vmatprep.mubr.bf16.mxu0 0
    %4834 = vmatmul.mubr.bf16.gmra.mrb[0].mxu0 %v4768
    %v4835 = vpop.f32.mrb[0].mxu0
    %v4836 = vadd.f32 0.0, %v4835
    %v4837 = vpop.f32.mrb[0].mxu0
    %v4838 = vpop.f32.mrb[0].mxu0
    %v4839 = vadd.f32 0.0, %v4838
    %v4840 = vpop.f32.mrb[0].mxu0
    %4841 = vmatprep.mubr.bf16.mxu0 0
    %4842 = vmatmul.mubr.bf16.gmra.mrb[0].mxu0 %v4771
    %v4843 = vpop.f32.mrb[0].mxu0
    %v4844 = vadd.f32 0.0, %v4843
    %v4845 = vpop.f32.mrb[0].mxu0
    %v4846 = vpop.f32.mrb[0].mxu0
    %v4847 = vadd.f32 0.0, %v4846
    %v4848 = vpop.f32.mrb[0].mxu0
    %4849 = vmatprep.mubr.bf16.mxu0 0
    %4850 = vmatmul.mubr.bf16.gmra.mrb[0].mxu0 %v4774
    %v4851 = vpop.f32.mrb[0].mxu0
    %v4852 = vadd.f32 0.0, %v4851
    %v4853 = vpop.f32.mrb[0].mxu0
    %v4854 = vpop.f32.mrb[0].mxu0
    %v4855 = vadd.f32 0.0, %v4854
    %v4856 = vpop.f32.mrb[0].mxu0
    %4857 = vmatprep.mubr.bf16.mxu0 0
    %4858 = vmatmul.mubr.bf16.gmra.mrb[0].mxu0 %v4777
    %v4859 = vpop.f32.mrb[0].mxu0
    %v4860 = vadd.f32 0.0, %v4859
    %v4861 = vpop.f32.mrb[0].mxu0
    %v4862 = vpop.f32.mrb[0].mxu0
    %v4863 = vadd.f32 0.0, %v4862
    %v4864 = vpop.f32.mrb[0].mxu0
    %4865 = vmatprep.mubr.bf16.mxu0 0
    %4866 = vmatmul.mubr.bf16.gmra.mrb[0].mxu0 %v4780
    %v4867 = vpop.f32.mrb[0].mxu0
    %v4868 = vadd.f32 0.0, %v4867
    %v4869 = vpop.f32.mrb[0].mxu0
    %v4870 = vpop.f32.mrb[0].mxu0
    %v4871 = vadd.f32 0.0, %v4870
    %v4872 = vpop.f32.mrb[0].mxu0
    %4873 = vmatprep.mubr.bf16.mxu0 0
    %4874 = vmatmul.mubr.bf16.gmra.mrb[0].mxu0 %v4783
    %v4875 = vpop.f32.mrb[0].mxu0
    %v4876 = vadd.f32 0.0, %v4875
    %v4877 = vpop.f32.mrb[0].mxu0
    %v4878 = vpop.f32.mrb[0].mxu0
    %v4879 = vadd.f32 0.0, %v4878
    %v4880 = vpop.f32.mrb[0].mxu0
    %4881 = vdwg.mxu0
    %v4882 = vadd.f32 %v4708, %v4820
    %v4883 = vadd.f32 %v4709, %v4823
    %v4884 = vadd.f32 %v4710, %v4828
    %v4885 = vadd.f32 %v4711, %v4831
    %v4886 = vadd.f32 %v4712, %v4836
    %v4887 = vadd.f32 %v4713, %v4839
    %v4888 = vadd.f32 %v4714, %v4844
    %v4889 = vadd.f32 %v4715, %v4847
    %v4890 = vadd.f32 %v4716, %v4852
    %v4891 = vadd.f32 %v4717, %v4855
    %v4892 = vadd.f32 %v4718, %v4860
    %v4893 = vadd.f32 %v4719, %v4863
    %v4894 = vadd.f32 %v4720, %v4868
    %v4895 = vadd.f32 %v4721, %v4871
    %v4896 = vadd.f32 %v4722, %v4876
    %v4897 = vadd.f32 %v4723, %v4879
    %v4898 = vrot.slane %v3925, 2
    %v4899 = vrot.slane %v3926, 2
    %v4900 = vsel %vm1590, %v4898, %v4899
    %v4901 = vrot.slane %v3945, 2
    %v4902 = vrot.slane %v3946, 2
    %v4903 = vsel %vm1590, %v4901, %v4902
    %v4906 = vpack.c.bf16 %v4344, %v4341
    %v4907 = vpack.c.bf16 %v4350, %v4347
    %v4908 = vpack.c.bf16 %v4356, %v4353
    %v4909 = vpack.c.bf16 %v4900, %v4359
    %v4910 = vpack.c.bf16 %v4368, %v4365
    %v4911 = vpack.c.bf16 %v4374, %v4371
    %v4912 = vpack.c.bf16 %v4380, %v4377
    %v4913 = vpack.c.bf16 %v4903, %v4383
    %s4914 = scalar_lea.vmem %s5, 80
    %v4915 = vld [vmem:[%s4914] sm:$0xf]
    %v4916 = vld [vmem:[%s4914 + $0x4] sm:$0xf]
    %v4917 = vld [vmem:[%s4914 + $0x8] sm:$0xf]
    %v4918 = vld [vmem:[%s4914 + $0xc] sm:$0xf]
    %v4923 = vunpack.c.l.b16 %v4915
    %v4924 = vunpack.c.l.b16 %v4916
    %v4925 = vunpack.c.l.b16 %v4917
    %v4926 = vunpack.c.l.b16 %v4918
    %v4927 = vpack.c.b16 %v4924, %v4923
    %v4928 = vpack.c.b16 %v4926, %v4925
    %v4932 = vsel %vm3850, %v4906, 0
    %v4935 = vsel %vm3850, %v4907, 0
    %v4938 = vsel %vm3850, %v4908, 0
    %v4941 = vsel %vm3850, %v4909, 0
    %v4944 = vsel %vm3850, %v4910, 0
    %v4947 = vsel %vm3850, %v4911, 0
    %v4950 = vsel %vm3850, %v4912, 0
    %v4953 = vsel %vm3850, %v4913, 0
    %4955 = vmatprep.subr.bf16.mxu0 0
    %4956 = vmatpush1.bf16.msra.mxu0 %v4927
    %4957 = vmatprep.subr.bf16.mxu0 0
    %4958 = vmatpush1.bf16.msra.mxu0 %v4928
    %4959 = vmatprep.subr.bf16.mxu0 0
    %4960 = vmatpush1.bf16.msra.mxu0 0
    %4961 = vmatprep.subr.bf16.mxu0 0
    %4962 = vmatpush1.bf16.msra.mxu0 0
    %4963 = vmatprep.subr.bf16.mxu0 0
    %4964 = vmatpush1.bf16.msra.mxu0 0
    %4965 = vmatprep.subr.bf16.mxu0 0
    %4966 = vmatpush1.bf16.msra.mxu0 0
    %4967 = vmatprep.subr.bf16.mxu0 0
    %4968 = vmatpush1.bf16.msra.mxu0 0
    %4969 = vmatprep.subr.bf16.mxu0 0
    %4970 = vmatpush1.bf16.msra.mxu0 0
    %4971 = vmatprep.subr.bf16.mxu0 0
    %4972 = vmatpush1.bf16.msra.mxu0 0
    %4973 = vmatprep.subr.bf16.mxu0 0
    %4974 = vmatpush1.bf16.msra.mxu0 0
    %4975 = vmatprep.subr.bf16.mxu0 0
    %4976 = vmatpush1.bf16.msra.mxu0 0
    %4977 = vmatprep.subr.bf16.mxu0 0
    %4978 = vmatpush1.bf16.msra.mxu0 0
    %4979 = vmatprep.subr.bf16.mxu0 0
    %4980 = vmatpush1.bf16.msra.mxu0 0
    %4981 = vmatprep.subr.bf16.mxu0 0
    %4982 = vmatpush1.bf16.msra.mxu0 0
    %4983 = vmatprep.subr.bf16.mxu0 0
    %4984 = vmatpush1.bf16.msra.mxu0 0
    %4985 = vmatprep.subr.bf16.mxu0 0
    %4986 = vmatpush1.bf16.msra.mxu0 0
    %4987 = vmatprep.mubr.bf16.mxu0 0
    %4988 = vmatmul.mubr.bf16.gmra.mrb[0].mxu0 %v4932
    %v4989 = vpop.f32.mrb[0].mxu0
    %v4990 = vadd.f32 0.0, %v4989
    %v4991 = vpop.f32.mrb[0].mxu0
    %v4992 = vpop.f32.mrb[0].mxu0
    %v4993 = vadd.f32 0.0, %v4992
    %v4994 = vpop.f32.mrb[0].mxu0
    %4995 = vmatprep.mubr.bf16.mxu0 0
    %4996 = vmatmul.mubr.bf16.gmra.mrb[0].mxu0 %v4935
    %v4997 = vpop.f32.mrb[0].mxu0
    %v4998 = vadd.f32 0.0, %v4997
    %v4999 = vpop.f32.mrb[0].mxu0
    %v5000 = vpop.f32.mrb[0].mxu0
    %v5001 = vadd.f32 0.0, %v5000
    %v5002 = vpop.f32.mrb[0].mxu0
    %5003 = vmatprep.mubr.bf16.mxu0 0
    %5004 = vmatmul.mubr.bf16.gmra.mrb[0].mxu0 %v4938
    %v5005 = vpop.f32.mrb[0].mxu0
    %v5006 = vadd.f32 0.0, %v5005
    %v5007 = vpop.f32.mrb[0].mxu0
    %v5008 = vpop.f32.mrb[0].mxu0
    %v5009 = vadd.f32 0.0, %v5008
    %v5010 = vpop.f32.mrb[0].mxu0
    %5011 = vmatprep.mubr.bf16.mxu0 0
    %5012 = vmatmul.mubr.bf16.gmra.mrb[0].mxu0 %v4941
    %v5013 = vpop.f32.mrb[0].mxu0
    %v5014 = vadd.f32 0.0, %v5013
    %v5015 = vpop.f32.mrb[0].mxu0
    %v5016 = vpop.f32.mrb[0].mxu0
    %v5017 = vadd.f32 0.0, %v5016
    %v5018 = vpop.f32.mrb[0].mxu0
    %5019 = vmatprep.mubr.bf16.mxu0 0
    %5020 = vmatmul.mubr.bf16.gmra.mrb[0].mxu0 %v4944
    %v5021 = vpop.f32.mrb[0].mxu0
    %v5022 = vadd.f32 0.0, %v5021
    %v5023 = vpop.f32.mrb[0].mxu0
    %v5024 = vpop.f32.mrb[0].mxu0
    %v5025 = vadd.f32 0.0, %v5024
    %v5026 = vpop.f32.mrb[0].mxu0
    %5027 = vmatprep.mubr.bf16.mxu0 0
    %5028 = vmatmul.mubr.bf16.gmra.mrb[0].mxu0 %v4947
    %v5029 = vpop.f32.mrb[0].mxu0
    %v5030 = vadd.f32 0.0, %v5029
    %v5031 = vpop.f32.mrb[0].mxu0
    %v5032 = vpop.f32.mrb[0].mxu0
    %v5033 = vadd.f32 0.0, %v5032
    %v5034 = vpop.f32.mrb[0].mxu0
    %5035 = vmatprep.mubr.bf16.mxu0 0
    %5036 = vmatmul.mubr.bf16.gmra.mrb[0].mxu0 %v4950
    %v5037 = vpop.f32.mrb[0].mxu0
    %v5038 = vadd.f32 0.0, %v5037
    %v5039 = vpop.f32.mrb[0].mxu0
    %v5040 = vpop.f32.mrb[0].mxu0
    %v5041 = vadd.f32 0.0, %v5040
    %v5042 = vpop.f32.mrb[0].mxu0
    %5043 = vmatprep.mubr.bf16.mxu0 0
    %5044 = vmatmul.mubr.bf16.gmra.mrb[0].mxu0 %v4953
    %v5045 = vpop.f32.mrb[0].mxu0
    %v5046 = vadd.f32 0.0, %v5045
    %v5047 = vpop.f32.mrb[0].mxu0
    %v5048 = vpop.f32.mrb[0].mxu0
    %v5049 = vadd.f32 0.0, %v5048
    %v5050 = vpop.f32.mrb[0].mxu0
    %5051 = vdwg.mxu0
    %v5052 = vadd.f32 %v4882, %v4990
    %v5053 = vadd.f32 %v4883, %v4993
    %v5054 = vadd.f32 %v4884, %v4998
    %v5055 = vadd.f32 %v4885, %v5001
    %v5056 = vadd.f32 %v4886, %v5006
    %v5057 = vadd.f32 %v4887, %v5009
    %v5058 = vadd.f32 %v4888, %v5014
    %v5059 = vadd.f32 %v4889, %v5017
    %v5060 = vadd.f32 %v4890, %v5022
    %v5061 = vadd.f32 %v4891, %v5025
    %v5062 = vadd.f32 %v4892, %v5030
    %v5063 = vadd.f32 %v4893, %v5033
    %v5064 = vadd.f32 %v4894, %v5038
    %v5065 = vadd.f32 %v4895, %v5041
    %v5066 = vadd.f32 %v4896, %v5046
    %v5067 = vadd.f32 %v4897, %v5049
    %v5068 = vpack.c.bf16 %v3927, %v3925
    %v5069 = vpack.c.bf16 %v3947, %v3945
    %s5070 = scalar_lea.vmem %s5, 96
    %v5071 = vld [vmem:[%s5070] sm:$0xf]
    %v5072 = vld [vmem:[%s5070 + $0x4] sm:$0xf]
    %v5073 = vld [vmem:[%s5070 + $0x8] sm:$0xf]
    %v5074 = vld [vmem:[%s5070 + $0xc] sm:$0xf]
    %v5079 = vunpack.c.l.b16 %v5071
    %v5080 = vunpack.c.l.b16 %v5072
    %v5081 = vunpack.c.l.b16 %v5073
    %v5082 = vunpack.c.l.b16 %v5074
    %v5083 = vpack.c.b16 %v5080, %v5079
    %v5084 = vpack.c.b16 %v5082, %v5081
    %v5088 = vsel %vm3850, %v5068, 0
    %v5091 = vsel %vm3850, %v5069, 0
    %5093 = vmatprep.subr.bf16.mxu0 0
    %5094 = vmatpush1.bf16.msra.mxu0 %v5083
    %5095 = vmatprep.subr.bf16.mxu0 0
    %5096 = vmatpush1.bf16.msra.mxu0 %v5084
    %5097 = vmatprep.subr.bf16.mxu0 0
    %5098 = vmatpush1.bf16.msra.mxu0 0
    %5099 = vmatprep.subr.bf16.mxu0 0
    %5100 = vmatpush1.bf16.msra.mxu0 0
    %5101 = vmatprep.subr.bf16.mxu0 0
    %5102 = vmatpush1.bf16.msra.mxu0 0
    %5103 = vmatprep.subr.bf16.mxu0 0
    %5104 = vmatpush1.bf16.msra.mxu0 0
    %5105 = vmatprep.subr.bf16.mxu0 0
    %5106 = vmatpush1.bf16.msra.mxu0 0
    %5107 = vmatprep.subr.bf16.mxu0 0
    %5108 = vmatpush1.bf16.msra.mxu0 0
    %5109 = vmatprep.subr.bf16.mxu0 0
    %5110 = vmatpush1.bf16.msra.mxu0 0
    %5111 = vmatprep.subr.bf16.mxu0 0
    %5112 = vmatpush1.bf16.msra.mxu0 0
    %5113 = vmatprep.subr.bf16.mxu0 0
    %5114 = vmatpush1.bf16.msra.mxu0 0
    %5115 = vmatprep.subr.bf16.mxu0 0
    %5116 = vmatpush1.bf16.msra.mxu0 0
    %5117 = vmatprep.subr.bf16.mxu0 0
    %5118 = vmatpush1.bf16.msra.mxu0 0
    %5119 = vmatprep.subr.bf16.mxu0 0
    %5120 = vmatpush1.bf16.msra.mxu0 0
    %5121 = vmatprep.subr.bf16.mxu0 0
    %5122 = vmatpush1.bf16.msra.mxu0 0
    %5123 = vmatprep.subr.bf16.mxu0 0
    %5124 = vmatpush1.bf16.msra.mxu0 0
    %5125 = vmatprep.mubr.bf16.mxu0 0
    %5126 = vmatmul.mubr.bf16.gmra.mrb[0].mxu0 %v4219
    %v5127 = vpop.f32.mrb[0].mxu0
    %v5128 = vadd.f32 0.0, %v5127
    %v5129 = vpop.f32.mrb[0].mxu0
    %v5130 = vpop.f32.mrb[0].mxu0
    %v5131 = vadd.f32 0.0, %v5130
    %v5132 = vpop.f32.mrb[0].mxu0
    %5133 = vmatprep.mubr.bf16.mxu0 0
    %5134 = vmatmul.mubr.bf16.gmra.mrb[0].mxu0 %v4222
    %v5135 = vpop.f32.mrb[0].mxu0
    %v5136 = vadd.f32 0.0, %v5135
    %v5137 = vpop.f32.mrb[0].mxu0
    %v5138 = vpop.f32.mrb[0].mxu0
    %v5139 = vadd.f32 0.0, %v5138
    %v5140 = vpop.f32.mrb[0].mxu0
    %5141 = vmatprep.mubr.bf16.mxu0 0
    %5142 = vmatmul.mubr.bf16.gmra.mrb[0].mxu0 %v4225
    %v5143 = vpop.f32.mrb[0].mxu0
    %v5144 = vadd.f32 0.0, %v5143
    %v5145 = vpop.f32.mrb[0].mxu0
    %v5146 = vpop.f32.mrb[0].mxu0
    %v5147 = vadd.f32 0.0, %v5146
    %v5148 = vpop.f32.mrb[0].mxu0
    %5149 = vmatprep.mubr.bf16.mxu0 0
    %5150 = vmatmul.mubr.bf16.gmra.mrb[0].mxu0 %v5088
    %v5151 = vpop.f32.mrb[0].mxu0
    %v5152 = vadd.f32 0.0, %v5151
    %v5153 = vpop.f32.mrb[0].mxu0
    %v5154 = vpop.f32.mrb[0].mxu0
    %v5155 = vadd.f32 0.0, %v5154
    %v5156 = vpop.f32.mrb[0].mxu0
    %5157 = vmatprep.mubr.bf16.mxu0 0
    %5158 = vmatmul.mubr.bf16.gmra.mrb[0].mxu0 %v4231
    %v5159 = vpop.f32.mrb[0].mxu0
    %v5160 = vadd.f32 0.0, %v5159
    %v5161 = vpop.f32.mrb[0].mxu0
    %v5162 = vpop.f32.mrb[0].mxu0
    %v5163 = vadd.f32 0.0, %v5162
    %v5164 = vpop.f32.mrb[0].mxu0
    %5165 = vmatprep.mubr.bf16.mxu0 0
    %5166 = vmatmul.mubr.bf16.gmra.mrb[0].mxu0 %v4234
    %v5167 = vpop.f32.mrb[0].mxu0
    %v5168 = vadd.f32 0.0, %v5167
    %v5169 = vpop.f32.mrb[0].mxu0
    %v5170 = vpop.f32.mrb[0].mxu0
    %v5171 = vadd.f32 0.0, %v5170
    %v5172 = vpop.f32.mrb[0].mxu0
    %5173 = vmatprep.mubr.bf16.mxu0 0
    %5174 = vmatmul.mubr.bf16.gmra.mrb[0].mxu0 %v4237
    %v5175 = vpop.f32.mrb[0].mxu0
    %v5176 = vadd.f32 0.0, %v5175
    %v5177 = vpop.f32.mrb[0].mxu0
    %v5178 = vpop.f32.mrb[0].mxu0
    %v5179 = vadd.f32 0.0, %v5178
    %v5180 = vpop.f32.mrb[0].mxu0
    %5181 = vmatprep.mubr.bf16.mxu0 0
    %5182 = vmatmul.mubr.bf16.gmra.mrb[0].mxu0 %v5091
    %v5183 = vpop.f32.mrb[0].mxu0
    %v5184 = vadd.f32 0.0, %v5183
    %v5185 = vpop.f32.mrb[0].mxu0
    %v5186 = vpop.f32.mrb[0].mxu0
    %v5187 = vadd.f32 0.0, %v5186
    %v5188 = vpop.f32.mrb[0].mxu0
    %5189 = vdwg.mxu0
    %v5190 = vadd.f32 %v5052, %v5128
    %v5191 = vadd.f32 %v5053, %v5131
    %v5192 = vadd.f32 %v5054, %v5136
    %v5193 = vadd.f32 %v5055, %v5139
    %v5194 = vadd.f32 %v5056, %v5144
    %v5195 = vadd.f32 %v5057, %v5147
    %v5196 = vadd.f32 %v5058, %v5152
    %v5197 = vadd.f32 %v5059, %v5155
    %v5198 = vadd.f32 %v5060, %v5160
    %v5199 = vadd.f32 %v5061, %v5163
    %v5200 = vadd.f32 %v5062, %v5168
    %v5201 = vadd.f32 %v5063, %v5171
    %v5202 = vadd.f32 %v5064, %v5176
    %v5203 = vadd.f32 %v5065, %v5179
    %v5204 = vadd.f32 %v5066, %v5184
    %v5205 = vadd.f32 %v5067, %v5187
    %v5210 = vrot.slane %v3927, 1
    %v5211 = vrot.slane %v3928, 1
    %v5212 = vsel %vm130, %v5210, %v5211
    %v5213 = vrot.slane %v3947, 1
    %v5214 = vrot.slane %v3948, 1
    %v5215 = vsel %vm130, %v5213, %v5214
    %v5218 = vpack.c.bf16 %v5212, %v4730
    %v5219 = vpack.c.bf16 %v5215, %v4733
    %s5220 = scalar_lea.vmem %s5, 112
    %v5221 = vld [vmem:[%s5220] sm:$0xf]
    %v5222 = vld [vmem:[%s5220 + $0x4] sm:$0xf]
    %v5223 = vld [vmem:[%s5220 + $0x8] sm:$0xf]
    %v5224 = vld [vmem:[%s5220 + $0xc] sm:$0xf]
    %v5229 = vunpack.c.l.b16 %v5221
    %v5230 = vunpack.c.l.b16 %v5222
    %v5231 = vunpack.c.l.b16 %v5223
    %v5232 = vunpack.c.l.b16 %v5224
    %v5233 = vpack.c.b16 %v5230, %v5229
    %v5234 = vpack.c.b16 %v5232, %v5231
    %v5238 = vsel %vm3850, %v5218, 0
    %v5241 = vsel %vm3850, %v5219, 0
    %5243 = vmatprep.subr.bf16.mxu0 0
    %5244 = vmatpush1.bf16.msra.mxu0 %v5233
    %5245 = vmatprep.subr.bf16.mxu0 0
    %5246 = vmatpush1.bf16.msra.mxu0 %v5234
    %5247 = vmatprep.subr.bf16.mxu0 0
    %5248 = vmatpush1.bf16.msra.mxu0 0
    %5249 = vmatprep.subr.bf16.mxu0 0
    %5250 = vmatpush1.bf16.msra.mxu0 0
    %5251 = vmatprep.subr.bf16.mxu0 0
    %5252 = vmatpush1.bf16.msra.mxu0 0
    %5253 = vmatprep.subr.bf16.mxu0 0
    %5254 = vmatpush1.bf16.msra.mxu0 0
    %5255 = vmatprep.subr.bf16.mxu0 0
    %5256 = vmatpush1.bf16.msra.mxu0 0
    %5257 = vmatprep.subr.bf16.mxu0 0
    %5258 = vmatpush1.bf16.msra.mxu0 0
    %5259 = vmatprep.subr.bf16.mxu0 0
    %5260 = vmatpush1.bf16.msra.mxu0 0
    %5261 = vmatprep.subr.bf16.mxu0 0
    %5262 = vmatpush1.bf16.msra.mxu0 0
    %5263 = vmatprep.subr.bf16.mxu0 0
    %5264 = vmatpush1.bf16.msra.mxu0 0
    %5265 = vmatprep.subr.bf16.mxu0 0
    %5266 = vmatpush1.bf16.msra.mxu0 0
    %5267 = vmatprep.subr.bf16.mxu0 0
    %5268 = vmatpush1.bf16.msra.mxu0 0
    %5269 = vmatprep.subr.bf16.mxu0 0
    %5270 = vmatpush1.bf16.msra.mxu0 0
    %5271 = vmatprep.subr.bf16.mxu0 0
    %5272 = vmatpush1.bf16.msra.mxu0 0
    %5273 = vmatprep.subr.bf16.mxu0 0
    %5274 = vmatpush1.bf16.msra.mxu0 0
    %5275 = vmatprep.mubr.bf16.mxu0 0
    %5276 = vmatmul.mubr.bf16.gmra.mrb[0].mxu0 %v4086
    %v5277 = vpop.f32.mrb[0].mxu0
    %v5278 = vadd.f32 0.0, %v5277
    %v5279 = vpop.f32.mrb[0].mxu0
    %v5280 = vpop.f32.mrb[0].mxu0
    %v5281 = vadd.f32 0.0, %v5280
    %v5282 = vpop.f32.mrb[0].mxu0
    %5283 = vmatprep.mubr.bf16.mxu0 0
    %5284 = vmatmul.mubr.bf16.gmra.mrb[0].mxu0 %v4089
    %v5285 = vpop.f32.mrb[0].mxu0
    %v5286 = vadd.f32 0.0, %v5285
    %v5287 = vpop.f32.mrb[0].mxu0
    %v5288 = vpop.f32.mrb[0].mxu0
    %v5289 = vadd.f32 0.0, %v5288
    %v5290 = vpop.f32.mrb[0].mxu0
    %5291 = vmatprep.mubr.bf16.mxu0 0
    %5292 = vmatmul.mubr.bf16.gmra.mrb[0].mxu0 %v4092
    %v5293 = vpop.f32.mrb[0].mxu0
    %v5294 = vadd.f32 0.0, %v5293
    %v5295 = vpop.f32.mrb[0].mxu0
    %v5296 = vpop.f32.mrb[0].mxu0
    %v5297 = vadd.f32 0.0, %v5296
    %v5298 = vpop.f32.mrb[0].mxu0
    %5299 = vmatprep.mubr.bf16.mxu0 0
    %5300 = vmatmul.mubr.bf16.gmra.mrb[0].mxu0 %v5238
    %v5301 = vpop.f32.mrb[0].mxu0
    %v5302 = vadd.f32 0.0, %v5301
    %v5303 = vpop.f32.mrb[0].mxu0
    %v5304 = vpop.f32.mrb[0].mxu0
    %v5305 = vadd.f32 0.0, %v5304
    %v5306 = vpop.f32.mrb[0].mxu0
    %5307 = vmatprep.mubr.bf16.mxu0 0
    %5308 = vmatmul.mubr.bf16.gmra.mrb[0].mxu0 %v4098
    %v5309 = vpop.f32.mrb[0].mxu0
    %v5310 = vadd.f32 0.0, %v5309
    %v5311 = vpop.f32.mrb[0].mxu0
    %v5312 = vpop.f32.mrb[0].mxu0
    %v5313 = vadd.f32 0.0, %v5312
    %v5314 = vpop.f32.mrb[0].mxu0
    %5315 = vmatprep.mubr.bf16.mxu0 0
    %5316 = vmatmul.mubr.bf16.gmra.mrb[0].mxu0 %v4101
    %v5317 = vpop.f32.mrb[0].mxu0
    %v5318 = vadd.f32 0.0, %v5317
    %v5319 = vpop.f32.mrb[0].mxu0
    %v5320 = vpop.f32.mrb[0].mxu0
    %v5321 = vadd.f32 0.0, %v5320
    %v5322 = vpop.f32.mrb[0].mxu0
    %5323 = vmatprep.mubr.bf16.mxu0 0
    %5324 = vmatmul.mubr.bf16.gmra.mrb[0].mxu0 %v4104
    %v5325 = vpop.f32.mrb[0].mxu0
    %v5326 = vadd.f32 0.0, %v5325
    %v5327 = vpop.f32.mrb[0].mxu0
    %v5328 = vpop.f32.mrb[0].mxu0
    %v5329 = vadd.f32 0.0, %v5328
    %v5330 = vpop.f32.mrb[0].mxu0
    %5331 = vmatprep.mubr.bf16.mxu0 0
    %5332 = vmatmul.mubr.bf16.gmra.mrb[0].mxu0 %v5241
    %v5333 = vpop.f32.mrb[0].mxu0
    %v5334 = vadd.f32 0.0, %v5333
    %v5335 = vpop.f32.mrb[0].mxu0
    %v5336 = vpop.f32.mrb[0].mxu0
    %v5337 = vadd.f32 0.0, %v5336
    %v5338 = vpop.f32.mrb[0].mxu0
    %5339 = vdwg.mxu0
    %v5340 = vadd.f32 %v5190, %v5278
    %v5341 = vadd.f32 %v5191, %v5281
    %v5342 = vadd.f32 %v5192, %v5286
    %v5343 = vadd.f32 %v5193, %v5289
    %v5344 = vadd.f32 %v5194, %v5294
    %v5345 = vadd.f32 %v5195, %v5297
    %v5346 = vadd.f32 %v5196, %v5302
    %v5347 = vadd.f32 %v5197, %v5305
    %v5348 = vadd.f32 %v5198, %v5310
    %v5349 = vadd.f32 %v5199, %v5313
    %v5350 = vadd.f32 %v5200, %v5318
    %v5351 = vadd.f32 %v5201, %v5321
    %v5352 = vadd.f32 %v5202, %v5326
    %v5353 = vadd.f32 %v5203, %v5329
    %v5354 = vadd.f32 %v5204, %v5334
    %v5355 = vadd.f32 %v5205, %v5337
    %v5356 = vrot.slane %v3927, 2
    %v5357 = vrot.slane %v3928, 2
    %v5358 = vsel %vm1590, %v5356, %v5357
    %v5359 = vrot.slane %v3947, 2
    %v5360 = vrot.slane %v3948, 2
    %v5361 = vsel %vm1590, %v5359, %v5360
    %v5364 = vpack.c.bf16 %v5358, %v4900
    %v5365 = vpack.c.bf16 %v5361, %v4903
    %s5366 = scalar_lea.vmem %s5, 128
    %v5367 = vld [vmem:[%s5366] sm:$0xf]
    %v5368 = vld [vmem:[%s5366 + $0x4] sm:$0xf]
    %v5369 = vld [vmem:[%s5366 + $0x8] sm:$0xf]
    %v5370 = vld [vmem:[%s5366 + $0xc] sm:$0xf]
    %v5375 = vunpack.c.l.b16 %v5367
    %v5376 = vunpack.c.l.b16 %v5368
    %v5377 = vunpack.c.l.b16 %v5369
    %v5378 = vunpack.c.l.b16 %v5370
    %v5379 = vpack.c.b16 %v5376, %v5375
    %v5380 = vpack.c.b16 %v5378, %v5377
    %v5384 = vsel %vm3850, %v5364, 0
    %v5387 = vsel %vm3850, %v5365, 0
    %5389 = vmatprep.subr.bf16.mxu0 0
    %5390 = vmatpush1.bf16.msra.mxu0 %v5379
    %5391 = vmatprep.subr.bf16.mxu0 0
    %5392 = vmatpush1.bf16.msra.mxu0 %v5380
    %5393 = vmatprep.subr.bf16.mxu0 0
    %5394 = vmatpush1.bf16.msra.mxu0 0
    %5395 = vmatprep.subr.bf16.mxu0 0
    %5396 = vmatpush1.bf16.msra.mxu0 0
    %5397 = vmatprep.subr.bf16.mxu0 0
    %5398 = vmatpush1.bf16.msra.mxu0 0
    %5399 = vmatprep.subr.bf16.mxu0 0
    %5400 = vmatpush1.bf16.msra.mxu0 0
    %5401 = vmatprep.subr.bf16.mxu0 0
    %5402 = vmatpush1.bf16.msra.mxu0 0
    %5403 = vmatprep.subr.bf16.mxu0 0
    %5404 = vmatpush1.bf16.msra.mxu0 0
    %5405 = vmatprep.subr.bf16.mxu0 0
    %5406 = vmatpush1.bf16.msra.mxu0 0
    %5407 = vmatprep.subr.bf16.mxu0 0
    %5408 = vmatpush1.bf16.msra.mxu0 0
    %5409 = vmatprep.subr.bf16.mxu0 0
    %5410 = vmatpush1.bf16.msra.mxu0 0
    %5411 = vmatprep.subr.bf16.mxu0 0
    %5412 = vmatpush1.bf16.msra.mxu0 0
    %5413 = vmatprep.subr.bf16.mxu0 0
    %5414 = vmatpush1.bf16.msra.mxu0 0
    %5415 = vmatprep.subr.bf16.mxu0 0
    %5416 = vmatpush1.bf16.msra.mxu0 0
    %5417 = vmatprep.subr.bf16.mxu0 0
    %5418 = vmatpush1.bf16.msra.mxu0 0
    %5419 = vmatprep.subr.bf16.mxu0 0
    %5420 = vmatpush1.bf16.msra.mxu0 0
    %5421 = vmatprep.mubr.bf16.mxu0 0
    %5422 = vmatmul.mubr.bf16.gmra.mrb[0].mxu0 %v4429
    %v5423 = vpop.f32.mrb[0].mxu0
    %v5424 = vadd.f32 0.0, %v5423
    %v5425 = vpop.f32.mrb[0].mxu0
    %v5426 = vpop.f32.mrb[0].mxu0
    %v5427 = vadd.f32 0.0, %v5426
    %v5428 = vpop.f32.mrb[0].mxu0
    %5429 = vmatprep.mubr.bf16.mxu0 0
    %5430 = vmatmul.mubr.bf16.gmra.mrb[0].mxu0 %v4432
    %v5431 = vpop.f32.mrb[0].mxu0
    %v5432 = vadd.f32 0.0, %v5431
    %v5433 = vpop.f32.mrb[0].mxu0
    %v5434 = vpop.f32.mrb[0].mxu0
    %v5435 = vadd.f32 0.0, %v5434
    %v5436 = vpop.f32.mrb[0].mxu0
    %5437 = vmatprep.mubr.bf16.mxu0 0
    %5438 = vmatmul.mubr.bf16.gmra.mrb[0].mxu0 %v4435
    %v5439 = vpop.f32.mrb[0].mxu0
    %v5440 = vadd.f32 0.0, %v5439
    %v5441 = vpop.f32.mrb[0].mxu0
    %v5442 = vpop.f32.mrb[0].mxu0
    %v5443 = vadd.f32 0.0, %v5442
    %v5444 = vpop.f32.mrb[0].mxu0
    %5445 = vmatprep.mubr.bf16.mxu0 0
    %5446 = vmatmul.mubr.bf16.gmra.mrb[0].mxu0 %v5384
    %v5447 = vpop.f32.mrb[0].mxu0
    %v5448 = vadd.f32 0.0, %v5447
    %v5449 = vpop.f32.mrb[0].mxu0
    %v5450 = vpop.f32.mrb[0].mxu0
    %v5451 = vadd.f32 0.0, %v5450
    %v5452 = vpop.f32.mrb[0].mxu0
    %5453 = vmatprep.mubr.bf16.mxu0 0
    %5454 = vmatmul.mubr.bf16.gmra.mrb[0].mxu0 %v4441
    %v5455 = vpop.f32.mrb[0].mxu0
    %v5456 = vadd.f32 0.0, %v5455
    %v5457 = vpop.f32.mrb[0].mxu0
    %v5458 = vpop.f32.mrb[0].mxu0
    %v5459 = vadd.f32 0.0, %v5458
    %v5460 = vpop.f32.mrb[0].mxu0
    %5461 = vmatprep.mubr.bf16.mxu0 0
    %5462 = vmatmul.mubr.bf16.gmra.mrb[0].mxu0 %v4444
    %v5463 = vpop.f32.mrb[0].mxu0
    %v5464 = vadd.f32 0.0, %v5463
    %v5465 = vpop.f32.mrb[0].mxu0
    %v5466 = vpop.f32.mrb[0].mxu0
    %v5467 = vadd.f32 0.0, %v5466
    %v5468 = vpop.f32.mrb[0].mxu0
    %5469 = vmatprep.mubr.bf16.mxu0 0
    %5470 = vmatmul.mubr.bf16.gmra.mrb[0].mxu0 %v4447
    %v5471 = vpop.f32.mrb[0].mxu0
    %v5472 = vadd.f32 0.0, %v5471
    %v5473 = vpop.f32.mrb[0].mxu0
    %v5474 = vpop.f32.mrb[0].mxu0
    %v5475 = vadd.f32 0.0, %v5474
    %v5476 = vpop.f32.mrb[0].mxu0
    %5477 = vmatprep.mubr.bf16.mxu0 0
    %5478 = vmatmul.mubr.bf16.gmra.mrb[0].mxu0 %v5387
    %v5479 = vpop.f32.mrb[0].mxu0
    %v5480 = vadd.f32 0.0, %v5479
    %v5481 = vpop.f32.mrb[0].mxu0
    %v5482 = vpop.f32.mrb[0].mxu0
    %v5483 = vadd.f32 0.0, %v5482
    %v5484 = vpop.f32.mrb[0].mxu0
    %5485 = vdwg.mxu0
    %v5486 = vadd.f32 %v5340, %v5424
    %v5487 = vadd.f32 %v5341, %v5427
    %v5488 = vadd.f32 %v5342, %v5432
    %v5489 = vadd.f32 %v5343, %v5435
    %v5490 = vadd.f32 %v5344, %v5440
    %v5491 = vadd.f32 %v5345, %v5443
    %v5492 = vadd.f32 %v5346, %v5448
    %v5493 = vadd.f32 %v5347, %v5451
    %v5494 = vadd.f32 %v5348, %v5456
    %v5495 = vadd.f32 %v5349, %v5459
    %v5496 = vadd.f32 %v5350, %v5464
    %v5497 = vadd.f32 %v5351, %v5467
    %v5498 = vadd.f32 %v5352, %v5472
    %v5499 = vadd.f32 %v5353, %v5475
    %v5500 = vadd.f32 %v5354, %v5480
    %v5501 = vadd.f32 %v5355, %v5483
    %v5502 = vld [vmem:[%s6] sm:$0x1]
    %v5504 = vlaneseq
    %v5505 = vshrl.u32 %v5504, 7
    %v5506 = vsub.s32 0, %v5505
    %v5507 = vrot.slane %v5502, %v5506
    %v5509 = vadd.f32 %v5486, %v5507
    %v5510 = vadd.f32 %v5487, %v5507
    %v5511 = vadd.f32 %v5488, %v5507
    %v5512 = vadd.f32 %v5489, %v5507
    %v5513 = vadd.f32 %v5490, %v5507
    %v5514 = vadd.f32 %v5491, %v5507
    %v5515 = vadd.f32 %v5492, %v5507
    %v5516 = vadd.f32 %v5493, %v5507
    %v5517 = vadd.f32 %v5494, %v5507
    %v5518 = vadd.f32 %v5495, %v5507
    %v5519 = vadd.f32 %v5496, %v5507
    %v5520 = vadd.f32 %v5497, %v5507
    %v5521 = vadd.f32 %v5498, %v5507
    %v5522 = vadd.f32 %v5499, %v5507
    %v5523 = vadd.f32 %v5500, %v5507
    %v5524 = vadd.f32 %v5501, %v5507
    %v5525 = vmax.f32 %v5509, 0.0
    %v5526 = vmax.f32 %v5510, 0.0
    %v5527 = vmax.f32 %v5511, 0.0
    %v5528 = vmax.f32 %v5512, 0.0
    %v5529 = vmax.f32 %v5513, 0.0
    %v5530 = vmax.f32 %v5514, 0.0
    %v5531 = vmax.f32 %v5515, 0.0
    %v5532 = vmax.f32 %v5516, 0.0
    %v5533 = vmax.f32 %v5517, 0.0
    %v5534 = vmax.f32 %v5518, 0.0
    %v5535 = vmax.f32 %v5519, 0.0
    %v5536 = vmax.f32 %v5520, 0.0
    %v5537 = vmax.f32 %v5521, 0.0
    %v5538 = vmax.f32 %v5522, 0.0
    %v5539 = vmax.f32 %v5523, 0.0
    %v5540 = vmax.f32 %v5524, 0.0
    %v5543 = vrot.slane %v5525, 1
    %v5544 = vrot.slane %v5533, 1
    %v5547 = vmax.f32 %v5525, %v5543
    %v5548 = vmax.f32 %v5533, %v5544
    %v5551 = vrot.slane %v5526, 1
    %v5552 = vrot.slane %v5534, 1
    %v5555 = vmax.f32 %v5526, %v5551
    %v5556 = vmax.f32 %v5534, %v5552
    %v5557 = vmax.f32 %v5547, %v5555
    %v5558 = vmax.f32 %v5548, %v5556
    %v5559 = vpack.c.bf16 %v5557, %v5557
    %v5560 = vpack.c.bf16 %v5558, %v5558
    %v5561 = vld [vmem:[%s7] sm:$0xff]
    %v5562 = vld [vmem:[%s7 + $0x8] sm:$0xff]
    %v5563 = vld [vmem:[%s7 + $0x10] sm:$0xff]
    %v5564 = vld [vmem:[%s7 + $0x18] sm:$0xff]
    %v5565 = vld [vmem:[%s7 + $0x20] sm:$0xff]
    %v5566 = vld [vmem:[%s7 + $0x28] sm:$0xff]
    %v5567 = vld [vmem:[%s7 + $0x30] sm:$0xff]
    %v5568 = vld [vmem:[%s7 + $0x38] sm:$0xff]
    %s5569 = scalar_lea.vmem %s7, 64
    %v5570 = vld [vmem:[%s5569] sm:$0xff]
    %v5571 = vld [vmem:[%s5569 + $0x8] sm:$0xff]
    %v5572 = vld [vmem:[%s5569 + $0x10] sm:$0xff]
    %v5573 = vld [vmem:[%s5569 + $0x18] sm:$0xff]
    %v5574 = vld [vmem:[%s5569 + $0x20] sm:$0xff]
    %v5575 = vld [vmem:[%s5569 + $0x28] sm:$0xff]
    %v5576 = vld [vmem:[%s5569 + $0x30] sm:$0xff]
    %v5577 = vld [vmem:[%s5569 + $0x38] sm:$0xff]
    %v5580 = vunpack.c.l.b16 %v5559
    %v5581 = vunpack.c.l.b16 %v5560
    %v5582 = vrot.slane %v5580, 2
    %v5583 = vrot.slane %v5581, 1
    %vm5584 = vcmask 1041409
    %v5585 = vsel %vm5584, %v5583, %v5582
    %v5586 = vpack.c.b16 %v5585, %v5585
    %v5595 = vunpack.c.l.b16 %v5570
    %v5596 = vunpack.c.h.b16 %v5570
    %v5597 = vunpack.c.l.b16 %v5571
    %v5598 = vunpack.c.h.b16 %v5571
    %v5599 = vunpack.c.l.b16 %v5572
    %v5600 = vunpack.c.h.b16 %v5572
    %v5601 = vunpack.c.l.b16 %v5573
    %v5602 = vunpack.c.h.b16 %v5573
    %v5603 = vunpack.c.l.b16 %v5574
    %v5604 = vunpack.c.h.b16 %v5574
    %v5605 = vunpack.c.l.b16 %v5575
    %v5606 = vunpack.c.h.b16 %v5575
    %v5607 = vunpack.c.l.b16 %v5576
    %v5608 = vunpack.c.h.b16 %v5576
    %v5609 = vunpack.c.l.b16 %v5577
    %v5610 = vunpack.c.h.b16 %v5577
    %v5611 = vpack.c.b16 %v5597, %v5595
    %v5612 = vpack.c.b16 %v5598, %v5596
    %v5613 = vpack.c.b16 %v5601, %v5599
    %v5614 = vpack.c.b16 %v5602, %v5600
    %v5615 = vpack.c.b16 %v5605, %v5603
    %v5616 = vpack.c.b16 %v5606, %v5604
    %v5617 = vpack.c.b16 %v5609, %v5607
    %v5618 = vpack.c.b16 %v5610, %v5608
    %v5628 = vsel %vm236, %v5586, 0
    %5630 = vmatprep.subr.bf16.mxu0 %v5612
    %5631 = vmatpush1.bf16.msra.mxu0 %v5611
    %5632 = vmatprep.subr.bf16.mxu0 %v5614
    %5633 = vmatpush1.bf16.msra.mxu0 %v5613
    %5634 = vmatprep.subr.bf16.mxu0 %v5616
    %5635 = vmatpush1.bf16.msra.mxu0 %v5615
    %5636 = vmatprep.subr.bf16.mxu0 %v5618
    %5637 = vmatpush1.bf16.msra.mxu0 %v5617
    %5638 = vmatprep.subr.bf16.mxu0 0
    %5639 = vmatpush1.bf16.msra.mxu0 0
    %5640 = vmatprep.subr.bf16.mxu0 0
    %5641 = vmatpush1.bf16.msra.mxu0 0
    %5642 = vmatprep.subr.bf16.mxu0 0
    %5643 = vmatpush1.bf16.msra.mxu0 0
    %5644 = vmatprep.subr.bf16.mxu0 0
    %5645 = vmatpush1.bf16.msra.mxu0 0
    %5646 = vmatprep.subr.bf16.mxu0 0
    %5647 = vmatpush1.bf16.msra.mxu0 0
    %5648 = vmatprep.subr.bf16.mxu0 0
    %5649 = vmatpush1.bf16.msra.mxu0 0
    %5650 = vmatprep.subr.bf16.mxu0 0
    %5651 = vmatpush1.bf16.msra.mxu0 0
    %5652 = vmatprep.subr.bf16.mxu0 0
    %5653 = vmatpush1.bf16.msra.mxu0 0
    %5654 = vmatprep.subr.bf16.mxu0 0
    %5655 = vmatpush1.bf16.msra.mxu0 0
    %5656 = vmatprep.subr.bf16.mxu0 0
    %5657 = vmatpush1.bf16.msra.mxu0 0
    %5658 = vmatprep.subr.bf16.mxu0 0
    %5659 = vmatpush1.bf16.msra.mxu0 0
    %5660 = vmatprep.subr.bf16.mxu0 0
    %5661 = vmatpush1.bf16.msra.mxu0 0
    %5662 = vmatprep.mubr.bf16.mxu0 0
    %5663 = vmatmul.mubr.bf16.gmra.mrb[0].mxu0 %v5628
    %v5664 = vpop.f32.mrb[0].mxu0
    %v5665 = vadd.f32 0.0, %v5664
    %v5666 = vpop.f32.mrb[0].mxu0
    %v5667 = vadd.f32 0.0, %v5666
    %v5668 = vpop.f32.mrb[0].mxu0
    %v5669 = vpop.f32.mrb[0].mxu0
    %5670 = vdwg.mxu0
    %v5671 = vrot.slane %v5581, 7
    %v5672 = vsel %vm5584, %v5671, %v5580
    %v5673 = vpack.c.b16 %v5672, %v5672
    %v5682 = vunpack.c.l.b16 %v5561
    %v5683 = vunpack.c.h.b16 %v5561
    %v5684 = vunpack.c.l.b16 %v5562
    %v5685 = vunpack.c.h.b16 %v5562
    %v5686 = vunpack.c.l.b16 %v5563
    %v5687 = vunpack.c.h.b16 %v5563
    %v5688 = vunpack.c.l.b16 %v5564
    %v5689 = vunpack.c.h.b16 %v5564
    %v5690 = vunpack.c.l.b16 %v5565
    %v5691 = vunpack.c.h.b16 %v5565
    %v5692 = vunpack.c.l.b16 %v5566
    %v5693 = vunpack.c.h.b16 %v5566
    %v5694 = vunpack.c.l.b16 %v5567
    %v5695 = vunpack.c.h.b16 %v5567
    %v5696 = vunpack.c.l.b16 %v5568
    %v5697 = vunpack.c.h.b16 %v5568
    %v5698 = vpack.c.b16 %v5684, %v5682
    %v5699 = vpack.c.b16 %v5685, %v5683
    %v5700 = vpack.c.b16 %v5688, %v5686
    %v5701 = vpack.c.b16 %v5689, %v5687
    %v5702 = vpack.c.b16 %v5692, %v5690
    %v5703 = vpack.c.b16 %v5693, %v5691
    %v5704 = vpack.c.b16 %v5696, %v5694
    %v5705 = vpack.c.b16 %v5697, %v5695
    %v5715 = vsel %vm236, %v5673, 0
    %5717 = vmatprep.subr.bf16.mxu0 %v5699
    %5718 = vmatpush1.bf16.msra.mxu0 %v5698
    %5719 = vmatprep.subr.bf16.mxu0 %v5701
    %5720 = vmatpush1.bf16.msra.mxu0 %v5700
    %5721 = vmatprep.subr.bf16.mxu0 %v5703
    %5722 = vmatpush1.bf16.msra.mxu0 %v5702
    %5723 = vmatprep.subr.bf16.mxu0 %v5705
    %5724 = vmatpush1.bf16.msra.mxu0 %v5704
    %5725 = vmatprep.subr.bf16.mxu0 0
    %5726 = vmatpush1.bf16.msra.mxu0 0
    %5727 = vmatprep.subr.bf16.mxu0 0
    %5728 = vmatpush1.bf16.msra.mxu0 0
    %5729 = vmatprep.subr.bf16.mxu0 0
    %5730 = vmatpush1.bf16.msra.mxu0 0
    %5731 = vmatprep.subr.bf16.mxu0 0
    %5732 = vmatpush1.bf16.msra.mxu0 0
    %5733 = vmatprep.subr.bf16.mxu0 0
    %5734 = vmatpush1.bf16.msra.mxu0 0
    %5735 = vmatprep.subr.bf16.mxu0 0
    %5736 = vmatpush1.bf16.msra.mxu0 0
    %5737 = vmatprep.subr.bf16.mxu0 0
    %5738 = vmatpush1.bf16.msra.mxu0 0
    %5739 = vmatprep.subr.bf16.mxu0 0
    %5740 = vmatpush1.bf16.msra.mxu0 0
    %5741 = vmatprep.subr.bf16.mxu0 0
    %5742 = vmatpush1.bf16.msra.mxu0 0
    %5743 = vmatprep.subr.bf16.mxu0 0
    %5744 = vmatpush1.bf16.msra.mxu0 0
    %5745 = vmatprep.subr.bf16.mxu0 0
    %5746 = vmatpush1.bf16.msra.mxu0 0
    %5747 = vmatprep.subr.bf16.mxu0 0
    %5748 = vmatpush1.bf16.msra.mxu0 0
    %5749 = vmatprep.mubr.bf16.mxu0 0
    %5750 = vmatmul.mubr.bf16.gmra.mrb[0].mxu0 %v5715
    %v5751 = vpop.f32.mrb[0].mxu0
    %v5752 = vadd.f32 %v5665, %v5751
    %v5753 = vpop.f32.mrb[0].mxu0
    %v5754 = vadd.f32 %v5667, %v5753
    %v5755 = vpop.f32.mrb[0].mxu0
    %v5756 = vpop.f32.mrb[0].mxu0
    %5757 = vdwg.mxu0
    %s5758 = scalar_lea.vmem %s7, 128
    %v5759 = vld [vmem:[%s5758] sm:$0xff]
    %v5760 = vld [vmem:[%s5758 + $0x8] sm:$0xff]
    %v5761 = vld [vmem:[%s5758 + $0x10] sm:$0xff]
    %v5762 = vld [vmem:[%s5758 + $0x18] sm:$0xff]
    %v5763 = vld [vmem:[%s5758 + $0x20] sm:$0xff]
    %v5764 = vld [vmem:[%s5758 + $0x28] sm:$0xff]
    %v5765 = vld [vmem:[%s5758 + $0x30] sm:$0xff]
    %v5766 = vld [vmem:[%s5758 + $0x38] sm:$0xff]
    %v5767 = vrot.slane %v5580, 4
    %v5768 = vrot.slane %v5581, 3
    %v5769 = vsel %vm5584, %v5768, %v5767
    %v5770 = vpack.c.b16 %v5769, %v5769
    %v5779 = vunpack.c.l.b16 %v5759
    %v5780 = vunpack.c.h.b16 %v5759
    %v5781 = vunpack.c.l.b16 %v5760
    %v5782 = vunpack.c.h.b16 %v5760
    %v5783 = vunpack.c.l.b16 %v5761
    %v5784 = vunpack.c.h.b16 %v5761
    %v5785 = vunpack.c.l.b16 %v5762
    %v5786 = vunpack.c.h.b16 %v5762
    %v5787 = vunpack.c.l.b16 %v5763
    %v5788 = vunpack.c.h.b16 %v5763
    %v5789 = vunpack.c.l.b16 %v5764
    %v5790 = vunpack.c.h.b16 %v5764
    %v5791 = vunpack.c.l.b16 %v5765
    %v5792 = vunpack.c.h.b16 %v5765
    %v5793 = vunpack.c.l.b16 %v5766
    %v5794 = vunpack.c.h.b16 %v5766
    %v5795 = vpack.c.b16 %v5781, %v5779
    %v5796 = vpack.c.b16 %v5782, %v5780
    %v5797 = vpack.c.b16 %v5785, %v5783
    %v5798 = vpack.c.b16 %v5786, %v5784
    %v5799 = vpack.c.b16 %v5789, %v5787
    %v5800 = vpack.c.b16 %v5790, %v5788
    %v5801 = vpack.c.b16 %v5793, %v5791
    %v5802 = vpack.c.b16 %v5794, %v5792
    %v5812 = vsel %vm236, %v5770, 0
    %5814 = vmatprep.subr.bf16.mxu0 %v5796
    %5815 = vmatpush1.bf16.msra.mxu0 %v5795
    %5816 = vmatprep.subr.bf16.mxu0 %v5798
    %5817 = vmatpush1.bf16.msra.mxu0 %v5797
    %5818 = vmatprep.subr.bf16.mxu0 %v5800
    %5819 = vmatpush1.bf16.msra.mxu0 %v5799
    %5820 = vmatprep.subr.bf16.mxu0 %v5802
    %5821 = vmatpush1.bf16.msra.mxu0 %v5801
    %5822 = vmatprep.subr.bf16.mxu0 0
    %5823 = vmatpush1.bf16.msra.mxu0 0
    %5824 = vmatprep.subr.bf16.mxu0 0
    %5825 = vmatpush1.bf16.msra.mxu0 0
    %5826 = vmatprep.subr.bf16.mxu0 0
    %5827 = vmatpush1.bf16.msra.mxu0 0
    %5828 = vmatprep.subr.bf16.mxu0 0
    %5829 = vmatpush1.bf16.msra.mxu0 0
    %5830 = vmatprep.subr.bf16.mxu0 0
    %5831 = vmatpush1.bf16.msra.mxu0 0
    %5832 = vmatprep.subr.bf16.mxu0 0
    %5833 = vmatpush1.bf16.msra.mxu0 0
    %5834 = vmatprep.subr.bf16.mxu0 0
    %5835 = vmatpush1.bf16.msra.mxu0 0
    %5836 = vmatprep.subr.bf16.mxu0 0
    %5837 = vmatpush1.bf16.msra.mxu0 0
    %5838 = vmatprep.subr.bf16.mxu0 0
    %5839 = vmatpush1.bf16.msra.mxu0 0
    %5840 = vmatprep.subr.bf16.mxu0 0
    %5841 = vmatpush1.bf16.msra.mxu0 0
    %5842 = vmatprep.subr.bf16.mxu0 0
    %5843 = vmatpush1.bf16.msra.mxu0 0
    %5844 = vmatprep.subr.bf16.mxu0 0
    %5845 = vmatpush1.bf16.msra.mxu0 0
    %5846 = vmatprep.mubr.bf16.mxu0 0
    %5847 = vmatmul.mubr.bf16.gmra.mrb[0].mxu0 %v5812
    %v5848 = vpop.f32.mrb[0].mxu0
    %v5849 = vadd.f32 0.0, %v5848
    %v5850 = vpop.f32.mrb[0].mxu0
    %v5851 = vadd.f32 0.0, %v5850
    %v5852 = vpop.f32.mrb[0].mxu0
    %v5853 = vpop.f32.mrb[0].mxu0
    %5854 = vdwg.mxu0
    %v5855 = vadd.f32 %v5752, %v5849
    %v5856 = vadd.f32 %v5754, %v5851
    %s5857 = scalar_lea.vmem %s7, 192
    %v5858 = vld [vmem:[%s5857] sm:$0xff]
    %v5859 = vld [vmem:[%s5857 + $0x8] sm:$0xff]
    %v5860 = vld [vmem:[%s5857 + $0x10] sm:$0xff]
    %v5861 = vld [vmem:[%s5857 + $0x18] sm:$0xff]
    %v5862 = vld [vmem:[%s5857 + $0x20] sm:$0xff]
    %v5863 = vld [vmem:[%s5857 + $0x28] sm:$0xff]
    %v5864 = vld [vmem:[%s5857 + $0x30] sm:$0xff]
    %v5865 = vld [vmem:[%s5857 + $0x38] sm:$0xff]
    %v5866 = vrot.slane %v5580, 6
    %v5867 = vrot.slane %v5581, 5
    %v5868 = vsel %vm5584, %v5867, %v5866
    %v5869 = vpack.c.b16 %v5868, %v5868
    %v5878 = vunpack.c.l.b16 %v5858
    %v5879 = vunpack.c.h.b16 %v5858
    %v5880 = vunpack.c.l.b16 %v5859
    %v5881 = vunpack.c.h.b16 %v5859
    %v5882 = vunpack.c.l.b16 %v5860
    %v5883 = vunpack.c.h.b16 %v5860
    %v5884 = vunpack.c.l.b16 %v5861
    %v5885 = vunpack.c.h.b16 %v5861
    %v5886 = vunpack.c.l.b16 %v5862
    %v5887 = vunpack.c.h.b16 %v5862
    %v5888 = vunpack.c.l.b16 %v5863
    %v5889 = vunpack.c.h.b16 %v5863
    %v5890 = vunpack.c.l.b16 %v5864
    %v5891 = vunpack.c.h.b16 %v5864
    %v5892 = vunpack.c.l.b16 %v5865
    %v5893 = vunpack.c.h.b16 %v5865
    %v5894 = vpack.c.b16 %v5880, %v5878
    %v5895 = vpack.c.b16 %v5881, %v5879
    %v5896 = vpack.c.b16 %v5884, %v5882
    %v5897 = vpack.c.b16 %v5885, %v5883
    %v5898 = vpack.c.b16 %v5888, %v5886
    %v5899 = vpack.c.b16 %v5889, %v5887
    %v5900 = vpack.c.b16 %v5892, %v5890
    %v5901 = vpack.c.b16 %v5893, %v5891
    %v5911 = vsel %vm236, %v5869, 0
    %5913 = vmatprep.subr.bf16.mxu0 %v5895
    %5914 = vmatpush1.bf16.msra.mxu0 %v5894
    %5915 = vmatprep.subr.bf16.mxu0 %v5897
    %5916 = vmatpush1.bf16.msra.mxu0 %v5896
    %5917 = vmatprep.subr.bf16.mxu0 %v5899
    %5918 = vmatpush1.bf16.msra.mxu0 %v5898
    %5919 = vmatprep.subr.bf16.mxu0 %v5901
    %5920 = vmatpush1.bf16.msra.mxu0 %v5900
    %5921 = vmatprep.subr.bf16.mxu0 0
    %5922 = vmatpush1.bf16.msra.mxu0 0
    %5923 = vmatprep.subr.bf16.mxu0 0
    %5924 = vmatpush1.bf16.msra.mxu0 0
    %5925 = vmatprep.subr.bf16.mxu0 0
    %5926 = vmatpush1.bf16.msra.mxu0 0
    %5927 = vmatprep.subr.bf16.mxu0 0
    %5928 = vmatpush1.bf16.msra.mxu0 0
    %5929 = vmatprep.subr.bf16.mxu0 0
    %5930 = vmatpush1.bf16.msra.mxu0 0
    %5931 = vmatprep.subr.bf16.mxu0 0
    %5932 = vmatpush1.bf16.msra.mxu0 0
    %5933 = vmatprep.subr.bf16.mxu0 0
    %5934 = vmatpush1.bf16.msra.mxu0 0
    %5935 = vmatprep.subr.bf16.mxu0 0
    %5936 = vmatpush1.bf16.msra.mxu0 0
    %5937 = vmatprep.subr.bf16.mxu0 0
    %5938 = vmatpush1.bf16.msra.mxu0 0
    %5939 = vmatprep.subr.bf16.mxu0 0
    %5940 = vmatpush1.bf16.msra.mxu0 0
    %5941 = vmatprep.subr.bf16.mxu0 0
    %5942 = vmatpush1.bf16.msra.mxu0 0
    %5943 = vmatprep.subr.bf16.mxu0 0
    %5944 = vmatpush1.bf16.msra.mxu0 0
    %5945 = vmatprep.mubr.bf16.mxu0 0
    %5946 = vmatmul.mubr.bf16.gmra.mrb[0].mxu0 %v5911
    %v5947 = vpop.f32.mrb[0].mxu0
    %v5948 = vadd.f32 0.0, %v5947
    %v5949 = vpop.f32.mrb[0].mxu0
    %v5950 = vadd.f32 0.0, %v5949
    %v5951 = vpop.f32.mrb[0].mxu0
    %v5952 = vpop.f32.mrb[0].mxu0
    %5953 = vdwg.mxu0
    %v5954 = vadd.f32 %v5855, %v5948
    %v5955 = vadd.f32 %v5856, %v5950
    %v5958 = vrot.slane %v5527, 1
    %v5959 = vrot.slane %v5535, 1
    %v5962 = vmax.f32 %v5527, %v5958
    %v5963 = vmax.f32 %v5535, %v5959
    %v5966 = vrot.slane %v5528, 1
    %v5967 = vrot.slane %v5536, 1
    %v5970 = vmax.f32 %v5528, %v5966
    %v5971 = vmax.f32 %v5536, %v5967
    %v5972 = vmax.f32 %v5962, %v5970
    %v5973 = vmax.f32 %v5963, %v5971
    %v5974 = vpack.c.bf16 %v5972, %v5972
    %v5975 = vpack.c.bf16 %v5973, %v5973
    %s5976 = scalar_lea.vmem %s7, 256
    %v5977 = vld [vmem:[%s5976] sm:$0xff]
    %v5978 = vld [vmem:[%s5976 + $0x8] sm:$0xff]
    %v5979 = vld [vmem:[%s5976 + $0x10] sm:$0xff]
    %v5980 = vld [vmem:[%s5976 + $0x18] sm:$0xff]
    %v5981 = vld [vmem:[%s5976 + $0x20] sm:$0xff]
    %v5982 = vld [vmem:[%s5976 + $0x28] sm:$0xff]
    %v5983 = vld [vmem:[%s5976 + $0x30] sm:$0xff]
    %v5984 = vld [vmem:[%s5976 + $0x38] sm:$0xff]
    %v5987 = vunpack.c.l.b16 %v5974
    %v5988 = vunpack.c.l.b16 %v5975
    %v5989 = vrot.slane %v5988, 7
    %v5990 = vsel %vm5584, %v5989, %v5987
    %v5991 = vpack.c.b16 %v5990, %v5990
    %v6000 = vunpack.c.l.b16 %v5977
    %v6001 = vunpack.c.h.b16 %v5977
    %v6002 = vunpack.c.l.b16 %v5978
    %v6003 = vunpack.c.h.b16 %v5978
    %v6004 = vunpack.c.l.b16 %v5979
    %v6005 = vunpack.c.h.b16 %v5979
    %v6006 = vunpack.c.l.b16 %v5980
    %v6007 = vunpack.c.h.b16 %v5980
    %v6008 = vunpack.c.l.b16 %v5981
    %v6009 = vunpack.c.h.b16 %v5981
    %v6010 = vunpack.c.l.b16 %v5982
    %v6011 = vunpack.c.h.b16 %v5982
    %v6012 = vunpack.c.l.b16 %v5983
    %v6013 = vunpack.c.h.b16 %v5983
    %v6014 = vunpack.c.l.b16 %v5984
    %v6015 = vunpack.c.h.b16 %v5984
    %v6016 = vpack.c.b16 %v6002, %v6000
    %v6017 = vpack.c.b16 %v6003, %v6001
    %v6018 = vpack.c.b16 %v6006, %v6004
    %v6019 = vpack.c.b16 %v6007, %v6005
    %v6020 = vpack.c.b16 %v6010, %v6008
    %v6021 = vpack.c.b16 %v6011, %v6009
    %v6022 = vpack.c.b16 %v6014, %v6012
    %v6023 = vpack.c.b16 %v6015, %v6013
    %v6033 = vsel %vm236, %v5991, 0
    %6035 = vmatprep.subr.bf16.mxu0 %v6017
    %6036 = vmatpush1.bf16.msra.mxu0 %v6016
    %6037 = vmatprep.subr.bf16.mxu0 %v6019
    %6038 = vmatpush1.bf16.msra.mxu0 %v6018
    %6039 = vmatprep.subr.bf16.mxu0 %v6021
    %6040 = vmatpush1.bf16.msra.mxu0 %v6020
    %6041 = vmatprep.subr.bf16.mxu0 %v6023
    %6042 = vmatpush1.bf16.msra.mxu0 %v6022
    %6043 = vmatprep.subr.bf16.mxu0 0
    %6044 = vmatpush1.bf16.msra.mxu0 0
    %6045 = vmatprep.subr.bf16.mxu0 0
    %6046 = vmatpush1.bf16.msra.mxu0 0
    %6047 = vmatprep.subr.bf16.mxu0 0
    %6048 = vmatpush1.bf16.msra.mxu0 0
    %6049 = vmatprep.subr.bf16.mxu0 0
    %6050 = vmatpush1.bf16.msra.mxu0 0
    %6051 = vmatprep.subr.bf16.mxu0 0
    %6052 = vmatpush1.bf16.msra.mxu0 0
    %6053 = vmatprep.subr.bf16.mxu0 0
    %6054 = vmatpush1.bf16.msra.mxu0 0
    %6055 = vmatprep.subr.bf16.mxu0 0
    %6056 = vmatpush1.bf16.msra.mxu0 0
    %6057 = vmatprep.subr.bf16.mxu0 0
    %6058 = vmatpush1.bf16.msra.mxu0 0
    %6059 = vmatprep.subr.bf16.mxu0 0
    %6060 = vmatpush1.bf16.msra.mxu0 0
    %6061 = vmatprep.subr.bf16.mxu0 0
    %6062 = vmatpush1.bf16.msra.mxu0 0
    %6063 = vmatprep.subr.bf16.mxu0 0
    %6064 = vmatpush1.bf16.msra.mxu0 0
    %6065 = vmatprep.subr.bf16.mxu0 0
    %6066 = vmatpush1.bf16.msra.mxu0 0
    %6067 = vmatprep.mubr.bf16.mxu0 0
    %6068 = vmatmul.mubr.bf16.gmra.mrb[0].mxu0 %v6033
    %v6069 = vpop.f32.mrb[0].mxu0
    %v6070 = vadd.f32 0.0, %v6069
    %v6071 = vpop.f32.mrb[0].mxu0
    %v6072 = vadd.f32 0.0, %v6071
    %v6073 = vpop.f32.mrb[0].mxu0
    %v6074 = vpop.f32.mrb[0].mxu0
    %6075 = vdwg.mxu0
    %v6076 = vadd.f32 %v5954, %v6070
    %v6077 = vadd.f32 %v5955, %v6072
    %s6078 = scalar_lea.vmem %s7, 320
    %v6079 = vld [vmem:[%s6078] sm:$0xff]
    %v6080 = vld [vmem:[%s6078 + $0x8] sm:$0xff]
    %v6081 = vld [vmem:[%s6078 + $0x10] sm:$0xff]
    %v6082 = vld [vmem:[%s6078 + $0x18] sm:$0xff]
    %v6083 = vld [vmem:[%s6078 + $0x20] sm:$0xff]
    %v6084 = vld [vmem:[%s6078 + $0x28] sm:$0xff]
    %v6085 = vld [vmem:[%s6078 + $0x30] sm:$0xff]
    %v6086 = vld [vmem:[%s6078 + $0x38] sm:$0xff]
    %v6087 = vrot.slane %v5987, 2
    %v6088 = vrot.slane %v5988, 1
    %v6089 = vsel %vm5584, %v6088, %v6087
    %v6090 = vpack.c.b16 %v6089, %v6089
    %v6099 = vunpack.c.l.b16 %v6079
    %v6100 = vunpack.c.h.b16 %v6079
    %v6101 = vunpack.c.l.b16 %v6080
    %v6102 = vunpack.c.h.b16 %v6080
    %v6103 = vunpack.c.l.b16 %v6081
    %v6104 = vunpack.c.h.b16 %v6081
    %v6105 = vunpack.c.l.b16 %v6082
    %v6106 = vunpack.c.h.b16 %v6082
    %v6107 = vunpack.c.l.b16 %v6083
    %v6108 = vunpack.c.h.b16 %v6083
    %v6109 = vunpack.c.l.b16 %v6084
    %v6110 = vunpack.c.h.b16 %v6084
    %v6111 = vunpack.c.l.b16 %v6085
    %v6112 = vunpack.c.h.b16 %v6085
    %v6113 = vunpack.c.l.b16 %v6086
    %v6114 = vunpack.c.h.b16 %v6086
    %v6115 = vpack.c.b16 %v6101, %v6099
    %v6116 = vpack.c.b16 %v6102, %v6100
    %v6117 = vpack.c.b16 %v6105, %v6103
    %v6118 = vpack.c.b16 %v6106, %v6104
    %v6119 = vpack.c.b16 %v6109, %v6107
    %v6120 = vpack.c.b16 %v6110, %v6108
    %v6121 = vpack.c.b16 %v6113, %v6111
    %v6122 = vpack.c.b16 %v6114, %v6112
    %v6132 = vsel %vm236, %v6090, 0
    %6134 = vmatprep.subr.bf16.mxu0 %v6116
    %6135 = vmatpush1.bf16.msra.mxu0 %v6115
    %6136 = vmatprep.subr.bf16.mxu0 %v6118
    %6137 = vmatpush1.bf16.msra.mxu0 %v6117
    %6138 = vmatprep.subr.bf16.mxu0 %v6120
    %6139 = vmatpush1.bf16.msra.mxu0 %v6119
    %6140 = vmatprep.subr.bf16.mxu0 %v6122
    %6141 = vmatpush1.bf16.msra.mxu0 %v6121
    %6142 = vmatprep.subr.bf16.mxu0 0
    %6143 = vmatpush1.bf16.msra.mxu0 0
    %6144 = vmatprep.subr.bf16.mxu0 0
    %6145 = vmatpush1.bf16.msra.mxu0 0
    %6146 = vmatprep.subr.bf16.mxu0 0
    %6147 = vmatpush1.bf16.msra.mxu0 0
    %6148 = vmatprep.subr.bf16.mxu0 0
    %6149 = vmatpush1.bf16.msra.mxu0 0
    %6150 = vmatprep.subr.bf16.mxu0 0
    %6151 = vmatpush1.bf16.msra.mxu0 0
    %6152 = vmatprep.subr.bf16.mxu0 0
    %6153 = vmatpush1.bf16.msra.mxu0 0
    %6154 = vmatprep.subr.bf16.mxu0 0
    %6155 = vmatpush1.bf16.msra.mxu0 0
    %6156 = vmatprep.subr.bf16.mxu0 0
    %6157 = vmatpush1.bf16.msra.mxu0 0
    %6158 = vmatprep.subr.bf16.mxu0 0
    %6159 = vmatpush1.bf16.msra.mxu0 0
    %6160 = vmatprep.subr.bf16.mxu0 0
    %6161 = vmatpush1.bf16.msra.mxu0 0
    %6162 = vmatprep.subr.bf16.mxu0 0
    %6163 = vmatpush1.bf16.msra.mxu0 0
    %6164 = vmatprep.subr.bf16.mxu0 0
    %6165 = vmatpush1.bf16.msra.mxu0 0
    %6166 = vmatprep.mubr.bf16.mxu0 0
    %6167 = vmatmul.mubr.bf16.gmra.mrb[0].mxu0 %v6132
    %v6168 = vpop.f32.mrb[0].mxu0
    %v6169 = vadd.f32 0.0, %v6168
    %v6170 = vpop.f32.mrb[0].mxu0
    %v6171 = vadd.f32 0.0, %v6170
    %v6172 = vpop.f32.mrb[0].mxu0
    %v6173 = vpop.f32.mrb[0].mxu0
    %6174 = vdwg.mxu0
    %v6175 = vadd.f32 %v6076, %v6169
    %v6176 = vadd.f32 %v6077, %v6171
    %s6177 = scalar_lea.vmem %s7, 384
    %v6178 = vld [vmem:[%s6177] sm:$0xff]
    %v6179 = vld [vmem:[%s6177 + $0x8] sm:$0xff]
    %v6180 = vld [vmem:[%s6177 + $0x10] sm:$0xff]
    %v6181 = vld [vmem:[%s6177 + $0x18] sm:$0xff]
    %v6182 = vld [vmem:[%s6177 + $0x20] sm:$0xff]
    %v6183 = vld [vmem:[%s6177 + $0x28] sm:$0xff]
    %v6184 = vld [vmem:[%s6177 + $0x30] sm:$0xff]
    %v6185 = vld [vmem:[%s6177 + $0x38] sm:$0xff]
    %v6186 = vrot.slane %v5987, 4
    %v6187 = vrot.slane %v5988, 3
    %v6188 = vsel %vm5584, %v6187, %v6186
    %v6189 = vpack.c.b16 %v6188, %v6188
    %v6198 = vunpack.c.l.b16 %v6178
    %v6199 = vunpack.c.h.b16 %v6178
    %v6200 = vunpack.c.l.b16 %v6179
    %v6201 = vunpack.c.h.b16 %v6179
    %v6202 = vunpack.c.l.b16 %v6180
    %v6203 = vunpack.c.h.b16 %v6180
    %v6204 = vunpack.c.l.b16 %v6181
    %v6205 = vunpack.c.h.b16 %v6181
    %v6206 = vunpack.c.l.b16 %v6182
    %v6207 = vunpack.c.h.b16 %v6182
    %v6208 = vunpack.c.l.b16 %v6183
    %v6209 = vunpack.c.h.b16 %v6183
    %v6210 = vunpack.c.l.b16 %v6184
    %v6211 = vunpack.c.h.b16 %v6184
    %v6212 = vunpack.c.l.b16 %v6185
    %v6213 = vunpack.c.h.b16 %v6185
    %v6214 = vpack.c.b16 %v6200, %v6198
    %v6215 = vpack.c.b16 %v6201, %v6199
    %v6216 = vpack.c.b16 %v6204, %v6202
    %v6217 = vpack.c.b16 %v6205, %v6203
    %v6218 = vpack.c.b16 %v6208, %v6206
    %v6219 = vpack.c.b16 %v6209, %v6207
    %v6220 = vpack.c.b16 %v6212, %v6210
    %v6221 = vpack.c.b16 %v6213, %v6211
    %v6231 = vsel %vm236, %v6189, 0
    %6233 = vmatprep.subr.bf16.mxu0 %v6215
    %6234 = vmatpush1.bf16.msra.mxu0 %v6214
    %6235 = vmatprep.subr.bf16.mxu0 %v6217
    %6236 = vmatpush1.bf16.msra.mxu0 %v6216
    %6237 = vmatprep.subr.bf16.mxu0 %v6219
    %6238 = vmatpush1.bf16.msra.mxu0 %v6218
    %6239 = vmatprep.subr.bf16.mxu0 %v6221
    %6240 = vmatpush1.bf16.msra.mxu0 %v6220
    %6241 = vmatprep.subr.bf16.mxu0 0
    %6242 = vmatpush1.bf16.msra.mxu0 0
    %6243 = vmatprep.subr.bf16.mxu0 0
    %6244 = vmatpush1.bf16.msra.mxu0 0
    %6245 = vmatprep.subr.bf16.mxu0 0
    %6246 = vmatpush1.bf16.msra.mxu0 0
    %6247 = vmatprep.subr.bf16.mxu0 0
    %6248 = vmatpush1.bf16.msra.mxu0 0
    %6249 = vmatprep.subr.bf16.mxu0 0
    %6250 = vmatpush1.bf16.msra.mxu0 0
    %6251 = vmatprep.subr.bf16.mxu0 0
    %6252 = vmatpush1.bf16.msra.mxu0 0
    %6253 = vmatprep.subr.bf16.mxu0 0
    %6254 = vmatpush1.bf16.msra.mxu0 0
    %6255 = vmatprep.subr.bf16.mxu0 0
    %6256 = vmatpush1.bf16.msra.mxu0 0
    %6257 = vmatprep.subr.bf16.mxu0 0
    %6258 = vmatpush1.bf16.msra.mxu0 0
    %6259 = vmatprep.subr.bf16.mxu0 0
    %6260 = vmatpush1.bf16.msra.mxu0 0
    %6261 = vmatprep.subr.bf16.mxu0 0
    %6262 = vmatpush1.bf16.msra.mxu0 0
    %6263 = vmatprep.subr.bf16.mxu0 0
    %6264 = vmatpush1.bf16.msra.mxu0 0
    %6265 = vmatprep.mubr.bf16.mxu0 0
    %6266 = vmatmul.mubr.bf16.gmra.mrb[0].mxu0 %v6231
    %v6267 = vpop.f32.mrb[0].mxu0
    %v6268 = vadd.f32 0.0, %v6267
    %v6269 = vpop.f32.mrb[0].mxu0
    %v6270 = vadd.f32 0.0, %v6269
    %v6271 = vpop.f32.mrb[0].mxu0
    %v6272 = vpop.f32.mrb[0].mxu0
    %6273 = vdwg.mxu0
    %v6274 = vadd.f32 %v6175, %v6268
    %v6275 = vadd.f32 %v6176, %v6270
    %s6276 = scalar_lea.vmem %s7, 448
    %v6277 = vld [vmem:[%s6276] sm:$0xff]
    %v6278 = vld [vmem:[%s6276 + $0x8] sm:$0xff]
    %v6279 = vld [vmem:[%s6276 + $0x10] sm:$0xff]
    %v6280 = vld [vmem:[%s6276 + $0x18] sm:$0xff]
    %v6281 = vld [vmem:[%s6276 + $0x20] sm:$0xff]
    %v6282 = vld [vmem:[%s6276 + $0x28] sm:$0xff]
    %v6283 = vld [vmem:[%s6276 + $0x30] sm:$0xff]
    %v6284 = vld [vmem:[%s6276 + $0x38] sm:$0xff]
    %v6285 = vrot.slane %v5987, 6
    %v6286 = vrot.slane %v5988, 5
    %v6287 = vsel %vm5584, %v6286, %v6285
    %v6288 = vpack.c.b16 %v6287, %v6287
    %v6297 = vunpack.c.l.b16 %v6277
    %v6298 = vunpack.c.h.b16 %v6277
    %v6299 = vunpack.c.l.b16 %v6278
    %v6300 = vunpack.c.h.b16 %v6278
    %v6301 = vunpack.c.l.b16 %v6279
    %v6302 = vunpack.c.h.b16 %v6279
    %v6303 = vunpack.c.l.b16 %v6280
    %v6304 = vunpack.c.h.b16 %v6280
    %v6305 = vunpack.c.l.b16 %v6281
    %v6306 = vunpack.c.h.b16 %v6281
    %v6307 = vunpack.c.l.b16 %v6282
    %v6308 = vunpack.c.h.b16 %v6282
    %v6309 = vunpack.c.l.b16 %v6283
    %v6310 = vunpack.c.h.b16 %v6283
    %v6311 = vunpack.c.l.b16 %v6284
    %v6312 = vunpack.c.h.b16 %v6284
    %v6313 = vpack.c.b16 %v6299, %v6297
    %v6314 = vpack.c.b16 %v6300, %v6298
    %v6315 = vpack.c.b16 %v6303, %v6301
    %v6316 = vpack.c.b16 %v6304, %v6302
    %v6317 = vpack.c.b16 %v6307, %v6305
    %v6318 = vpack.c.b16 %v6308, %v6306
    %v6319 = vpack.c.b16 %v6311, %v6309
    %v6320 = vpack.c.b16 %v6312, %v6310
    %v6330 = vsel %vm236, %v6288, 0
    %6332 = vmatprep.subr.bf16.mxu0 %v6314
    %6333 = vmatpush1.bf16.msra.mxu0 %v6313
    %6334 = vmatprep.subr.bf16.mxu0 %v6316
    %6335 = vmatpush1.bf16.msra.mxu0 %v6315
    %6336 = vmatprep.subr.bf16.mxu0 %v6318
    %6337 = vmatpush1.bf16.msra.mxu0 %v6317
    %6338 = vmatprep.subr.bf16.mxu0 %v6320
    %6339 = vmatpush1.bf16.msra.mxu0 %v6319
    %6340 = vmatprep.subr.bf16.mxu0 0
    %6341 = vmatpush1.bf16.msra.mxu0 0
    %6342 = vmatprep.subr.bf16.mxu0 0
    %6343 = vmatpush1.bf16.msra.mxu0 0
    %6344 = vmatprep.subr.bf16.mxu0 0
    %6345 = vmatpush1.bf16.msra.mxu0 0
    %6346 = vmatprep.subr.bf16.mxu0 0
    %6347 = vmatpush1.bf16.msra.mxu0 0
    %6348 = vmatprep.subr.bf16.mxu0 0
    %6349 = vmatpush1.bf16.msra.mxu0 0
    %6350 = vmatprep.subr.bf16.mxu0 0
    %6351 = vmatpush1.bf16.msra.mxu0 0
    %6352 = vmatprep.subr.bf16.mxu0 0
    %6353 = vmatpush1.bf16.msra.mxu0 0
    %6354 = vmatprep.subr.bf16.mxu0 0
    %6355 = vmatpush1.bf16.msra.mxu0 0
    %6356 = vmatprep.subr.bf16.mxu0 0
    %6357 = vmatpush1.bf16.msra.mxu0 0
    %6358 = vmatprep.subr.bf16.mxu0 0
    %6359 = vmatpush1.bf16.msra.mxu0 0
    %6360 = vmatprep.subr.bf16.mxu0 0
    %6361 = vmatpush1.bf16.msra.mxu0 0
    %6362 = vmatprep.subr.bf16.mxu0 0
    %6363 = vmatpush1.bf16.msra.mxu0 0
    %6364 = vmatprep.mubr.bf16.mxu0 0
    %6365 = vmatmul.mubr.bf16.gmra.mrb[0].mxu0 %v6330
    %v6366 = vpop.f32.mrb[0].mxu0
    %v6367 = vadd.f32 0.0, %v6366
    %v6368 = vpop.f32.mrb[0].mxu0
    %v6369 = vadd.f32 0.0, %v6368
    %v6370 = vpop.f32.mrb[0].mxu0
    %v6371 = vpop.f32.mrb[0].mxu0
    %6372 = vdwg.mxu0
    %v6373 = vadd.f32 %v6274, %v6367
    %v6374 = vadd.f32 %v6275, %v6369
    %v6377 = vrot.slane %v5529, 1
    %v6378 = vrot.slane %v5537, 1
    %v6381 = vmax.f32 %v5529, %v6377
    %v6382 = vmax.f32 %v5537, %v6378
    %v6385 = vrot.slane %v5530, 1
    %v6386 = vrot.slane %v5538, 1
    %v6389 = vmax.f32 %v5530, %v6385
    %v6390 = vmax.f32 %v5538, %v6386
    %v6391 = vmax.f32 %v6381, %v6389
    %v6392 = vmax.f32 %v6382, %v6390
    %v6393 = vpack.c.bf16 %v6391, %v6391
    %v6394 = vpack.c.bf16 %v6392, %v6392
    %s6395 = scalar_lea.vmem %s7, 512
    %v6396 = vld [vmem:[%s6395] sm:$0xff]
    %v6397 = vld [vmem:[%s6395 + $0x8] sm:$0xff]
    %v6398 = vld [vmem:[%s6395 + $0x10] sm:$0xff]
    %v6399 = vld [vmem:[%s6395 + $0x18] sm:$0xff]
    %v6400 = vld [vmem:[%s6395 + $0x20] sm:$0xff]
    %v6401 = vld [vmem:[%s6395 + $0x28] sm:$0xff]
    %v6402 = vld [vmem:[%s6395 + $0x30] sm:$0xff]
    %v6403 = vld [vmem:[%s6395 + $0x38] sm:$0xff]
    %v6406 = vunpack.c.l.b16 %v6393
    %v6407 = vunpack.c.l.b16 %v6394
    %v6408 = vrot.slane %v6407, 7
    %v6409 = vsel %vm5584, %v6408, %v6406
    %v6410 = vpack.c.b16 %v6409, %v6409
    %v6419 = vunpack.c.l.b16 %v6396
    %v6420 = vunpack.c.h.b16 %v6396
    %v6421 = vunpack.c.l.b16 %v6397
    %v6422 = vunpack.c.h.b16 %v6397
    %v6423 = vunpack.c.l.b16 %v6398
    %v6424 = vunpack.c.h.b16 %v6398
    %v6425 = vunpack.c.l.b16 %v6399
    %v6426 = vunpack.c.h.b16 %v6399
    %v6427 = vunpack.c.l.b16 %v6400
    %v6428 = vunpack.c.h.b16 %v6400
    %v6429 = vunpack.c.l.b16 %v6401
    %v6430 = vunpack.c.h.b16 %v6401
    %v6431 = vunpack.c.l.b16 %v6402
    %v6432 = vunpack.c.h.b16 %v6402
    %v6433 = vunpack.c.l.b16 %v6403
    %v6434 = vunpack.c.h.b16 %v6403
    %v6435 = vpack.c.b16 %v6421, %v6419
    %v6436 = vpack.c.b16 %v6422, %v6420
    %v6437 = vpack.c.b16 %v6425, %v6423
    %v6438 = vpack.c.b16 %v6426, %v6424
    %v6439 = vpack.c.b16 %v6429, %v6427
    %v6440 = vpack.c.b16 %v6430, %v6428
    %v6441 = vpack.c.b16 %v6433, %v6431
    %v6442 = vpack.c.b16 %v6434, %v6432
    %v6452 = vsel %vm236, %v6410, 0
    %6454 = vmatprep.subr.bf16.mxu0 %v6436
    %6455 = vmatpush1.bf16.msra.mxu0 %v6435
    %6456 = vmatprep.subr.bf16.mxu0 %v6438
    %6457 = vmatpush1.bf16.msra.mxu0 %v6437
    %6458 = vmatprep.subr.bf16.mxu0 %v6440
    %6459 = vmatpush1.bf16.msra.mxu0 %v6439
    %6460 = vmatprep.subr.bf16.mxu0 %v6442
    %6461 = vmatpush1.bf16.msra.mxu0 %v6441
    %6462 = vmatprep.subr.bf16.mxu0 0
    %6463 = vmatpush1.bf16.msra.mxu0 0
    %6464 = vmatprep.subr.bf16.mxu0 0
    %6465 = vmatpush1.bf16.msra.mxu0 0
    %6466 = vmatprep.subr.bf16.mxu0 0
    %6467 = vmatpush1.bf16.msra.mxu0 0
    %6468 = vmatprep.subr.bf16.mxu0 0
    %6469 = vmatpush1.bf16.msra.mxu0 0
    %6470 = vmatprep.subr.bf16.mxu0 0
    %6471 = vmatpush1.bf16.msra.mxu0 0
    %6472 = vmatprep.subr.bf16.mxu0 0
    %6473 = vmatpush1.bf16.msra.mxu0 0
    %6474 = vmatprep.subr.bf16.mxu0 0
    %6475 = vmatpush1.bf16.msra.mxu0 0
    %6476 = vmatprep.subr.bf16.mxu0 0
    %6477 = vmatpush1.bf16.msra.mxu0 0
    %6478 = vmatprep.subr.bf16.mxu0 0
    %6479 = vmatpush1.bf16.msra.mxu0 0
    %6480 = vmatprep.subr.bf16.mxu0 0
    %6481 = vmatpush1.bf16.msra.mxu0 0
    %6482 = vmatprep.subr.bf16.mxu0 0
    %6483 = vmatpush1.bf16.msra.mxu0 0
    %6484 = vmatprep.subr.bf16.mxu0 0
    %6485 = vmatpush1.bf16.msra.mxu0 0
    %6486 = vmatprep.mubr.bf16.mxu0 0
    %6487 = vmatmul.mubr.bf16.gmra.mrb[0].mxu0 %v6452
    %v6488 = vpop.f32.mrb[0].mxu0
    %v6489 = vadd.f32 0.0, %v6488
    %v6490 = vpop.f32.mrb[0].mxu0
    %v6491 = vadd.f32 0.0, %v6490
    %v6492 = vpop.f32.mrb[0].mxu0
    %v6493 = vpop.f32.mrb[0].mxu0
    %6494 = vdwg.mxu0
    %v6495 = vadd.f32 %v6373, %v6489
    %v6496 = vadd.f32 %v6374, %v6491
    %s6497 = scalar_lea.vmem %s7, 576
    %v6498 = vld [vmem:[%s6497] sm:$0xff]
    %v6499 = vld [vmem:[%s6497 + $0x8] sm:$0xff]
    %v6500 = vld [vmem:[%s6497 + $0x10] sm:$0xff]
    %v6501 = vld [vmem:[%s6497 + $0x18] sm:$0xff]
    %v6502 = vld [vmem:[%s6497 + $0x20] sm:$0xff]
    %v6503 = vld [vmem:[%s6497 + $0x28] sm:$0xff]
    %v6504 = vld [vmem:[%s6497 + $0x30] sm:$0xff]
    %v6505 = vld [vmem:[%s6497 + $0x38] sm:$0xff]
    %v6506 = vrot.slane %v6406, 2
    %v6507 = vrot.slane %v6407, 1
    %v6508 = vsel %vm5584, %v6507, %v6506
    %v6509 = vpack.c.b16 %v6508, %v6508
    %v6518 = vunpack.c.l.b16 %v6498
    %v6519 = vunpack.c.h.b16 %v6498
    %v6520 = vunpack.c.l.b16 %v6499
    %v6521 = vunpack.c.h.b16 %v6499
    %v6522 = vunpack.c.l.b16 %v6500
    %v6523 = vunpack.c.h.b16 %v6500
    %v6524 = vunpack.c.l.b16 %v6501
    %v6525 = vunpack.c.h.b16 %v6501
    %v6526 = vunpack.c.l.b16 %v6502
    %v6527 = vunpack.c.h.b16 %v6502
    %v6528 = vunpack.c.l.b16 %v6503
    %v6529 = vunpack.c.h.b16 %v6503
    %v6530 = vunpack.c.l.b16 %v6504
    %v6531 = vunpack.c.h.b16 %v6504
    %v6532 = vunpack.c.l.b16 %v6505
    %v6533 = vunpack.c.h.b16 %v6505
    %v6534 = vpack.c.b16 %v6520, %v6518
    %v6535 = vpack.c.b16 %v6521, %v6519
    %v6536 = vpack.c.b16 %v6524, %v6522
    %v6537 = vpack.c.b16 %v6525, %v6523
    %v6538 = vpack.c.b16 %v6528, %v6526
    %v6539 = vpack.c.b16 %v6529, %v6527
    %v6540 = vpack.c.b16 %v6532, %v6530
    %v6541 = vpack.c.b16 %v6533, %v6531
    %v6551 = vsel %vm236, %v6509, 0
    %6553 = vmatprep.subr.bf16.mxu0 %v6535
    %6554 = vmatpush1.bf16.msra.mxu0 %v6534
    %6555 = vmatprep.subr.bf16.mxu0 %v6537
    %6556 = vmatpush1.bf16.msra.mxu0 %v6536
    %6557 = vmatprep.subr.bf16.mxu0 %v6539
    %6558 = vmatpush1.bf16.msra.mxu0 %v6538
    %6559 = vmatprep.subr.bf16.mxu0 %v6541
    %6560 = vmatpush1.bf16.msra.mxu0 %v6540
    %6561 = vmatprep.subr.bf16.mxu0 0
    %6562 = vmatpush1.bf16.msra.mxu0 0
    %6563 = vmatprep.subr.bf16.mxu0 0
    %6564 = vmatpush1.bf16.msra.mxu0 0
    %6565 = vmatprep.subr.bf16.mxu0 0
    %6566 = vmatpush1.bf16.msra.mxu0 0
    %6567 = vmatprep.subr.bf16.mxu0 0
    %6568 = vmatpush1.bf16.msra.mxu0 0
    %6569 = vmatprep.subr.bf16.mxu0 0
    %6570 = vmatpush1.bf16.msra.mxu0 0
    %6571 = vmatprep.subr.bf16.mxu0 0
    %6572 = vmatpush1.bf16.msra.mxu0 0
    %6573 = vmatprep.subr.bf16.mxu0 0
    %6574 = vmatpush1.bf16.msra.mxu0 0
    %6575 = vmatprep.subr.bf16.mxu0 0
    %6576 = vmatpush1.bf16.msra.mxu0 0
    %6577 = vmatprep.subr.bf16.mxu0 0
    %6578 = vmatpush1.bf16.msra.mxu0 0
    %6579 = vmatprep.subr.bf16.mxu0 0
    %6580 = vmatpush1.bf16.msra.mxu0 0
    %6581 = vmatprep.subr.bf16.mxu0 0
    %6582 = vmatpush1.bf16.msra.mxu0 0
    %6583 = vmatprep.subr.bf16.mxu0 0
    %6584 = vmatpush1.bf16.msra.mxu0 0
    %6585 = vmatprep.mubr.bf16.mxu0 0
    %6586 = vmatmul.mubr.bf16.gmra.mrb[0].mxu0 %v6551
    %v6587 = vpop.f32.mrb[0].mxu0
    %v6588 = vadd.f32 0.0, %v6587
    %v6589 = vpop.f32.mrb[0].mxu0
    %v6590 = vadd.f32 0.0, %v6589
    %v6591 = vpop.f32.mrb[0].mxu0
    %v6592 = vpop.f32.mrb[0].mxu0
    %6593 = vdwg.mxu0
    %v6594 = vadd.f32 %v6495, %v6588
    %v6595 = vadd.f32 %v6496, %v6590
    %s6596 = scalar_lea.vmem %s7, 640
    %v6597 = vld [vmem:[%s6596] sm:$0xff]
    %v6598 = vld [vmem:[%s6596 + $0x8] sm:$0xff]
    %v6599 = vld [vmem:[%s6596 + $0x10] sm:$0xff]
    %v6600 = vld [vmem:[%s6596 + $0x18] sm:$0xff]
    %v6601 = vld [vmem:[%s6596 + $0x20] sm:$0xff]
    %v6602 = vld [vmem:[%s6596 + $0x28] sm:$0xff]
    %v6603 = vld [vmem:[%s6596 + $0x30] sm:$0xff]
    %v6604 = vld [vmem:[%s6596 + $0x38] sm:$0xff]
    %v6605 = vrot.slane %v6406, 4
    %v6606 = vrot.slane %v6407, 3
    %v6607 = vsel %vm5584, %v6606, %v6605
    %v6608 = vpack.c.b16 %v6607, %v6607
    %v6617 = vunpack.c.l.b16 %v6597
    %v6618 = vunpack.c.h.b16 %v6597
    %v6619 = vunpack.c.l.b16 %v6598
    %v6620 = vunpack.c.h.b16 %v6598
    %v6621 = vunpack.c.l.b16 %v6599
    %v6622 = vunpack.c.h.b16 %v6599
    %v6623 = vunpack.c.l.b16 %v6600
    %v6624 = vunpack.c.h.b16 %v6600
    %v6625 = vunpack.c.l.b16 %v6601
    %v6626 = vunpack.c.h.b16 %v6601
    %v6627 = vunpack.c.l.b16 %v6602
    %v6628 = vunpack.c.h.b16 %v6602
    %v6629 = vunpack.c.l.b16 %v6603
    %v6630 = vunpack.c.h.b16 %v6603
    %v6631 = vunpack.c.l.b16 %v6604
    %v6632 = vunpack.c.h.b16 %v6604
    %v6633 = vpack.c.b16 %v6619, %v6617
    %v6634 = vpack.c.b16 %v6620, %v6618
    %v6635 = vpack.c.b16 %v6623, %v6621
    %v6636 = vpack.c.b16 %v6624, %v6622
    %v6637 = vpack.c.b16 %v6627, %v6625
    %v6638 = vpack.c.b16 %v6628, %v6626
    %v6639 = vpack.c.b16 %v6631, %v6629
    %v6640 = vpack.c.b16 %v6632, %v6630
    %v6650 = vsel %vm236, %v6608, 0
    %6652 = vmatprep.subr.bf16.mxu0 %v6634
    %6653 = vmatpush1.bf16.msra.mxu0 %v6633
    %6654 = vmatprep.subr.bf16.mxu0 %v6636
    %6655 = vmatpush1.bf16.msra.mxu0 %v6635
    %6656 = vmatprep.subr.bf16.mxu0 %v6638
    %6657 = vmatpush1.bf16.msra.mxu0 %v6637
    %6658 = vmatprep.subr.bf16.mxu0 %v6640
    %6659 = vmatpush1.bf16.msra.mxu0 %v6639
    %6660 = vmatprep.subr.bf16.mxu0 0
    %6661 = vmatpush1.bf16.msra.mxu0 0
    %6662 = vmatprep.subr.bf16.mxu0 0
    %6663 = vmatpush1.bf16.msra.mxu0 0
    %6664 = vmatprep.subr.bf16.mxu0 0
    %6665 = vmatpush1.bf16.msra.mxu0 0
    %6666 = vmatprep.subr.bf16.mxu0 0
    %6667 = vmatpush1.bf16.msra.mxu0 0
    %6668 = vmatprep.subr.bf16.mxu0 0
    %6669 = vmatpush1.bf16.msra.mxu0 0
    %6670 = vmatprep.subr.bf16.mxu0 0
    %6671 = vmatpush1.bf16.msra.mxu0 0
    %6672 = vmatprep.subr.bf16.mxu0 0
    %6673 = vmatpush1.bf16.msra.mxu0 0
    %6674 = vmatprep.subr.bf16.mxu0 0
    %6675 = vmatpush1.bf16.msra.mxu0 0
    %6676 = vmatprep.subr.bf16.mxu0 0
    %6677 = vmatpush1.bf16.msra.mxu0 0
    %6678 = vmatprep.subr.bf16.mxu0 0
    %6679 = vmatpush1.bf16.msra.mxu0 0
    %6680 = vmatprep.subr.bf16.mxu0 0
    %6681 = vmatpush1.bf16.msra.mxu0 0
    %6682 = vmatprep.subr.bf16.mxu0 0
    %6683 = vmatpush1.bf16.msra.mxu0 0
    %6684 = vmatprep.mubr.bf16.mxu0 0
    %6685 = vmatmul.mubr.bf16.gmra.mrb[0].mxu0 %v6650
    %v6686 = vpop.f32.mrb[0].mxu0
    %v6687 = vadd.f32 0.0, %v6686
    %v6688 = vpop.f32.mrb[0].mxu0
    %v6689 = vadd.f32 0.0, %v6688
    %v6690 = vpop.f32.mrb[0].mxu0
    %v6691 = vpop.f32.mrb[0].mxu0
    %6692 = vdwg.mxu0
    %v6693 = vadd.f32 %v6594, %v6687
    %v6694 = vadd.f32 %v6595, %v6689
    %s6695 = scalar_lea.vmem %s7, 704
    %v6696 = vld [vmem:[%s6695] sm:$0xff]
    %v6697 = vld [vmem:[%s6695 + $0x8] sm:$0xff]
    %v6698 = vld [vmem:[%s6695 + $0x10] sm:$0xff]
    %v6699 = vld [vmem:[%s6695 + $0x18] sm:$0xff]
    %v6700 = vld [vmem:[%s6695 + $0x20] sm:$0xff]
    %v6701 = vld [vmem:[%s6695 + $0x28] sm:$0xff]
    %v6702 = vld [vmem:[%s6695 + $0x30] sm:$0xff]
    %v6703 = vld [vmem:[%s6695 + $0x38] sm:$0xff]
    %v6704 = vrot.slane %v6406, 6
    %v6705 = vrot.slane %v6407, 5
    %v6706 = vsel %vm5584, %v6705, %v6704
    %v6707 = vpack.c.b16 %v6706, %v6706
    %v6716 = vunpack.c.l.b16 %v6696
    %v6717 = vunpack.c.h.b16 %v6696
    %v6718 = vunpack.c.l.b16 %v6697
    %v6719 = vunpack.c.h.b16 %v6697
    %v6720 = vunpack.c.l.b16 %v6698
    %v6721 = vunpack.c.h.b16 %v6698
    %v6722 = vunpack.c.l.b16 %v6699
    %v6723 = vunpack.c.h.b16 %v6699
    %v6724 = vunpack.c.l.b16 %v6700
    %v6725 = vunpack.c.h.b16 %v6700
    %v6726 = vunpack.c.l.b16 %v6701
    %v6727 = vunpack.c.h.b16 %v6701
    %v6728 = vunpack.c.l.b16 %v6702
    %v6729 = vunpack.c.h.b16 %v6702
    %v6730 = vunpack.c.l.b16 %v6703
    %v6731 = vunpack.c.h.b16 %v6703
    %v6732 = vpack.c.b16 %v6718, %v6716
    %v6733 = vpack.c.b16 %v6719, %v6717
    %v6734 = vpack.c.b16 %v6722, %v6720
    %v6735 = vpack.c.b16 %v6723, %v6721
    %v6736 = vpack.c.b16 %v6726, %v6724
    %v6737 = vpack.c.b16 %v6727, %v6725
    %v6738 = vpack.c.b16 %v6730, %v6728
    %v6739 = vpack.c.b16 %v6731, %v6729
    %v6749 = vsel %vm236, %v6707, 0
    %6751 = vmatprep.subr.bf16.mxu0 %v6733
    %6752 = vmatpush1.bf16.msra.mxu0 %v6732
    %6753 = vmatprep.subr.bf16.mxu0 %v6735
    %6754 = vmatpush1.bf16.msra.mxu0 %v6734
    %6755 = vmatprep.subr.bf16.mxu0 %v6737
    %6756 = vmatpush1.bf16.msra.mxu0 %v6736
    %6757 = vmatprep.subr.bf16.mxu0 %v6739
    %6758 = vmatpush1.bf16.msra.mxu0 %v6738
    %6759 = vmatprep.subr.bf16.mxu0 0
    %6760 = vmatpush1.bf16.msra.mxu0 0
    %6761 = vmatprep.subr.bf16.mxu0 0
    %6762 = vmatpush1.bf16.msra.mxu0 0
    %6763 = vmatprep.subr.bf16.mxu0 0
    %6764 = vmatpush1.bf16.msra.mxu0 0
    %6765 = vmatprep.subr.bf16.mxu0 0
    %6766 = vmatpush1.bf16.msra.mxu0 0
    %6767 = vmatprep.subr.bf16.mxu0 0
    %6768 = vmatpush1.bf16.msra.mxu0 0
    %6769 = vmatprep.subr.bf16.mxu0 0
    %6770 = vmatpush1.bf16.msra.mxu0 0
    %6771 = vmatprep.subr.bf16.mxu0 0
    %6772 = vmatpush1.bf16.msra.mxu0 0
    %6773 = vmatprep.subr.bf16.mxu0 0
    %6774 = vmatpush1.bf16.msra.mxu0 0
    %6775 = vmatprep.subr.bf16.mxu0 0
    %6776 = vmatpush1.bf16.msra.mxu0 0
    %6777 = vmatprep.subr.bf16.mxu0 0
    %6778 = vmatpush1.bf16.msra.mxu0 0
    %6779 = vmatprep.subr.bf16.mxu0 0
    %6780 = vmatpush1.bf16.msra.mxu0 0
    %6781 = vmatprep.subr.bf16.mxu0 0
    %6782 = vmatpush1.bf16.msra.mxu0 0
    %6783 = vmatprep.mubr.bf16.mxu0 0
    %6784 = vmatmul.mubr.bf16.gmra.mrb[0].mxu0 %v6749
    %v6785 = vpop.f32.mrb[0].mxu0
    %v6786 = vadd.f32 0.0, %v6785
    %v6787 = vpop.f32.mrb[0].mxu0
    %v6788 = vadd.f32 0.0, %v6787
    %v6789 = vpop.f32.mrb[0].mxu0
    %v6790 = vpop.f32.mrb[0].mxu0
    %6791 = vdwg.mxu0
    %v6792 = vadd.f32 %v6693, %v6786
    %v6793 = vadd.f32 %v6694, %v6788
    %v6796 = vrot.slane %v5531, 1
    %v6797 = vrot.slane %v5539, 1
    %v6800 = vmax.f32 %v5531, %v6796
    %v6801 = vmax.f32 %v5539, %v6797
    %v6804 = vrot.slane %v5532, 1
    %v6805 = vrot.slane %v5540, 1
    %v6808 = vmax.f32 %v5532, %v6804
    %v6809 = vmax.f32 %v5540, %v6805
    %v6810 = vmax.f32 %v6800, %v6808
    %v6811 = vmax.f32 %v6801, %v6809
    %v6812 = vpack.c.bf16 %v6810, %v6810
    %v6813 = vpack.c.bf16 %v6811, %v6811
    %s6814 = scalar_lea.vmem %s7, 768
    %v6815 = vld [vmem:[%s6814] sm:$0xff]
    %v6816 = vld [vmem:[%s6814 + $0x8] sm:$0xff]
    %v6817 = vld [vmem:[%s6814 + $0x10] sm:$0xff]
    %v6818 = vld [vmem:[%s6814 + $0x18] sm:$0xff]
    %v6819 = vld [vmem:[%s6814 + $0x20] sm:$0xff]
    %v6820 = vld [vmem:[%s6814 + $0x28] sm:$0xff]
    %v6821 = vld [vmem:[%s6814 + $0x30] sm:$0xff]
    %v6822 = vld [vmem:[%s6814 + $0x38] sm:$0xff]
    %v6825 = vunpack.c.l.b16 %v6812
    %v6826 = vunpack.c.l.b16 %v6813
    %v6827 = vrot.slane %v6826, 7
    %v6828 = vsel %vm5584, %v6827, %v6825
    %v6829 = vpack.c.b16 %v6828, %v6828
    %v6838 = vunpack.c.l.b16 %v6815
    %v6839 = vunpack.c.h.b16 %v6815
    %v6840 = vunpack.c.l.b16 %v6816
    %v6841 = vunpack.c.h.b16 %v6816
    %v6842 = vunpack.c.l.b16 %v6817
    %v6843 = vunpack.c.h.b16 %v6817
    %v6844 = vunpack.c.l.b16 %v6818
    %v6845 = vunpack.c.h.b16 %v6818
    %v6846 = vunpack.c.l.b16 %v6819
    %v6847 = vunpack.c.h.b16 %v6819
    %v6848 = vunpack.c.l.b16 %v6820
    %v6849 = vunpack.c.h.b16 %v6820
    %v6850 = vunpack.c.l.b16 %v6821
    %v6851 = vunpack.c.h.b16 %v6821
    %v6852 = vunpack.c.l.b16 %v6822
    %v6853 = vunpack.c.h.b16 %v6822
    %v6854 = vpack.c.b16 %v6840, %v6838
    %v6855 = vpack.c.b16 %v6841, %v6839
    %v6856 = vpack.c.b16 %v6844, %v6842
    %v6857 = vpack.c.b16 %v6845, %v6843
    %v6858 = vpack.c.b16 %v6848, %v6846
    %v6859 = vpack.c.b16 %v6849, %v6847
    %v6860 = vpack.c.b16 %v6852, %v6850
    %v6861 = vpack.c.b16 %v6853, %v6851
    %v6871 = vsel %vm236, %v6829, 0
    %6873 = vmatprep.subr.bf16.mxu0 %v6855
    %6874 = vmatpush1.bf16.msra.mxu0 %v6854
    %6875 = vmatprep.subr.bf16.mxu0 %v6857
    %6876 = vmatpush1.bf16.msra.mxu0 %v6856
    %6877 = vmatprep.subr.bf16.mxu0 %v6859
    %6878 = vmatpush1.bf16.msra.mxu0 %v6858
    %6879 = vmatprep.subr.bf16.mxu0 %v6861
    %6880 = vmatpush1.bf16.msra.mxu0 %v6860
    %6881 = vmatprep.subr.bf16.mxu0 0
    %6882 = vmatpush1.bf16.msra.mxu0 0
    %6883 = vmatprep.subr.bf16.mxu0 0
    %6884 = vmatpush1.bf16.msra.mxu0 0
    %6885 = vmatprep.subr.bf16.mxu0 0
    %6886 = vmatpush1.bf16.msra.mxu0 0
    %6887 = vmatprep.subr.bf16.mxu0 0
    %6888 = vmatpush1.bf16.msra.mxu0 0
    %6889 = vmatprep.subr.bf16.mxu0 0
    %6890 = vmatpush1.bf16.msra.mxu0 0
    %6891 = vmatprep.subr.bf16.mxu0 0
    %6892 = vmatpush1.bf16.msra.mxu0 0
    %6893 = vmatprep.subr.bf16.mxu0 0
    %6894 = vmatpush1.bf16.msra.mxu0 0
    %6895 = vmatprep.subr.bf16.mxu0 0
    %6896 = vmatpush1.bf16.msra.mxu0 0
    %6897 = vmatprep.subr.bf16.mxu0 0
    %6898 = vmatpush1.bf16.msra.mxu0 0
    %6899 = vmatprep.subr.bf16.mxu0 0
    %6900 = vmatpush1.bf16.msra.mxu0 0
    %6901 = vmatprep.subr.bf16.mxu0 0
    %6902 = vmatpush1.bf16.msra.mxu0 0
    %6903 = vmatprep.subr.bf16.mxu0 0
    %6904 = vmatpush1.bf16.msra.mxu0 0
    %6905 = vmatprep.mubr.bf16.mxu0 0
    %6906 = vmatmul.mubr.bf16.gmra.mrb[0].mxu0 %v6871
    %v6907 = vpop.f32.mrb[0].mxu0
    %v6908 = vadd.f32 0.0, %v6907
    %v6909 = vpop.f32.mrb[0].mxu0
    %v6910 = vadd.f32 0.0, %v6909
    %v6911 = vpop.f32.mrb[0].mxu0
    %v6912 = vpop.f32.mrb[0].mxu0
    %6913 = vdwg.mxu0
    %v6914 = vadd.f32 %v6792, %v6908
    %v6915 = vadd.f32 %v6793, %v6910
    %s6916 = scalar_lea.vmem %s7, 832
    %v6917 = vld [vmem:[%s6916] sm:$0xff]
    %v6918 = vld [vmem:[%s6916 + $0x8] sm:$0xff]
    %v6919 = vld [vmem:[%s6916 + $0x10] sm:$0xff]
    %v6920 = vld [vmem:[%s6916 + $0x18] sm:$0xff]
    %v6921 = vld [vmem:[%s6916 + $0x20] sm:$0xff]
    %v6922 = vld [vmem:[%s6916 + $0x28] sm:$0xff]
    %v6923 = vld [vmem:[%s6916 + $0x30] sm:$0xff]
    %v6924 = vld [vmem:[%s6916 + $0x38] sm:$0xff]
    %v6925 = vrot.slane %v6825, 2
    %v6926 = vrot.slane %v6826, 1
    %v6927 = vsel %vm5584, %v6926, %v6925
    %v6928 = vpack.c.b16 %v6927, %v6927
    %v6937 = vunpack.c.l.b16 %v6917
    %v6938 = vunpack.c.h.b16 %v6917
    %v6939 = vunpack.c.l.b16 %v6918
    %v6940 = vunpack.c.h.b16 %v6918
    %v6941 = vunpack.c.l.b16 %v6919
    %v6942 = vunpack.c.h.b16 %v6919
    %v6943 = vunpack.c.l.b16 %v6920
    %v6944 = vunpack.c.h.b16 %v6920
    %v6945 = vunpack.c.l.b16 %v6921
    %v6946 = vunpack.c.h.b16 %v6921
    %v6947 = vunpack.c.l.b16 %v6922
    %v6948 = vunpack.c.h.b16 %v6922
    %v6949 = vunpack.c.l.b16 %v6923
    %v6950 = vunpack.c.h.b16 %v6923
    %v6951 = vunpack.c.l.b16 %v6924
    %v6952 = vunpack.c.h.b16 %v6924
    %v6953 = vpack.c.b16 %v6939, %v6937
    %v6954 = vpack.c.b16 %v6940, %v6938
    %v6955 = vpack.c.b16 %v6943, %v6941
    %v6956 = vpack.c.b16 %v6944, %v6942
    %v6957 = vpack.c.b16 %v6947, %v6945
    %v6958 = vpack.c.b16 %v6948, %v6946
    %v6959 = vpack.c.b16 %v6951, %v6949
    %v6960 = vpack.c.b16 %v6952, %v6950
    %v6970 = vsel %vm236, %v6928, 0
    %6972 = vmatprep.subr.bf16.mxu0 %v6954
    %6973 = vmatpush1.bf16.msra.mxu0 %v6953
    %6974 = vmatprep.subr.bf16.mxu0 %v6956
    %6975 = vmatpush1.bf16.msra.mxu0 %v6955
    %6976 = vmatprep.subr.bf16.mxu0 %v6958
    %6977 = vmatpush1.bf16.msra.mxu0 %v6957
    %6978 = vmatprep.subr.bf16.mxu0 %v6960
    %6979 = vmatpush1.bf16.msra.mxu0 %v6959
    %6980 = vmatprep.subr.bf16.mxu0 0
    %6981 = vmatpush1.bf16.msra.mxu0 0
    %6982 = vmatprep.subr.bf16.mxu0 0
    %6983 = vmatpush1.bf16.msra.mxu0 0
    %6984 = vmatprep.subr.bf16.mxu0 0
    %6985 = vmatpush1.bf16.msra.mxu0 0
    %6986 = vmatprep.subr.bf16.mxu0 0
    %6987 = vmatpush1.bf16.msra.mxu0 0
    %6988 = vmatprep.subr.bf16.mxu0 0
    %6989 = vmatpush1.bf16.msra.mxu0 0
    %6990 = vmatprep.subr.bf16.mxu0 0
    %6991 = vmatpush1.bf16.msra.mxu0 0
    %6992 = vmatprep.subr.bf16.mxu0 0
    %6993 = vmatpush1.bf16.msra.mxu0 0
    %6994 = vmatprep.subr.bf16.mxu0 0
    %6995 = vmatpush1.bf16.msra.mxu0 0
    %6996 = vmatprep.subr.bf16.mxu0 0
    %6997 = vmatpush1.bf16.msra.mxu0 0
    %6998 = vmatprep.subr.bf16.mxu0 0
    %6999 = vmatpush1.bf16.msra.mxu0 0
    %7000 = vmatprep.subr.bf16.mxu0 0
    %7001 = vmatpush1.bf16.msra.mxu0 0
    %7002 = vmatprep.subr.bf16.mxu0 0
    %7003 = vmatpush1.bf16.msra.mxu0 0
    %7004 = vmatprep.mubr.bf16.mxu0 0
    %7005 = vmatmul.mubr.bf16.gmra.mrb[0].mxu0 %v6970
    %v7006 = vpop.f32.mrb[0].mxu0
    %v7007 = vadd.f32 0.0, %v7006
    %v7008 = vpop.f32.mrb[0].mxu0
    %v7009 = vadd.f32 0.0, %v7008
    %v7010 = vpop.f32.mrb[0].mxu0
    %v7011 = vpop.f32.mrb[0].mxu0
    %7012 = vdwg.mxu0
    %v7013 = vadd.f32 %v6914, %v7007
    %v7014 = vadd.f32 %v6915, %v7009
    %s7015 = scalar_lea.vmem %s7, 896
    %v7016 = vld [vmem:[%s7015] sm:$0xff]
    %v7017 = vld [vmem:[%s7015 + $0x8] sm:$0xff]
    %v7018 = vld [vmem:[%s7015 + $0x10] sm:$0xff]
    %v7019 = vld [vmem:[%s7015 + $0x18] sm:$0xff]
    %v7020 = vld [vmem:[%s7015 + $0x20] sm:$0xff]
    %v7021 = vld [vmem:[%s7015 + $0x28] sm:$0xff]
    %v7022 = vld [vmem:[%s7015 + $0x30] sm:$0xff]
    %v7023 = vld [vmem:[%s7015 + $0x38] sm:$0xff]
    %v7024 = vrot.slane %v6825, 4
    %v7025 = vrot.slane %v6826, 3
    %v7026 = vsel %vm5584, %v7025, %v7024
    %v7027 = vpack.c.b16 %v7026, %v7026
    %v7036 = vunpack.c.l.b16 %v7016
    %v7037 = vunpack.c.h.b16 %v7016
    %v7038 = vunpack.c.l.b16 %v7017
    %v7039 = vunpack.c.h.b16 %v7017
    %v7040 = vunpack.c.l.b16 %v7018
    %v7041 = vunpack.c.h.b16 %v7018
    %v7042 = vunpack.c.l.b16 %v7019
    %v7043 = vunpack.c.h.b16 %v7019
    %v7044 = vunpack.c.l.b16 %v7020
    %v7045 = vunpack.c.h.b16 %v7020
    %v7046 = vunpack.c.l.b16 %v7021
    %v7047 = vunpack.c.h.b16 %v7021
    %v7048 = vunpack.c.l.b16 %v7022
    %v7049 = vunpack.c.h.b16 %v7022
    %v7050 = vunpack.c.l.b16 %v7023
    %v7051 = vunpack.c.h.b16 %v7023
    %v7052 = vpack.c.b16 %v7038, %v7036
    %v7053 = vpack.c.b16 %v7039, %v7037
    %v7054 = vpack.c.b16 %v7042, %v7040
    %v7055 = vpack.c.b16 %v7043, %v7041
    %v7056 = vpack.c.b16 %v7046, %v7044
    %v7057 = vpack.c.b16 %v7047, %v7045
    %v7058 = vpack.c.b16 %v7050, %v7048
    %v7059 = vpack.c.b16 %v7051, %v7049
    %v7069 = vsel %vm236, %v7027, 0
    %7071 = vmatprep.subr.bf16.mxu0 %v7053
    %7072 = vmatpush1.bf16.msra.mxu0 %v7052
    %7073 = vmatprep.subr.bf16.mxu0 %v7055
    %7074 = vmatpush1.bf16.msra.mxu0 %v7054
    %7075 = vmatprep.subr.bf16.mxu0 %v7057
    %7076 = vmatpush1.bf16.msra.mxu0 %v7056
    %7077 = vmatprep.subr.bf16.mxu0 %v7059
    %7078 = vmatpush1.bf16.msra.mxu0 %v7058
    %7079 = vmatprep.subr.bf16.mxu0 0
    %7080 = vmatpush1.bf16.msra.mxu0 0
    %7081 = vmatprep.subr.bf16.mxu0 0
    %7082 = vmatpush1.bf16.msra.mxu0 0
    %7083 = vmatprep.subr.bf16.mxu0 0
    %7084 = vmatpush1.bf16.msra.mxu0 0
    %7085 = vmatprep.subr.bf16.mxu0 0
    %7086 = vmatpush1.bf16.msra.mxu0 0
    %7087 = vmatprep.subr.bf16.mxu0 0
    %7088 = vmatpush1.bf16.msra.mxu0 0
    %7089 = vmatprep.subr.bf16.mxu0 0
    %7090 = vmatpush1.bf16.msra.mxu0 0
    %7091 = vmatprep.subr.bf16.mxu0 0
    %7092 = vmatpush1.bf16.msra.mxu0 0
    %7093 = vmatprep.subr.bf16.mxu0 0
    %7094 = vmatpush1.bf16.msra.mxu0 0
    %7095 = vmatprep.subr.bf16.mxu0 0
    %7096 = vmatpush1.bf16.msra.mxu0 0
    %7097 = vmatprep.subr.bf16.mxu0 0
    %7098 = vmatpush1.bf16.msra.mxu0 0
    %7099 = vmatprep.subr.bf16.mxu0 0
    %7100 = vmatpush1.bf16.msra.mxu0 0
    %7101 = vmatprep.subr.bf16.mxu0 0
    %7102 = vmatpush1.bf16.msra.mxu0 0
    %7103 = vmatprep.mubr.bf16.mxu0 0
    %7104 = vmatmul.mubr.bf16.gmra.mrb[0].mxu0 %v7069
    %v7105 = vpop.f32.mrb[0].mxu0
    %v7106 = vadd.f32 0.0, %v7105
    %v7107 = vpop.f32.mrb[0].mxu0
    %v7108 = vadd.f32 0.0, %v7107
    %v7109 = vpop.f32.mrb[0].mxu0
    %v7110 = vpop.f32.mrb[0].mxu0
    %7111 = vdwg.mxu0
    %v7112 = vadd.f32 %v7013, %v7106
    %v7113 = vadd.f32 %v7014, %v7108
    %s7114 = scalar_lea.vmem %s7, 960
    %v7115 = vld [vmem:[%s7114] sm:$0xff]
    %v7116 = vld [vmem:[%s7114 + $0x8] sm:$0xff]
    %v7117 = vld [vmem:[%s7114 + $0x10] sm:$0xff]
    %v7118 = vld [vmem:[%s7114 + $0x18] sm:$0xff]
    %v7119 = vld [vmem:[%s7114 + $0x20] sm:$0xff]
    %v7120 = vld [vmem:[%s7114 + $0x28] sm:$0xff]
    %v7121 = vld [vmem:[%s7114 + $0x30] sm:$0xff]
    %v7122 = vld [vmem:[%s7114 + $0x38] sm:$0xff]
    %v7123 = vrot.slane %v6825, 6
    %v7124 = vrot.slane %v6826, 5
    %v7125 = vsel %vm5584, %v7124, %v7123
    %v7126 = vpack.c.b16 %v7125, %v7125
    %v7135 = vunpack.c.l.b16 %v7115
    %v7136 = vunpack.c.h.b16 %v7115
    %v7137 = vunpack.c.l.b16 %v7116
    %v7138 = vunpack.c.h.b16 %v7116
    %v7139 = vunpack.c.l.b16 %v7117
    %v7140 = vunpack.c.h.b16 %v7117
    %v7141 = vunpack.c.l.b16 %v7118
    %v7142 = vunpack.c.h.b16 %v7118
    %v7143 = vunpack.c.l.b16 %v7119
    %v7144 = vunpack.c.h.b16 %v7119
    %v7145 = vunpack.c.l.b16 %v7120
    %v7146 = vunpack.c.h.b16 %v7120
    %v7147 = vunpack.c.l.b16 %v7121
    %v7148 = vunpack.c.h.b16 %v7121
    %v7149 = vunpack.c.l.b16 %v7122
    %v7150 = vunpack.c.h.b16 %v7122
    %v7151 = vpack.c.b16 %v7137, %v7135
    %v7152 = vpack.c.b16 %v7138, %v7136
    %v7153 = vpack.c.b16 %v7141, %v7139
    %v7154 = vpack.c.b16 %v7142, %v7140
    %v7155 = vpack.c.b16 %v7145, %v7143
    %v7156 = vpack.c.b16 %v7146, %v7144
    %v7157 = vpack.c.b16 %v7149, %v7147
    %v7158 = vpack.c.b16 %v7150, %v7148
    %v7168 = vsel %vm236, %v7126, 0
    %7170 = vmatprep.subr.bf16.mxu0 %v7152
    %7171 = vmatpush1.bf16.msra.mxu0 %v7151
    %7172 = vmatprep.subr.bf16.mxu0 %v7154
    %7173 = vmatpush1.bf16.msra.mxu0 %v7153
    %7174 = vmatprep.subr.bf16.mxu0 %v7156
    %7175 = vmatpush1.bf16.msra.mxu0 %v7155
    %7176 = vmatprep.subr.bf16.mxu0 %v7158
    %7177 = vmatpush1.bf16.msra.mxu0 %v7157
    %7178 = vmatprep.subr.bf16.mxu0 0
    %7179 = vmatpush1.bf16.msra.mxu0 0
    %7180 = vmatprep.subr.bf16.mxu0 0
    %7181 = vmatpush1.bf16.msra.mxu0 0
    %7182 = vmatprep.subr.bf16.mxu0 0
    %7183 = vmatpush1.bf16.msra.mxu0 0
    %7184 = vmatprep.subr.bf16.mxu0 0
    %7185 = vmatpush1.bf16.msra.mxu0 0
    %7186 = vmatprep.subr.bf16.mxu0 0
    %7187 = vmatpush1.bf16.msra.mxu0 0
    %7188 = vmatprep.subr.bf16.mxu0 0
    %7189 = vmatpush1.bf16.msra.mxu0 0
    %7190 = vmatprep.subr.bf16.mxu0 0
    %7191 = vmatpush1.bf16.msra.mxu0 0
    %7192 = vmatprep.subr.bf16.mxu0 0
    %7193 = vmatpush1.bf16.msra.mxu0 0
    %7194 = vmatprep.subr.bf16.mxu0 0
    %7195 = vmatpush1.bf16.msra.mxu0 0
    %7196 = vmatprep.subr.bf16.mxu0 0
    %7197 = vmatpush1.bf16.msra.mxu0 0
    %7198 = vmatprep.subr.bf16.mxu0 0
    %7199 = vmatpush1.bf16.msra.mxu0 0
    %7200 = vmatprep.subr.bf16.mxu0 0
    %7201 = vmatpush1.bf16.msra.mxu0 0
    %7202 = vmatprep.mubr.bf16.mxu0 0
    %7203 = vmatmul.mubr.bf16.gmra.mrb[0].mxu0 %v7168
    %v7204 = vpop.f32.mrb[0].mxu0
    %v7205 = vadd.f32 0.0, %v7204
    %v7206 = vpop.f32.mrb[0].mxu0
    %v7207 = vadd.f32 0.0, %v7206
    %v7208 = vpop.f32.mrb[0].mxu0
    %v7209 = vpop.f32.mrb[0].mxu0
    %7210 = vdwg.mxu0
    %v7211 = vadd.f32 %v7112, %v7205
    %v7212 = vadd.f32 %v7113, %v7207
    %v7213 = vld [vmem:[%s8] sm:$0x3]
    %v7215 = vlaneseq
    %v7216 = vshrl.u32 %v7215, 7
    %v7217 = vsub.s32 0, %v7216
    %v7218 = vrot.slane %v7213, %v7217
    %v7219 = vlaneseq
    %v7220 = vshrl.u32 %v7219, 7
    %v7221 = vsub.s32 1, %v7220
    %v7222 = vrot.slane %v7213, %v7221
    %v7225 = vadd.f32 %v7211, %v7218
    %v7226 = vadd.f32 %v7212, %v7222
    %v7227 = vmax.f32 %v7225, 0.0
    %v7228 = vmax.f32 %v7226, 0.0
    %v7229 = vpack.c.bf16 %v7227, %v7227
    %v7230 = vpack.c.bf16 %v7228, %v7228
    %v7231 = vld [vmem:[%s9] sm:$0xf]
    %v7232 = vld [vmem:[%s9 + $0x4] sm:$0xf]
    %v7233 = vld [vmem:[%s9 + $0x8] sm:$0xf]
    %v7234 = vld [vmem:[%s9 + $0xc] sm:$0xf]
    %v7235 = vld [vmem:[%s9 + $0x10] sm:$0xf]
    %v7236 = vld [vmem:[%s9 + $0x14] sm:$0xf]
    %v7237 = vld [vmem:[%s9 + $0x18] sm:$0xf]
    %v7238 = vld [vmem:[%s9 + $0x1c] sm:$0xf]
    %v7239 = vld [vmem:[%s9 + $0x20] sm:$0xf]
    %v7240 = vld [vmem:[%s9 + $0x24] sm:$0xf]
    %v7241 = vld [vmem:[%s9 + $0x28] sm:$0xf]
    %v7242 = vld [vmem:[%s9 + $0x2c] sm:$0xf]
    %v7243 = vld [vmem:[%s9 + $0x30] sm:$0xf]
    %v7244 = vld [vmem:[%s9 + $0x34] sm:$0xf]
    %v7245 = vld [vmem:[%s9 + $0x38] sm:$0xf]
    %v7246 = vld [vmem:[%s9 + $0x3c] sm:$0xf]
    %v7247 = vld [vmem:[%s9 + $0x40] sm:$0xf]
    %v7248 = vld [vmem:[%s9 + $0x44] sm:$0xf]
    %v7249 = vld [vmem:[%s9 + $0x48] sm:$0xf]
    %v7250 = vld [vmem:[%s9 + $0x4c] sm:$0xf]
    %v7251 = vld [vmem:[%s9 + $0x50] sm:$0xf]
    %v7252 = vld [vmem:[%s9 + $0x54] sm:$0xf]
    %v7253 = vld [vmem:[%s9 + $0x58] sm:$0xf]
    %v7254 = vld [vmem:[%s9 + $0x5c] sm:$0xf]
    %v7255 = vld [vmem:[%s9 + $0x60] sm:$0xf]
    %v7256 = vld [vmem:[%s9 + $0x64] sm:$0xf]
    %v7257 = vld [vmem:[%s9 + $0x68] sm:$0xf]
    %v7258 = vld [vmem:[%s9 + $0x6c] sm:$0xf]
    %v7259 = vld [vmem:[%s9 + $0x70] sm:$0xf]
    %v7260 = vld [vmem:[%s9 + $0x74] sm:$0xf]
    %v7261 = vld [vmem:[%s9 + $0x78] sm:$0xf]
    %v7262 = vld [vmem:[%s9 + $0x7c] sm:$0xf]
    %v7263 = vld [vmem:[%s10] sm:$0x1]
    %v7265 = vlaneseq
    %v7266 = vshrl.u32 %v7265, 7
    %v7267 = vsub.s32 0, %v7266
    %v7268 = vrot.slane %v7263, %v7267
    %v7302 = vunpack.c.l.b16 %v7231
    %v7303 = vunpack.c.l.b16 %v7232
    %v7304 = vunpack.c.l.b16 %v7233
    %v7305 = vunpack.c.l.b16 %v7234
    %v7306 = vunpack.c.l.b16 %v7235
    %v7307 = vunpack.c.l.b16 %v7236
    %v7308 = vunpack.c.l.b16 %v7237
    %v7309 = vunpack.c.l.b16 %v7238
    %v7310 = vunpack.c.l.b16 %v7239
    %v7311 = vunpack.c.l.b16 %v7240
    %v7312 = vunpack.c.l.b16 %v7241
    %v7313 = vunpack.c.l.b16 %v7242
    %v7314 = vunpack.c.l.b16 %v7243
    %v7315 = vunpack.c.l.b16 %v7244
    %v7316 = vunpack.c.l.b16 %v7245
    %v7317 = vunpack.c.l.b16 %v7246
    %v7318 = vunpack.c.l.b16 %v7247
    %v7319 = vunpack.c.l.b16 %v7248
    %v7320 = vunpack.c.l.b16 %v7249
    %v7321 = vunpack.c.l.b16 %v7250
    %v7322 = vunpack.c.l.b16 %v7251
    %v7323 = vunpack.c.l.b16 %v7252
    %v7324 = vunpack.c.l.b16 %v7253
    %v7325 = vunpack.c.l.b16 %v7254
    %v7326 = vunpack.c.l.b16 %v7255
    %v7327 = vunpack.c.l.b16 %v7256
    %v7328 = vunpack.c.l.b16 %v7257
    %v7329 = vunpack.c.l.b16 %v7258
    %v7330 = vunpack.c.l.b16 %v7259
    %v7331 = vunpack.c.l.b16 %v7260
    %v7332 = vunpack.c.l.b16 %v7261
    %v7333 = vunpack.c.l.b16 %v7262
    %v7334 = vpack.c.b16 %v7303, %v7302
    %v7335 = vpack.c.b16 %v7305, %v7304
    %v7336 = vpack.c.b16 %v7307, %v7306
    %v7337 = vpack.c.b16 %v7309, %v7308
    %v7338 = vpack.c.b16 %v7311, %v7310
    %v7339 = vpack.c.b16 %v7313, %v7312
    %v7340 = vpack.c.b16 %v7315, %v7314
    %v7341 = vpack.c.b16 %v7317, %v7316
    %v7342 = vpack.c.b16 %v7319, %v7318
    %v7343 = vpack.c.b16 %v7321, %v7320
    %v7344 = vpack.c.b16 %v7323, %v7322
    %v7345 = vpack.c.b16 %v7325, %v7324
    %v7346 = vpack.c.b16 %v7327, %v7326
    %v7347 = vpack.c.b16 %v7329, %v7328
    %v7348 = vpack.c.b16 %v7331, %v7330
    %v7349 = vpack.c.b16 %v7333, %v7332
    %7366 = vmatprep.subr.bf16.mxu0 0
    %7367 = vmatpush1.bf16.msra.mxu0 %v7334
    %7368 = vmatprep.subr.bf16.mxu0 0
    %7369 = vmatpush1.bf16.msra.mxu0 %v7335
    %7370 = vmatprep.subr.bf16.mxu0 0
    %7371 = vmatpush1.bf16.msra.mxu0 %v7336
    %7372 = vmatprep.subr.bf16.mxu0 0
    %7373 = vmatpush1.bf16.msra.mxu0 %v7337
    %7374 = vmatprep.subr.bf16.mxu0 0
    %7375 = vmatpush1.bf16.msra.mxu0 %v7338
    %7376 = vmatprep.subr.bf16.mxu0 0
    %7377 = vmatpush1.bf16.msra.mxu0 %v7339
    %7378 = vmatprep.subr.bf16.mxu0 0
    %7379 = vmatpush1.bf16.msra.mxu0 %v7340
    %7380 = vmatprep.subr.bf16.mxu0 0
    %7381 = vmatpush1.bf16.msra.mxu0 %v7341
    %7382 = vmatprep.subr.bf16.mxu0 0
    %7383 = vmatpush1.bf16.msra.mxu0 %v7342
    %7384 = vmatprep.subr.bf16.mxu0 0
    %7385 = vmatpush1.bf16.msra.mxu0 %v7343
    %7386 = vmatprep.subr.bf16.mxu0 0
    %7387 = vmatpush1.bf16.msra.mxu0 %v7344
    %7388 = vmatprep.subr.bf16.mxu0 0
    %7389 = vmatpush1.bf16.msra.mxu0 %v7345
    %7390 = vmatprep.subr.bf16.mxu0 0
    %7391 = vmatpush1.bf16.msra.mxu0 %v7346
    %7392 = vmatprep.subr.bf16.mxu0 0
    %7393 = vmatpush1.bf16.msra.mxu0 %v7347
    %7394 = vmatprep.subr.bf16.mxu0 0
    %7395 = vmatpush1.bf16.msra.mxu0 %v7348
    %7396 = vmatprep.subr.bf16.mxu0 0
    %7397 = vmatpush1.bf16.msra.mxu0 %v7349
    %7398 = vmatprep.mubr.bf16.mxu0 %v7230
    %7399 = vmatmul.mubr.bf16.gmra.mrb[0].mxu0 %v7229
    %v7400 = vpop.f32.mrb[0].mxu0
    %v7401 = vadd.f32 %v7268, %v7400
    %v7402 = vpop.f32.mrb[0].mxu0
    %v7403 = vpop.f32.mrb[0].mxu0
    %v7404 = vpop.f32.mrb[0].mxu0
    %7405 = vdwg.mxu0
    %v7406 = vmax.f32 %v7401, 0.0
    %v7407 = vpack.c.bf16 %v7406, %v7406
    %v7408 = vld [vmem:[%s11] sm:$0xf]
    %v7409 = vld [vmem:[%s11 + $0x4] sm:$0xf]
    %v7410 = vld [vmem:[%s11 + $0x8] sm:$0xf]
    %v7411 = vld [vmem:[%s11 + $0xc] sm:$0xf]
    %v7412 = vld [vmem:[%s11 + $0x10] sm:$0xf]
    %v7413 = vld [vmem:[%s11 + $0x14] sm:$0xf]
    %v7414 = vld [vmem:[%s11 + $0x18] sm:$0xf]
    %v7415 = vld [vmem:[%s11 + $0x1c] sm:$0xf]
    %v7416 = vld [vmem:[%s12] sm:$0x1]
    %v7418 = vlaneseq
    %v7419 = vshrl.u32 %v7418, 7
    %v7420 = vsub.s32 0, %v7419
    %v7421 = vrot.slane %v7416, %v7420
    %v7431 = vunpack.c.l.b16 %v7408
    %v7432 = vunpack.c.l.b16 %v7409
    %v7433 = vunpack.c.l.b16 %v7410
    %v7434 = vunpack.c.l.b16 %v7411
    %v7435 = vunpack.c.l.b16 %v7412
    %v7436 = vunpack.c.l.b16 %v7413
    %v7437 = vunpack.c.l.b16 %v7414
    %v7438 = vunpack.c.l.b16 %v7415
    %v7439 = vpack.c.b16 %v7432, %v7431
    %v7440 = vpack.c.b16 %v7434, %v7433
    %v7441 = vpack.c.b16 %v7436, %v7435
    %v7442 = vpack.c.b16 %v7438, %v7437
    %v7448 = vsel %vm236, %v7407, 0
    %7450 = vmatprep.subr.bf16.mxu0 0
    %7451 = vmatpush1.bf16.msra.mxu0 %v7439
    %7452 = vmatprep.subr.bf16.mxu0 0
    %7453 = vmatpush1.bf16.msra.mxu0 %v7440
    %7454 = vmatprep.subr.bf16.mxu0 0
    %7455 = vmatpush1.bf16.msra.mxu0 %v7441
    %7456 = vmatprep.subr.bf16.mxu0 0
    %7457 = vmatpush1.bf16.msra.mxu0 %v7442
    %7458 = vmatprep.subr.bf16.mxu0 0
    %7459 = vmatpush1.bf16.msra.mxu0 0
    %7460 = vmatprep.subr.bf16.mxu0 0
    %7461 = vmatpush1.bf16.msra.mxu0 0
    %7462 = vmatprep.subr.bf16.mxu0 0
    %7463 = vmatpush1.bf16.msra.mxu0 0
    %7464 = vmatprep.subr.bf16.mxu0 0
    %7465 = vmatpush1.bf16.msra.mxu0 0
    %7466 = vmatprep.subr.bf16.mxu0 0
    %7467 = vmatpush1.bf16.msra.mxu0 0
    %7468 = vmatprep.subr.bf16.mxu0 0
    %7469 = vmatpush1.bf16.msra.mxu0 0
    %7470 = vmatprep.subr.bf16.mxu0 0
    %7471 = vmatpush1.bf16.msra.mxu0 0
    %7472 = vmatprep.subr.bf16.mxu0 0
    %7473 = vmatpush1.bf16.msra.mxu0 0
    %7474 = vmatprep.subr.bf16.mxu0 0
    %7475 = vmatpush1.bf16.msra.mxu0 0
    %7476 = vmatprep.subr.bf16.mxu0 0
    %7477 = vmatpush1.bf16.msra.mxu0 0
    %7478 = vmatprep.subr.bf16.mxu0 0
    %7479 = vmatpush1.bf16.msra.mxu0 0
    %7480 = vmatprep.subr.bf16.mxu0 0
    %7481 = vmatpush1.bf16.msra.mxu0 0
    %7482 = vmatprep.mubr.bf16.mxu0 0
    %7483 = vmatmul.mubr.bf16.gmra.mrb[0].mxu0 %v7448
    %v7484 = vpop.f32.mrb[0].mxu0
    %v7485 = vadd.f32 %v7421, %v7484
    %v7486 = vpop.f32.mrb[0].mxu0
    %v7487 = vpop.f32.mrb[0].mxu0
    %v7488 = vpop.f32.mrb[0].mxu0
    %7489 = vdwg.mxu0
    %7490 = vst [vmem:[#allocation4] sm:$0x3] %v7485
    // Predicated region
    $region54: #{dqn_forward.1} parent=1 // pred_check
      _
    $region55: #{dqn_forward.1} parent=1 // pred_check_branch
      %7492 = sbr.rel (0) target = $region57
    $region56: #{dqn_forward.1} parent=1 // pred_region
      %s7494 = ssub.s32 32, 32
      %7495 = vsyncadd [#allocation5], %s7494
      %s7497 = sshll.u32 [#allocation4], 4
      %s7498 = int_to_ptr.vmem [resolvable:$true] %s7497
      %7500 = dma.vmem_to_hbm [thread:$0]  %s7498, 32, %s13, [#allocation5]
    $region57: #{dqn_forward.1} parent=1 // pred_fallthru
      _
    // Predicated region
    $region58: #{dqn_forward.1} parent=1 // pred_check
      _
    $region59: #{dqn_forward.1} parent=1 // pred_check_branch
      %7502 = sbr.rel (0) target = $region61
    $region60: #{dqn_forward.1} parent=1 // pred_region
      %7503 = dma.done [#allocation5], 32
    $region61: #{dqn_forward.1} parent=1 // pred_fallthru
      _
    %7504 = vsyncpa [#allocation5], 1

</llo_original>
